<compile_context>
chip_gen: v7x
topology: tpu7x:2x2x1
jax: 0.10.0
libtpu: 0.0.40
codegen_flags: <defaults>
</compile_context>

<pallas_src>
import jax
import jax.numpy as jnp
from jax import lax
from jax.experimental import pallas as pl
from jax.experimental.pallas import tpu as pltpu


# ----------------------------------------------------------------------------
# Fused generator kernel: fc + 4 deconv layers, everything resident in VMEM.
# ----------------------------------------------------------------------------
def _generator_kernel(
    x_ref,      # (B, 256)        f32
    wfc_ref,    # (256, 6144)     bf16, columns ordered (p = h0*3 + w0, c)
    bfc_ref,    # (1, 6144)       f32, same column order
    w0_ref,     # (512, 1024)     bf16, cols = (s0 = kh*2+kw, cout=256)
    b0_ref,     # (1, 1024)       f32  (bias tiled over the 4 sub-positions)
    w1_ref,     # (256, 512)      bf16, cols = (s1, cout=128)
    b1_ref,     # (1, 512)        f32
    w2_ref,     # (128, 256)      bf16, cols = (s2, cout=64)
    b2_ref,     # (1, 256)        f32
    w3t_ref,    # (16, 256)       f32, block-diag: [s2*4+s3, s2*64+ci] = W3[ci,s3]
    b3_ref,     # (1, 1)          f32 (single output channel)
    out_ref,    # (16, 192*B)     f32, rows=(kh2,kw2,kh3,kw3), cols=(s1,s0,p,b)
    act0_ref,   # scratch (12*B, 512)  f32
    act1_ref,   # scratch (48*B, 256)  f32
    act2_ref,   # scratch (192*B, 128) f32
    act3_ref,   # scratch (192*B, 256) f32
):
    f32 = jnp.float32
    bf16 = jnp.bfloat16
    B = x_ref.shape[0]
    C0 = act0_ref.shape[1]              # 512
    n_pos = act0_ref.shape[0] // B      # 12 = 4*3 spatial positions after fc
    R0, R1 = act0_ref.shape[0], act1_ref.shape[0]
    C1, C2 = act1_ref.shape[1], act2_ref.shape[1]

    # ---- fc + ReLU ----------------------------------------------------------
    yfc = jnp.maximum(
        jnp.dot(x_ref[...].astype(bf16), wfc_ref[...], preferred_element_type=f32)
        + bfc_ref[...],
        0.0,
    )                                                           # (B, 6144)

    # Scatter to channels-last rows: act0[(p, b), c] = fc_out[b, (p, c)].
    # Lane slices are 512-aligned (whole vregs). The B-row sublane stores are
    # masked at B=2; raise B to a multiple of 8 to make them whole-vreg.
    for p in range(n_pos):
        act0_ref[p * B:(p + 1) * B, :] = yfc[:, p * C0:(p + 1) * C0]

    # ---- deconv0: 512 -> 256, ReLU (one wide matmul, 4 col->row scatters) ---
    y0 = jnp.maximum(
        jnp.dot(act0_ref[...].astype(bf16), w0_ref[...], preferred_element_type=f32)
        + b0_ref[...],
        0.0,
    )                                                           # (R0, 1024)
    for s in range(4):
        act1_ref[s * R0:(s + 1) * R0, :] = y0[:, s * C1:(s + 1) * C1]

    # ---- deconv1: 256 -> 128, ReLU -----------------------------------------
    y1 = jnp.maximum(
        jnp.dot(act1_ref[...].astype(bf16), w1_ref[...], preferred_element_type=f32)
        + b1_ref[...],
        0.0,
    )                                                           # (R1, 512)
    for s in range(4):
        act2_ref[s * R1:(s + 1) * R1, :] = y1[:, s * C2:(s + 1) * C2]

    # ---- deconv2: 128 -> 64, ReLU (all 4 sub-positions in one matmul) -------
    act3_ref[...] = jnp.maximum(
        jnp.dot(act2_ref[...].astype(bf16), w2_ref[...], preferred_element_type=f32)
        + b2_ref[...],
        0.0,
    )                                                           # (R2, 256)

    # ---- deconv3 (64 -> 1, 2x2) + Tanh, computed transposed -----------------
    # z[s2*4 + s3, r] = sum_ci act3[r, s2*64 + ci] * W3[ci, s3]
    # Transposed orientation makes the kernel output lane-dense (192*B cols,
    # a multiple of 128) so the final store and tanh use full-lane vregs.
    z = lax.dot_general(
        w3t_ref[...], act3_ref[...],
        dimension_numbers=(((1,), (1,)), ((), ())),
        preferred_element_type=f32,
    )                                                           # (16, 192*B)
    out_ref[...] = jnp.tanh(z + b3_ref[...])


# ----------------------------------------------------------------------------
# Wrapper: single pallas_call + one tiny layout fix-up in plain JAX.
# ----------------------------------------------------------------------------
def generator_forward(x, kparams):
    """x: (B, 256) f32 -> (B, 1, 64, 48) f32 (NCHW, like PyTorch)."""
    B = x.shape[0]
    R2 = 192 * B  # rows of act2/act3 = 16*12 pixels * B

    # Advisory cost hint so XLA can overlap neighbours around the short kernel.
    flops = 2 * B * (256 * 6144 + 12 * 512 * 1024 + 48 * 256 * 512
                     + 192 * 128 * 256 + 192 * 256 * 16)
    bytes_accessed = (
        2 * (256 * 6144 + 512 * 1024 + 256 * 512 + 128 * 256)   # bf16 weights
        + 4 * (16 * 256 + 6144 + 1024 + 512 + 256 + 1)          # f32 w3t + biases
        + 4 * B * 256 + 4 * 16 * R2                              # input + output
    )

    out_k = pl.pallas_call(
        _generator_kernel,
        out_shape=jax.ShapeDtypeStruct((16, R2), jnp.float32),
        scratch_shapes=[
            pltpu.VMEM((12 * B, 512), jnp.float32),   # act0 (4x3 pixels)
            pltpu.VMEM((48 * B, 256), jnp.float32),   # act1 (8x6 pixels)
            pltpu.VMEM((192 * B, 128), jnp.float32),  # act2 (16x12 pixels)
            pltpu.VMEM((192 * B, 256), jnp.float32),  # act3 (deconv2 out, 4 sub-pos)
        ],
        compiler_params=pltpu.CompilerParams(
            # ~5.5 MB actually used at B=2 with bf16 weights; 16 MiB leaves
            # headroom and fits every generation's scoped default. Raise for
            # large B (scratch grows ~0.4 MB per sample).
            vmem_limit_bytes=16 * 1024 * 1024,
        ),
        cost_estimate=pl.CostEstimate(
            flops=flops, transcendentals=16 * R2, bytes_accessed=bytes_accessed),
    )(
        x,
        kparams["fc_w"], kparams["fc_b"],
        kparams["w0"], kparams["b0"],
        kparams["w1"], kparams["b1"],
        kparams["w2"], kparams["b2"],
        kparams["w3t"], kparams["b3"],
    )

    # Undo the kernel's row/column ordering (one ~25 KB transpose in XLA):
    #   rows = (kh2, kw2, kh3, kw3), cols = (kh1, kw1, kh0, kw0, h0, w0, b)
    #   H = 16*h0 + 8*kh0 + 4*kh1 + 2*kh2 + kh3 ;  W likewise with w/kw.
    o = out_k.reshape(2, 2, 2, 2, 2, 2, 2, 2, 4, 3, B)
    o = o.transpose(10, 8, 6, 4, 0, 2, 9, 7, 5, 1, 3)
    return o.reshape(B, 1, 64, 48)


# ----------------------------------------------------------------------------
# Parameters: PyTorch-layout init + one-time re-layout for the fused kernel.
# ----------------------------------------------------------------------------
def init_torch_params(key):
    """Deterministic synthetic weights in PyTorch-equivalent layouts."""
    p = {}
    k_fc, kb_fc, k0, k1, k2, k3 = jax.random.split(key, 6)
    # Linear(256, 6144) stored pre-transposed (in, out); out col = c*12 + h*3 + w
    p["fc_w"] = 0.05 * jax.random.normal(k_fc, (256, 6144), jnp.float32)
    p["fc_b"] = 0.01 * jax.random.normal(kb_fc, (6144,), jnp.float32)
    chans = [512, 256, 128, 64, 1]
    for i, k in enumerate((k0, k1, k2, k3)):
        cin, cout = chans[i], chans[i + 1]
        kw_, kb_ = jax.random.split(k)
        # ConvTranspose2d weight layout: (Cin, Cout, kH, kW)
        p[f"deconv{i}_w"] = 0.05 * jax.random.normal(kw_, (cin, cout, 2, 2), jnp.float32)
        p[f"deconv{i}_b"] = 0.01 * jax.random.normal(kb_, (cout,), jnp.float32)
    return p


def prep_kernel_params(tp):
    """One-time re-layout (and bf16 cast) of PyTorch-style weights."""
    bf16 = jnp.bfloat16
    kp = {}
    # fc columns: (c, h, w) -> (h, w, c) so the kernel slices per spatial pixel.
    kp["fc_w"] = (tp["fc_w"].reshape(256, 512, 4, 3)
                  .transpose(0, 2, 3, 1).reshape(256, 12 * 512)).astype(bf16)
    kp["fc_b"] = (tp["fc_b"].reshape(512, 4, 3)
                  .transpose(1, 2, 0).reshape(1, 12 * 512))
    chans = [512, 256, 128, 64, 1]
    for i in range(3):
        cin, cout = chans[i], chans[i + 1]
        # (Cin, Cout, 2, 2) -> (Cin, kh, kw, Cout) -> (Cin, 4*Cout); col = s*Cout+co
        kp[f"w{i}"] = (tp[f"deconv{i}_w"].transpose(0, 2, 3, 1)
                       .reshape(cin, 4 * cout)).astype(bf16)
        kp[f"b{i}"] = jnp.tile(tp[f"deconv{i}_b"], 4).reshape(1, 4 * cout)
    # Last layer (Cout=1): block-diagonal transposed weight (16, 256), f32.
    #   w3t[s2*4 + s3, s2*64 + ci] = W3[ci, 0, kh3, kw3]
    w3 = tp["deconv3_w"].reshape(64, 4)            # (ci, s3)
    w3t = jnp.zeros((16, 256), jnp.float32)
    for s2 in range(4):
        w3t = w3t.at[s2 * 4:(s2 + 1) * 4, s2 * 64:(s2 + 1) * 64].set(w3.T)
    kp["w3t"] = w3t
    kp["b3"] = tp["deconv3_b"].reshape(1, 1)
    return kp


# ----------------------------------------------------------------------------
# Pure-JAX f32 reference with PyTorch semantics (for the correctness check).
# ----------------------------------------------------------------------------
def generator_ref(x, tp):
    B = x.shape[0]
    h = jnp.maximum(x @ tp["fc_w"] + tp["fc_b"], 0.0).reshape(B, 512, 4, 3)
    chans = [512, 256, 128, 64, 1]
    acts = ["relu", "relu", "relu", "tanh"]
    H, W = 4, 3
    for i in range(4):
        w = tp[f"deconv{i}_w"]
        b = tp[f"deconv{i}_b"]
        # out[b,o,2h+kh,2w+kw] = bias[o] + sum_i in[b,i,h,w] * W[i,o,kl]
        y = jnp.einsum("bihw,iokl->bohkwl", h, w)
        y = y.reshape(B, chans[i + 1], 2 * H, 2 * W) + b.reshape(1, -1, 1, 1)
        h = jnp.maximum(y, 0.0) if acts[i] == "relu" else jnp.tanh(y)
        H, W = 2 * H, 2 * W
    return h


if __name__ == "__main__":
    key = jax.random.PRNGKey(0)
    k_param, k_in = jax.random.split(key)

    torch_params = init_torch_params(k_param)
    kernel_params = prep_kernel_params(torch_params)
    x = jax.random.normal(k_in, (2, 256), jnp.float32)  # batch=2, latent=256

    fwd = jax.jit(generator_forward)
    out = jax.block_until_ready(fwd(x, kernel_params))
    assert out.shape == (2, 1, 64, 48), out.shape

    ref = jax.block_until_ready(generator_ref(x, torch_params))
    max_err = float(jnp.max(jnp.abs(out - ref)))
    scale = float(jnp.max(jnp.abs(ref)))
    # bf16 weights / bf16 matmul inputs (f32 accumulation) -> relative tolerance.
    assert max_err <= 5e-2 * scale + 1e-4, (max_err, scale)

    print("KERNEL_OK")
</pallas_src>

<mosaic_0001>
module attributes {stable_mosaic.version = 11 : i64} {
  func.func @_generator_kernel(%arg0: memref<2x256xf32, #tpu.memory_space<vmem>>, %arg1: memref<256x6144xbf16, #tpu.memory_space<vmem>>, %arg2: memref<1x6144xf32, #tpu.memory_space<vmem>>, %arg3: memref<512x1024xbf16, #tpu.memory_space<vmem>>, %arg4: memref<1x1024xf32, #tpu.memory_space<vmem>>, %arg5: memref<256x512xbf16, #tpu.memory_space<vmem>>, %arg6: memref<1x512xf32, #tpu.memory_space<vmem>>, %arg7: memref<128x256xbf16, #tpu.memory_space<vmem>>, %arg8: memref<1x256xf32, #tpu.memory_space<vmem>>, %arg9: memref<16x256xf32, #tpu.memory_space<vmem>>, %arg10: memref<1x1xf32, #tpu.memory_space<vmem>>, %arg11: memref<16x384xf32, #tpu.memory_space<vmem>>, %arg12: memref<24x512xf32, #tpu.memory_space<vmem>>, %arg13: memref<96x256xf32, #tpu.memory_space<vmem>>, %arg14: memref<384x128xf32, #tpu.memory_space<vmem>>, %arg15: memref<384x256xf32, #tpu.memory_space<vmem>>) attributes {dimension_semantics = [], scalar_prefetch = 0 : i64, scratch_operands = 4 : i64, tpu.core_type = #tpu.core_type<tc>} {
    %c0 = arith.constant 0 : index
    %c0_0 = arith.constant 0 : index
    %0 = vector.load %arg0[%c0, %c0_0] : memref<2x256xf32, #tpu.memory_space<vmem>>, vector<2x256xf32>
    %1 = arith.truncf %0 : vector<2x256xf32> to vector<2x256xbf16>
    %c0_1 = arith.constant 0 : index
    %c0_2 = arith.constant 0 : index
    %2 = vector.load %arg1[%c0_1, %c0_2] : memref<256x6144xbf16, #tpu.memory_space<vmem>>, vector<256x6144xbf16>
    %cst = arith.constant dense<0.000000e+00> : vector<2x6144xf32>
    %3 = tpu.matmul %1, %2, %cst {dimension_numbers = #tpu.dot_dimension_numbers<[1], [0], [0], [1], [0, 0, 1, 1], [], []>} : vector<2x256xbf16>, vector<256x6144xbf16>, vector<2x6144xf32> -> vector<2x6144xf32>
    %c0_3 = arith.constant 0 : index
    %c0_4 = arith.constant 0 : index
    %4 = vector.load %arg2[%c0_3, %c0_4] : memref<1x6144xf32, #tpu.memory_space<vmem>>, vector<1x6144xf32>
    %5 = vector.broadcast %4 : vector<1x6144xf32> to vector<2x6144xf32>
    %6 = arith.addf %3, %5 : vector<2x6144xf32>
    %cst_5 = arith.constant 0.000000e+00 : f32
    %7 = vector.broadcast %cst_5 : f32 to vector<2x6144xf32>
    %8 = arith.maximumf %6, %7 : vector<2x6144xf32>
    %9 = vector.extract_strided_slice %8 {offsets = [0, 0], sizes = [2, 512], strides = [1, 1]} : vector<2x6144xf32> to vector<2x512xf32>
    %c0_6 = arith.constant 0 : index
    %c0_7 = arith.constant 0 : index
    %10 = vector.load %arg12[%c0_6, %c0_7] : memref<24x512xf32, #tpu.memory_space<vmem>>, vector<2x512xf32>
    tpu.vector_store %arg12[%c0_6, %c0_7], %9 {strides = array<i32>} : memref<24x512xf32, #tpu.memory_space<vmem>>, vector<2x512xf32>,
    %11 = vector.extract_strided_slice %8 {offsets = [0, 512], sizes = [2, 512], strides = [1, 1]} : vector<2x6144xf32> to vector<2x512xf32>
    %c2 = arith.constant 2 : index
    %c0_8 = arith.constant 0 : index
    %12 = vector.load %arg12[%c2, %c0_8] : memref<24x512xf32, #tpu.memory_space<vmem>>, vector<2x512xf32>
    tpu.vector_store %arg12[%c2, %c0_8], %11 {strides = array<i32>} : memref<24x512xf32, #tpu.memory_space<vmem>>, vector<2x512xf32>,
    %13 = vector.extract_strided_slice %8 {offsets = [0, 1024], sizes = [2, 512], strides = [1, 1]} : vector<2x6144xf32> to vector<2x512xf32>
    %c4 = arith.constant 4 : index
    %c0_9 = arith.constant 0 : index
    %14 = vector.load %arg12[%c4, %c0_9] : memref<24x512xf32, #tpu.memory_space<vmem>>, vector<2x512xf32>
    tpu.vector_store %arg12[%c4, %c0_9], %13 {strides = array<i32>} : memref<24x512xf32, #tpu.memory_space<vmem>>, vector<2x512xf32>,
    %15 = vector.extract_strided_slice %8 {offsets = [0, 1536], sizes = [2, 512], strides = [1, 1]} : vector<2x6144xf32> to vector<2x512xf32>
    %c6 = arith.constant 6 : index
    %c0_10 = arith.constant 0 : index
    %16 = vector.load %arg12[%c6, %c0_10] : memref<24x512xf32, #tpu.memory_space<vmem>>, vector<2x512xf32>
    tpu.vector_store %arg12[%c6, %c0_10], %15 {strides = array<i32>} : memref<24x512xf32, #tpu.memory_space<vmem>>, vector<2x512xf32>,
    %17 = vector.extract_strided_slice %8 {offsets = [0, 2048], sizes = [2, 512], strides = [1, 1]} : vector<2x6144xf32> to vector<2x512xf32>
    %c8 = arith.constant 8 : index
    %c0_11 = arith.constant 0 : index
    %18 = vector.load %arg12[%c8, %c0_11] : memref<24x512xf32, #tpu.memory_space<vmem>>, vector<2x512xf32>
    tpu.vector_store %arg12[%c8, %c0_11], %17 {strides = array<i32>} : memref<24x512xf32, #tpu.memory_space<vmem>>, vector<2x512xf32>,
    %19 = vector.extract_strided_slice %8 {offsets = [0, 2560], sizes = [2, 512], strides = [1, 1]} : vector<2x6144xf32> to vector<2x512xf32>
    %c10 = arith.constant 10 : index
    %c0_12 = arith.constant 0 : index
    %20 = vector.load %arg12[%c10, %c0_12] : memref<24x512xf32, #tpu.memory_space<vmem>>, vector<2x512xf32>
    tpu.vector_store %arg12[%c10, %c0_12], %19 {strides = array<i32>} : memref<24x512xf32, #tpu.memory_space<vmem>>, vector<2x512xf32>,
    %21 = vector.extract_strided_slice %8 {offsets = [0, 3072], sizes = [2, 512], strides = [1, 1]} : vector<2x6144xf32> to vector<2x512xf32>
    %c12 = arith.constant 12 : index
    %c0_13 = arith.constant 0 : index
    %22 = vector.load %arg12[%c12, %c0_13] : memref<24x512xf32, #tpu.memory_space<vmem>>, vector<2x512xf32>
    tpu.vector_store %arg12[%c12, %c0_13], %21 {strides = array<i32>} : memref<24x512xf32, #tpu.memory_space<vmem>>, vector<2x512xf32>,
    %23 = vector.extract_strided_slice %8 {offsets = [0, 3584], sizes = [2, 512], strides = [1, 1]} : vector<2x6144xf32> to vector<2x512xf32>
    %c14 = arith.constant 14 : index
    %c0_14 = arith.constant 0 : index
    %24 = vector.load %arg12[%c14, %c0_14] : memref<24x512xf32, #tpu.memory_space<vmem>>, vector<2x512xf32>
    tpu.vector_store %arg12[%c14, %c0_14], %23 {strides = array<i32>} : memref<24x512xf32, #tpu.memory_space<vmem>>, vector<2x512xf32>,
    %25 = vector.extract_strided_slice %8 {offsets = [0, 4096], sizes = [2, 512], strides = [1, 1]} : vector<2x6144xf32> to vector<2x512xf32>
    %c16 = arith.constant 16 : index
    %c0_15 = arith.constant 0 : index
    %26 = vector.load %arg12[%c16, %c0_15] : memref<24x512xf32, #tpu.memory_space<vmem>>, vector<2x512xf32>
    tpu.vector_store %arg12[%c16, %c0_15], %25 {strides = array<i32>} : memref<24x512xf32, #tpu.memory_space<vmem>>, vector<2x512xf32>,
    %27 = vector.extract_strided_slice %8 {offsets = [0, 4608], sizes = [2, 512], strides = [1, 1]} : vector<2x6144xf32> to vector<2x512xf32>
    %c18 = arith.constant 18 : index
    %c0_16 = arith.constant 0 : index
    %28 = vector.load %arg12[%c18, %c0_16] : memref<24x512xf32, #tpu.memory_space<vmem>>, vector<2x512xf32>
    tpu.vector_store %arg12[%c18, %c0_16], %27 {strides = array<i32>} : memref<24x512xf32, #tpu.memory_space<vmem>>, vector<2x512xf32>,
    %29 = vector.extract_strided_slice %8 {offsets = [0, 5120], sizes = [2, 512], strides = [1, 1]} : vector<2x6144xf32> to vector<2x512xf32>
    %c20 = arith.constant 20 : index
    %c0_17 = arith.constant 0 : index
    %30 = vector.load %arg12[%c20, %c0_17] : memref<24x512xf32, #tpu.memory_space<vmem>>, vector<2x512xf32>
    tpu.vector_store %arg12[%c20, %c0_17], %29 {strides = array<i32>} : memref<24x512xf32, #tpu.memory_space<vmem>>, vector<2x512xf32>,
    %31 = vector.extract_strided_slice %8 {offsets = [0, 5632], sizes = [2, 512], strides = [1, 1]} : vector<2x6144xf32> to vector<2x512xf32>
    %c22 = arith.constant 22 : index
    %c0_18 = arith.constant 0 : index
    %32 = vector.load %arg12[%c22, %c0_18] : memref<24x512xf32, #tpu.memory_space<vmem>>, vector<2x512xf32>
    tpu.vector_store %arg12[%c22, %c0_18], %31 {strides = array<i32>} : memref<24x512xf32, #tpu.memory_space<vmem>>, vector<2x512xf32>,
    %c0_19 = arith.constant 0 : index
    %c0_20 = arith.constant 0 : index
    %33 = vector.load %arg12[%c0_19, %c0_20] : memref<24x512xf32, #tpu.memory_space<vmem>>, vector<24x512xf32>
    %34 = arith.truncf %33 : vector<24x512xf32> to vector<24x512xbf16>
    %c0_21 = arith.constant 0 : index
    %c0_22 = arith.constant 0 : index
    %35 = vector.load %arg3[%c0_21, %c0_22] : memref<512x1024xbf16, #tpu.memory_space<vmem>>, vector<512x1024xbf16>
    %cst_23 = arith.constant dense<0.000000e+00> : vector<24x1024xf32>
    %36 = tpu.matmul %34, %35, %cst_23 {dimension_numbers = #tpu.dot_dimension_numbers<[1], [0], [0], [1], [0, 0, 1, 1], [], []>} : vector<24x512xbf16>, vector<512x1024xbf16>, vector<24x1024xf32> -> vector<24x1024xf32>
    %c0_24 = arith.constant 0 : index
    %c0_25 = arith.constant 0 : index
    %37 = vector.load %arg4[%c0_24, %c0_25] : memref<1x1024xf32, #tpu.memory_space<vmem>>, vector<1x1024xf32>
    %38 = vector.broadcast %37 : vector<1x1024xf32> to vector<24x1024xf32>
    %39 = arith.addf %36, %38 : vector<24x1024xf32>
    %cst_26 = arith.constant 0.000000e+00 : f32
    %40 = vector.broadcast %cst_26 : f32 to vector<24x1024xf32>
    %41 = arith.maximumf %39, %40 : vector<24x1024xf32>
    %42 = vector.extract_strided_slice %41 {offsets = [0, 0], sizes = [24, 256], strides = [1, 1]} : vector<24x1024xf32> to vector<24x256xf32>
    %c0_27 = arith.constant 0 : index
    %c0_28 = arith.constant 0 : index
    %43 = vector.load %arg13[%c0_27, %c0_28] : memref<96x256xf32, #tpu.memory_space<vmem>>, vector<24x256xf32>
    tpu.vector_store %arg13[%c0_27, %c0_28], %42 {strides = array<i32>} : memref<96x256xf32, #tpu.memory_space<vmem>>, vector<24x256xf32>,
    %44 = vector.extract_strided_slice %41 {offsets = [0, 256], sizes = [24, 256], strides = [1, 1]} : vector<24x1024xf32> to vector<24x256xf32>
    %c24 = arith.constant 24 : index
    %c0_29 = arith.constant 0 : index
    %45 = vector.load %arg13[%c24, %c0_29] : memref<96x256xf32, #tpu.memory_space<vmem>>, vector<24x256xf32>
    tpu.vector_store %arg13[%c24, %c0_29], %44 {strides = array<i32>} : memref<96x256xf32, #tpu.memory_space<vmem>>, vector<24x256xf32>,
    %46 = vector.extract_strided_slice %41 {offsets = [0, 512], sizes = [24, 256], strides = [1, 1]} : vector<24x1024xf32> to vector<24x256xf32>
    %c48 = arith.constant 48 : index
    %c0_30 = arith.constant 0 : index
    %47 = vector.load %arg13[%c48, %c0_30] : memref<96x256xf32, #tpu.memory_space<vmem>>, vector<24x256xf32>
    tpu.vector_store %arg13[%c48, %c0_30], %46 {strides = array<i32>} : memref<96x256xf32, #tpu.memory_space<vmem>>, vector<24x256xf32>,
    %48 = vector.extract_strided_slice %41 {offsets = [0, 768], sizes = [24, 256], strides = [1, 1]} : vector<24x1024xf32> to vector<24x256xf32>
    %c72 = arith.constant 72 : index
    %c0_31 = arith.constant 0 : index
    %49 = vector.load %arg13[%c72, %c0_31] : memref<96x256xf32, #tpu.memory_space<vmem>>, vector<24x256xf32>
    tpu.vector_store %arg13[%c72, %c0_31], %48 {strides = array<i32>} : memref<96x256xf32, #tpu.memory_space<vmem>>, vector<24x256xf32>,
    %c0_32 = arith.constant 0 : index
    %c0_33 = arith.constant 0 : index
    %50 = vector.load %arg13[%c0_32, %c0_33] : memref<96x256xf32, #tpu.memory_space<vmem>>, vector<96x256xf32>
    %51 = arith.truncf %50 : vector<96x256xf32> to vector<96x256xbf16>
    %c0_34 = arith.constant 0 : index
    %c0_35 = arith.constant 0 : index
    %52 = vector.load %arg5[%c0_34, %c0_35] : memref<256x512xbf16, #tpu.memory_space<vmem>>, vector<256x512xbf16>
    %cst_36 = arith.constant dense<0.000000e+00> : vector<96x512xf32>
    %53 = tpu.matmul %51, %52, %cst_36 {dimension_numbers = #tpu.dot_dimension_numbers<[1], [0], [0], [1], [0, 0, 1, 1], [], []>} : vector<96x256xbf16>, vector<256x512xbf16>, vector<96x512xf32> -> vector<96x512xf32>
    %c0_37 = arith.constant 0 : index
    %c0_38 = arith.constant 0 : index
    %54 = vector.load %arg6[%c0_37, %c0_38] : memref<1x512xf32, #tpu.memory_space<vmem>>, vector<1x512xf32>
    %55 = vector.broadcast %54 : vector<1x512xf32> to vector<96x512xf32>
    %56 = arith.addf %53, %55 : vector<96x512xf32>
    %cst_39 = arith.constant 0.000000e+00 : f32
    %57 = vector.broadcast %cst_39 : f32 to vector<96x512xf32>
    %58 = arith.maximumf %56, %57 : vector<96x512xf32>
    %59 = vector.extract_strided_slice %58 {offsets = [0, 0], sizes = [96, 128], strides = [1, 1]} : vector<96x512xf32> to vector<96x128xf32>
    %c0_40 = arith.constant 0 : index
    %c0_41 = arith.constant 0 : index
    %60 = vector.load %arg14[%c0_40, %c0_41] : memref<384x128xf32, #tpu.memory_space<vmem>>, vector<96x128xf32>
    tpu.vector_store %arg14[%c0_40, %c0_41], %59 {strides = array<i32>} : memref<384x128xf32, #tpu.memory_space<vmem>>, vector<96x128xf32>,
    %61 = vector.extract_strided_slice %58 {offsets = [0, 128], sizes = [96, 128], strides = [1, 1]} : vector<96x512xf32> to vector<96x128xf32>
    %c96 = arith.constant 96 : index
    %c0_42 = arith.constant 0 : index
    %62 = vector.load %arg14[%c96, %c0_42] : memref<384x128xf32, #tpu.memory_space<vmem>>, vector<96x128xf32>
    tpu.vector_store %arg14[%c96, %c0_42], %61 {strides = array<i32>} : memref<384x128xf32, #tpu.memory_space<vmem>>, vector<96x128xf32>,
    %63 = vector.extract_strided_slice %58 {offsets = [0, 256], sizes = [96, 128], strides = [1, 1]} : vector<96x512xf32> to vector<96x128xf32>
    %c192 = arith.constant 192 : index
    %c0_43 = arith.constant 0 : index
    %64 = vector.load %arg14[%c192, %c0_43] : memref<384x128xf32, #tpu.memory_space<vmem>>, vector<96x128xf32>
    tpu.vector_store %arg14[%c192, %c0_43], %63 {strides = array<i32>} : memref<384x128xf32, #tpu.memory_space<vmem>>, vector<96x128xf32>,
    %65 = vector.extract_strided_slice %58 {offsets = [0, 384], sizes = [96, 128], strides = [1, 1]} : vector<96x512xf32> to vector<96x128xf32>
    %c288 = arith.constant 288 : index
    %c0_44 = arith.constant 0 : index
    %66 = vector.load %arg14[%c288, %c0_44] : memref<384x128xf32, #tpu.memory_space<vmem>>, vector<96x128xf32>
    tpu.vector_store %arg14[%c288, %c0_44], %65 {strides = array<i32>} : memref<384x128xf32, #tpu.memory_space<vmem>>, vector<96x128xf32>,
    %c0_45 = arith.constant 0 : index
    %c0_46 = arith.constant 0 : index
    %67 = vector.load %arg14[%c0_45, %c0_46] : memref<384x128xf32, #tpu.memory_space<vmem>>, vector<384x128xf32>
    %68 = arith.truncf %67 : vector<384x128xf32> to vector<384x128xbf16>
    %c0_47 = arith.constant 0 : index
    %c0_48 = arith.constant 0 : index
    %69 = vector.load %arg7[%c0_47, %c0_48] : memref<128x256xbf16, #tpu.memory_space<vmem>>, vector<128x256xbf16>
    %cst_49 = arith.constant dense<0.000000e+00> : vector<384x256xf32>
    %70 = tpu.matmul %68, %69, %cst_49 {dimension_numbers = #tpu.dot_dimension_numbers<[1], [0], [0], [1], [0, 0, 1, 1], [], []>} : vector<384x128xbf16>, vector<128x256xbf16>, vector<384x256xf32> -> vector<384x256xf32>
    %c0_50 = arith.constant 0 : index
    %c0_51 = arith.constant 0 : index
    %71 = vector.load %arg8[%c0_50, %c0_51] : memref<1x256xf32, #tpu.memory_space<vmem>>, vector<1x256xf32>
    %72 = vector.broadcast %71 : vector<1x256xf32> to vector<384x256xf32>
    %73 = arith.addf %70, %72 : vector<384x256xf32>
    %cst_52 = arith.constant 0.000000e+00 : f32
    %74 = vector.broadcast %cst_52 : f32 to vector<384x256xf32>
    %75 = arith.maximumf %73, %74 : vector<384x256xf32>
    %c0_53 = arith.constant 0 : index
    %c0_54 = arith.constant 0 : index
    %76 = vector.load %arg15[%c0_53, %c0_54] : memref<384x256xf32, #tpu.memory_space<vmem>>, vector<384x256xf32>
    tpu.vector_store %arg15[%c0_53, %c0_54], %75 {strides = array<i32>} : memref<384x256xf32, #tpu.memory_space<vmem>>, vector<384x256xf32>,
    %c0_55 = arith.constant 0 : index
    %c0_56 = arith.constant 0 : index
    %77 = vector.load %arg9[%c0_55, %c0_56] : memref<16x256xf32, #tpu.memory_space<vmem>>, vector<16x256xf32>
    %c0_57 = arith.constant 0 : index
    %c0_58 = arith.constant 0 : index
    %78 = vector.load %arg15[%c0_57, %c0_58] : memref<384x256xf32, #tpu.memory_space<vmem>>, vector<384x256xf32>
    %cst_59 = arith.constant dense<0.000000e+00> : vector<16x384xf32>
    %79 = tpu.matmul %77, %78, %cst_59 {dimension_numbers = #tpu.dot_dimension_numbers<[1], [1], [0], [0], [0, 0, 1, 0], [], []>} : vector<16x256xf32>, vector<384x256xf32>, vector<16x384xf32> -> vector<16x384xf32>
    %c0_60 = arith.constant 0 : index
    %c0_61 = arith.constant 0 : index
    %80 = vector.load %arg10[%c0_60, %c0_61] : memref<1x1xf32, #tpu.memory_space<vmem>>, vector<1x1xf32>
    %81 = vector.broadcast %80 : vector<1x1xf32> to vector<16x384xf32>
    %82 = arith.addf %79, %81 : vector<16x384xf32>
    %83 = math.tanh %82 : vector<16x384xf32>
    %c0_62 = arith.constant 0 : index
    %c0_63 = arith.constant 0 : index
    %84 = vector.load %arg11[%c0_62, %c0_63] : memref<16x384xf32, #tpu.memory_space<vmem>>, vector<16x384xf32>
    tpu.vector_store %arg11[%c0_62, %c0_63], %83 {strides = array<i32>} : memref<16x384xf32, #tpu.memory_space<vmem>>, vector<16x384xf32>,
    return
  }
}

</mosaic_0001>

<llo_original>
// kernel: generator_forward.1
$region0: #{generator_forward.1}
  #allocation0 [shape = 'u32[]', space=smem, size = 0x4, offset = 0x4, fixed_abs, tag = 'smem constant byte address 0x4 - core index']
  #allocation1 [shape = 'u32[144,128]{1,0:T(1,128)}', space=vmem, size = 0x12000, scoped, tag = 'internal scratch']
  #allocation2 [shape = 'f32[24,512]{1,0:T(8,128)}', space=vmem, size = 0xc000, scoped, tag = 'scratch operand']
  #allocation3 [shape = 'f32[96,256]{1,0:T(8,128)}', space=vmem, size = 0x18000, scoped, tag = 'scratch operand']
  #allocation4 [shape = 'f32[384,128]{1,0:T(8,128)}', space=vmem, size = 0x30000, scoped, tag = 'scratch operand']
  #allocation5 [shape = 'f32[384,256]{1,0:T(8,128)}', space=vmem, size = 0x60000, scoped, tag = 'scratch operand']
  #allocation6 [shape = 'f32[1,1]{1,0:T(1,128)S(1)}', space=vmem, size = 0x200, scoped, tag = 'scoped memory for generator_forward.1']
  %s0 = inlined_call_operand.hbm [shape: f32[2,256], index: 0, kind: input, shape index: {}]
  %s1 = inlined_call_operand.hbm [shape: bf16[256,6144], index: 1, kind: input, shape index: {}]
  %s2 = inlined_call_operand.hbm [shape: f32[1,6144], index: 2, kind: input, shape index: {}]
  %s3 = inlined_call_operand.hbm [shape: bf16[512,1024], index: 3, kind: input, shape index: {}]
  %s4 = inlined_call_operand.hbm [shape: f32[1,1024], index: 4, kind: input, shape index: {}]
  %s5 = inlined_call_operand.hbm [shape: bf16[256,512], index: 5, kind: input, shape index: {}]
  %s6 = inlined_call_operand.hbm [shape: f32[1,512], index: 6, kind: input, shape index: {}]
  %s7 = inlined_call_operand.hbm [shape: bf16[128,256], index: 7, kind: input, shape index: {}]
  %s8 = inlined_call_operand.hbm [shape: f32[1,256], index: 8, kind: input, shape index: {}]
  %s9 = inlined_call_operand.hbm [shape: f32[16,256], index: 9, kind: input, shape index: {}]
  %s10 = inlined_call_operand.<no memory space> [shape: f32[1,1], index: 10, kind: input, shape index: {}]
  %s11 = inlined_call_operand.vmem [shape: f32[16,384], index: 11, kind: output, shape index: {}]
  %s12 = sld [smem:[#allocation0]]
  $region94: #{generator_forward.1} parent=0
    _
  %s14 = ssub.s32 1, %s12
  %s15 = scalar_select 0, %s14, %s12
  %v16 = vstv %s10
  %17 = vst [vmem:[#allocation6] sm:$0x1] %v16
  $region1: #{generator_forward.1} parent=0
    #allocation7 [shape = 'u8[2048]{0}', space=vmem, size = 0x800, scoped, tag = 'input window, operand 0, single buffered']
    #allocation8 [shape = 's32[1]{0}', space=sflag, size = 0x4, scoped, tag = 'scoped memory for generator_forward.1']
    #allocation9 [shape = 'u8[3145728]{0}', space=vmem, size = 0x300000, scoped, tag = 'input window, operand 1, single buffered']
    #allocation10 [shape = 's32[1]{0}', space=sflag, size = 0x4, scoped, tag = 'scoped memory for generator_forward.1']
    #allocation11 [shape = 'u8[24576]{0}', space=vmem, size = 0x6000, scoped, tag = 'input window, operand 2, single buffered']
    #allocation12 [shape = 'u8[1048576]{0}', space=vmem, size = 0x100000, scoped, tag = 'input window, operand 3, single buffered']
    #allocation13 [shape = 's32[1]{0}', space=sflag, size = 0x4, scoped, tag = 'scoped memory for generator_forward.1']
    #allocation14 [shape = 'u8[4096]{0}', space=vmem, size = 0x1000, scoped, tag = 'input window, operand 4, single buffered']
    #allocation15 [shape = 'u8[262144]{0}', space=vmem, size = 0x40000, scoped, tag = 'input window, operand 5, single buffered']
    #allocation16 [shape = 's32[1]{0}', space=sflag, size = 0x4, scoped, tag = 'scoped memory for generator_forward.1']
    #allocation17 [shape = 'u8[2048]{0}', space=vmem, size = 0x800, scoped, tag = 'input window, operand 6, single buffered']
    #allocation18 [shape = 'u8[65536]{0}', space=vmem, size = 0x10000, scoped, tag = 'input window, operand 7, single buffered']
    #allocation19 [shape = 's32[1]{0}', space=sflag, size = 0x4, scoped, tag = 'scoped memory for generator_forward.1']
    #allocation20 [shape = 'u8[1024]{0}', space=vmem, size = 0x400, scoped, tag = 'input window, operand 8, single buffered']
    #allocation21 [shape = 'u8[16384]{0}', space=vmem, size = 0x4000, scoped, tag = 'input window, operand 9, single buffered']
    #allocation22 [shape = 's32[1]{0}', space=sflag, size = 0x4, scoped, tag = 'scoped memory for generator_forward.1']
    %18 = vsyncpa [#allocation8], 0
    %19 = vsyncpa [#allocation10], 0
    %20 = vsyncpa [#allocation13], 0
    %21 = vsyncpa [#allocation16], 0
    %22 = vsyncpa [#allocation19], 0
    %23 = vsyncpa [#allocation22], 0
    // Predicated region
    $region2: #{generator_forward.1} parent=1 // pred_check
      _
    $region3: #{generator_forward.1} parent=1 // pred_check_branch
      %25 = sbr.rel (0) target = $region5
    $region4: #{generator_forward.1} parent=1 // pred_region
      %s27 = ssub.s32 64, 64
      %28 = vsyncadd [#allocation8], %s27
      %s30 = sshll.u32 [#allocation7], 4
      %s31 = int_to_ptr.vmem [resolvable:$true] %s30
      %33 = dma.hbm_to_vmem [thread:$0]  %s0, 64, %s31, [#allocation8]
    $region5: #{generator_forward.1} parent=1 // pred_fallthru
      _
    // Predicated region
    $region6: #{generator_forward.1} parent=1 // pred_check
      _
    $region7: #{generator_forward.1} parent=1 // pred_check_branch
      %35 = sbr.rel (0) target = $region9
    $region8: #{generator_forward.1} parent=1 // pred_region
      %s37 = ssub.s32 98304, 98304
      %38 = vsyncadd [#allocation10], %s37
      %s39 = sshll.u32 [#allocation9], 4
      %s40 = int_to_ptr.vmem [resolvable:$true] %s39
      %45 = dma.hbm_to_vmem [thread:$0]  %s1, 98304, %s40, [#allocation10], 3072, 3072, 192
    $region9: #{generator_forward.1} parent=1 // pred_fallthru
      _
    // Predicated region
    $region10: #{generator_forward.1} parent=1 // pred_check
      _
    $region11: #{generator_forward.1} parent=1 // pred_check_branch
      %47 = sbr.rel (0) target = $region13
    $region12: #{generator_forward.1} parent=1 // pred_region
      %s49 = ssub.s32 768, 768
      %50 = vsyncadd [#allocation10], %s49
      %s52 = sshll.u32 [#allocation11], 4
      %s53 = int_to_ptr.vmem [resolvable:$true] %s52
      %55 = dma.hbm_to_vmem [thread:$0]  %s2, 768, %s53, [#allocation10]
    $region13: #{generator_forward.1} parent=1 // pred_fallthru
      _
    // Predicated region
    $region14: #{generator_forward.1} parent=1 // pred_check
      _
    $region15: #{generator_forward.1} parent=1 // pred_check_branch
      %57 = sbr.rel (0) target = $region17
    $region16: #{generator_forward.1} parent=1 // pred_region
      %s59 = ssub.s32 32768, 32768
      %60 = vsyncadd [#allocation13], %s59
      %s61 = sshll.u32 [#allocation12], 4
      %s62 = int_to_ptr.vmem [resolvable:$true] %s61
      %67 = dma.hbm_to_vmem [thread:$0]  %s3, 32768, %s62, [#allocation13], 512, 512, 32
    $region17: #{generator_forward.1} parent=1 // pred_fallthru
      _
    // Predicated region
    $region18: #{generator_forward.1} parent=1 // pred_check
      _
    $region19: #{generator_forward.1} parent=1 // pred_check_branch
      %69 = sbr.rel (0) target = $region21
    $region20: #{generator_forward.1} parent=1 // pred_region
      %s71 = ssub.s32 128, 128
      %72 = vsyncadd [#allocation13], %s71
      %s74 = sshll.u32 [#allocation14], 4
      %s75 = int_to_ptr.vmem [resolvable:$true] %s74
      %77 = dma.hbm_to_vmem [thread:$0]  %s4, 128, %s75, [#allocation13]
    $region21: #{generator_forward.1} parent=1 // pred_fallthru
      _
    // Predicated region
    $region22: #{generator_forward.1} parent=1 // pred_check
      _
    $region23: #{generator_forward.1} parent=1 // pred_check_branch
      %79 = sbr.rel (0) target = $region25
    $region24: #{generator_forward.1} parent=1 // pred_region
      %s81 = ssub.s32 8192, 8192
      %82 = vsyncadd [#allocation16], %s81
      %s83 = sshll.u32 [#allocation15], 4
      %s84 = int_to_ptr.vmem [resolvable:$true] %s83
      %89 = dma.hbm_to_vmem [thread:$0]  %s5, 8192, %s84, [#allocation16], 256, 256, 16
    $region25: #{generator_forward.1} parent=1 // pred_fallthru
      _
    // Predicated region
    $region26: #{generator_forward.1} parent=1 // pred_check
      _
    $region27: #{generator_forward.1} parent=1 // pred_check_branch
      %91 = sbr.rel (0) target = $region29
    $region28: #{generator_forward.1} parent=1 // pred_region
      %s93 = ssub.s32 64, 64
      %94 = vsyncadd [#allocation16], %s93
      %s96 = sshll.u32 [#allocation17], 4
      %s97 = int_to_ptr.vmem [resolvable:$true] %s96
      %99 = dma.hbm_to_vmem [thread:$0]  %s6, 64, %s97, [#allocation16]
    $region29: #{generator_forward.1} parent=1 // pred_fallthru
      _
    // Predicated region
    $region30: #{generator_forward.1} parent=1 // pred_check
      _
    $region31: #{generator_forward.1} parent=1 // pred_check_branch
      %101 = sbr.rel (0) target = $region33
    $region32: #{generator_forward.1} parent=1 // pred_region
      %s103 = ssub.s32 2048, 2048
      %104 = vsyncadd [#allocation19], %s103
      %s105 = sshll.u32 [#allocation18], 4
      %s106 = int_to_ptr.vmem [resolvable:$true] %s105
      %111 = dma.hbm_to_vmem [thread:$0]  %s7, 2048, %s106, [#allocation19], 128, 128, 8
    $region33: #{generator_forward.1} parent=1 // pred_fallthru
      _
    // Predicated region
    $region34: #{generator_forward.1} parent=1 // pred_check
      _
    $region35: #{generator_forward.1} parent=1 // pred_check_branch
      %113 = sbr.rel (0) target = $region37
    $region36: #{generator_forward.1} parent=1 // pred_region
      %s115 = ssub.s32 32, 32
      %116 = vsyncadd [#allocation19], %s115
      %s118 = sshll.u32 [#allocation20], 4
      %s119 = int_to_ptr.vmem [resolvable:$true] %s118
      %121 = dma.hbm_to_vmem [thread:$0]  %s8, 32, %s119, [#allocation19]
    $region37: #{generator_forward.1} parent=1 // pred_fallthru
      _
    // Predicated region
    $region38: #{generator_forward.1} parent=1 // pred_check
      _
    $region39: #{generator_forward.1} parent=1 // pred_check_branch
      %123 = sbr.rel (0) target = $region41
    $region40: #{generator_forward.1} parent=1 // pred_region
      %s125 = ssub.s32 512, 512
      %126 = vsyncadd [#allocation22], %s125
      %s127 = sshll.u32 [#allocation21], 4
      %s128 = int_to_ptr.vmem [resolvable:$true] %s127
      %133 = dma.hbm_to_vmem [thread:$0]  %s9, 512, %s128, [#allocation22], 256, 256, 16
    $region41: #{generator_forward.1} parent=1 // pred_fallthru
      _
    // Predicated region
    $region42: #{generator_forward.1} parent=1 // pred_check
      _
    $region43: #{generator_forward.1} parent=1 // pred_check_branch
      %135 = sbr.rel (0) target = $region45
    $region44: #{generator_forward.1} parent=1 // pred_region
      _
    $region45: #{generator_forward.1} parent=1 // pred_fallthru
      _
    // Predicated region
    $region46: #{generator_forward.1} parent=1 // pred_check
      _
    $region47: #{generator_forward.1} parent=1 // pred_check_branch
      %137 = sbr.rel (0) target = $region49
    $region48: #{generator_forward.1} parent=1 // pred_region
      %138 = dma.done [#allocation8], 64
    $region49: #{generator_forward.1} parent=1 // pred_fallthru
      _
    // Predicated region
    $region50: #{generator_forward.1} parent=1 // pred_check
      _
    $region51: #{generator_forward.1} parent=1 // pred_check_branch
      %140 = sbr.rel (0) target = $region53
    $region52: #{generator_forward.1} parent=1 // pred_region
      %141 = dma.done [#allocation10], 98304
    $region53: #{generator_forward.1} parent=1 // pred_fallthru
      _
    // Predicated region
    $region54: #{generator_forward.1} parent=1 // pred_check
      _
    $region55: #{generator_forward.1} parent=1 // pred_check_branch
      %143 = sbr.rel (0) target = $region57
    $region56: #{generator_forward.1} parent=1 // pred_region
      %144 = dma.done [#allocation10], 768
    $region57: #{generator_forward.1} parent=1 // pred_fallthru
      _
    // Predicated region
    $region58: #{generator_forward.1} parent=1 // pred_check
      _
    $region59: #{generator_forward.1} parent=1 // pred_check_branch
      %146 = sbr.rel (0) target = $region61
    $region60: #{generator_forward.1} parent=1 // pred_region
      %147 = dma.done [#allocation13], 32768
    $region61: #{generator_forward.1} parent=1 // pred_fallthru
      _
    // Predicated region
    $region62: #{generator_forward.1} parent=1 // pred_check
      _
    $region63: #{generator_forward.1} parent=1 // pred_check_branch
      %149 = sbr.rel (0) target = $region65
    $region64: #{generator_forward.1} parent=1 // pred_region
      %150 = dma.done [#allocation13], 128
    $region65: #{generator_forward.1} parent=1 // pred_fallthru
      _
    // Predicated region
    $region66: #{generator_forward.1} parent=1 // pred_check
      _
    $region67: #{generator_forward.1} parent=1 // pred_check_branch
      %152 = sbr.rel (0) target = $region69
    $region68: #{generator_forward.1} parent=1 // pred_region
      %153 = dma.done [#allocation16], 8192
    $region69: #{generator_forward.1} parent=1 // pred_fallthru
      _
    // Predicated region
    $region70: #{generator_forward.1} parent=1 // pred_check
      _
    $region71: #{generator_forward.1} parent=1 // pred_check_branch
      %155 = sbr.rel (0) target = $region73
    $region72: #{generator_forward.1} parent=1 // pred_region
      %156 = dma.done [#allocation16], 64
    $region73: #{generator_forward.1} parent=1 // pred_fallthru
      _
    // Predicated region
    $region74: #{generator_forward.1} parent=1 // pred_check
      _
    $region75: #{generator_forward.1} parent=1 // pred_check_branch
      %158 = sbr.rel (0) target = $region77
    $region76: #{generator_forward.1} parent=1 // pred_region
      %159 = dma.done [#allocation19], 2048
    $region77: #{generator_forward.1} parent=1 // pred_fallthru
      _
    // Predicated region
    $region78: #{generator_forward.1} parent=1 // pred_check
      _
    $region79: #{generator_forward.1} parent=1 // pred_check_branch
      %161 = sbr.rel (0) target = $region81
    $region80: #{generator_forward.1} parent=1 // pred_region
      %162 = dma.done [#allocation19], 32
    $region81: #{generator_forward.1} parent=1 // pred_fallthru
      _
    // Predicated region
    $region82: #{generator_forward.1} parent=1 // pred_check
      _
    $region83: #{generator_forward.1} parent=1 // pred_check_branch
      %164 = sbr.rel (0) target = $region85
    $region84: #{generator_forward.1} parent=1 // pred_region
      %165 = dma.done [#allocation22], 512
    $region85: #{generator_forward.1} parent=1 // pred_fallthru
      _
    %v167 = vld [vmem:[#allocation7] sm:$0xf]
    %v170 = vunpack.c.l.s4 1983009808
    %v171 = vunpack.c.0.s8 %v170
    %v172 = vlaneseq
    %v173 = vshrl.u32 %v172, 7
    %v174 = vsub.s32 %v171, %v173
    %v175 = vrot.slane %v167, %v174
    %v176 = vcombine.high %v175, %v175
    %v179 = vpack.c.bf16 %v175, %v175
    %v180 = vpack.c.bf16 %v176, %v176
    %v181 = vld [vmem:[#allocation9] sm:$0xff]
    %v182 = vld [vmem:[#allocation9 + $0x8] sm:$0xff]
    %v183 = vld [vmem:[#allocation9 + $0x10] sm:$0xff]
    %v184 = vld [vmem:[#allocation9 + $0x18] sm:$0xff]
    %v185 = vld [vmem:[#allocation9 + $0x20] sm:$0xff]
    %v186 = vld [vmem:[#allocation9 + $0x28] sm:$0xff]
    %v187 = vld [vmem:[#allocation9 + $0x30] sm:$0xff]
    %v188 = vld [vmem:[#allocation9 + $0x38] sm:$0xff]
    %v189 = vld [vmem:[#allocation9 + $0x40] sm:$0xff]
    %v190 = vld [vmem:[#allocation9 + $0x48] sm:$0xff]
    %v191 = vld [vmem:[#allocation9 + $0x50] sm:$0xff]
    %v192 = vld [vmem:[#allocation9 + $0x58] sm:$0xff]
    %v193 = vld [vmem:[#allocation9 + $0x60] sm:$0xff]
    %v194 = vld [vmem:[#allocation9 + $0x68] sm:$0xff]
    %v195 = vld [vmem:[#allocation9 + $0x70] sm:$0xff]
    %v196 = vld [vmem:[#allocation9 + $0x78] sm:$0xff]
    %v197 = vld [vmem:[#allocation9 + $0x80] sm:$0xff]
    %v198 = vld [vmem:[#allocation9 + $0x88] sm:$0xff]
    %v199 = vld [vmem:[#allocation9 + $0x90] sm:$0xff]
    %v200 = vld [vmem:[#allocation9 + $0x98] sm:$0xff]
    %v201 = vld [vmem:[#allocation9 + $0xa0] sm:$0xff]
    %v202 = vld [vmem:[#allocation9 + $0xa8] sm:$0xff]
    %v203 = vld [vmem:[#allocation9 + $0xb0] sm:$0xff]
    %v204 = vld [vmem:[#allocation9 + $0xb8] sm:$0xff]
    %v205 = vld [vmem:[#allocation9 + $0xc0] sm:$0xff]
    %v206 = vld [vmem:[#allocation9 + $0xc8] sm:$0xff]
    %v207 = vld [vmem:[#allocation9 + $0xd0] sm:$0xff]
    %v208 = vld [vmem:[#allocation9 + $0xd8] sm:$0xff]
    %v209 = vld [vmem:[#allocation9 + $0xe0] sm:$0xff]
    %v210 = vld [vmem:[#allocation9 + $0xe8] sm:$0xff]
    %v211 = vld [vmem:[#allocation9 + $0xf0] sm:$0xff]
    %v212 = vld [vmem:[#allocation9 + $0xf8] sm:$0xff]
    %v213 = vld [vmem:[#allocation9 + $0x100] sm:$0xff]
    %v214 = vld [vmem:[#allocation9 + $0x108] sm:$0xff]
    %v215 = vld [vmem:[#allocation9 + $0x110] sm:$0xff]
    %v216 = vld [vmem:[#allocation9 + $0x118] sm:$0xff]
    %v217 = vld [vmem:[#allocation9 + $0x120] sm:$0xff]
    %v218 = vld [vmem:[#allocation9 + $0x128] sm:$0xff]
    %v219 = vld [vmem:[#allocation9 + $0x130] sm:$0xff]
    %v220 = vld [vmem:[#allocation9 + $0x138] sm:$0xff]
    %v221 = vld [vmem:[#allocation9 + $0x140] sm:$0xff]
    %v222 = vld [vmem:[#allocation9 + $0x148] sm:$0xff]
    %v223 = vld [vmem:[#allocation9 + $0x150] sm:$0xff]
    %v224 = vld [vmem:[#allocation9 + $0x158] sm:$0xff]
    %v225 = vld [vmem:[#allocation9 + $0x160] sm:$0xff]
    %v226 = vld [vmem:[#allocation9 + $0x168] sm:$0xff]
    %v227 = vld [vmem:[#allocation9 + $0x170] sm:$0xff]
    %v228 = vld [vmem:[#allocation9 + $0x178] sm:$0xff]
    %v229 = vld [vmem:[#allocation9 + $0x180] sm:$0xff]
    %v230 = vld [vmem:[#allocation9 + $0x188] sm:$0xff]
    %v231 = vld [vmem:[#allocation9 + $0x190] sm:$0xff]
    %v232 = vld [vmem:[#allocation9 + $0x198] sm:$0xff]
    %v233 = vld [vmem:[#allocation9 + $0x1a0] sm:$0xff]
    %v234 = vld [vmem:[#allocation9 + $0x1a8] sm:$0xff]
    %v235 = vld [vmem:[#allocation9 + $0x1b0] sm:$0xff]
    %v236 = vld [vmem:[#allocation9 + $0x1b8] sm:$0xff]
    %v237 = vld [vmem:[#allocation9 + $0x1c0] sm:$0xff]
    %v238 = vld [vmem:[#allocation9 + $0x1c8] sm:$0xff]
    %v239 = vld [vmem:[#allocation9 + $0x1d0] sm:$0xff]
    %v240 = vld [vmem:[#allocation9 + $0x1d8] sm:$0xff]
    %v241 = vld [vmem:[#allocation9 + $0x1e0] sm:$0xff]
    %v242 = vld [vmem:[#allocation9 + $0x1e8] sm:$0xff]
    %v243 = vld [vmem:[#allocation9 + $0x1f0] sm:$0xff]
    %v244 = vld [vmem:[#allocation9 + $0x1f8] sm:$0xff]
    %v245 = vld [vmem:[#allocation9 + $0x200] sm:$0xff]
    %v246 = vld [vmem:[#allocation9 + $0x208] sm:$0xff]
    %v247 = vld [vmem:[#allocation9 + $0x210] sm:$0xff]
    %v248 = vld [vmem:[#allocation9 + $0x218] sm:$0xff]
    %v249 = vld [vmem:[#allocation9 + $0x220] sm:$0xff]
    %v250 = vld [vmem:[#allocation9 + $0x228] sm:$0xff]
    %v251 = vld [vmem:[#allocation9 + $0x230] sm:$0xff]
    %v252 = vld [vmem:[#allocation9 + $0x238] sm:$0xff]
    %v253 = vld [vmem:[#allocation9 + $0x240] sm:$0xff]
    %v254 = vld [vmem:[#allocation9 + $0x248] sm:$0xff]
    %v255 = vld [vmem:[#allocation9 + $0x250] sm:$0xff]
    %v256 = vld [vmem:[#allocation9 + $0x258] sm:$0xff]
    %v257 = vld [vmem:[#allocation9 + $0x260] sm:$0xff]
    %v258 = vld [vmem:[#allocation9 + $0x268] sm:$0xff]
    %v259 = vld [vmem:[#allocation9 + $0x270] sm:$0xff]
    %v260 = vld [vmem:[#allocation9 + $0x278] sm:$0xff]
    %v261 = vld [vmem:[#allocation9 + $0x280] sm:$0xff]
    %v262 = vld [vmem:[#allocation9 + $0x288] sm:$0xff]
    %v263 = vld [vmem:[#allocation9 + $0x290] sm:$0xff]
    %v264 = vld [vmem:[#allocation9 + $0x298] sm:$0xff]
    %v265 = vld [vmem:[#allocation9 + $0x2a0] sm:$0xff]
    %v266 = vld [vmem:[#allocation9 + $0x2a8] sm:$0xff]
    %v267 = vld [vmem:[#allocation9 + $0x2b0] sm:$0xff]
    %v268 = vld [vmem:[#allocation9 + $0x2b8] sm:$0xff]
    %v269 = vld [vmem:[#allocation9 + $0x2c0] sm:$0xff]
    %v270 = vld [vmem:[#allocation9 + $0x2c8] sm:$0xff]
    %v271 = vld [vmem:[#allocation9 + $0x2d0] sm:$0xff]
    %v272 = vld [vmem:[#allocation9 + $0x2d8] sm:$0xff]
    %v273 = vld [vmem:[#allocation9 + $0x2e0] sm:$0xff]
    %v274 = vld [vmem:[#allocation9 + $0x2e8] sm:$0xff]
    %v275 = vld [vmem:[#allocation9 + $0x2f0] sm:$0xff]
    %v276 = vld [vmem:[#allocation9 + $0x2f8] sm:$0xff]
    %v277 = vld [vmem:[#allocation9 + $0x300] sm:$0xff]
    %v278 = vld [vmem:[#allocation9 + $0x308] sm:$0xff]
    %v279 = vld [vmem:[#allocation9 + $0x310] sm:$0xff]
    %v280 = vld [vmem:[#allocation9 + $0x318] sm:$0xff]
    %v281 = vld [vmem:[#allocation9 + $0x320] sm:$0xff]
    %v282 = vld [vmem:[#allocation9 + $0x328] sm:$0xff]
    %v283 = vld [vmem:[#allocation9 + $0x330] sm:$0xff]
    %v284 = vld [vmem:[#allocation9 + $0x338] sm:$0xff]
    %v285 = vld [vmem:[#allocation9 + $0x340] sm:$0xff]
    %v286 = vld [vmem:[#allocation9 + $0x348] sm:$0xff]
    %v287 = vld [vmem:[#allocation9 + $0x350] sm:$0xff]
    %v288 = vld [vmem:[#allocation9 + $0x358] sm:$0xff]
    %v289 = vld [vmem:[#allocation9 + $0x360] sm:$0xff]
    %v290 = vld [vmem:[#allocation9 + $0x368] sm:$0xff]
    %v291 = vld [vmem:[#allocation9 + $0x370] sm:$0xff]
    %v292 = vld [vmem:[#allocation9 + $0x378] sm:$0xff]
    %v293 = vld [vmem:[#allocation9 + $0x380] sm:$0xff]
    %v294 = vld [vmem:[#allocation9 + $0x388] sm:$0xff]
    %v295 = vld [vmem:[#allocation9 + $0x390] sm:$0xff]
    %v296 = vld [vmem:[#allocation9 + $0x398] sm:$0xff]
    %v297 = vld [vmem:[#allocation9 + $0x3a0] sm:$0xff]
    %v298 = vld [vmem:[#allocation9 + $0x3a8] sm:$0xff]
    %v299 = vld [vmem:[#allocation9 + $0x3b0] sm:$0xff]
    %v300 = vld [vmem:[#allocation9 + $0x3b8] sm:$0xff]
    %v301 = vld [vmem:[#allocation9 + $0x3c0] sm:$0xff]
    %v302 = vld [vmem:[#allocation9 + $0x3c8] sm:$0xff]
    %v303 = vld [vmem:[#allocation9 + $0x3d0] sm:$0xff]
    %v304 = vld [vmem:[#allocation9 + $0x3d8] sm:$0xff]
    %v305 = vld [vmem:[#allocation9 + $0x3e0] sm:$0xff]
    %v306 = vld [vmem:[#allocation9 + $0x3e8] sm:$0xff]
    %v307 = vld [vmem:[#allocation9 + $0x3f0] sm:$0xff]
    %v308 = vld [vmem:[#allocation9 + $0x3f8] sm:$0xff]
    %v309 = vld [vmem:[#allocation9 + $0x400] sm:$0xff]
    %v310 = vld [vmem:[#allocation9 + $0x408] sm:$0xff]
    %v311 = vld [vmem:[#allocation9 + $0x410] sm:$0xff]
    %v312 = vld [vmem:[#allocation9 + $0x418] sm:$0xff]
    %v313 = vld [vmem:[#allocation9 + $0x420] sm:$0xff]
    %v314 = vld [vmem:[#allocation9 + $0x428] sm:$0xff]
    %v315 = vld [vmem:[#allocation9 + $0x430] sm:$0xff]
    %v316 = vld [vmem:[#allocation9 + $0x438] sm:$0xff]
    %v317 = vld [vmem:[#allocation9 + $0x440] sm:$0xff]
    %v318 = vld [vmem:[#allocation9 + $0x448] sm:$0xff]
    %v319 = vld [vmem:[#allocation9 + $0x450] sm:$0xff]
    %v320 = vld [vmem:[#allocation9 + $0x458] sm:$0xff]
    %v321 = vld [vmem:[#allocation9 + $0x460] sm:$0xff]
    %v322 = vld [vmem:[#allocation9 + $0x468] sm:$0xff]
    %v323 = vld [vmem:[#allocation9 + $0x470] sm:$0xff]
    %v324 = vld [vmem:[#allocation9 + $0x478] sm:$0xff]
    %v325 = vld [vmem:[#allocation9 + $0x480] sm:$0xff]
    %v326 = vld [vmem:[#allocation9 + $0x488] sm:$0xff]
    %v327 = vld [vmem:[#allocation9 + $0x490] sm:$0xff]
    %v328 = vld [vmem:[#allocation9 + $0x498] sm:$0xff]
    %v329 = vld [vmem:[#allocation9 + $0x4a0] sm:$0xff]
    %v330 = vld [vmem:[#allocation9 + $0x4a8] sm:$0xff]
    %v331 = vld [vmem:[#allocation9 + $0x4b0] sm:$0xff]
    %v332 = vld [vmem:[#allocation9 + $0x4b8] sm:$0xff]
    %v333 = vld [vmem:[#allocation9 + $0x4c0] sm:$0xff]
    %v334 = vld [vmem:[#allocation9 + $0x4c8] sm:$0xff]
    %v335 = vld [vmem:[#allocation9 + $0x4d0] sm:$0xff]
    %v336 = vld [vmem:[#allocation9 + $0x4d8] sm:$0xff]
    %v337 = vld [vmem:[#allocation9 + $0x4e0] sm:$0xff]
    %v338 = vld [vmem:[#allocation9 + $0x4e8] sm:$0xff]
    %v339 = vld [vmem:[#allocation9 + $0x4f0] sm:$0xff]
    %v340 = vld [vmem:[#allocation9 + $0x4f8] sm:$0xff]
    %v341 = vld [vmem:[#allocation9 + $0x500] sm:$0xff]
    %v342 = vld [vmem:[#allocation9 + $0x508] sm:$0xff]
    %v343 = vld [vmem:[#allocation9 + $0x510] sm:$0xff]
    %v344 = vld [vmem:[#allocation9 + $0x518] sm:$0xff]
    %v345 = vld [vmem:[#allocation9 + $0x520] sm:$0xff]
    %v346 = vld [vmem:[#allocation9 + $0x528] sm:$0xff]
    %v347 = vld [vmem:[#allocation9 + $0x530] sm:$0xff]
    %v348 = vld [vmem:[#allocation9 + $0x538] sm:$0xff]
    %v349 = vld [vmem:[#allocation9 + $0x540] sm:$0xff]
    %v350 = vld [vmem:[#allocation9 + $0x548] sm:$0xff]
    %v351 = vld [vmem:[#allocation9 + $0x550] sm:$0xff]
    %v352 = vld [vmem:[#allocation9 + $0x558] sm:$0xff]
    %v353 = vld [vmem:[#allocation9 + $0x560] sm:$0xff]
    %v354 = vld [vmem:[#allocation9 + $0x568] sm:$0xff]
    %v355 = vld [vmem:[#allocation9 + $0x570] sm:$0xff]
    %v356 = vld [vmem:[#allocation9 + $0x578] sm:$0xff]
    %v357 = vld [vmem:[#allocation9 + $0x580] sm:$0xff]
    %v358 = vld [vmem:[#allocation9 + $0x588] sm:$0xff]
    %v359 = vld [vmem:[#allocation9 + $0x590] sm:$0xff]
    %v360 = vld [vmem:[#allocation9 + $0x598] sm:$0xff]
    %v361 = vld [vmem:[#allocation9 + $0x5a0] sm:$0xff]
    %v362 = vld [vmem:[#allocation9 + $0x5a8] sm:$0xff]
    %v363 = vld [vmem:[#allocation9 + $0x5b0] sm:$0xff]
    %v364 = vld [vmem:[#allocation9 + $0x5b8] sm:$0xff]
    %v365 = vld [vmem:[#allocation9 + $0x5c0] sm:$0xff]
    %v366 = vld [vmem:[#allocation9 + $0x5c8] sm:$0xff]
    %v367 = vld [vmem:[#allocation9 + $0x5d0] sm:$0xff]
    %v368 = vld [vmem:[#allocation9 + $0x5d8] sm:$0xff]
    %v369 = vld [vmem:[#allocation9 + $0x5e0] sm:$0xff]
    %v370 = vld [vmem:[#allocation9 + $0x5e8] sm:$0xff]
    %v371 = vld [vmem:[#allocation9 + $0x5f0] sm:$0xff]
    %v372 = vld [vmem:[#allocation9 + $0x5f8] sm:$0xff]
    %v373 = vld [vmem:[#allocation9 + $0x600] sm:$0xff]
    %v374 = vld [vmem:[#allocation9 + $0x608] sm:$0xff]
    %v375 = vld [vmem:[#allocation9 + $0x610] sm:$0xff]
    %v376 = vld [vmem:[#allocation9 + $0x618] sm:$0xff]
    %v377 = vld [vmem:[#allocation9 + $0x620] sm:$0xff]
    %v378 = vld [vmem:[#allocation9 + $0x628] sm:$0xff]
    %v379 = vld [vmem:[#allocation9 + $0x630] sm:$0xff]
    %v380 = vld [vmem:[#allocation9 + $0x638] sm:$0xff]
    %v381 = vld [vmem:[#allocation9 + $0x640] sm:$0xff]
    %v382 = vld [vmem:[#allocation9 + $0x648] sm:$0xff]
    %v383 = vld [vmem:[#allocation9 + $0x650] sm:$0xff]
    %v384 = vld [vmem:[#allocation9 + $0x658] sm:$0xff]
    %v385 = vld [vmem:[#allocation9 + $0x660] sm:$0xff]
    %v386 = vld [vmem:[#allocation9 + $0x668] sm:$0xff]
    %v387 = vld [vmem:[#allocation9 + $0x670] sm:$0xff]
    %v388 = vld [vmem:[#allocation9 + $0x678] sm:$0xff]
    %v389 = vld [vmem:[#allocation9 + $0x680] sm:$0xff]
    %v390 = vld [vmem:[#allocation9 + $0x688] sm:$0xff]
    %v391 = vld [vmem:[#allocation9 + $0x690] sm:$0xff]
    %v392 = vld [vmem:[#allocation9 + $0x698] sm:$0xff]
    %v393 = vld [vmem:[#allocation9 + $0x6a0] sm:$0xff]
    %v394 = vld [vmem:[#allocation9 + $0x6a8] sm:$0xff]
    %v395 = vld [vmem:[#allocation9 + $0x6b0] sm:$0xff]
    %v396 = vld [vmem:[#allocation9 + $0x6b8] sm:$0xff]
    %v397 = vld [vmem:[#allocation9 + $0x6c0] sm:$0xff]
    %v398 = vld [vmem:[#allocation9 + $0x6c8] sm:$0xff]
    %v399 = vld [vmem:[#allocation9 + $0x6d0] sm:$0xff]
    %v400 = vld [vmem:[#allocation9 + $0x6d8] sm:$0xff]
    %v401 = vld [vmem:[#allocation9 + $0x6e0] sm:$0xff]
    %v402 = vld [vmem:[#allocation9 + $0x6e8] sm:$0xff]
    %v403 = vld [vmem:[#allocation9 + $0x6f0] sm:$0xff]
    %v404 = vld [vmem:[#allocation9 + $0x6f8] sm:$0xff]
    %v405 = vld [vmem:[#allocation9 + $0x700] sm:$0xff]
    %v406 = vld [vmem:[#allocation9 + $0x708] sm:$0xff]
    %v407 = vld [vmem:[#allocation9 + $0x710] sm:$0xff]
    %v408 = vld [vmem:[#allocation9 + $0x718] sm:$0xff]
    %v409 = vld [vmem:[#allocation9 + $0x720] sm:$0xff]
    %v410 = vld [vmem:[#allocation9 + $0x728] sm:$0xff]
    %v411 = vld [vmem:[#allocation9 + $0x730] sm:$0xff]
    %v412 = vld [vmem:[#allocation9 + $0x738] sm:$0xff]
    %v413 = vld [vmem:[#allocation9 + $0x740] sm:$0xff]
    %v414 = vld [vmem:[#allocation9 + $0x748] sm:$0xff]
    %v415 = vld [vmem:[#allocation9 + $0x750] sm:$0xff]
    %v416 = vld [vmem:[#allocation9 + $0x758] sm:$0xff]
    %v417 = vld [vmem:[#allocation9 + $0x760] sm:$0xff]
    %v418 = vld [vmem:[#allocation9 + $0x768] sm:$0xff]
    %v419 = vld [vmem:[#allocation9 + $0x770] sm:$0xff]
    %v420 = vld [vmem:[#allocation9 + $0x778] sm:$0xff]
    %v421 = vld [vmem:[#allocation9 + $0x780] sm:$0xff]
    %v422 = vld [vmem:[#allocation9 + $0x788] sm:$0xff]
    %v423 = vld [vmem:[#allocation9 + $0x790] sm:$0xff]
    %v424 = vld [vmem:[#allocation9 + $0x798] sm:$0xff]
    %v425 = vld [vmem:[#allocation9 + $0x7a0] sm:$0xff]
    %v426 = vld [vmem:[#allocation9 + $0x7a8] sm:$0xff]
    %v427 = vld [vmem:[#allocation9 + $0x7b0] sm:$0xff]
    %v428 = vld [vmem:[#allocation9 + $0x7b8] sm:$0xff]
    %v429 = vld [vmem:[#allocation9 + $0x7c0] sm:$0xff]
    %v430 = vld [vmem:[#allocation9 + $0x7c8] sm:$0xff]
    %v431 = vld [vmem:[#allocation9 + $0x7d0] sm:$0xff]
    %v432 = vld [vmem:[#allocation9 + $0x7d8] sm:$0xff]
    %v433 = vld [vmem:[#allocation9 + $0x7e0] sm:$0xff]
    %v434 = vld [vmem:[#allocation9 + $0x7e8] sm:$0xff]
    %v435 = vld [vmem:[#allocation9 + $0x7f0] sm:$0xff]
    %v436 = vld [vmem:[#allocation9 + $0x7f8] sm:$0xff]
    %v437 = vld [vmem:[#allocation9 + $0x800] sm:$0xff]
    %v438 = vld [vmem:[#allocation9 + $0x808] sm:$0xff]
    %v439 = vld [vmem:[#allocation9 + $0x810] sm:$0xff]
    %v440 = vld [vmem:[#allocation9 + $0x818] sm:$0xff]
    %v441 = vld [vmem:[#allocation9 + $0x820] sm:$0xff]
    %v442 = vld [vmem:[#allocation9 + $0x828] sm:$0xff]
    %v443 = vld [vmem:[#allocation9 + $0x830] sm:$0xff]
    %v444 = vld [vmem:[#allocation9 + $0x838] sm:$0xff]
    %v445 = vld [vmem:[#allocation9 + $0x840] sm:$0xff]
    %v446 = vld [vmem:[#allocation9 + $0x848] sm:$0xff]
    %v447 = vld [vmem:[#allocation9 + $0x850] sm:$0xff]
    %v448 = vld [vmem:[#allocation9 + $0x858] sm:$0xff]
    %v449 = vld [vmem:[#allocation9 + $0x860] sm:$0xff]
    %v450 = vld [vmem:[#allocation9 + $0x868] sm:$0xff]
    %v451 = vld [vmem:[#allocation9 + $0x870] sm:$0xff]
    %v452 = vld [vmem:[#allocation9 + $0x878] sm:$0xff]
    %v453 = vld [vmem:[#allocation9 + $0x880] sm:$0xff]
    %v454 = vld [vmem:[#allocation9 + $0x888] sm:$0xff]
    %v455 = vld [vmem:[#allocation9 + $0x890] sm:$0xff]
    %v456 = vld [vmem:[#allocation9 + $0x898] sm:$0xff]
    %v457 = vld [vmem:[#allocation9 + $0x8a0] sm:$0xff]
    %v458 = vld [vmem:[#allocation9 + $0x8a8] sm:$0xff]
    %v459 = vld [vmem:[#allocation9 + $0x8b0] sm:$0xff]
    %v460 = vld [vmem:[#allocation9 + $0x8b8] sm:$0xff]
    %v461 = vld [vmem:[#allocation9 + $0x8c0] sm:$0xff]
    %v462 = vld [vmem:[#allocation9 + $0x8c8] sm:$0xff]
    %v463 = vld [vmem:[#allocation9 + $0x8d0] sm:$0xff]
    %v464 = vld [vmem:[#allocation9 + $0x8d8] sm:$0xff]
    %v465 = vld [vmem:[#allocation9 + $0x8e0] sm:$0xff]
    %v466 = vld [vmem:[#allocation9 + $0x8e8] sm:$0xff]
    %v467 = vld [vmem:[#allocation9 + $0x8f0] sm:$0xff]
    %v468 = vld [vmem:[#allocation9 + $0x8f8] sm:$0xff]
    %v469 = vld [vmem:[#allocation9 + $0x900] sm:$0xff]
    %v470 = vld [vmem:[#allocation9 + $0x908] sm:$0xff]
    %v471 = vld [vmem:[#allocation9 + $0x910] sm:$0xff]
    %v472 = vld [vmem:[#allocation9 + $0x918] sm:$0xff]
    %v473 = vld [vmem:[#allocation9 + $0x920] sm:$0xff]
    %v474 = vld [vmem:[#allocation9 + $0x928] sm:$0xff]
    %v475 = vld [vmem:[#allocation9 + $0x930] sm:$0xff]
    %v476 = vld [vmem:[#allocation9 + $0x938] sm:$0xff]
    %v477 = vld [vmem:[#allocation9 + $0x940] sm:$0xff]
    %v478 = vld [vmem:[#allocation9 + $0x948] sm:$0xff]
    %v479 = vld [vmem:[#allocation9 + $0x950] sm:$0xff]
    %v480 = vld [vmem:[#allocation9 + $0x958] sm:$0xff]
    %v481 = vld [vmem:[#allocation9 + $0x960] sm:$0xff]
    %v482 = vld [vmem:[#allocation9 + $0x968] sm:$0xff]
    %v483 = vld [vmem:[#allocation9 + $0x970] sm:$0xff]
    %v484 = vld [vmem:[#allocation9 + $0x978] sm:$0xff]
    %v485 = vld [vmem:[#allocation9 + $0x980] sm:$0xff]
    %v486 = vld [vmem:[#allocation9 + $0x988] sm:$0xff]
    %v487 = vld [vmem:[#allocation9 + $0x990] sm:$0xff]
    %v488 = vld [vmem:[#allocation9 + $0x998] sm:$0xff]
    %v489 = vld [vmem:[#allocation9 + $0x9a0] sm:$0xff]
    %v490 = vld [vmem:[#allocation9 + $0x9a8] sm:$0xff]
    %v491 = vld [vmem:[#allocation9 + $0x9b0] sm:$0xff]
    %v492 = vld [vmem:[#allocation9 + $0x9b8] sm:$0xff]
    %v493 = vld [vmem:[#allocation9 + $0x9c0] sm:$0xff]
    %v494 = vld [vmem:[#allocation9 + $0x9c8] sm:$0xff]
    %v495 = vld [vmem:[#allocation9 + $0x9d0] sm:$0xff]
    %v496 = vld [vmem:[#allocation9 + $0x9d8] sm:$0xff]
    %v497 = vld [vmem:[#allocation9 + $0x9e0] sm:$0xff]
    %v498 = vld [vmem:[#allocation9 + $0x9e8] sm:$0xff]
    %v499 = vld [vmem:[#allocation9 + $0x9f0] sm:$0xff]
    %v500 = vld [vmem:[#allocation9 + $0x9f8] sm:$0xff]
    %v501 = vld [vmem:[#allocation9 + $0xa00] sm:$0xff]
    %v502 = vld [vmem:[#allocation9 + $0xa08] sm:$0xff]
    %v503 = vld [vmem:[#allocation9 + $0xa10] sm:$0xff]
    %v504 = vld [vmem:[#allocation9 + $0xa18] sm:$0xff]
    %v505 = vld [vmem:[#allocation9 + $0xa20] sm:$0xff]
    %v506 = vld [vmem:[#allocation9 + $0xa28] sm:$0xff]
    %v507 = vld [vmem:[#allocation9 + $0xa30] sm:$0xff]
    %v508 = vld [vmem:[#allocation9 + $0xa38] sm:$0xff]
    %v509 = vld [vmem:[#allocation9 + $0xa40] sm:$0xff]
    %v510 = vld [vmem:[#allocation9 + $0xa48] sm:$0xff]
    %v511 = vld [vmem:[#allocation9 + $0xa50] sm:$0xff]
    %v512 = vld [vmem:[#allocation9 + $0xa58] sm:$0xff]
    %v513 = vld [vmem:[#allocation9 + $0xa60] sm:$0xff]
    %v514 = vld [vmem:[#allocation9 + $0xa68] sm:$0xff]
    %v515 = vld [vmem:[#allocation9 + $0xa70] sm:$0xff]
    %v516 = vld [vmem:[#allocation9 + $0xa78] sm:$0xff]
    %v517 = vld [vmem:[#allocation9 + $0xa80] sm:$0xff]
    %v518 = vld [vmem:[#allocation9 + $0xa88] sm:$0xff]
    %v519 = vld [vmem:[#allocation9 + $0xa90] sm:$0xff]
    %v520 = vld [vmem:[#allocation9 + $0xa98] sm:$0xff]
    %v521 = vld [vmem:[#allocation9 + $0xaa0] sm:$0xff]
    %v522 = vld [vmem:[#allocation9 + $0xaa8] sm:$0xff]
    %v523 = vld [vmem:[#allocation9 + $0xab0] sm:$0xff]
    %v524 = vld [vmem:[#allocation9 + $0xab8] sm:$0xff]
    %v525 = vld [vmem:[#allocation9 + $0xac0] sm:$0xff]
    %v526 = vld [vmem:[#allocation9 + $0xac8] sm:$0xff]
    %v527 = vld [vmem:[#allocation9 + $0xad0] sm:$0xff]
    %v528 = vld [vmem:[#allocation9 + $0xad8] sm:$0xff]
    %v529 = vld [vmem:[#allocation9 + $0xae0] sm:$0xff]
    %v530 = vld [vmem:[#allocation9 + $0xae8] sm:$0xff]
    %v531 = vld [vmem:[#allocation9 + $0xaf0] sm:$0xff]
    %v532 = vld [vmem:[#allocation9 + $0xaf8] sm:$0xff]
    %v533 = vld [vmem:[#allocation9 + $0xb00] sm:$0xff]
    %v534 = vld [vmem:[#allocation9 + $0xb08] sm:$0xff]
    %v535 = vld [vmem:[#allocation9 + $0xb10] sm:$0xff]
    %v536 = vld [vmem:[#allocation9 + $0xb18] sm:$0xff]
    %v537 = vld [vmem:[#allocation9 + $0xb20] sm:$0xff]
    %v538 = vld [vmem:[#allocation9 + $0xb28] sm:$0xff]
    %v539 = vld [vmem:[#allocation9 + $0xb30] sm:$0xff]
    %v540 = vld [vmem:[#allocation9 + $0xb38] sm:$0xff]
    %v541 = vld [vmem:[#allocation9 + $0xb40] sm:$0xff]
    %v542 = vld [vmem:[#allocation9 + $0xb48] sm:$0xff]
    %v543 = vld [vmem:[#allocation9 + $0xb50] sm:$0xff]
    %v544 = vld [vmem:[#allocation9 + $0xb58] sm:$0xff]
    %v545 = vld [vmem:[#allocation9 + $0xb60] sm:$0xff]
    %v546 = vld [vmem:[#allocation9 + $0xb68] sm:$0xff]
    %v547 = vld [vmem:[#allocation9 + $0xb70] sm:$0xff]
    %v548 = vld [vmem:[#allocation9 + $0xb78] sm:$0xff]
    %v549 = vld [vmem:[#allocation9 + $0xb80] sm:$0xff]
    %v550 = vld [vmem:[#allocation9 + $0xb88] sm:$0xff]
    %v551 = vld [vmem:[#allocation9 + $0xb90] sm:$0xff]
    %v552 = vld [vmem:[#allocation9 + $0xb98] sm:$0xff]
    %v553 = vld [vmem:[#allocation9 + $0xba0] sm:$0xff]
    %v554 = vld [vmem:[#allocation9 + $0xba8] sm:$0xff]
    %v555 = vld [vmem:[#allocation9 + $0xbb0] sm:$0xff]
    %v556 = vld [vmem:[#allocation9 + $0xbb8] sm:$0xff]
    %v557 = vld [vmem:[#allocation9 + $0xbc0] sm:$0xff]
    %v558 = vld [vmem:[#allocation9 + $0xbc8] sm:$0xff]
    %v559 = vld [vmem:[#allocation9 + $0xbd0] sm:$0xff]
    %v560 = vld [vmem:[#allocation9 + $0xbd8] sm:$0xff]
    %v561 = vld [vmem:[#allocation9 + $0xbe0] sm:$0xff]
    %v562 = vld [vmem:[#allocation9 + $0xbe8] sm:$0xff]
    %v563 = vld [vmem:[#allocation9 + $0xbf0] sm:$0xff]
    %v564 = vld [vmem:[#allocation9 + $0xbf8] sm:$0xff]
    %v565 = vld [vmem:[#allocation9 + $0xc00] sm:$0xff]
    %v566 = vld [vmem:[#allocation9 + $0xc08] sm:$0xff]
    %v567 = vld [vmem:[#allocation9 + $0xc10] sm:$0xff]
    %v568 = vld [vmem:[#allocation9 + $0xc18] sm:$0xff]
    %v569 = vld [vmem:[#allocation9 + $0xc20] sm:$0xff]
    %v570 = vld [vmem:[#allocation9 + $0xc28] sm:$0xff]
    %v571 = vld [vmem:[#allocation9 + $0xc30] sm:$0xff]
    %v572 = vld [vmem:[#allocation9 + $0xc38] sm:$0xff]
    %v573 = vld [vmem:[#allocation9 + $0xc40] sm:$0xff]
    %v574 = vld [vmem:[#allocation9 + $0xc48] sm:$0xff]
    %v575 = vld [vmem:[#allocation9 + $0xc50] sm:$0xff]
    %v576 = vld [vmem:[#allocation9 + $0xc58] sm:$0xff]
    %v577 = vld [vmem:[#allocation9 + $0xc60] sm:$0xff]
    %v578 = vld [vmem:[#allocation9 + $0xc68] sm:$0xff]
    %v579 = vld [vmem:[#allocation9 + $0xc70] sm:$0xff]
    %v580 = vld [vmem:[#allocation9 + $0xc78] sm:$0xff]
    %v581 = vld [vmem:[#allocation9 + $0xc80] sm:$0xff]
    %v582 = vld [vmem:[#allocation9 + $0xc88] sm:$0xff]
    %v583 = vld [vmem:[#allocation9 + $0xc90] sm:$0xff]
    %v584 = vld [vmem:[#allocation9 + $0xc98] sm:$0xff]
    %v585 = vld [vmem:[#allocation9 + $0xca0] sm:$0xff]
    %v586 = vld [vmem:[#allocation9 + $0xca8] sm:$0xff]
    %v587 = vld [vmem:[#allocation9 + $0xcb0] sm:$0xff]
    %v588 = vld [vmem:[#allocation9 + $0xcb8] sm:$0xff]
    %v589 = vld [vmem:[#allocation9 + $0xcc0] sm:$0xff]
    %v590 = vld [vmem:[#allocation9 + $0xcc8] sm:$0xff]
    %v591 = vld [vmem:[#allocation9 + $0xcd0] sm:$0xff]
    %v592 = vld [vmem:[#allocation9 + $0xcd8] sm:$0xff]
    %v593 = vld [vmem:[#allocation9 + $0xce0] sm:$0xff]
    %v594 = vld [vmem:[#allocation9 + $0xce8] sm:$0xff]
    %v595 = vld [vmem:[#allocation9 + $0xcf0] sm:$0xff]
    %v596 = vld [vmem:[#allocation9 + $0xcf8] sm:$0xff]
    %v597 = vld [vmem:[#allocation9 + $0xd00] sm:$0xff]
    %v598 = vld [vmem:[#allocation9 + $0xd08] sm:$0xff]
    %v599 = vld [vmem:[#allocation9 + $0xd10] sm:$0xff]
    %v600 = vld [vmem:[#allocation9 + $0xd18] sm:$0xff]
    %v601 = vld [vmem:[#allocation9 + $0xd20] sm:$0xff]
    %v602 = vld [vmem:[#allocation9 + $0xd28] sm:$0xff]
    %v603 = vld [vmem:[#allocation9 + $0xd30] sm:$0xff]
    %v604 = vld [vmem:[#allocation9 + $0xd38] sm:$0xff]
    %v605 = vld [vmem:[#allocation9 + $0xd40] sm:$0xff]
    %v606 = vld [vmem:[#allocation9 + $0xd48] sm:$0xff]
    %v607 = vld [vmem:[#allocation9 + $0xd50] sm:$0xff]
    %v608 = vld [vmem:[#allocation9 + $0xd58] sm:$0xff]
    %v609 = vld [vmem:[#allocation9 + $0xd60] sm:$0xff]
    %v610 = vld [vmem:[#allocation9 + $0xd68] sm:$0xff]
    %v611 = vld [vmem:[#allocation9 + $0xd70] sm:$0xff]
    %v612 = vld [vmem:[#allocation9 + $0xd78] sm:$0xff]
    %v613 = vld [vmem:[#allocation9 + $0xd80] sm:$0xff]
    %v614 = vld [vmem:[#allocation9 + $0xd88] sm:$0xff]
    %v615 = vld [vmem:[#allocation9 + $0xd90] sm:$0xff]
    %v616 = vld [vmem:[#allocation9 + $0xd98] sm:$0xff]
    %v617 = vld [vmem:[#allocation9 + $0xda0] sm:$0xff]
    %v618 = vld [vmem:[#allocation9 + $0xda8] sm:$0xff]
    %v619 = vld [vmem:[#allocation9 + $0xdb0] sm:$0xff]
    %v620 = vld [vmem:[#allocation9 + $0xdb8] sm:$0xff]
    %v621 = vld [vmem:[#allocation9 + $0xdc0] sm:$0xff]
    %v622 = vld [vmem:[#allocation9 + $0xdc8] sm:$0xff]
    %v623 = vld [vmem:[#allocation9 + $0xdd0] sm:$0xff]
    %v624 = vld [vmem:[#allocation9 + $0xdd8] sm:$0xff]
    %v625 = vld [vmem:[#allocation9 + $0xde0] sm:$0xff]
    %v626 = vld [vmem:[#allocation9 + $0xde8] sm:$0xff]
    %v627 = vld [vmem:[#allocation9 + $0xdf0] sm:$0xff]
    %v628 = vld [vmem:[#allocation9 + $0xdf8] sm:$0xff]
    %v629 = vld [vmem:[#allocation9 + $0xe00] sm:$0xff]
    %v630 = vld [vmem:[#allocation9 + $0xe08] sm:$0xff]
    %v631 = vld [vmem:[#allocation9 + $0xe10] sm:$0xff]
    %v632 = vld [vmem:[#allocation9 + $0xe18] sm:$0xff]
    %v633 = vld [vmem:[#allocation9 + $0xe20] sm:$0xff]
    %v634 = vld [vmem:[#allocation9 + $0xe28] sm:$0xff]
    %v635 = vld [vmem:[#allocation9 + $0xe30] sm:$0xff]
    %v636 = vld [vmem:[#allocation9 + $0xe38] sm:$0xff]
    %v637 = vld [vmem:[#allocation9 + $0xe40] sm:$0xff]
    %v638 = vld [vmem:[#allocation9 + $0xe48] sm:$0xff]
    %v639 = vld [vmem:[#allocation9 + $0xe50] sm:$0xff]
    %v640 = vld [vmem:[#allocation9 + $0xe58] sm:$0xff]
    %v641 = vld [vmem:[#allocation9 + $0xe60] sm:$0xff]
    %v642 = vld [vmem:[#allocation9 + $0xe68] sm:$0xff]
    %v643 = vld [vmem:[#allocation9 + $0xe70] sm:$0xff]
    %v644 = vld [vmem:[#allocation9 + $0xe78] sm:$0xff]
    %v645 = vld [vmem:[#allocation9 + $0xe80] sm:$0xff]
    %v646 = vld [vmem:[#allocation9 + $0xe88] sm:$0xff]
    %v647 = vld [vmem:[#allocation9 + $0xe90] sm:$0xff]
    %v648 = vld [vmem:[#allocation9 + $0xe98] sm:$0xff]
    %v649 = vld [vmem:[#allocation9 + $0xea0] sm:$0xff]
    %v650 = vld [vmem:[#allocation9 + $0xea8] sm:$0xff]
    %v651 = vld [vmem:[#allocation9 + $0xeb0] sm:$0xff]
    %v652 = vld [vmem:[#allocation9 + $0xeb8] sm:$0xff]
    %v653 = vld [vmem:[#allocation9 + $0xec0] sm:$0xff]
    %v654 = vld [vmem:[#allocation9 + $0xec8] sm:$0xff]
    %v655 = vld [vmem:[#allocation9 + $0xed0] sm:$0xff]
    %v656 = vld [vmem:[#allocation9 + $0xed8] sm:$0xff]
    %v657 = vld [vmem:[#allocation9 + $0xee0] sm:$0xff]
    %v658 = vld [vmem:[#allocation9 + $0xee8] sm:$0xff]
    %v659 = vld [vmem:[#allocation9 + $0xef0] sm:$0xff]
    %v660 = vld [vmem:[#allocation9 + $0xef8] sm:$0xff]
    %v661 = vld [vmem:[#allocation9 + $0xf00] sm:$0xff]
    %v662 = vld [vmem:[#allocation9 + $0xf08] sm:$0xff]
    %v663 = vld [vmem:[#allocation9 + $0xf10] sm:$0xff]
    %v664 = vld [vmem:[#allocation9 + $0xf18] sm:$0xff]
    %v665 = vld [vmem:[#allocation9 + $0xf20] sm:$0xff]
    %v666 = vld [vmem:[#allocation9 + $0xf28] sm:$0xff]
    %v667 = vld [vmem:[#allocation9 + $0xf30] sm:$0xff]
    %v668 = vld [vmem:[#allocation9 + $0xf38] sm:$0xff]
    %v669 = vld [vmem:[#allocation9 + $0xf40] sm:$0xff]
    %v670 = vld [vmem:[#allocation9 + $0xf48] sm:$0xff]
    %v671 = vld [vmem:[#allocation9 + $0xf50] sm:$0xff]
    %v672 = vld [vmem:[#allocation9 + $0xf58] sm:$0xff]
    %v673 = vld [vmem:[#allocation9 + $0xf60] sm:$0xff]
    %v674 = vld [vmem:[#allocation9 + $0xf68] sm:$0xff]
    %v675 = vld [vmem:[#allocation9 + $0xf70] sm:$0xff]
    %v676 = vld [vmem:[#allocation9 + $0xf78] sm:$0xff]
    %v677 = vld [vmem:[#allocation9 + $0xf80] sm:$0xff]
    %v678 = vld [vmem:[#allocation9 + $0xf88] sm:$0xff]
    %v679 = vld [vmem:[#allocation9 + $0xf90] sm:$0xff]
    %v680 = vld [vmem:[#allocation9 + $0xf98] sm:$0xff]
    %v681 = vld [vmem:[#allocation9 + $0xfa0] sm:$0xff]
    %v682 = vld [vmem:[#allocation9 + $0xfa8] sm:$0xff]
    %v683 = vld [vmem:[#allocation9 + $0xfb0] sm:$0xff]
    %v684 = vld [vmem:[#allocation9 + $0xfb8] sm:$0xff]
    %v685 = vld [vmem:[#allocation9 + $0xfc0] sm:$0xff]
    %v686 = vld [vmem:[#allocation9 + $0xfc8] sm:$0xff]
    %v687 = vld [vmem:[#allocation9 + $0xfd0] sm:$0xff]
    %v688 = vld [vmem:[#allocation9 + $0xfd8] sm:$0xff]
    %v689 = vld [vmem:[#allocation9 + $0xfe0] sm:$0xff]
    %v690 = vld [vmem:[#allocation9 + $0xfe8] sm:$0xff]
    %v691 = vld [vmem:[#allocation9 + $0xff0] sm:$0xff]
    %v692 = vld [vmem:[#allocation9 + $0xff8] sm:$0xff]
    %v693 = vld [vmem:[#allocation9 + $0x1000] sm:$0xff]
    %v694 = vld [vmem:[#allocation9 + $0x1008] sm:$0xff]
    %v695 = vld [vmem:[#allocation9 + $0x1010] sm:$0xff]
    %v696 = vld [vmem:[#allocation9 + $0x1018] sm:$0xff]
    %v697 = vld [vmem:[#allocation9 + $0x1020] sm:$0xff]
    %v698 = vld [vmem:[#allocation9 + $0x1028] sm:$0xff]
    %v699 = vld [vmem:[#allocation9 + $0x1030] sm:$0xff]
    %v700 = vld [vmem:[#allocation9 + $0x1038] sm:$0xff]
    %v701 = vld [vmem:[#allocation9 + $0x1040] sm:$0xff]
    %v702 = vld [vmem:[#allocation9 + $0x1048] sm:$0xff]
    %v703 = vld [vmem:[#allocation9 + $0x1050] sm:$0xff]
    %v704 = vld [vmem:[#allocation9 + $0x1058] sm:$0xff]
    %v705 = vld [vmem:[#allocation9 + $0x1060] sm:$0xff]
    %v706 = vld [vmem:[#allocation9 + $0x1068] sm:$0xff]
    %v707 = vld [vmem:[#allocation9 + $0x1070] sm:$0xff]
    %v708 = vld [vmem:[#allocation9 + $0x1078] sm:$0xff]
    %v709 = vld [vmem:[#allocation9 + $0x1080] sm:$0xff]
    %v710 = vld [vmem:[#allocation9 + $0x1088] sm:$0xff]
    %v711 = vld [vmem:[#allocation9 + $0x1090] sm:$0xff]
    %v712 = vld [vmem:[#allocation9 + $0x1098] sm:$0xff]
    %v713 = vld [vmem:[#allocation9 + $0x10a0] sm:$0xff]
    %v714 = vld [vmem:[#allocation9 + $0x10a8] sm:$0xff]
    %v715 = vld [vmem:[#allocation9 + $0x10b0] sm:$0xff]
    %v716 = vld [vmem:[#allocation9 + $0x10b8] sm:$0xff]
    %v717 = vld [vmem:[#allocation9 + $0x10c0] sm:$0xff]
    %v718 = vld [vmem:[#allocation9 + $0x10c8] sm:$0xff]
    %v719 = vld [vmem:[#allocation9 + $0x10d0] sm:$0xff]
    %v720 = vld [vmem:[#allocation9 + $0x10d8] sm:$0xff]
    %v721 = vld [vmem:[#allocation9 + $0x10e0] sm:$0xff]
    %v722 = vld [vmem:[#allocation9 + $0x10e8] sm:$0xff]
    %v723 = vld [vmem:[#allocation9 + $0x10f0] sm:$0xff]
    %v724 = vld [vmem:[#allocation9 + $0x10f8] sm:$0xff]
    %v725 = vld [vmem:[#allocation9 + $0x1100] sm:$0xff]
    %v726 = vld [vmem:[#allocation9 + $0x1108] sm:$0xff]
    %v727 = vld [vmem:[#allocation9 + $0x1110] sm:$0xff]
    %v728 = vld [vmem:[#allocation9 + $0x1118] sm:$0xff]
    %v729 = vld [vmem:[#allocation9 + $0x1120] sm:$0xff]
    %v730 = vld [vmem:[#allocation9 + $0x1128] sm:$0xff]
    %v731 = vld [vmem:[#allocation9 + $0x1130] sm:$0xff]
    %v732 = vld [vmem:[#allocation9 + $0x1138] sm:$0xff]
    %v733 = vld [vmem:[#allocation9 + $0x1140] sm:$0xff]
    %v734 = vld [vmem:[#allocation9 + $0x1148] sm:$0xff]
    %v735 = vld [vmem:[#allocation9 + $0x1150] sm:$0xff]
    %v736 = vld [vmem:[#allocation9 + $0x1158] sm:$0xff]
    %v737 = vld [vmem:[#allocation9 + $0x1160] sm:$0xff]
    %v738 = vld [vmem:[#allocation9 + $0x1168] sm:$0xff]
    %v739 = vld [vmem:[#allocation9 + $0x1170] sm:$0xff]
    %v740 = vld [vmem:[#allocation9 + $0x1178] sm:$0xff]
    %v741 = vld [vmem:[#allocation9 + $0x1180] sm:$0xff]
    %v742 = vld [vmem:[#allocation9 + $0x1188] sm:$0xff]
    %v743 = vld [vmem:[#allocation9 + $0x1190] sm:$0xff]
    %v744 = vld [vmem:[#allocation9 + $0x1198] sm:$0xff]
    %v745 = vld [vmem:[#allocation9 + $0x11a0] sm:$0xff]
    %v746 = vld [vmem:[#allocation9 + $0x11a8] sm:$0xff]
    %v747 = vld [vmem:[#allocation9 + $0x11b0] sm:$0xff]
    %v748 = vld [vmem:[#allocation9 + $0x11b8] sm:$0xff]
    %v749 = vld [vmem:[#allocation9 + $0x11c0] sm:$0xff]
    %v750 = vld [vmem:[#allocation9 + $0x11c8] sm:$0xff]
    %v751 = vld [vmem:[#allocation9 + $0x11d0] sm:$0xff]
    %v752 = vld [vmem:[#allocation9 + $0x11d8] sm:$0xff]
    %v753 = vld [vmem:[#allocation9 + $0x11e0] sm:$0xff]
    %v754 = vld [vmem:[#allocation9 + $0x11e8] sm:$0xff]
    %v755 = vld [vmem:[#allocation9 + $0x11f0] sm:$0xff]
    %v756 = vld [vmem:[#allocation9 + $0x11f8] sm:$0xff]
    %v757 = vld [vmem:[#allocation9 + $0x1200] sm:$0xff]
    %v758 = vld [vmem:[#allocation9 + $0x1208] sm:$0xff]
    %v759 = vld [vmem:[#allocation9 + $0x1210] sm:$0xff]
    %v760 = vld [vmem:[#allocation9 + $0x1218] sm:$0xff]
    %v761 = vld [vmem:[#allocation9 + $0x1220] sm:$0xff]
    %v762 = vld [vmem:[#allocation9 + $0x1228] sm:$0xff]
    %v763 = vld [vmem:[#allocation9 + $0x1230] sm:$0xff]
    %v764 = vld [vmem:[#allocation9 + $0x1238] sm:$0xff]
    %v765 = vld [vmem:[#allocation9 + $0x1240] sm:$0xff]
    %v766 = vld [vmem:[#allocation9 + $0x1248] sm:$0xff]
    %v767 = vld [vmem:[#allocation9 + $0x1250] sm:$0xff]
    %v768 = vld [vmem:[#allocation9 + $0x1258] sm:$0xff]
    %v769 = vld [vmem:[#allocation9 + $0x1260] sm:$0xff]
    %v770 = vld [vmem:[#allocation9 + $0x1268] sm:$0xff]
    %v771 = vld [vmem:[#allocation9 + $0x1270] sm:$0xff]
    %v772 = vld [vmem:[#allocation9 + $0x1278] sm:$0xff]
    %v773 = vld [vmem:[#allocation9 + $0x1280] sm:$0xff]
    %v774 = vld [vmem:[#allocation9 + $0x1288] sm:$0xff]
    %v775 = vld [vmem:[#allocation9 + $0x1290] sm:$0xff]
    %v776 = vld [vmem:[#allocation9 + $0x1298] sm:$0xff]
    %v777 = vld [vmem:[#allocation9 + $0x12a0] sm:$0xff]
    %v778 = vld [vmem:[#allocation9 + $0x12a8] sm:$0xff]
    %v779 = vld [vmem:[#allocation9 + $0x12b0] sm:$0xff]
    %v780 = vld [vmem:[#allocation9 + $0x12b8] sm:$0xff]
    %v781 = vld [vmem:[#allocation9 + $0x12c0] sm:$0xff]
    %v782 = vld [vmem:[#allocation9 + $0x12c8] sm:$0xff]
    %v783 = vld [vmem:[#allocation9 + $0x12d0] sm:$0xff]
    %v784 = vld [vmem:[#allocation9 + $0x12d8] sm:$0xff]
    %v785 = vld [vmem:[#allocation9 + $0x12e0] sm:$0xff]
    %v786 = vld [vmem:[#allocation9 + $0x12e8] sm:$0xff]
    %v787 = vld [vmem:[#allocation9 + $0x12f0] sm:$0xff]
    %v788 = vld [vmem:[#allocation9 + $0x12f8] sm:$0xff]
    %v789 = vld [vmem:[#allocation9 + $0x1300] sm:$0xff]
    %v790 = vld [vmem:[#allocation9 + $0x1308] sm:$0xff]
    %v791 = vld [vmem:[#allocation9 + $0x1310] sm:$0xff]
    %v792 = vld [vmem:[#allocation9 + $0x1318] sm:$0xff]
    %v793 = vld [vmem:[#allocation9 + $0x1320] sm:$0xff]
    %v794 = vld [vmem:[#allocation9 + $0x1328] sm:$0xff]
    %v795 = vld [vmem:[#allocation9 + $0x1330] sm:$0xff]
    %v796 = vld [vmem:[#allocation9 + $0x1338] sm:$0xff]
    %v797 = vld [vmem:[#allocation9 + $0x1340] sm:$0xff]
    %v798 = vld [vmem:[#allocation9 + $0x1348] sm:$0xff]
    %v799 = vld [vmem:[#allocation9 + $0x1350] sm:$0xff]
    %v800 = vld [vmem:[#allocation9 + $0x1358] sm:$0xff]
    %v801 = vld [vmem:[#allocation9 + $0x1360] sm:$0xff]
    %v802 = vld [vmem:[#allocation9 + $0x1368] sm:$0xff]
    %v803 = vld [vmem:[#allocation9 + $0x1370] sm:$0xff]
    %v804 = vld [vmem:[#allocation9 + $0x1378] sm:$0xff]
    %v805 = vld [vmem:[#allocation9 + $0x1380] sm:$0xff]
    %v806 = vld [vmem:[#allocation9 + $0x1388] sm:$0xff]
    %v807 = vld [vmem:[#allocation9 + $0x1390] sm:$0xff]
    %v808 = vld [vmem:[#allocation9 + $0x1398] sm:$0xff]
    %v809 = vld [vmem:[#allocation9 + $0x13a0] sm:$0xff]
    %v810 = vld [vmem:[#allocation9 + $0x13a8] sm:$0xff]
    %v811 = vld [vmem:[#allocation9 + $0x13b0] sm:$0xff]
    %v812 = vld [vmem:[#allocation9 + $0x13b8] sm:$0xff]
    %v813 = vld [vmem:[#allocation9 + $0x13c0] sm:$0xff]
    %v814 = vld [vmem:[#allocation9 + $0x13c8] sm:$0xff]
    %v815 = vld [vmem:[#allocation9 + $0x13d0] sm:$0xff]
    %v816 = vld [vmem:[#allocation9 + $0x13d8] sm:$0xff]
    %v817 = vld [vmem:[#allocation9 + $0x13e0] sm:$0xff]
    %v818 = vld [vmem:[#allocation9 + $0x13e8] sm:$0xff]
    %v819 = vld [vmem:[#allocation9 + $0x13f0] sm:$0xff]
    %v820 = vld [vmem:[#allocation9 + $0x13f8] sm:$0xff]
    %v821 = vld [vmem:[#allocation9 + $0x1400] sm:$0xff]
    %v822 = vld [vmem:[#allocation9 + $0x1408] sm:$0xff]
    %v823 = vld [vmem:[#allocation9 + $0x1410] sm:$0xff]
    %v824 = vld [vmem:[#allocation9 + $0x1418] sm:$0xff]
    %v825 = vld [vmem:[#allocation9 + $0x1420] sm:$0xff]
    %v826 = vld [vmem:[#allocation9 + $0x1428] sm:$0xff]
    %v827 = vld [vmem:[#allocation9 + $0x1430] sm:$0xff]
    %v828 = vld [vmem:[#allocation9 + $0x1438] sm:$0xff]
    %v829 = vld [vmem:[#allocation9 + $0x1440] sm:$0xff]
    %v830 = vld [vmem:[#allocation9 + $0x1448] sm:$0xff]
    %v831 = vld [vmem:[#allocation9 + $0x1450] sm:$0xff]
    %v832 = vld [vmem:[#allocation9 + $0x1458] sm:$0xff]
    %v833 = vld [vmem:[#allocation9 + $0x1460] sm:$0xff]
    %v834 = vld [vmem:[#allocation9 + $0x1468] sm:$0xff]
    %v835 = vld [vmem:[#allocation9 + $0x1470] sm:$0xff]
    %v836 = vld [vmem:[#allocation9 + $0x1478] sm:$0xff]
    %v837 = vld [vmem:[#allocation9 + $0x1480] sm:$0xff]
    %v838 = vld [vmem:[#allocation9 + $0x1488] sm:$0xff]
    %v839 = vld [vmem:[#allocation9 + $0x1490] sm:$0xff]
    %v840 = vld [vmem:[#allocation9 + $0x1498] sm:$0xff]
    %v841 = vld [vmem:[#allocation9 + $0x14a0] sm:$0xff]
    %v842 = vld [vmem:[#allocation9 + $0x14a8] sm:$0xff]
    %v843 = vld [vmem:[#allocation9 + $0x14b0] sm:$0xff]
    %v844 = vld [vmem:[#allocation9 + $0x14b8] sm:$0xff]
    %v845 = vld [vmem:[#allocation9 + $0x14c0] sm:$0xff]
    %v846 = vld [vmem:[#allocation9 + $0x14c8] sm:$0xff]
    %v847 = vld [vmem:[#allocation9 + $0x14d0] sm:$0xff]
    %v848 = vld [vmem:[#allocation9 + $0x14d8] sm:$0xff]
    %v849 = vld [vmem:[#allocation9 + $0x14e0] sm:$0xff]
    %v850 = vld [vmem:[#allocation9 + $0x14e8] sm:$0xff]
    %v851 = vld [vmem:[#allocation9 + $0x14f0] sm:$0xff]
    %v852 = vld [vmem:[#allocation9 + $0x14f8] sm:$0xff]
    %v853 = vld [vmem:[#allocation9 + $0x1500] sm:$0xff]
    %v854 = vld [vmem:[#allocation9 + $0x1508] sm:$0xff]
    %v855 = vld [vmem:[#allocation9 + $0x1510] sm:$0xff]
    %v856 = vld [vmem:[#allocation9 + $0x1518] sm:$0xff]
    %v857 = vld [vmem:[#allocation9 + $0x1520] sm:$0xff]
    %v858 = vld [vmem:[#allocation9 + $0x1528] sm:$0xff]
    %v859 = vld [vmem:[#allocation9 + $0x1530] sm:$0xff]
    %v860 = vld [vmem:[#allocation9 + $0x1538] sm:$0xff]
    %v861 = vld [vmem:[#allocation9 + $0x1540] sm:$0xff]
    %v862 = vld [vmem:[#allocation9 + $0x1548] sm:$0xff]
    %v863 = vld [vmem:[#allocation9 + $0x1550] sm:$0xff]
    %v864 = vld [vmem:[#allocation9 + $0x1558] sm:$0xff]
    %v865 = vld [vmem:[#allocation9 + $0x1560] sm:$0xff]
    %v866 = vld [vmem:[#allocation9 + $0x1568] sm:$0xff]
    %v867 = vld [vmem:[#allocation9 + $0x1570] sm:$0xff]
    %v868 = vld [vmem:[#allocation9 + $0x1578] sm:$0xff]
    %v869 = vld [vmem:[#allocation9 + $0x1580] sm:$0xff]
    %v870 = vld [vmem:[#allocation9 + $0x1588] sm:$0xff]
    %v871 = vld [vmem:[#allocation9 + $0x1590] sm:$0xff]
    %v872 = vld [vmem:[#allocation9 + $0x1598] sm:$0xff]
    %v873 = vld [vmem:[#allocation9 + $0x15a0] sm:$0xff]
    %v874 = vld [vmem:[#allocation9 + $0x15a8] sm:$0xff]
    %v875 = vld [vmem:[#allocation9 + $0x15b0] sm:$0xff]
    %v876 = vld [vmem:[#allocation9 + $0x15b8] sm:$0xff]
    %v877 = vld [vmem:[#allocation9 + $0x15c0] sm:$0xff]
    %v878 = vld [vmem:[#allocation9 + $0x15c8] sm:$0xff]
    %v879 = vld [vmem:[#allocation9 + $0x15d0] sm:$0xff]
    %v880 = vld [vmem:[#allocation9 + $0x15d8] sm:$0xff]
    %v881 = vld [vmem:[#allocation9 + $0x15e0] sm:$0xff]
    %v882 = vld [vmem:[#allocation9 + $0x15e8] sm:$0xff]
    %v883 = vld [vmem:[#allocation9 + $0x15f0] sm:$0xff]
    %v884 = vld [vmem:[#allocation9 + $0x15f8] sm:$0xff]
    %v885 = vld [vmem:[#allocation9 + $0x1600] sm:$0xff]
    %v886 = vld [vmem:[#allocation9 + $0x1608] sm:$0xff]
    %v887 = vld [vmem:[#allocation9 + $0x1610] sm:$0xff]
    %v888 = vld [vmem:[#allocation9 + $0x1618] sm:$0xff]
    %v889 = vld [vmem:[#allocation9 + $0x1620] sm:$0xff]
    %v890 = vld [vmem:[#allocation9 + $0x1628] sm:$0xff]
    %v891 = vld [vmem:[#allocation9 + $0x1630] sm:$0xff]
    %v892 = vld [vmem:[#allocation9 + $0x1638] sm:$0xff]
    %v893 = vld [vmem:[#allocation9 + $0x1640] sm:$0xff]
    %v894 = vld [vmem:[#allocation9 + $0x1648] sm:$0xff]
    %v895 = vld [vmem:[#allocation9 + $0x1650] sm:$0xff]
    %v896 = vld [vmem:[#allocation9 + $0x1658] sm:$0xff]
    %v897 = vld [vmem:[#allocation9 + $0x1660] sm:$0xff]
    %v898 = vld [vmem:[#allocation9 + $0x1668] sm:$0xff]
    %v899 = vld [vmem:[#allocation9 + $0x1670] sm:$0xff]
    %v900 = vld [vmem:[#allocation9 + $0x1678] sm:$0xff]
    %v901 = vld [vmem:[#allocation9 + $0x1680] sm:$0xff]
    %v902 = vld [vmem:[#allocation9 + $0x1688] sm:$0xff]
    %v903 = vld [vmem:[#allocation9 + $0x1690] sm:$0xff]
    %v904 = vld [vmem:[#allocation9 + $0x1698] sm:$0xff]
    %v905 = vld [vmem:[#allocation9 + $0x16a0] sm:$0xff]
    %v906 = vld [vmem:[#allocation9 + $0x16a8] sm:$0xff]
    %v907 = vld [vmem:[#allocation9 + $0x16b0] sm:$0xff]
    %v908 = vld [vmem:[#allocation9 + $0x16b8] sm:$0xff]
    %v909 = vld [vmem:[#allocation9 + $0x16c0] sm:$0xff]
    %v910 = vld [vmem:[#allocation9 + $0x16c8] sm:$0xff]
    %v911 = vld [vmem:[#allocation9 + $0x16d0] sm:$0xff]
    %v912 = vld [vmem:[#allocation9 + $0x16d8] sm:$0xff]
    %v913 = vld [vmem:[#allocation9 + $0x16e0] sm:$0xff]
    %v914 = vld [vmem:[#allocation9 + $0x16e8] sm:$0xff]
    %v915 = vld [vmem:[#allocation9 + $0x16f0] sm:$0xff]
    %v916 = vld [vmem:[#allocation9 + $0x16f8] sm:$0xff]
    %v917 = vld [vmem:[#allocation9 + $0x1700] sm:$0xff]
    %v918 = vld [vmem:[#allocation9 + $0x1708] sm:$0xff]
    %v919 = vld [vmem:[#allocation9 + $0x1710] sm:$0xff]
    %v920 = vld [vmem:[#allocation9 + $0x1718] sm:$0xff]
    %v921 = vld [vmem:[#allocation9 + $0x1720] sm:$0xff]
    %v922 = vld [vmem:[#allocation9 + $0x1728] sm:$0xff]
    %v923 = vld [vmem:[#allocation9 + $0x1730] sm:$0xff]
    %v924 = vld [vmem:[#allocation9 + $0x1738] sm:$0xff]
    %v925 = vld [vmem:[#allocation9 + $0x1740] sm:$0xff]
    %v926 = vld [vmem:[#allocation9 + $0x1748] sm:$0xff]
    %v927 = vld [vmem:[#allocation9 + $0x1750] sm:$0xff]
    %v928 = vld [vmem:[#allocation9 + $0x1758] sm:$0xff]
    %v929 = vld [vmem:[#allocation9 + $0x1760] sm:$0xff]
    %v930 = vld [vmem:[#allocation9 + $0x1768] sm:$0xff]
    %v931 = vld [vmem:[#allocation9 + $0x1770] sm:$0xff]
    %v932 = vld [vmem:[#allocation9 + $0x1778] sm:$0xff]
    %v933 = vld [vmem:[#allocation9 + $0x1780] sm:$0xff]
    %v934 = vld [vmem:[#allocation9 + $0x1788] sm:$0xff]
    %v935 = vld [vmem:[#allocation9 + $0x1790] sm:$0xff]
    %v936 = vld [vmem:[#allocation9 + $0x1798] sm:$0xff]
    %v937 = vld [vmem:[#allocation9 + $0x17a0] sm:$0xff]
    %v938 = vld [vmem:[#allocation9 + $0x17a8] sm:$0xff]
    %v939 = vld [vmem:[#allocation9 + $0x17b0] sm:$0xff]
    %v940 = vld [vmem:[#allocation9 + $0x17b8] sm:$0xff]
    %v941 = vld [vmem:[#allocation9 + $0x17c0] sm:$0xff]
    %v942 = vld [vmem:[#allocation9 + $0x17c8] sm:$0xff]
    %v943 = vld [vmem:[#allocation9 + $0x17d0] sm:$0xff]
    %v944 = vld [vmem:[#allocation9 + $0x17d8] sm:$0xff]
    %v945 = vld [vmem:[#allocation9 + $0x17e0] sm:$0xff]
    %v946 = vld [vmem:[#allocation9 + $0x17e8] sm:$0xff]
    %v947 = vld [vmem:[#allocation9 + $0x17f0] sm:$0xff]
    %v948 = vld [vmem:[#allocation9 + $0x17f8] sm:$0xff]
    %v949 = vld [vmem:[#allocation11] sm:$0xff]
    %v950 = vld [vmem:[#allocation11 + $0x8] sm:$0xff]
    %v951 = vld [vmem:[#allocation11 + $0x10] sm:$0xff]
    %v952 = vld [vmem:[#allocation11 + $0x18] sm:$0xff]
    %v953 = vld [vmem:[#allocation11 + $0x20] sm:$0xff]
    %v954 = vld [vmem:[#allocation11 + $0x28] sm:$0xff]
    %v961 = vlaneseq
    %v962 = vshrl.u32 %v961, 7
    %v963 = vsub.s32 0, %v962
    %v964 = vrot.slane %v949, %v963
    %v965 = vlaneseq
    %v966 = vshrl.u32 %v965, 7
    %v967 = vsub.s32 1, %v966
    %v968 = vrot.slane %v949, %v967
    %v969 = vlaneseq
    %v970 = vshrl.u32 %v969, 7
    %v971 = vsub.s32 2, %v970
    %v972 = vrot.slane %v949, %v971
    %v973 = vlaneseq
    %v974 = vshrl.u32 %v973, 7
    %v975 = vsub.s32 3, %v974
    %v976 = vrot.slane %v949, %v975
    %v977 = vlaneseq
    %v978 = vshrl.u32 %v977, 7
    %v979 = vsub.s32 4, %v978
    %v980 = vrot.slane %v949, %v979
    %v981 = vlaneseq
    %v982 = vshrl.u32 %v981, 7
    %v983 = vsub.s32 5, %v982
    %v984 = vrot.slane %v949, %v983
    %v985 = vlaneseq
    %v986 = vshrl.u32 %v985, 7
    %v987 = vsub.s32 6, %v986
    %v988 = vrot.slane %v949, %v987
    %v989 = vlaneseq
    %v990 = vshrl.u32 %v989, 7
    %v991 = vsub.s32 7, %v990
    %v992 = vrot.slane %v949, %v991
    %v993 = vlaneseq
    %v994 = vshrl.u32 %v993, 7
    %v995 = vsub.s32 0, %v994
    %v996 = vrot.slane %v950, %v995
    %v997 = vlaneseq
    %v998 = vshrl.u32 %v997, 7
    %v999 = vsub.s32 1, %v998
    %v1000 = vrot.slane %v950, %v999
    %v1001 = vlaneseq
    %v1002 = vshrl.u32 %v1001, 7
    %v1003 = vsub.s32 2, %v1002
    %v1004 = vrot.slane %v950, %v1003
    %v1005 = vlaneseq
    %v1006 = vshrl.u32 %v1005, 7
    %v1007 = vsub.s32 3, %v1006
    %v1008 = vrot.slane %v950, %v1007
    %v1009 = vlaneseq
    %v1010 = vshrl.u32 %v1009, 7
    %v1011 = vsub.s32 4, %v1010
    %v1012 = vrot.slane %v950, %v1011
    %v1013 = vlaneseq
    %v1014 = vshrl.u32 %v1013, 7
    %v1015 = vsub.s32 5, %v1014
    %v1016 = vrot.slane %v950, %v1015
    %v1017 = vlaneseq
    %v1018 = vshrl.u32 %v1017, 7
    %v1019 = vsub.s32 6, %v1018
    %v1020 = vrot.slane %v950, %v1019
    %v1021 = vlaneseq
    %v1022 = vshrl.u32 %v1021, 7
    %v1023 = vsub.s32 7, %v1022
    %v1024 = vrot.slane %v950, %v1023
    %v1025 = vlaneseq
    %v1026 = vshrl.u32 %v1025, 7
    %v1027 = vsub.s32 0, %v1026
    %v1028 = vrot.slane %v951, %v1027
    %v1029 = vlaneseq
    %v1030 = vshrl.u32 %v1029, 7
    %v1031 = vsub.s32 1, %v1030
    %v1032 = vrot.slane %v951, %v1031
    %v1033 = vlaneseq
    %v1034 = vshrl.u32 %v1033, 7
    %v1035 = vsub.s32 2, %v1034
    %v1036 = vrot.slane %v951, %v1035
    %v1037 = vlaneseq
    %v1038 = vshrl.u32 %v1037, 7
    %v1039 = vsub.s32 3, %v1038
    %v1040 = vrot.slane %v951, %v1039
    %v1041 = vlaneseq
    %v1042 = vshrl.u32 %v1041, 7
    %v1043 = vsub.s32 4, %v1042
    %v1044 = vrot.slane %v951, %v1043
    %v1045 = vlaneseq
    %v1046 = vshrl.u32 %v1045, 7
    %v1047 = vsub.s32 5, %v1046
    %v1048 = vrot.slane %v951, %v1047
    %v1049 = vlaneseq
    %v1050 = vshrl.u32 %v1049, 7
    %v1051 = vsub.s32 6, %v1050
    %v1052 = vrot.slane %v951, %v1051
    %v1053 = vlaneseq
    %v1054 = vshrl.u32 %v1053, 7
    %v1055 = vsub.s32 7, %v1054
    %v1056 = vrot.slane %v951, %v1055
    %v1057 = vlaneseq
    %v1058 = vshrl.u32 %v1057, 7
    %v1059 = vsub.s32 0, %v1058
    %v1060 = vrot.slane %v952, %v1059
    %v1061 = vlaneseq
    %v1062 = vshrl.u32 %v1061, 7
    %v1063 = vsub.s32 1, %v1062
    %v1064 = vrot.slane %v952, %v1063
    %v1065 = vlaneseq
    %v1066 = vshrl.u32 %v1065, 7
    %v1067 = vsub.s32 2, %v1066
    %v1068 = vrot.slane %v952, %v1067
    %v1069 = vlaneseq
    %v1070 = vshrl.u32 %v1069, 7
    %v1071 = vsub.s32 3, %v1070
    %v1072 = vrot.slane %v952, %v1071
    %v1073 = vlaneseq
    %v1074 = vshrl.u32 %v1073, 7
    %v1075 = vsub.s32 4, %v1074
    %v1076 = vrot.slane %v952, %v1075
    %v1077 = vlaneseq
    %v1078 = vshrl.u32 %v1077, 7
    %v1079 = vsub.s32 5, %v1078
    %v1080 = vrot.slane %v952, %v1079
    %v1081 = vlaneseq
    %v1082 = vshrl.u32 %v1081, 7
    %v1083 = vsub.s32 6, %v1082
    %v1084 = vrot.slane %v952, %v1083
    %v1085 = vlaneseq
    %v1086 = vshrl.u32 %v1085, 7
    %v1087 = vsub.s32 7, %v1086
    %v1088 = vrot.slane %v952, %v1087
    %v1089 = vlaneseq
    %v1090 = vshrl.u32 %v1089, 7
    %v1091 = vsub.s32 0, %v1090
    %v1092 = vrot.slane %v953, %v1091
    %v1093 = vlaneseq
    %v1094 = vshrl.u32 %v1093, 7
    %v1095 = vsub.s32 1, %v1094
    %v1096 = vrot.slane %v953, %v1095
    %v1097 = vlaneseq
    %v1098 = vshrl.u32 %v1097, 7
    %v1099 = vsub.s32 2, %v1098
    %v1100 = vrot.slane %v953, %v1099
    %v1101 = vlaneseq
    %v1102 = vshrl.u32 %v1101, 7
    %v1103 = vsub.s32 3, %v1102
    %v1104 = vrot.slane %v953, %v1103
    %v1105 = vlaneseq
    %v1106 = vshrl.u32 %v1105, 7
    %v1107 = vsub.s32 4, %v1106
    %v1108 = vrot.slane %v953, %v1107
    %v1109 = vlaneseq
    %v1110 = vshrl.u32 %v1109, 7
    %v1111 = vsub.s32 5, %v1110
    %v1112 = vrot.slane %v953, %v1111
    %v1113 = vlaneseq
    %v1114 = vshrl.u32 %v1113, 7
    %v1115 = vsub.s32 6, %v1114
    %v1116 = vrot.slane %v953, %v1115
    %v1117 = vlaneseq
    %v1118 = vshrl.u32 %v1117, 7
    %v1119 = vsub.s32 7, %v1118
    %v1120 = vrot.slane %v953, %v1119
    %v1121 = vlaneseq
    %v1122 = vshrl.u32 %v1121, 7
    %v1123 = vsub.s32 0, %v1122
    %v1124 = vrot.slane %v954, %v1123
    %v1125 = vlaneseq
    %v1126 = vshrl.u32 %v1125, 7
    %v1127 = vsub.s32 1, %v1126
    %v1128 = vrot.slane %v954, %v1127
    %v1129 = vlaneseq
    %v1130 = vshrl.u32 %v1129, 7
    %v1131 = vsub.s32 2, %v1130
    %v1132 = vrot.slane %v954, %v1131
    %v1133 = vlaneseq
    %v1134 = vshrl.u32 %v1133, 7
    %v1135 = vsub.s32 3, %v1134
    %v1136 = vrot.slane %v954, %v1135
    %v1137 = vlaneseq
    %v1138 = vshrl.u32 %v1137, 7
    %v1139 = vsub.s32 4, %v1138
    %v1140 = vrot.slane %v954, %v1139
    %v1141 = vlaneseq
    %v1142 = vshrl.u32 %v1141, 7
    %v1143 = vsub.s32 5, %v1142
    %v1144 = vrot.slane %v954, %v1143
    %v1145 = vlaneseq
    %v1146 = vshrl.u32 %v1145, 7
    %v1147 = vsub.s32 6, %v1146
    %v1148 = vrot.slane %v954, %v1147
    %v1149 = vlaneseq
    %v1150 = vshrl.u32 %v1149, 7
    %v1151 = vsub.s32 7, %v1150
    %v1152 = vrot.slane %v954, %v1151
    %v1969 = vunpack.c.l.b16 %v181
    %v1970 = vunpack.c.h.b16 %v181
    %v1971 = vunpack.c.l.b16 %v182
    %v1972 = vunpack.c.h.b16 %v182
    %v1973 = vunpack.c.l.b16 %v183
    %v1974 = vunpack.c.h.b16 %v183
    %v1975 = vunpack.c.l.b16 %v184
    %v1976 = vunpack.c.h.b16 %v184
    %v1977 = vunpack.c.l.b16 %v185
    %v1978 = vunpack.c.h.b16 %v185
    %v1979 = vunpack.c.l.b16 %v186
    %v1980 = vunpack.c.h.b16 %v186
    %v1981 = vunpack.c.l.b16 %v187
    %v1982 = vunpack.c.h.b16 %v187
    %v1983 = vunpack.c.l.b16 %v188
    %v1984 = vunpack.c.h.b16 %v188
    %v1985 = vunpack.c.l.b16 %v189
    %v1986 = vunpack.c.h.b16 %v189
    %v1987 = vunpack.c.l.b16 %v190
    %v1988 = vunpack.c.h.b16 %v190
    %v1989 = vunpack.c.l.b16 %v191
    %v1990 = vunpack.c.h.b16 %v191
    %v1991 = vunpack.c.l.b16 %v192
    %v1992 = vunpack.c.h.b16 %v192
    %v1993 = vunpack.c.l.b16 %v193
    %v1994 = vunpack.c.h.b16 %v193
    %v1995 = vunpack.c.l.b16 %v194
    %v1996 = vunpack.c.h.b16 %v194
    %v1997 = vunpack.c.l.b16 %v195
    %v1998 = vunpack.c.h.b16 %v195
    %v1999 = vunpack.c.l.b16 %v196
    %v2000 = vunpack.c.h.b16 %v196
    %v2001 = vunpack.c.l.b16 %v197
    %v2002 = vunpack.c.h.b16 %v197
    %v2003 = vunpack.c.l.b16 %v198
    %v2004 = vunpack.c.h.b16 %v198
    %v2005 = vunpack.c.l.b16 %v199
    %v2006 = vunpack.c.h.b16 %v199
    %v2007 = vunpack.c.l.b16 %v200
    %v2008 = vunpack.c.h.b16 %v200
    %v2009 = vunpack.c.l.b16 %v201
    %v2010 = vunpack.c.h.b16 %v201
    %v2011 = vunpack.c.l.b16 %v202
    %v2012 = vunpack.c.h.b16 %v202
    %v2013 = vunpack.c.l.b16 %v203
    %v2014 = vunpack.c.h.b16 %v203
    %v2015 = vunpack.c.l.b16 %v204
    %v2016 = vunpack.c.h.b16 %v204
    %v2017 = vunpack.c.l.b16 %v205
    %v2018 = vunpack.c.h.b16 %v205
    %v2019 = vunpack.c.l.b16 %v206
    %v2020 = vunpack.c.h.b16 %v206
    %v2021 = vunpack.c.l.b16 %v207
    %v2022 = vunpack.c.h.b16 %v207
    %v2023 = vunpack.c.l.b16 %v208
    %v2024 = vunpack.c.h.b16 %v208
    %v2025 = vunpack.c.l.b16 %v209
    %v2026 = vunpack.c.h.b16 %v209
    %v2027 = vunpack.c.l.b16 %v210
    %v2028 = vunpack.c.h.b16 %v210
    %v2029 = vunpack.c.l.b16 %v211
    %v2030 = vunpack.c.h.b16 %v211
    %v2031 = vunpack.c.l.b16 %v212
    %v2032 = vunpack.c.h.b16 %v212
    %v2033 = vunpack.c.l.b16 %v213
    %v2034 = vunpack.c.h.b16 %v213
    %v2035 = vunpack.c.l.b16 %v214
    %v2036 = vunpack.c.h.b16 %v214
    %v2037 = vunpack.c.l.b16 %v215
    %v2038 = vunpack.c.h.b16 %v215
    %v2039 = vunpack.c.l.b16 %v216
    %v2040 = vunpack.c.h.b16 %v216
    %v2041 = vunpack.c.l.b16 %v217
    %v2042 = vunpack.c.h.b16 %v217
    %v2043 = vunpack.c.l.b16 %v218
    %v2044 = vunpack.c.h.b16 %v218
    %v2045 = vunpack.c.l.b16 %v219
    %v2046 = vunpack.c.h.b16 %v219
    %v2047 = vunpack.c.l.b16 %v220
    %v2048 = vunpack.c.h.b16 %v220
    %v2049 = vunpack.c.l.b16 %v221
    %v2050 = vunpack.c.h.b16 %v221
    %v2051 = vunpack.c.l.b16 %v222
    %v2052 = vunpack.c.h.b16 %v222
    %v2053 = vunpack.c.l.b16 %v223
    %v2054 = vunpack.c.h.b16 %v223
    %v2055 = vunpack.c.l.b16 %v224
    %v2056 = vunpack.c.h.b16 %v224
    %v2057 = vunpack.c.l.b16 %v225
    %v2058 = vunpack.c.h.b16 %v225
    %v2059 = vunpack.c.l.b16 %v226
    %v2060 = vunpack.c.h.b16 %v226
    %v2061 = vunpack.c.l.b16 %v227
    %v2062 = vunpack.c.h.b16 %v227
    %v2063 = vunpack.c.l.b16 %v228
    %v2064 = vunpack.c.h.b16 %v228
    %v2065 = vunpack.c.l.b16 %v229
    %v2066 = vunpack.c.h.b16 %v229
    %v2067 = vunpack.c.l.b16 %v230
    %v2068 = vunpack.c.h.b16 %v230
    %v2069 = vunpack.c.l.b16 %v231
    %v2070 = vunpack.c.h.b16 %v231
    %v2071 = vunpack.c.l.b16 %v232
    %v2072 = vunpack.c.h.b16 %v232
    %v2073 = vunpack.c.l.b16 %v233
    %v2074 = vunpack.c.h.b16 %v233
    %v2075 = vunpack.c.l.b16 %v234
    %v2076 = vunpack.c.h.b16 %v234
    %v2077 = vunpack.c.l.b16 %v235
    %v2078 = vunpack.c.h.b16 %v235
    %v2079 = vunpack.c.l.b16 %v236
    %v2080 = vunpack.c.h.b16 %v236
    %v2081 = vunpack.c.l.b16 %v237
    %v2082 = vunpack.c.h.b16 %v237
    %v2083 = vunpack.c.l.b16 %v238
    %v2084 = vunpack.c.h.b16 %v238
    %v2085 = vunpack.c.l.b16 %v239
    %v2086 = vunpack.c.h.b16 %v239
    %v2087 = vunpack.c.l.b16 %v240
    %v2088 = vunpack.c.h.b16 %v240
    %v2089 = vunpack.c.l.b16 %v241
    %v2090 = vunpack.c.h.b16 %v241
    %v2091 = vunpack.c.l.b16 %v242
    %v2092 = vunpack.c.h.b16 %v242
    %v2093 = vunpack.c.l.b16 %v243
    %v2094 = vunpack.c.h.b16 %v243
    %v2095 = vunpack.c.l.b16 %v244
    %v2096 = vunpack.c.h.b16 %v244
    %v2097 = vunpack.c.l.b16 %v245
    %v2098 = vunpack.c.h.b16 %v245
    %v2099 = vunpack.c.l.b16 %v246
    %v2100 = vunpack.c.h.b16 %v246
    %v2101 = vunpack.c.l.b16 %v247
    %v2102 = vunpack.c.h.b16 %v247
    %v2103 = vunpack.c.l.b16 %v248
    %v2104 = vunpack.c.h.b16 %v248
    %v2105 = vunpack.c.l.b16 %v249
    %v2106 = vunpack.c.h.b16 %v249
    %v2107 = vunpack.c.l.b16 %v250
    %v2108 = vunpack.c.h.b16 %v250
    %v2109 = vunpack.c.l.b16 %v251
    %v2110 = vunpack.c.h.b16 %v251
    %v2111 = vunpack.c.l.b16 %v252
    %v2112 = vunpack.c.h.b16 %v252
    %v2113 = vunpack.c.l.b16 %v253
    %v2114 = vunpack.c.h.b16 %v253
    %v2115 = vunpack.c.l.b16 %v254
    %v2116 = vunpack.c.h.b16 %v254
    %v2117 = vunpack.c.l.b16 %v255
    %v2118 = vunpack.c.h.b16 %v255
    %v2119 = vunpack.c.l.b16 %v256
    %v2120 = vunpack.c.h.b16 %v256
    %v2121 = vunpack.c.l.b16 %v257
    %v2122 = vunpack.c.h.b16 %v257
    %v2123 = vunpack.c.l.b16 %v258
    %v2124 = vunpack.c.h.b16 %v258
    %v2125 = vunpack.c.l.b16 %v259
    %v2126 = vunpack.c.h.b16 %v259
    %v2127 = vunpack.c.l.b16 %v260
    %v2128 = vunpack.c.h.b16 %v260
    %v2129 = vunpack.c.l.b16 %v261
    %v2130 = vunpack.c.h.b16 %v261
    %v2131 = vunpack.c.l.b16 %v262
    %v2132 = vunpack.c.h.b16 %v262
    %v2133 = vunpack.c.l.b16 %v263
    %v2134 = vunpack.c.h.b16 %v263
    %v2135 = vunpack.c.l.b16 %v264
    %v2136 = vunpack.c.h.b16 %v264
    %v2137 = vunpack.c.l.b16 %v265
    %v2138 = vunpack.c.h.b16 %v265
    %v2139 = vunpack.c.l.b16 %v266
    %v2140 = vunpack.c.h.b16 %v266
    %v2141 = vunpack.c.l.b16 %v267
    %v2142 = vunpack.c.h.b16 %v267
    %v2143 = vunpack.c.l.b16 %v268
    %v2144 = vunpack.c.h.b16 %v268
    %v2145 = vunpack.c.l.b16 %v269
    %v2146 = vunpack.c.h.b16 %v269
    %v2147 = vunpack.c.l.b16 %v270
    %v2148 = vunpack.c.h.b16 %v270
    %v2149 = vunpack.c.l.b16 %v271
    %v2150 = vunpack.c.h.b16 %v271
    %v2151 = vunpack.c.l.b16 %v272
    %v2152 = vunpack.c.h.b16 %v272
    %v2153 = vunpack.c.l.b16 %v273
    %v2154 = vunpack.c.h.b16 %v273
    %v2155 = vunpack.c.l.b16 %v274
    %v2156 = vunpack.c.h.b16 %v274
    %v2157 = vunpack.c.l.b16 %v275
    %v2158 = vunpack.c.h.b16 %v275
    %v2159 = vunpack.c.l.b16 %v276
    %v2160 = vunpack.c.h.b16 %v276
    %v2161 = vunpack.c.l.b16 %v277
    %v2162 = vunpack.c.h.b16 %v277
    %v2163 = vunpack.c.l.b16 %v278
    %v2164 = vunpack.c.h.b16 %v278
    %v2165 = vunpack.c.l.b16 %v279
    %v2166 = vunpack.c.h.b16 %v279
    %v2167 = vunpack.c.l.b16 %v280
    %v2168 = vunpack.c.h.b16 %v280
    %v2169 = vunpack.c.l.b16 %v281
    %v2170 = vunpack.c.h.b16 %v281
    %v2171 = vunpack.c.l.b16 %v282
    %v2172 = vunpack.c.h.b16 %v282
    %v2173 = vunpack.c.l.b16 %v283
    %v2174 = vunpack.c.h.b16 %v283
    %v2175 = vunpack.c.l.b16 %v284
    %v2176 = vunpack.c.h.b16 %v284
    %v2177 = vunpack.c.l.b16 %v285
    %v2178 = vunpack.c.h.b16 %v285
    %v2179 = vunpack.c.l.b16 %v286
    %v2180 = vunpack.c.h.b16 %v286
    %v2181 = vunpack.c.l.b16 %v287
    %v2182 = vunpack.c.h.b16 %v287
    %v2183 = vunpack.c.l.b16 %v288
    %v2184 = vunpack.c.h.b16 %v288
    %v2185 = vunpack.c.l.b16 %v289
    %v2186 = vunpack.c.h.b16 %v289
    %v2187 = vunpack.c.l.b16 %v290
    %v2188 = vunpack.c.h.b16 %v290
    %v2189 = vunpack.c.l.b16 %v291
    %v2190 = vunpack.c.h.b16 %v291
    %v2191 = vunpack.c.l.b16 %v292
    %v2192 = vunpack.c.h.b16 %v292
    %v2193 = vunpack.c.l.b16 %v293
    %v2194 = vunpack.c.h.b16 %v293
    %v2195 = vunpack.c.l.b16 %v294
    %v2196 = vunpack.c.h.b16 %v294
    %v2197 = vunpack.c.l.b16 %v295
    %v2198 = vunpack.c.h.b16 %v295
    %v2199 = vunpack.c.l.b16 %v296
    %v2200 = vunpack.c.h.b16 %v296
    %v2201 = vunpack.c.l.b16 %v297
    %v2202 = vunpack.c.h.b16 %v297
    %v2203 = vunpack.c.l.b16 %v298
    %v2204 = vunpack.c.h.b16 %v298
    %v2205 = vunpack.c.l.b16 %v299
    %v2206 = vunpack.c.h.b16 %v299
    %v2207 = vunpack.c.l.b16 %v300
    %v2208 = vunpack.c.h.b16 %v300
    %v2209 = vunpack.c.l.b16 %v301
    %v2210 = vunpack.c.h.b16 %v301
    %v2211 = vunpack.c.l.b16 %v302
    %v2212 = vunpack.c.h.b16 %v302
    %v2213 = vunpack.c.l.b16 %v303
    %v2214 = vunpack.c.h.b16 %v303
    %v2215 = vunpack.c.l.b16 %v304
    %v2216 = vunpack.c.h.b16 %v304
    %v2217 = vunpack.c.l.b16 %v305
    %v2218 = vunpack.c.h.b16 %v305
    %v2219 = vunpack.c.l.b16 %v306
    %v2220 = vunpack.c.h.b16 %v306
    %v2221 = vunpack.c.l.b16 %v307
    %v2222 = vunpack.c.h.b16 %v307
    %v2223 = vunpack.c.l.b16 %v308
    %v2224 = vunpack.c.h.b16 %v308
    %v2225 = vunpack.c.l.b16 %v309
    %v2226 = vunpack.c.h.b16 %v309
    %v2227 = vunpack.c.l.b16 %v310
    %v2228 = vunpack.c.h.b16 %v310
    %v2229 = vunpack.c.l.b16 %v311
    %v2230 = vunpack.c.h.b16 %v311
    %v2231 = vunpack.c.l.b16 %v312
    %v2232 = vunpack.c.h.b16 %v312
    %v2233 = vunpack.c.l.b16 %v313
    %v2234 = vunpack.c.h.b16 %v313
    %v2235 = vunpack.c.l.b16 %v314
    %v2236 = vunpack.c.h.b16 %v314
    %v2237 = vunpack.c.l.b16 %v315
    %v2238 = vunpack.c.h.b16 %v315
    %v2239 = vunpack.c.l.b16 %v316
    %v2240 = vunpack.c.h.b16 %v316
    %v2241 = vunpack.c.l.b16 %v317
    %v2242 = vunpack.c.h.b16 %v317
    %v2243 = vunpack.c.l.b16 %v318
    %v2244 = vunpack.c.h.b16 %v318
    %v2245 = vunpack.c.l.b16 %v319
    %v2246 = vunpack.c.h.b16 %v319
    %v2247 = vunpack.c.l.b16 %v320
    %v2248 = vunpack.c.h.b16 %v320
    %v2249 = vunpack.c.l.b16 %v321
    %v2250 = vunpack.c.h.b16 %v321
    %v2251 = vunpack.c.l.b16 %v322
    %v2252 = vunpack.c.h.b16 %v322
    %v2253 = vunpack.c.l.b16 %v323
    %v2254 = vunpack.c.h.b16 %v323
    %v2255 = vunpack.c.l.b16 %v324
    %v2256 = vunpack.c.h.b16 %v324
    %v2257 = vunpack.c.l.b16 %v325
    %v2258 = vunpack.c.h.b16 %v325
    %v2259 = vunpack.c.l.b16 %v326
    %v2260 = vunpack.c.h.b16 %v326
    %v2261 = vunpack.c.l.b16 %v327
    %v2262 = vunpack.c.h.b16 %v327
    %v2263 = vunpack.c.l.b16 %v328
    %v2264 = vunpack.c.h.b16 %v328
    %v2265 = vunpack.c.l.b16 %v329
    %v2266 = vunpack.c.h.b16 %v329
    %v2267 = vunpack.c.l.b16 %v330
    %v2268 = vunpack.c.h.b16 %v330
    %v2269 = vunpack.c.l.b16 %v331
    %v2270 = vunpack.c.h.b16 %v331
    %v2271 = vunpack.c.l.b16 %v332
    %v2272 = vunpack.c.h.b16 %v332
    %v2273 = vunpack.c.l.b16 %v333
    %v2274 = vunpack.c.h.b16 %v333
    %v2275 = vunpack.c.l.b16 %v334
    %v2276 = vunpack.c.h.b16 %v334
    %v2277 = vunpack.c.l.b16 %v335
    %v2278 = vunpack.c.h.b16 %v335
    %v2279 = vunpack.c.l.b16 %v336
    %v2280 = vunpack.c.h.b16 %v336
    %v2281 = vunpack.c.l.b16 %v337
    %v2282 = vunpack.c.h.b16 %v337
    %v2283 = vunpack.c.l.b16 %v338
    %v2284 = vunpack.c.h.b16 %v338
    %v2285 = vunpack.c.l.b16 %v339
    %v2286 = vunpack.c.h.b16 %v339
    %v2287 = vunpack.c.l.b16 %v340
    %v2288 = vunpack.c.h.b16 %v340
    %v2289 = vunpack.c.l.b16 %v341
    %v2290 = vunpack.c.h.b16 %v341
    %v2291 = vunpack.c.l.b16 %v342
    %v2292 = vunpack.c.h.b16 %v342
    %v2293 = vunpack.c.l.b16 %v343
    %v2294 = vunpack.c.h.b16 %v343
    %v2295 = vunpack.c.l.b16 %v344
    %v2296 = vunpack.c.h.b16 %v344
    %v2297 = vunpack.c.l.b16 %v345
    %v2298 = vunpack.c.h.b16 %v345
    %v2299 = vunpack.c.l.b16 %v346
    %v2300 = vunpack.c.h.b16 %v346
    %v2301 = vunpack.c.l.b16 %v347
    %v2302 = vunpack.c.h.b16 %v347
    %v2303 = vunpack.c.l.b16 %v348
    %v2304 = vunpack.c.h.b16 %v348
    %v2305 = vunpack.c.l.b16 %v349
    %v2306 = vunpack.c.h.b16 %v349
    %v2307 = vunpack.c.l.b16 %v350
    %v2308 = vunpack.c.h.b16 %v350
    %v2309 = vunpack.c.l.b16 %v351
    %v2310 = vunpack.c.h.b16 %v351
    %v2311 = vunpack.c.l.b16 %v352
    %v2312 = vunpack.c.h.b16 %v352
    %v2313 = vunpack.c.l.b16 %v353
    %v2314 = vunpack.c.h.b16 %v353
    %v2315 = vunpack.c.l.b16 %v354
    %v2316 = vunpack.c.h.b16 %v354
    %v2317 = vunpack.c.l.b16 %v355
    %v2318 = vunpack.c.h.b16 %v355
    %v2319 = vunpack.c.l.b16 %v356
    %v2320 = vunpack.c.h.b16 %v356
    %v2321 = vunpack.c.l.b16 %v357
    %v2322 = vunpack.c.h.b16 %v357
    %v2323 = vunpack.c.l.b16 %v358
    %v2324 = vunpack.c.h.b16 %v358
    %v2325 = vunpack.c.l.b16 %v359
    %v2326 = vunpack.c.h.b16 %v359
    %v2327 = vunpack.c.l.b16 %v360
    %v2328 = vunpack.c.h.b16 %v360
    %v2329 = vunpack.c.l.b16 %v361
    %v2330 = vunpack.c.h.b16 %v361
    %v2331 = vunpack.c.l.b16 %v362
    %v2332 = vunpack.c.h.b16 %v362
    %v2333 = vunpack.c.l.b16 %v363
    %v2334 = vunpack.c.h.b16 %v363
    %v2335 = vunpack.c.l.b16 %v364
    %v2336 = vunpack.c.h.b16 %v364
    %v2337 = vunpack.c.l.b16 %v365
    %v2338 = vunpack.c.h.b16 %v365
    %v2339 = vunpack.c.l.b16 %v366
    %v2340 = vunpack.c.h.b16 %v366
    %v2341 = vunpack.c.l.b16 %v367
    %v2342 = vunpack.c.h.b16 %v367
    %v2343 = vunpack.c.l.b16 %v368
    %v2344 = vunpack.c.h.b16 %v368
    %v2345 = vunpack.c.l.b16 %v369
    %v2346 = vunpack.c.h.b16 %v369
    %v2347 = vunpack.c.l.b16 %v370
    %v2348 = vunpack.c.h.b16 %v370
    %v2349 = vunpack.c.l.b16 %v371
    %v2350 = vunpack.c.h.b16 %v371
    %v2351 = vunpack.c.l.b16 %v372
    %v2352 = vunpack.c.h.b16 %v372
    %v2353 = vunpack.c.l.b16 %v373
    %v2354 = vunpack.c.h.b16 %v373
    %v2355 = vunpack.c.l.b16 %v374
    %v2356 = vunpack.c.h.b16 %v374
    %v2357 = vunpack.c.l.b16 %v375
    %v2358 = vunpack.c.h.b16 %v375
    %v2359 = vunpack.c.l.b16 %v376
    %v2360 = vunpack.c.h.b16 %v376
    %v2361 = vunpack.c.l.b16 %v377
    %v2362 = vunpack.c.h.b16 %v377
    %v2363 = vunpack.c.l.b16 %v378
    %v2364 = vunpack.c.h.b16 %v378
    %v2365 = vunpack.c.l.b16 %v379
    %v2366 = vunpack.c.h.b16 %v379
    %v2367 = vunpack.c.l.b16 %v380
    %v2368 = vunpack.c.h.b16 %v380
    %v2369 = vunpack.c.l.b16 %v381
    %v2370 = vunpack.c.h.b16 %v381
    %v2371 = vunpack.c.l.b16 %v382
    %v2372 = vunpack.c.h.b16 %v382
    %v2373 = vunpack.c.l.b16 %v383
    %v2374 = vunpack.c.h.b16 %v383
    %v2375 = vunpack.c.l.b16 %v384
    %v2376 = vunpack.c.h.b16 %v384
    %v2377 = vunpack.c.l.b16 %v385
    %v2378 = vunpack.c.h.b16 %v385
    %v2379 = vunpack.c.l.b16 %v386
    %v2380 = vunpack.c.h.b16 %v386
    %v2381 = vunpack.c.l.b16 %v387
    %v2382 = vunpack.c.h.b16 %v387
    %v2383 = vunpack.c.l.b16 %v388
    %v2384 = vunpack.c.h.b16 %v388
    %v2385 = vunpack.c.l.b16 %v389
    %v2386 = vunpack.c.h.b16 %v389
    %v2387 = vunpack.c.l.b16 %v390
    %v2388 = vunpack.c.h.b16 %v390
    %v2389 = vunpack.c.l.b16 %v391
    %v2390 = vunpack.c.h.b16 %v391
    %v2391 = vunpack.c.l.b16 %v392
    %v2392 = vunpack.c.h.b16 %v392
    %v2393 = vunpack.c.l.b16 %v393
    %v2394 = vunpack.c.h.b16 %v393
    %v2395 = vunpack.c.l.b16 %v394
    %v2396 = vunpack.c.h.b16 %v394
    %v2397 = vunpack.c.l.b16 %v395
    %v2398 = vunpack.c.h.b16 %v395
    %v2399 = vunpack.c.l.b16 %v396
    %v2400 = vunpack.c.h.b16 %v396
    %v2401 = vunpack.c.l.b16 %v397
    %v2402 = vunpack.c.h.b16 %v397
    %v2403 = vunpack.c.l.b16 %v398
    %v2404 = vunpack.c.h.b16 %v398
    %v2405 = vunpack.c.l.b16 %v399
    %v2406 = vunpack.c.h.b16 %v399
    %v2407 = vunpack.c.l.b16 %v400
    %v2408 = vunpack.c.h.b16 %v400
    %v2409 = vunpack.c.l.b16 %v401
    %v2410 = vunpack.c.h.b16 %v401
    %v2411 = vunpack.c.l.b16 %v402
    %v2412 = vunpack.c.h.b16 %v402
    %v2413 = vunpack.c.l.b16 %v403
    %v2414 = vunpack.c.h.b16 %v403
    %v2415 = vunpack.c.l.b16 %v404
    %v2416 = vunpack.c.h.b16 %v404
    %v2417 = vunpack.c.l.b16 %v405
    %v2418 = vunpack.c.h.b16 %v405
    %v2419 = vunpack.c.l.b16 %v406
    %v2420 = vunpack.c.h.b16 %v406
    %v2421 = vunpack.c.l.b16 %v407
    %v2422 = vunpack.c.h.b16 %v407
    %v2423 = vunpack.c.l.b16 %v408
    %v2424 = vunpack.c.h.b16 %v408
    %v2425 = vunpack.c.l.b16 %v409
    %v2426 = vunpack.c.h.b16 %v409
    %v2427 = vunpack.c.l.b16 %v410
    %v2428 = vunpack.c.h.b16 %v410
    %v2429 = vunpack.c.l.b16 %v411
    %v2430 = vunpack.c.h.b16 %v411
    %v2431 = vunpack.c.l.b16 %v412
    %v2432 = vunpack.c.h.b16 %v412
    %v2433 = vunpack.c.l.b16 %v413
    %v2434 = vunpack.c.h.b16 %v413
    %v2435 = vunpack.c.l.b16 %v414
    %v2436 = vunpack.c.h.b16 %v414
    %v2437 = vunpack.c.l.b16 %v415
    %v2438 = vunpack.c.h.b16 %v415
    %v2439 = vunpack.c.l.b16 %v416
    %v2440 = vunpack.c.h.b16 %v416
    %v2441 = vunpack.c.l.b16 %v417
    %v2442 = vunpack.c.h.b16 %v417
    %v2443 = vunpack.c.l.b16 %v418
    %v2444 = vunpack.c.h.b16 %v418
    %v2445 = vunpack.c.l.b16 %v419
    %v2446 = vunpack.c.h.b16 %v419
    %v2447 = vunpack.c.l.b16 %v420
    %v2448 = vunpack.c.h.b16 %v420
    %v2449 = vunpack.c.l.b16 %v421
    %v2450 = vunpack.c.h.b16 %v421
    %v2451 = vunpack.c.l.b16 %v422
    %v2452 = vunpack.c.h.b16 %v422
    %v2453 = vunpack.c.l.b16 %v423
    %v2454 = vunpack.c.h.b16 %v423
    %v2455 = vunpack.c.l.b16 %v424
    %v2456 = vunpack.c.h.b16 %v424
    %v2457 = vunpack.c.l.b16 %v425
    %v2458 = vunpack.c.h.b16 %v425
    %v2459 = vunpack.c.l.b16 %v426
    %v2460 = vunpack.c.h.b16 %v426
    %v2461 = vunpack.c.l.b16 %v427
    %v2462 = vunpack.c.h.b16 %v427
    %v2463 = vunpack.c.l.b16 %v428
    %v2464 = vunpack.c.h.b16 %v428
    %v2465 = vunpack.c.l.b16 %v429
    %v2466 = vunpack.c.h.b16 %v429
    %v2467 = vunpack.c.l.b16 %v430
    %v2468 = vunpack.c.h.b16 %v430
    %v2469 = vunpack.c.l.b16 %v431
    %v2470 = vunpack.c.h.b16 %v431
    %v2471 = vunpack.c.l.b16 %v432
    %v2472 = vunpack.c.h.b16 %v432
    %v2473 = vunpack.c.l.b16 %v433
    %v2474 = vunpack.c.h.b16 %v433
    %v2475 = vunpack.c.l.b16 %v434
    %v2476 = vunpack.c.h.b16 %v434
    %v2477 = vunpack.c.l.b16 %v435
    %v2478 = vunpack.c.h.b16 %v435
    %v2479 = vunpack.c.l.b16 %v436
    %v2480 = vunpack.c.h.b16 %v436
    %v2481 = vunpack.c.l.b16 %v437
    %v2482 = vunpack.c.h.b16 %v437
    %v2483 = vunpack.c.l.b16 %v438
    %v2484 = vunpack.c.h.b16 %v438
    %v2485 = vunpack.c.l.b16 %v439
    %v2486 = vunpack.c.h.b16 %v439
    %v2487 = vunpack.c.l.b16 %v440
    %v2488 = vunpack.c.h.b16 %v440
    %v2489 = vunpack.c.l.b16 %v441
    %v2490 = vunpack.c.h.b16 %v441
    %v2491 = vunpack.c.l.b16 %v442
    %v2492 = vunpack.c.h.b16 %v442
    %v2493 = vunpack.c.l.b16 %v443
    %v2494 = vunpack.c.h.b16 %v443
    %v2495 = vunpack.c.l.b16 %v444
    %v2496 = vunpack.c.h.b16 %v444
    %v2497 = vunpack.c.l.b16 %v445
    %v2498 = vunpack.c.h.b16 %v445
    %v2499 = vunpack.c.l.b16 %v446
    %v2500 = vunpack.c.h.b16 %v446
    %v2501 = vunpack.c.l.b16 %v447
    %v2502 = vunpack.c.h.b16 %v447
    %v2503 = vunpack.c.l.b16 %v448
    %v2504 = vunpack.c.h.b16 %v448
    %v2505 = vunpack.c.l.b16 %v449
    %v2506 = vunpack.c.h.b16 %v449
    %v2507 = vunpack.c.l.b16 %v450
    %v2508 = vunpack.c.h.b16 %v450
    %v2509 = vunpack.c.l.b16 %v451
    %v2510 = vunpack.c.h.b16 %v451
    %v2511 = vunpack.c.l.b16 %v452
    %v2512 = vunpack.c.h.b16 %v452
    %v2513 = vunpack.c.l.b16 %v453
    %v2514 = vunpack.c.h.b16 %v453
    %v2515 = vunpack.c.l.b16 %v454
    %v2516 = vunpack.c.h.b16 %v454
    %v2517 = vunpack.c.l.b16 %v455
    %v2518 = vunpack.c.h.b16 %v455
    %v2519 = vunpack.c.l.b16 %v456
    %v2520 = vunpack.c.h.b16 %v456
    %v2521 = vunpack.c.l.b16 %v457
    %v2522 = vunpack.c.h.b16 %v457
    %v2523 = vunpack.c.l.b16 %v458
    %v2524 = vunpack.c.h.b16 %v458
    %v2525 = vunpack.c.l.b16 %v459
    %v2526 = vunpack.c.h.b16 %v459
    %v2527 = vunpack.c.l.b16 %v460
    %v2528 = vunpack.c.h.b16 %v460
    %v2529 = vunpack.c.l.b16 %v461
    %v2530 = vunpack.c.h.b16 %v461
    %v2531 = vunpack.c.l.b16 %v462
    %v2532 = vunpack.c.h.b16 %v462
    %v2533 = vunpack.c.l.b16 %v463
    %v2534 = vunpack.c.h.b16 %v463
    %v2535 = vunpack.c.l.b16 %v464
    %v2536 = vunpack.c.h.b16 %v464
    %v2537 = vunpack.c.l.b16 %v465
    %v2538 = vunpack.c.h.b16 %v465
    %v2539 = vunpack.c.l.b16 %v466
    %v2540 = vunpack.c.h.b16 %v466
    %v2541 = vunpack.c.l.b16 %v467
    %v2542 = vunpack.c.h.b16 %v467
    %v2543 = vunpack.c.l.b16 %v468
    %v2544 = vunpack.c.h.b16 %v468
    %v2545 = vunpack.c.l.b16 %v469
    %v2546 = vunpack.c.h.b16 %v469
    %v2547 = vunpack.c.l.b16 %v470
    %v2548 = vunpack.c.h.b16 %v470
    %v2549 = vunpack.c.l.b16 %v471
    %v2550 = vunpack.c.h.b16 %v471
    %v2551 = vunpack.c.l.b16 %v472
    %v2552 = vunpack.c.h.b16 %v472
    %v2553 = vunpack.c.l.b16 %v473
    %v2554 = vunpack.c.h.b16 %v473
    %v2555 = vunpack.c.l.b16 %v474
    %v2556 = vunpack.c.h.b16 %v474
    %v2557 = vunpack.c.l.b16 %v475
    %v2558 = vunpack.c.h.b16 %v475
    %v2559 = vunpack.c.l.b16 %v476
    %v2560 = vunpack.c.h.b16 %v476
    %v2561 = vunpack.c.l.b16 %v477
    %v2562 = vunpack.c.h.b16 %v477
    %v2563 = vunpack.c.l.b16 %v478
    %v2564 = vunpack.c.h.b16 %v478
    %v2565 = vunpack.c.l.b16 %v479
    %v2566 = vunpack.c.h.b16 %v479
    %v2567 = vunpack.c.l.b16 %v480
    %v2568 = vunpack.c.h.b16 %v480
    %v2569 = vunpack.c.l.b16 %v481
    %v2570 = vunpack.c.h.b16 %v481
    %v2571 = vunpack.c.l.b16 %v482
    %v2572 = vunpack.c.h.b16 %v482
    %v2573 = vunpack.c.l.b16 %v483
    %v2574 = vunpack.c.h.b16 %v483
    %v2575 = vunpack.c.l.b16 %v484
    %v2576 = vunpack.c.h.b16 %v484
    %v2577 = vunpack.c.l.b16 %v485
    %v2578 = vunpack.c.h.b16 %v485
    %v2579 = vunpack.c.l.b16 %v486
    %v2580 = vunpack.c.h.b16 %v486
    %v2581 = vunpack.c.l.b16 %v487
    %v2582 = vunpack.c.h.b16 %v487
    %v2583 = vunpack.c.l.b16 %v488
    %v2584 = vunpack.c.h.b16 %v488
    %v2585 = vunpack.c.l.b16 %v489
    %v2586 = vunpack.c.h.b16 %v489
    %v2587 = vunpack.c.l.b16 %v490
    %v2588 = vunpack.c.h.b16 %v490
    %v2589 = vunpack.c.l.b16 %v491
    %v2590 = vunpack.c.h.b16 %v491
    %v2591 = vunpack.c.l.b16 %v492
    %v2592 = vunpack.c.h.b16 %v492
    %v2593 = vunpack.c.l.b16 %v493
    %v2594 = vunpack.c.h.b16 %v493
    %v2595 = vunpack.c.l.b16 %v494
    %v2596 = vunpack.c.h.b16 %v494
    %v2597 = vunpack.c.l.b16 %v495
    %v2598 = vunpack.c.h.b16 %v495
    %v2599 = vunpack.c.l.b16 %v496
    %v2600 = vunpack.c.h.b16 %v496
    %v2601 = vunpack.c.l.b16 %v497
    %v2602 = vunpack.c.h.b16 %v497
    %v2603 = vunpack.c.l.b16 %v498
    %v2604 = vunpack.c.h.b16 %v498
    %v2605 = vunpack.c.l.b16 %v499
    %v2606 = vunpack.c.h.b16 %v499
    %v2607 = vunpack.c.l.b16 %v500
    %v2608 = vunpack.c.h.b16 %v500
    %v2609 = vunpack.c.l.b16 %v501
    %v2610 = vunpack.c.h.b16 %v501
    %v2611 = vunpack.c.l.b16 %v502
    %v2612 = vunpack.c.h.b16 %v502
    %v2613 = vunpack.c.l.b16 %v503
    %v2614 = vunpack.c.h.b16 %v503
    %v2615 = vunpack.c.l.b16 %v504
    %v2616 = vunpack.c.h.b16 %v504
    %v2617 = vunpack.c.l.b16 %v505
    %v2618 = vunpack.c.h.b16 %v505
    %v2619 = vunpack.c.l.b16 %v506
    %v2620 = vunpack.c.h.b16 %v506
    %v2621 = vunpack.c.l.b16 %v507
    %v2622 = vunpack.c.h.b16 %v507
    %v2623 = vunpack.c.l.b16 %v508
    %v2624 = vunpack.c.h.b16 %v508
    %v2625 = vunpack.c.l.b16 %v509
    %v2626 = vunpack.c.h.b16 %v509
    %v2627 = vunpack.c.l.b16 %v510
    %v2628 = vunpack.c.h.b16 %v510
    %v2629 = vunpack.c.l.b16 %v511
    %v2630 = vunpack.c.h.b16 %v511
    %v2631 = vunpack.c.l.b16 %v512
    %v2632 = vunpack.c.h.b16 %v512
    %v2633 = vunpack.c.l.b16 %v513
    %v2634 = vunpack.c.h.b16 %v513
    %v2635 = vunpack.c.l.b16 %v514
    %v2636 = vunpack.c.h.b16 %v514
    %v2637 = vunpack.c.l.b16 %v515
    %v2638 = vunpack.c.h.b16 %v515
    %v2639 = vunpack.c.l.b16 %v516
    %v2640 = vunpack.c.h.b16 %v516
    %v2641 = vunpack.c.l.b16 %v517
    %v2642 = vunpack.c.h.b16 %v517
    %v2643 = vunpack.c.l.b16 %v518
    %v2644 = vunpack.c.h.b16 %v518
    %v2645 = vunpack.c.l.b16 %v519
    %v2646 = vunpack.c.h.b16 %v519
    %v2647 = vunpack.c.l.b16 %v520
    %v2648 = vunpack.c.h.b16 %v520
    %v2649 = vunpack.c.l.b16 %v521
    %v2650 = vunpack.c.h.b16 %v521
    %v2651 = vunpack.c.l.b16 %v522
    %v2652 = vunpack.c.h.b16 %v522
    %v2653 = vunpack.c.l.b16 %v523
    %v2654 = vunpack.c.h.b16 %v523
    %v2655 = vunpack.c.l.b16 %v524
    %v2656 = vunpack.c.h.b16 %v524
    %v2657 = vunpack.c.l.b16 %v525
    %v2658 = vunpack.c.h.b16 %v525
    %v2659 = vunpack.c.l.b16 %v526
    %v2660 = vunpack.c.h.b16 %v526
    %v2661 = vunpack.c.l.b16 %v527
    %v2662 = vunpack.c.h.b16 %v527
    %v2663 = vunpack.c.l.b16 %v528
    %v2664 = vunpack.c.h.b16 %v528
    %v2665 = vunpack.c.l.b16 %v529
    %v2666 = vunpack.c.h.b16 %v529
    %v2667 = vunpack.c.l.b16 %v530
    %v2668 = vunpack.c.h.b16 %v530
    %v2669 = vunpack.c.l.b16 %v531
    %v2670 = vunpack.c.h.b16 %v531
    %v2671 = vunpack.c.l.b16 %v532
    %v2672 = vunpack.c.h.b16 %v532
    %v2673 = vunpack.c.l.b16 %v533
    %v2674 = vunpack.c.h.b16 %v533
    %v2675 = vunpack.c.l.b16 %v534
    %v2676 = vunpack.c.h.b16 %v534
    %v2677 = vunpack.c.l.b16 %v535
    %v2678 = vunpack.c.h.b16 %v535
    %v2679 = vunpack.c.l.b16 %v536
    %v2680 = vunpack.c.h.b16 %v536
    %v2681 = vunpack.c.l.b16 %v537
    %v2682 = vunpack.c.h.b16 %v537
    %v2683 = vunpack.c.l.b16 %v538
    %v2684 = vunpack.c.h.b16 %v538
    %v2685 = vunpack.c.l.b16 %v539
    %v2686 = vunpack.c.h.b16 %v539
    %v2687 = vunpack.c.l.b16 %v540
    %v2688 = vunpack.c.h.b16 %v540
    %v2689 = vunpack.c.l.b16 %v541
    %v2690 = vunpack.c.h.b16 %v541
    %v2691 = vunpack.c.l.b16 %v542
    %v2692 = vunpack.c.h.b16 %v542
    %v2693 = vunpack.c.l.b16 %v543
    %v2694 = vunpack.c.h.b16 %v543
    %v2695 = vunpack.c.l.b16 %v544
    %v2696 = vunpack.c.h.b16 %v544
    %v2697 = vunpack.c.l.b16 %v545
    %v2698 = vunpack.c.h.b16 %v545
    %v2699 = vunpack.c.l.b16 %v546
    %v2700 = vunpack.c.h.b16 %v546
    %v2701 = vunpack.c.l.b16 %v547
    %v2702 = vunpack.c.h.b16 %v547
    %v2703 = vunpack.c.l.b16 %v548
    %v2704 = vunpack.c.h.b16 %v548
    %v2705 = vunpack.c.l.b16 %v549
    %v2706 = vunpack.c.h.b16 %v549
    %v2707 = vunpack.c.l.b16 %v550
    %v2708 = vunpack.c.h.b16 %v550
    %v2709 = vunpack.c.l.b16 %v551
    %v2710 = vunpack.c.h.b16 %v551
    %v2711 = vunpack.c.l.b16 %v552
    %v2712 = vunpack.c.h.b16 %v552
    %v2713 = vunpack.c.l.b16 %v553
    %v2714 = vunpack.c.h.b16 %v553
    %v2715 = vunpack.c.l.b16 %v554
    %v2716 = vunpack.c.h.b16 %v554
    %v2717 = vunpack.c.l.b16 %v555
    %v2718 = vunpack.c.h.b16 %v555
    %v2719 = vunpack.c.l.b16 %v556
    %v2720 = vunpack.c.h.b16 %v556
    %v2721 = vunpack.c.l.b16 %v557
    %v2722 = vunpack.c.h.b16 %v557
    %v2723 = vunpack.c.l.b16 %v558
    %v2724 = vunpack.c.h.b16 %v558
    %v2725 = vunpack.c.l.b16 %v559
    %v2726 = vunpack.c.h.b16 %v559
    %v2727 = vunpack.c.l.b16 %v560
    %v2728 = vunpack.c.h.b16 %v560
    %v2729 = vunpack.c.l.b16 %v561
    %v2730 = vunpack.c.h.b16 %v561
    %v2731 = vunpack.c.l.b16 %v562
    %v2732 = vunpack.c.h.b16 %v562
    %v2733 = vunpack.c.l.b16 %v563
    %v2734 = vunpack.c.h.b16 %v563
    %v2735 = vunpack.c.l.b16 %v564
    %v2736 = vunpack.c.h.b16 %v564
    %v2737 = vunpack.c.l.b16 %v565
    %v2738 = vunpack.c.h.b16 %v565
    %v2739 = vunpack.c.l.b16 %v566
    %v2740 = vunpack.c.h.b16 %v566
    %v2741 = vunpack.c.l.b16 %v567
    %v2742 = vunpack.c.h.b16 %v567
    %v2743 = vunpack.c.l.b16 %v568
    %v2744 = vunpack.c.h.b16 %v568
    %v2745 = vunpack.c.l.b16 %v569
    %v2746 = vunpack.c.h.b16 %v569
    %v2747 = vunpack.c.l.b16 %v570
    %v2748 = vunpack.c.h.b16 %v570
    %v2749 = vunpack.c.l.b16 %v571
    %v2750 = vunpack.c.h.b16 %v571
    %v2751 = vunpack.c.l.b16 %v572
    %v2752 = vunpack.c.h.b16 %v572
    %v2753 = vunpack.c.l.b16 %v573
    %v2754 = vunpack.c.h.b16 %v573
    %v2755 = vunpack.c.l.b16 %v574
    %v2756 = vunpack.c.h.b16 %v574
    %v2757 = vunpack.c.l.b16 %v575
    %v2758 = vunpack.c.h.b16 %v575
    %v2759 = vunpack.c.l.b16 %v576
    %v2760 = vunpack.c.h.b16 %v576
    %v2761 = vunpack.c.l.b16 %v577
    %v2762 = vunpack.c.h.b16 %v577
    %v2763 = vunpack.c.l.b16 %v578
    %v2764 = vunpack.c.h.b16 %v578
    %v2765 = vunpack.c.l.b16 %v579
    %v2766 = vunpack.c.h.b16 %v579
    %v2767 = vunpack.c.l.b16 %v580
    %v2768 = vunpack.c.h.b16 %v580
    %v2769 = vunpack.c.l.b16 %v581
    %v2770 = vunpack.c.h.b16 %v581
    %v2771 = vunpack.c.l.b16 %v582
    %v2772 = vunpack.c.h.b16 %v582
    %v2773 = vunpack.c.l.b16 %v583
    %v2774 = vunpack.c.h.b16 %v583
    %v2775 = vunpack.c.l.b16 %v584
    %v2776 = vunpack.c.h.b16 %v584
    %v2777 = vunpack.c.l.b16 %v585
    %v2778 = vunpack.c.h.b16 %v585
    %v2779 = vunpack.c.l.b16 %v586
    %v2780 = vunpack.c.h.b16 %v586
    %v2781 = vunpack.c.l.b16 %v587
    %v2782 = vunpack.c.h.b16 %v587
    %v2783 = vunpack.c.l.b16 %v588
    %v2784 = vunpack.c.h.b16 %v588
    %v2785 = vunpack.c.l.b16 %v589
    %v2786 = vunpack.c.h.b16 %v589
    %v2787 = vunpack.c.l.b16 %v590
    %v2788 = vunpack.c.h.b16 %v590
    %v2789 = vunpack.c.l.b16 %v591
    %v2790 = vunpack.c.h.b16 %v591
    %v2791 = vunpack.c.l.b16 %v592
    %v2792 = vunpack.c.h.b16 %v592
    %v2793 = vunpack.c.l.b16 %v593
    %v2794 = vunpack.c.h.b16 %v593
    %v2795 = vunpack.c.l.b16 %v594
    %v2796 = vunpack.c.h.b16 %v594
    %v2797 = vunpack.c.l.b16 %v595
    %v2798 = vunpack.c.h.b16 %v595
    %v2799 = vunpack.c.l.b16 %v596
    %v2800 = vunpack.c.h.b16 %v596
    %v2801 = vunpack.c.l.b16 %v597
    %v2802 = vunpack.c.h.b16 %v597
    %v2803 = vunpack.c.l.b16 %v598
    %v2804 = vunpack.c.h.b16 %v598
    %v2805 = vunpack.c.l.b16 %v599
    %v2806 = vunpack.c.h.b16 %v599
    %v2807 = vunpack.c.l.b16 %v600
    %v2808 = vunpack.c.h.b16 %v600
    %v2809 = vunpack.c.l.b16 %v601
    %v2810 = vunpack.c.h.b16 %v601
    %v2811 = vunpack.c.l.b16 %v602
    %v2812 = vunpack.c.h.b16 %v602
    %v2813 = vunpack.c.l.b16 %v603
    %v2814 = vunpack.c.h.b16 %v603
    %v2815 = vunpack.c.l.b16 %v604
    %v2816 = vunpack.c.h.b16 %v604
    %v2817 = vunpack.c.l.b16 %v605
    %v2818 = vunpack.c.h.b16 %v605
    %v2819 = vunpack.c.l.b16 %v606
    %v2820 = vunpack.c.h.b16 %v606
    %v2821 = vunpack.c.l.b16 %v607
    %v2822 = vunpack.c.h.b16 %v607
    %v2823 = vunpack.c.l.b16 %v608
    %v2824 = vunpack.c.h.b16 %v608
    %v2825 = vunpack.c.l.b16 %v609
    %v2826 = vunpack.c.h.b16 %v609
    %v2827 = vunpack.c.l.b16 %v610
    %v2828 = vunpack.c.h.b16 %v610
    %v2829 = vunpack.c.l.b16 %v611
    %v2830 = vunpack.c.h.b16 %v611
    %v2831 = vunpack.c.l.b16 %v612
    %v2832 = vunpack.c.h.b16 %v612
    %v2833 = vunpack.c.l.b16 %v613
    %v2834 = vunpack.c.h.b16 %v613
    %v2835 = vunpack.c.l.b16 %v614
    %v2836 = vunpack.c.h.b16 %v614
    %v2837 = vunpack.c.l.b16 %v615
    %v2838 = vunpack.c.h.b16 %v615
    %v2839 = vunpack.c.l.b16 %v616
    %v2840 = vunpack.c.h.b16 %v616
    %v2841 = vunpack.c.l.b16 %v617
    %v2842 = vunpack.c.h.b16 %v617
    %v2843 = vunpack.c.l.b16 %v618
    %v2844 = vunpack.c.h.b16 %v618
    %v2845 = vunpack.c.l.b16 %v619
    %v2846 = vunpack.c.h.b16 %v619
    %v2847 = vunpack.c.l.b16 %v620
    %v2848 = vunpack.c.h.b16 %v620
    %v2849 = vunpack.c.l.b16 %v621
    %v2850 = vunpack.c.h.b16 %v621
    %v2851 = vunpack.c.l.b16 %v622
    %v2852 = vunpack.c.h.b16 %v622
    %v2853 = vunpack.c.l.b16 %v623
    %v2854 = vunpack.c.h.b16 %v623
    %v2855 = vunpack.c.l.b16 %v624
    %v2856 = vunpack.c.h.b16 %v624
    %v2857 = vunpack.c.l.b16 %v625
    %v2858 = vunpack.c.h.b16 %v625
    %v2859 = vunpack.c.l.b16 %v626
    %v2860 = vunpack.c.h.b16 %v626
    %v2861 = vunpack.c.l.b16 %v627
    %v2862 = vunpack.c.h.b16 %v627
    %v2863 = vunpack.c.l.b16 %v628
    %v2864 = vunpack.c.h.b16 %v628
    %v2865 = vunpack.c.l.b16 %v629
    %v2866 = vunpack.c.h.b16 %v629
    %v2867 = vunpack.c.l.b16 %v630
    %v2868 = vunpack.c.h.b16 %v630
    %v2869 = vunpack.c.l.b16 %v631
    %v2870 = vunpack.c.h.b16 %v631
    %v2871 = vunpack.c.l.b16 %v632
    %v2872 = vunpack.c.h.b16 %v632
    %v2873 = vunpack.c.l.b16 %v633
    %v2874 = vunpack.c.h.b16 %v633
    %v2875 = vunpack.c.l.b16 %v634
    %v2876 = vunpack.c.h.b16 %v634
    %v2877 = vunpack.c.l.b16 %v635
    %v2878 = vunpack.c.h.b16 %v635
    %v2879 = vunpack.c.l.b16 %v636
    %v2880 = vunpack.c.h.b16 %v636
    %v2881 = vunpack.c.l.b16 %v637
    %v2882 = vunpack.c.h.b16 %v637
    %v2883 = vunpack.c.l.b16 %v638
    %v2884 = vunpack.c.h.b16 %v638
    %v2885 = vunpack.c.l.b16 %v639
    %v2886 = vunpack.c.h.b16 %v639
    %v2887 = vunpack.c.l.b16 %v640
    %v2888 = vunpack.c.h.b16 %v640
    %v2889 = vunpack.c.l.b16 %v641
    %v2890 = vunpack.c.h.b16 %v641
    %v2891 = vunpack.c.l.b16 %v642
    %v2892 = vunpack.c.h.b16 %v642
    %v2893 = vunpack.c.l.b16 %v643
    %v2894 = vunpack.c.h.b16 %v643
    %v2895 = vunpack.c.l.b16 %v644
    %v2896 = vunpack.c.h.b16 %v644
    %v2897 = vunpack.c.l.b16 %v645
    %v2898 = vunpack.c.h.b16 %v645
    %v2899 = vunpack.c.l.b16 %v646
    %v2900 = vunpack.c.h.b16 %v646
    %v2901 = vunpack.c.l.b16 %v647
    %v2902 = vunpack.c.h.b16 %v647
    %v2903 = vunpack.c.l.b16 %v648
    %v2904 = vunpack.c.h.b16 %v648
    %v2905 = vunpack.c.l.b16 %v649
    %v2906 = vunpack.c.h.b16 %v649
    %v2907 = vunpack.c.l.b16 %v650
    %v2908 = vunpack.c.h.b16 %v650
    %v2909 = vunpack.c.l.b16 %v651
    %v2910 = vunpack.c.h.b16 %v651
    %v2911 = vunpack.c.l.b16 %v652
    %v2912 = vunpack.c.h.b16 %v652
    %v2913 = vunpack.c.l.b16 %v653
    %v2914 = vunpack.c.h.b16 %v653
    %v2915 = vunpack.c.l.b16 %v654
    %v2916 = vunpack.c.h.b16 %v654
    %v2917 = vunpack.c.l.b16 %v655
    %v2918 = vunpack.c.h.b16 %v655
    %v2919 = vunpack.c.l.b16 %v656
    %v2920 = vunpack.c.h.b16 %v656
    %v2921 = vunpack.c.l.b16 %v657
    %v2922 = vunpack.c.h.b16 %v657
    %v2923 = vunpack.c.l.b16 %v658
    %v2924 = vunpack.c.h.b16 %v658
    %v2925 = vunpack.c.l.b16 %v659
    %v2926 = vunpack.c.h.b16 %v659
    %v2927 = vunpack.c.l.b16 %v660
    %v2928 = vunpack.c.h.b16 %v660
    %v2929 = vunpack.c.l.b16 %v661
    %v2930 = vunpack.c.h.b16 %v661
    %v2931 = vunpack.c.l.b16 %v662
    %v2932 = vunpack.c.h.b16 %v662
    %v2933 = vunpack.c.l.b16 %v663
    %v2934 = vunpack.c.h.b16 %v663
    %v2935 = vunpack.c.l.b16 %v664
    %v2936 = vunpack.c.h.b16 %v664
    %v2937 = vunpack.c.l.b16 %v665
    %v2938 = vunpack.c.h.b16 %v665
    %v2939 = vunpack.c.l.b16 %v666
    %v2940 = vunpack.c.h.b16 %v666
    %v2941 = vunpack.c.l.b16 %v667
    %v2942 = vunpack.c.h.b16 %v667
    %v2943 = vunpack.c.l.b16 %v668
    %v2944 = vunpack.c.h.b16 %v668
    %v2945 = vunpack.c.l.b16 %v669
    %v2946 = vunpack.c.h.b16 %v669
    %v2947 = vunpack.c.l.b16 %v670
    %v2948 = vunpack.c.h.b16 %v670
    %v2949 = vunpack.c.l.b16 %v671
    %v2950 = vunpack.c.h.b16 %v671
    %v2951 = vunpack.c.l.b16 %v672
    %v2952 = vunpack.c.h.b16 %v672
    %v2953 = vunpack.c.l.b16 %v673
    %v2954 = vunpack.c.h.b16 %v673
    %v2955 = vunpack.c.l.b16 %v674
    %v2956 = vunpack.c.h.b16 %v674
    %v2957 = vunpack.c.l.b16 %v675
    %v2958 = vunpack.c.h.b16 %v675
    %v2959 = vunpack.c.l.b16 %v676
    %v2960 = vunpack.c.h.b16 %v676
    %v2961 = vunpack.c.l.b16 %v677
    %v2962 = vunpack.c.h.b16 %v677
    %v2963 = vunpack.c.l.b16 %v678
    %v2964 = vunpack.c.h.b16 %v678
    %v2965 = vunpack.c.l.b16 %v679
    %v2966 = vunpack.c.h.b16 %v679
    %v2967 = vunpack.c.l.b16 %v680
    %v2968 = vunpack.c.h.b16 %v680
    %v2969 = vunpack.c.l.b16 %v681
    %v2970 = vunpack.c.h.b16 %v681
    %v2971 = vunpack.c.l.b16 %v682
    %v2972 = vunpack.c.h.b16 %v682
    %v2973 = vunpack.c.l.b16 %v683
    %v2974 = vunpack.c.h.b16 %v683
    %v2975 = vunpack.c.l.b16 %v684
    %v2976 = vunpack.c.h.b16 %v684
    %v2977 = vunpack.c.l.b16 %v685
    %v2978 = vunpack.c.h.b16 %v685
    %v2979 = vunpack.c.l.b16 %v686
    %v2980 = vunpack.c.h.b16 %v686
    %v2981 = vunpack.c.l.b16 %v687
    %v2982 = vunpack.c.h.b16 %v687
    %v2983 = vunpack.c.l.b16 %v688
    %v2984 = vunpack.c.h.b16 %v688
    %v2985 = vunpack.c.l.b16 %v689
    %v2986 = vunpack.c.h.b16 %v689
    %v2987 = vunpack.c.l.b16 %v690
    %v2988 = vunpack.c.h.b16 %v690
    %v2989 = vunpack.c.l.b16 %v691
    %v2990 = vunpack.c.h.b16 %v691
    %v2991 = vunpack.c.l.b16 %v692
    %v2992 = vunpack.c.h.b16 %v692
    %v2993 = vunpack.c.l.b16 %v693
    %v2994 = vunpack.c.h.b16 %v693
    %v2995 = vunpack.c.l.b16 %v694
    %v2996 = vunpack.c.h.b16 %v694
    %v2997 = vunpack.c.l.b16 %v695
    %v2998 = vunpack.c.h.b16 %v695
    %v2999 = vunpack.c.l.b16 %v696
    %v3000 = vunpack.c.h.b16 %v696
    %v3001 = vunpack.c.l.b16 %v697
    %v3002 = vunpack.c.h.b16 %v697
    %v3003 = vunpack.c.l.b16 %v698
    %v3004 = vunpack.c.h.b16 %v698
    %v3005 = vunpack.c.l.b16 %v699
    %v3006 = vunpack.c.h.b16 %v699
    %v3007 = vunpack.c.l.b16 %v700
    %v3008 = vunpack.c.h.b16 %v700
    %v3009 = vunpack.c.l.b16 %v701
    %v3010 = vunpack.c.h.b16 %v701
    %v3011 = vunpack.c.l.b16 %v702
    %v3012 = vunpack.c.h.b16 %v702
    %v3013 = vunpack.c.l.b16 %v703
    %v3014 = vunpack.c.h.b16 %v703
    %v3015 = vunpack.c.l.b16 %v704
    %v3016 = vunpack.c.h.b16 %v704
    %v3017 = vunpack.c.l.b16 %v705
    %v3018 = vunpack.c.h.b16 %v705
    %v3019 = vunpack.c.l.b16 %v706
    %v3020 = vunpack.c.h.b16 %v706
    %v3021 = vunpack.c.l.b16 %v707
    %v3022 = vunpack.c.h.b16 %v707
    %v3023 = vunpack.c.l.b16 %v708
    %v3024 = vunpack.c.h.b16 %v708
    %v3025 = vunpack.c.l.b16 %v709
    %v3026 = vunpack.c.h.b16 %v709
    %v3027 = vunpack.c.l.b16 %v710
    %v3028 = vunpack.c.h.b16 %v710
    %v3029 = vunpack.c.l.b16 %v711
    %v3030 = vunpack.c.h.b16 %v711
    %v3031 = vunpack.c.l.b16 %v712
    %v3032 = vunpack.c.h.b16 %v712
    %v3033 = vunpack.c.l.b16 %v713
    %v3034 = vunpack.c.h.b16 %v713
    %v3035 = vunpack.c.l.b16 %v714
    %v3036 = vunpack.c.h.b16 %v714
    %v3037 = vunpack.c.l.b16 %v715
    %v3038 = vunpack.c.h.b16 %v715
    %v3039 = vunpack.c.l.b16 %v716
    %v3040 = vunpack.c.h.b16 %v716
    %v3041 = vunpack.c.l.b16 %v717
    %v3042 = vunpack.c.h.b16 %v717
    %v3043 = vunpack.c.l.b16 %v718
    %v3044 = vunpack.c.h.b16 %v718
    %v3045 = vunpack.c.l.b16 %v719
    %v3046 = vunpack.c.h.b16 %v719
    %v3047 = vunpack.c.l.b16 %v720
    %v3048 = vunpack.c.h.b16 %v720
    %v3049 = vunpack.c.l.b16 %v721
    %v3050 = vunpack.c.h.b16 %v721
    %v3051 = vunpack.c.l.b16 %v722
    %v3052 = vunpack.c.h.b16 %v722
    %v3053 = vunpack.c.l.b16 %v723
    %v3054 = vunpack.c.h.b16 %v723
    %v3055 = vunpack.c.l.b16 %v724
    %v3056 = vunpack.c.h.b16 %v724
    %v3057 = vunpack.c.l.b16 %v725
    %v3058 = vunpack.c.h.b16 %v725
    %v3059 = vunpack.c.l.b16 %v726
    %v3060 = vunpack.c.h.b16 %v726
    %v3061 = vunpack.c.l.b16 %v727
    %v3062 = vunpack.c.h.b16 %v727
    %v3063 = vunpack.c.l.b16 %v728
    %v3064 = vunpack.c.h.b16 %v728
    %v3065 = vunpack.c.l.b16 %v729
    %v3066 = vunpack.c.h.b16 %v729
    %v3067 = vunpack.c.l.b16 %v730
    %v3068 = vunpack.c.h.b16 %v730
    %v3069 = vunpack.c.l.b16 %v731
    %v3070 = vunpack.c.h.b16 %v731
    %v3071 = vunpack.c.l.b16 %v732
    %v3072 = vunpack.c.h.b16 %v732
    %v3073 = vunpack.c.l.b16 %v733
    %v3074 = vunpack.c.h.b16 %v733
    %v3075 = vunpack.c.l.b16 %v734
    %v3076 = vunpack.c.h.b16 %v734
    %v3077 = vunpack.c.l.b16 %v735
    %v3078 = vunpack.c.h.b16 %v735
    %v3079 = vunpack.c.l.b16 %v736
    %v3080 = vunpack.c.h.b16 %v736
    %v3081 = vunpack.c.l.b16 %v737
    %v3082 = vunpack.c.h.b16 %v737
    %v3083 = vunpack.c.l.b16 %v738
    %v3084 = vunpack.c.h.b16 %v738
    %v3085 = vunpack.c.l.b16 %v739
    %v3086 = vunpack.c.h.b16 %v739
    %v3087 = vunpack.c.l.b16 %v740
    %v3088 = vunpack.c.h.b16 %v740
    %v3089 = vunpack.c.l.b16 %v741
    %v3090 = vunpack.c.h.b16 %v741
    %v3091 = vunpack.c.l.b16 %v742
    %v3092 = vunpack.c.h.b16 %v742
    %v3093 = vunpack.c.l.b16 %v743
    %v3094 = vunpack.c.h.b16 %v743
    %v3095 = vunpack.c.l.b16 %v744
    %v3096 = vunpack.c.h.b16 %v744
    %v3097 = vunpack.c.l.b16 %v745
    %v3098 = vunpack.c.h.b16 %v745
    %v3099 = vunpack.c.l.b16 %v746
    %v3100 = vunpack.c.h.b16 %v746
    %v3101 = vunpack.c.l.b16 %v747
    %v3102 = vunpack.c.h.b16 %v747
    %v3103 = vunpack.c.l.b16 %v748
    %v3104 = vunpack.c.h.b16 %v748
    %v3105 = vunpack.c.l.b16 %v749
    %v3106 = vunpack.c.h.b16 %v749
    %v3107 = vunpack.c.l.b16 %v750
    %v3108 = vunpack.c.h.b16 %v750
    %v3109 = vunpack.c.l.b16 %v751
    %v3110 = vunpack.c.h.b16 %v751
    %v3111 = vunpack.c.l.b16 %v752
    %v3112 = vunpack.c.h.b16 %v752
    %v3113 = vunpack.c.l.b16 %v753
    %v3114 = vunpack.c.h.b16 %v753
    %v3115 = vunpack.c.l.b16 %v754
    %v3116 = vunpack.c.h.b16 %v754
    %v3117 = vunpack.c.l.b16 %v755
    %v3118 = vunpack.c.h.b16 %v755
    %v3119 = vunpack.c.l.b16 %v756
    %v3120 = vunpack.c.h.b16 %v756
    %v3121 = vunpack.c.l.b16 %v757
    %v3122 = vunpack.c.h.b16 %v757
    %v3123 = vunpack.c.l.b16 %v758
    %v3124 = vunpack.c.h.b16 %v758
    %v3125 = vunpack.c.l.b16 %v759
    %v3126 = vunpack.c.h.b16 %v759
    %v3127 = vunpack.c.l.b16 %v760
    %v3128 = vunpack.c.h.b16 %v760
    %v3129 = vunpack.c.l.b16 %v761
    %v3130 = vunpack.c.h.b16 %v761
    %v3131 = vunpack.c.l.b16 %v762
    %v3132 = vunpack.c.h.b16 %v762
    %v3133 = vunpack.c.l.b16 %v763
    %v3134 = vunpack.c.h.b16 %v763
    %v3135 = vunpack.c.l.b16 %v764
    %v3136 = vunpack.c.h.b16 %v764
    %v3137 = vunpack.c.l.b16 %v765
    %v3138 = vunpack.c.h.b16 %v765
    %v3139 = vunpack.c.l.b16 %v766
    %v3140 = vunpack.c.h.b16 %v766
    %v3141 = vunpack.c.l.b16 %v767
    %v3142 = vunpack.c.h.b16 %v767
    %v3143 = vunpack.c.l.b16 %v768
    %v3144 = vunpack.c.h.b16 %v768
    %v3145 = vunpack.c.l.b16 %v769
    %v3146 = vunpack.c.h.b16 %v769
    %v3147 = vunpack.c.l.b16 %v770
    %v3148 = vunpack.c.h.b16 %v770
    %v3149 = vunpack.c.l.b16 %v771
    %v3150 = vunpack.c.h.b16 %v771
    %v3151 = vunpack.c.l.b16 %v772
    %v3152 = vunpack.c.h.b16 %v772
    %v3153 = vunpack.c.l.b16 %v773
    %v3154 = vunpack.c.h.b16 %v773
    %v3155 = vunpack.c.l.b16 %v774
    %v3156 = vunpack.c.h.b16 %v774
    %v3157 = vunpack.c.l.b16 %v775
    %v3158 = vunpack.c.h.b16 %v775
    %v3159 = vunpack.c.l.b16 %v776
    %v3160 = vunpack.c.h.b16 %v776
    %v3161 = vunpack.c.l.b16 %v777
    %v3162 = vunpack.c.h.b16 %v777
    %v3163 = vunpack.c.l.b16 %v778
    %v3164 = vunpack.c.h.b16 %v778
    %v3165 = vunpack.c.l.b16 %v779
    %v3166 = vunpack.c.h.b16 %v779
    %v3167 = vunpack.c.l.b16 %v780
    %v3168 = vunpack.c.h.b16 %v780
    %v3169 = vunpack.c.l.b16 %v781
    %v3170 = vunpack.c.h.b16 %v781
    %v3171 = vunpack.c.l.b16 %v782
    %v3172 = vunpack.c.h.b16 %v782
    %v3173 = vunpack.c.l.b16 %v783
    %v3174 = vunpack.c.h.b16 %v783
    %v3175 = vunpack.c.l.b16 %v784
    %v3176 = vunpack.c.h.b16 %v784
    %v3177 = vunpack.c.l.b16 %v785
    %v3178 = vunpack.c.h.b16 %v785
    %v3179 = vunpack.c.l.b16 %v786
    %v3180 = vunpack.c.h.b16 %v786
    %v3181 = vunpack.c.l.b16 %v787
    %v3182 = vunpack.c.h.b16 %v787
    %v3183 = vunpack.c.l.b16 %v788
    %v3184 = vunpack.c.h.b16 %v788
    %v3185 = vunpack.c.l.b16 %v789
    %v3186 = vunpack.c.h.b16 %v789
    %v3187 = vunpack.c.l.b16 %v790
    %v3188 = vunpack.c.h.b16 %v790
    %v3189 = vunpack.c.l.b16 %v791
    %v3190 = vunpack.c.h.b16 %v791
    %v3191 = vunpack.c.l.b16 %v792
    %v3192 = vunpack.c.h.b16 %v792
    %v3193 = vunpack.c.l.b16 %v793
    %v3194 = vunpack.c.h.b16 %v793
    %v3195 = vunpack.c.l.b16 %v794
    %v3196 = vunpack.c.h.b16 %v794
    %v3197 = vunpack.c.l.b16 %v795
    %v3198 = vunpack.c.h.b16 %v795
    %v3199 = vunpack.c.l.b16 %v796
    %v3200 = vunpack.c.h.b16 %v796
    %v3201 = vunpack.c.l.b16 %v797
    %v3202 = vunpack.c.h.b16 %v797
    %v3203 = vunpack.c.l.b16 %v798
    %v3204 = vunpack.c.h.b16 %v798
    %v3205 = vunpack.c.l.b16 %v799
    %v3206 = vunpack.c.h.b16 %v799
    %v3207 = vunpack.c.l.b16 %v800
    %v3208 = vunpack.c.h.b16 %v800
    %v3209 = vunpack.c.l.b16 %v801
    %v3210 = vunpack.c.h.b16 %v801
    %v3211 = vunpack.c.l.b16 %v802
    %v3212 = vunpack.c.h.b16 %v802
    %v3213 = vunpack.c.l.b16 %v803
    %v3214 = vunpack.c.h.b16 %v803
    %v3215 = vunpack.c.l.b16 %v804
    %v3216 = vunpack.c.h.b16 %v804
    %v3217 = vunpack.c.l.b16 %v805
    %v3218 = vunpack.c.h.b16 %v805
    %v3219 = vunpack.c.l.b16 %v806
    %v3220 = vunpack.c.h.b16 %v806
    %v3221 = vunpack.c.l.b16 %v807
    %v3222 = vunpack.c.h.b16 %v807
    %v3223 = vunpack.c.l.b16 %v808
    %v3224 = vunpack.c.h.b16 %v808
    %v3225 = vunpack.c.l.b16 %v809
    %v3226 = vunpack.c.h.b16 %v809
    %v3227 = vunpack.c.l.b16 %v810
    %v3228 = vunpack.c.h.b16 %v810
    %v3229 = vunpack.c.l.b16 %v811
    %v3230 = vunpack.c.h.b16 %v811
    %v3231 = vunpack.c.l.b16 %v812
    %v3232 = vunpack.c.h.b16 %v812
    %v3233 = vunpack.c.l.b16 %v813
    %v3234 = vunpack.c.h.b16 %v813
    %v3235 = vunpack.c.l.b16 %v814
    %v3236 = vunpack.c.h.b16 %v814
    %v3237 = vunpack.c.l.b16 %v815
    %v3238 = vunpack.c.h.b16 %v815
    %v3239 = vunpack.c.l.b16 %v816
    %v3240 = vunpack.c.h.b16 %v816
    %v3241 = vunpack.c.l.b16 %v817
    %v3242 = vunpack.c.h.b16 %v817
    %v3243 = vunpack.c.l.b16 %v818
    %v3244 = vunpack.c.h.b16 %v818
    %v3245 = vunpack.c.l.b16 %v819
    %v3246 = vunpack.c.h.b16 %v819
    %v3247 = vunpack.c.l.b16 %v820
    %v3248 = vunpack.c.h.b16 %v820
    %v3249 = vunpack.c.l.b16 %v821
    %v3250 = vunpack.c.h.b16 %v821
    %v3251 = vunpack.c.l.b16 %v822
    %v3252 = vunpack.c.h.b16 %v822
    %v3253 = vunpack.c.l.b16 %v823
    %v3254 = vunpack.c.h.b16 %v823
    %v3255 = vunpack.c.l.b16 %v824
    %v3256 = vunpack.c.h.b16 %v824
    %v3257 = vunpack.c.l.b16 %v825
    %v3258 = vunpack.c.h.b16 %v825
    %v3259 = vunpack.c.l.b16 %v826
    %v3260 = vunpack.c.h.b16 %v826
    %v3261 = vunpack.c.l.b16 %v827
    %v3262 = vunpack.c.h.b16 %v827
    %v3263 = vunpack.c.l.b16 %v828
    %v3264 = vunpack.c.h.b16 %v828
    %v3265 = vunpack.c.l.b16 %v829
    %v3266 = vunpack.c.h.b16 %v829
    %v3267 = vunpack.c.l.b16 %v830
    %v3268 = vunpack.c.h.b16 %v830
    %v3269 = vunpack.c.l.b16 %v831
    %v3270 = vunpack.c.h.b16 %v831
    %v3271 = vunpack.c.l.b16 %v832
    %v3272 = vunpack.c.h.b16 %v832
    %v3273 = vunpack.c.l.b16 %v833
    %v3274 = vunpack.c.h.b16 %v833
    %v3275 = vunpack.c.l.b16 %v834
    %v3276 = vunpack.c.h.b16 %v834
    %v3277 = vunpack.c.l.b16 %v835
    %v3278 = vunpack.c.h.b16 %v835
    %v3279 = vunpack.c.l.b16 %v836
    %v3280 = vunpack.c.h.b16 %v836
    %v3281 = vunpack.c.l.b16 %v837
    %v3282 = vunpack.c.h.b16 %v837
    %v3283 = vunpack.c.l.b16 %v838
    %v3284 = vunpack.c.h.b16 %v838
    %v3285 = vunpack.c.l.b16 %v839
    %v3286 = vunpack.c.h.b16 %v839
    %v3287 = vunpack.c.l.b16 %v840
    %v3288 = vunpack.c.h.b16 %v840
    %v3289 = vunpack.c.l.b16 %v841
    %v3290 = vunpack.c.h.b16 %v841
    %v3291 = vunpack.c.l.b16 %v842
    %v3292 = vunpack.c.h.b16 %v842
    %v3293 = vunpack.c.l.b16 %v843
    %v3294 = vunpack.c.h.b16 %v843
    %v3295 = vunpack.c.l.b16 %v844
    %v3296 = vunpack.c.h.b16 %v844
    %v3297 = vunpack.c.l.b16 %v845
    %v3298 = vunpack.c.h.b16 %v845
    %v3299 = vunpack.c.l.b16 %v846
    %v3300 = vunpack.c.h.b16 %v846
    %v3301 = vunpack.c.l.b16 %v847
    %v3302 = vunpack.c.h.b16 %v847
    %v3303 = vunpack.c.l.b16 %v848
    %v3304 = vunpack.c.h.b16 %v848
    %v3305 = vunpack.c.l.b16 %v849
    %v3306 = vunpack.c.h.b16 %v849
    %v3307 = vunpack.c.l.b16 %v850
    %v3308 = vunpack.c.h.b16 %v850
    %v3309 = vunpack.c.l.b16 %v851
    %v3310 = vunpack.c.h.b16 %v851
    %v3311 = vunpack.c.l.b16 %v852
    %v3312 = vunpack.c.h.b16 %v852
    %v3313 = vunpack.c.l.b16 %v853
    %v3314 = vunpack.c.h.b16 %v853
    %v3315 = vunpack.c.l.b16 %v854
    %v3316 = vunpack.c.h.b16 %v854
    %v3317 = vunpack.c.l.b16 %v855
    %v3318 = vunpack.c.h.b16 %v855
    %v3319 = vunpack.c.l.b16 %v856
    %v3320 = vunpack.c.h.b16 %v856
    %v3321 = vunpack.c.l.b16 %v857
    %v3322 = vunpack.c.h.b16 %v857
    %v3323 = vunpack.c.l.b16 %v858
    %v3324 = vunpack.c.h.b16 %v858
    %v3325 = vunpack.c.l.b16 %v859
    %v3326 = vunpack.c.h.b16 %v859
    %v3327 = vunpack.c.l.b16 %v860
    %v3328 = vunpack.c.h.b16 %v860
    %v3329 = vunpack.c.l.b16 %v861
    %v3330 = vunpack.c.h.b16 %v861
    %v3331 = vunpack.c.l.b16 %v862
    %v3332 = vunpack.c.h.b16 %v862
    %v3333 = vunpack.c.l.b16 %v863
    %v3334 = vunpack.c.h.b16 %v863
    %v3335 = vunpack.c.l.b16 %v864
    %v3336 = vunpack.c.h.b16 %v864
    %v3337 = vunpack.c.l.b16 %v865
    %v3338 = vunpack.c.h.b16 %v865
    %v3339 = vunpack.c.l.b16 %v866
    %v3340 = vunpack.c.h.b16 %v866
    %v3341 = vunpack.c.l.b16 %v867
    %v3342 = vunpack.c.h.b16 %v867
    %v3343 = vunpack.c.l.b16 %v868
    %v3344 = vunpack.c.h.b16 %v868
    %v3345 = vunpack.c.l.b16 %v869
    %v3346 = vunpack.c.h.b16 %v869
    %v3347 = vunpack.c.l.b16 %v870
    %v3348 = vunpack.c.h.b16 %v870
    %v3349 = vunpack.c.l.b16 %v871
    %v3350 = vunpack.c.h.b16 %v871
    %v3351 = vunpack.c.l.b16 %v872
    %v3352 = vunpack.c.h.b16 %v872
    %v3353 = vunpack.c.l.b16 %v873
    %v3354 = vunpack.c.h.b16 %v873
    %v3355 = vunpack.c.l.b16 %v874
    %v3356 = vunpack.c.h.b16 %v874
    %v3357 = vunpack.c.l.b16 %v875
    %v3358 = vunpack.c.h.b16 %v875
    %v3359 = vunpack.c.l.b16 %v876
    %v3360 = vunpack.c.h.b16 %v876
    %v3361 = vunpack.c.l.b16 %v877
    %v3362 = vunpack.c.h.b16 %v877
    %v3363 = vunpack.c.l.b16 %v878
    %v3364 = vunpack.c.h.b16 %v878
    %v3365 = vunpack.c.l.b16 %v879
    %v3366 = vunpack.c.h.b16 %v879
    %v3367 = vunpack.c.l.b16 %v880
    %v3368 = vunpack.c.h.b16 %v880
    %v3369 = vunpack.c.l.b16 %v881
    %v3370 = vunpack.c.h.b16 %v881
    %v3371 = vunpack.c.l.b16 %v882
    %v3372 = vunpack.c.h.b16 %v882
    %v3373 = vunpack.c.l.b16 %v883
    %v3374 = vunpack.c.h.b16 %v883
    %v3375 = vunpack.c.l.b16 %v884
    %v3376 = vunpack.c.h.b16 %v884
    %v3377 = vunpack.c.l.b16 %v885
    %v3378 = vunpack.c.h.b16 %v885
    %v3379 = vunpack.c.l.b16 %v886
    %v3380 = vunpack.c.h.b16 %v886
    %v3381 = vunpack.c.l.b16 %v887
    %v3382 = vunpack.c.h.b16 %v887
    %v3383 = vunpack.c.l.b16 %v888
    %v3384 = vunpack.c.h.b16 %v888
    %v3385 = vunpack.c.l.b16 %v889
    %v3386 = vunpack.c.h.b16 %v889
    %v3387 = vunpack.c.l.b16 %v890
    %v3388 = vunpack.c.h.b16 %v890
    %v3389 = vunpack.c.l.b16 %v891
    %v3390 = vunpack.c.h.b16 %v891
    %v3391 = vunpack.c.l.b16 %v892
    %v3392 = vunpack.c.h.b16 %v892
    %v3393 = vunpack.c.l.b16 %v893
    %v3394 = vunpack.c.h.b16 %v893
    %v3395 = vunpack.c.l.b16 %v894
    %v3396 = vunpack.c.h.b16 %v894
    %v3397 = vunpack.c.l.b16 %v895
    %v3398 = vunpack.c.h.b16 %v895
    %v3399 = vunpack.c.l.b16 %v896
    %v3400 = vunpack.c.h.b16 %v896
    %v3401 = vunpack.c.l.b16 %v897
    %v3402 = vunpack.c.h.b16 %v897
    %v3403 = vunpack.c.l.b16 %v898
    %v3404 = vunpack.c.h.b16 %v898
    %v3405 = vunpack.c.l.b16 %v899
    %v3406 = vunpack.c.h.b16 %v899
    %v3407 = vunpack.c.l.b16 %v900
    %v3408 = vunpack.c.h.b16 %v900
    %v3409 = vunpack.c.l.b16 %v901
    %v3410 = vunpack.c.h.b16 %v901
    %v3411 = vunpack.c.l.b16 %v902
    %v3412 = vunpack.c.h.b16 %v902
    %v3413 = vunpack.c.l.b16 %v903
    %v3414 = vunpack.c.h.b16 %v903
    %v3415 = vunpack.c.l.b16 %v904
    %v3416 = vunpack.c.h.b16 %v904
    %v3417 = vunpack.c.l.b16 %v905
    %v3418 = vunpack.c.h.b16 %v905
    %v3419 = vunpack.c.l.b16 %v906
    %v3420 = vunpack.c.h.b16 %v906
    %v3421 = vunpack.c.l.b16 %v907
    %v3422 = vunpack.c.h.b16 %v907
    %v3423 = vunpack.c.l.b16 %v908
    %v3424 = vunpack.c.h.b16 %v908
    %v3425 = vunpack.c.l.b16 %v909
    %v3426 = vunpack.c.h.b16 %v909
    %v3427 = vunpack.c.l.b16 %v910
    %v3428 = vunpack.c.h.b16 %v910
    %v3429 = vunpack.c.l.b16 %v911
    %v3430 = vunpack.c.h.b16 %v911
    %v3431 = vunpack.c.l.b16 %v912
    %v3432 = vunpack.c.h.b16 %v912
    %v3433 = vunpack.c.l.b16 %v913
    %v3434 = vunpack.c.h.b16 %v913
    %v3435 = vunpack.c.l.b16 %v914
    %v3436 = vunpack.c.h.b16 %v914
    %v3437 = vunpack.c.l.b16 %v915
    %v3438 = vunpack.c.h.b16 %v915
    %v3439 = vunpack.c.l.b16 %v916
    %v3440 = vunpack.c.h.b16 %v916
    %v3441 = vunpack.c.l.b16 %v917
    %v3442 = vunpack.c.h.b16 %v917
    %v3443 = vunpack.c.l.b16 %v918
    %v3444 = vunpack.c.h.b16 %v918
    %v3445 = vunpack.c.l.b16 %v919
    %v3446 = vunpack.c.h.b16 %v919
    %v3447 = vunpack.c.l.b16 %v920
    %v3448 = vunpack.c.h.b16 %v920
    %v3449 = vunpack.c.l.b16 %v921
    %v3450 = vunpack.c.h.b16 %v921
    %v3451 = vunpack.c.l.b16 %v922
    %v3452 = vunpack.c.h.b16 %v922
    %v3453 = vunpack.c.l.b16 %v923
    %v3454 = vunpack.c.h.b16 %v923
    %v3455 = vunpack.c.l.b16 %v924
    %v3456 = vunpack.c.h.b16 %v924
    %v3457 = vunpack.c.l.b16 %v925
    %v3458 = vunpack.c.h.b16 %v925
    %v3459 = vunpack.c.l.b16 %v926
    %v3460 = vunpack.c.h.b16 %v926
    %v3461 = vunpack.c.l.b16 %v927
    %v3462 = vunpack.c.h.b16 %v927
    %v3463 = vunpack.c.l.b16 %v928
    %v3464 = vunpack.c.h.b16 %v928
    %v3465 = vunpack.c.l.b16 %v929
    %v3466 = vunpack.c.h.b16 %v929
    %v3467 = vunpack.c.l.b16 %v930
    %v3468 = vunpack.c.h.b16 %v930
    %v3469 = vunpack.c.l.b16 %v931
    %v3470 = vunpack.c.h.b16 %v931
    %v3471 = vunpack.c.l.b16 %v932
    %v3472 = vunpack.c.h.b16 %v932
    %v3473 = vunpack.c.l.b16 %v933
    %v3474 = vunpack.c.h.b16 %v933
    %v3475 = vunpack.c.l.b16 %v934
    %v3476 = vunpack.c.h.b16 %v934
    %v3477 = vunpack.c.l.b16 %v935
    %v3478 = vunpack.c.h.b16 %v935
    %v3479 = vunpack.c.l.b16 %v936
    %v3480 = vunpack.c.h.b16 %v936
    %v3481 = vunpack.c.l.b16 %v937
    %v3482 = vunpack.c.h.b16 %v937
    %v3483 = vunpack.c.l.b16 %v938
    %v3484 = vunpack.c.h.b16 %v938
    %v3485 = vunpack.c.l.b16 %v939
    %v3486 = vunpack.c.h.b16 %v939
    %v3487 = vunpack.c.l.b16 %v940
    %v3488 = vunpack.c.h.b16 %v940
    %v3489 = vunpack.c.l.b16 %v941
    %v3490 = vunpack.c.h.b16 %v941
    %v3491 = vunpack.c.l.b16 %v942
    %v3492 = vunpack.c.h.b16 %v942
    %v3493 = vunpack.c.l.b16 %v943
    %v3494 = vunpack.c.h.b16 %v943
    %v3495 = vunpack.c.l.b16 %v944
    %v3496 = vunpack.c.h.b16 %v944
    %v3497 = vunpack.c.l.b16 %v945
    %v3498 = vunpack.c.h.b16 %v945
    %v3499 = vunpack.c.l.b16 %v946
    %v3500 = vunpack.c.h.b16 %v946
    %v3501 = vunpack.c.l.b16 %v947
    %v3502 = vunpack.c.h.b16 %v947
    %v3503 = vunpack.c.l.b16 %v948
    %v3504 = vunpack.c.h.b16 %v948
    %v3505 = vpack.c.b16 %v2017, %v1969
    %v3506 = vpack.c.b16 %v2018, %v1970
    %v3507 = vpack.c.b16 %v2019, %v1971
    %v3508 = vpack.c.b16 %v2020, %v1972
    %v3509 = vpack.c.b16 %v2021, %v1973
    %v3510 = vpack.c.b16 %v2022, %v1974
    %v3511 = vpack.c.b16 %v2023, %v1975
    %v3512 = vpack.c.b16 %v2024, %v1976
    %v3513 = vpack.c.b16 %v2025, %v1977
    %v3514 = vpack.c.b16 %v2026, %v1978
    %v3515 = vpack.c.b16 %v2027, %v1979
    %v3516 = vpack.c.b16 %v2028, %v1980
    %v3517 = vpack.c.b16 %v2029, %v1981
    %v3518 = vpack.c.b16 %v2030, %v1982
    %v3519 = vpack.c.b16 %v2031, %v1983
    %v3520 = vpack.c.b16 %v2032, %v1984
    %v3521 = vpack.c.b16 %v2033, %v1985
    %v3522 = vpack.c.b16 %v2034, %v1986
    %v3523 = vpack.c.b16 %v2035, %v1987
    %v3524 = vpack.c.b16 %v2036, %v1988
    %v3525 = vpack.c.b16 %v2037, %v1989
    %v3526 = vpack.c.b16 %v2038, %v1990
    %v3527 = vpack.c.b16 %v2039, %v1991
    %v3528 = vpack.c.b16 %v2040, %v1992
    %v3529 = vpack.c.b16 %v2041, %v1993
    %v3530 = vpack.c.b16 %v2042, %v1994
    %v3531 = vpack.c.b16 %v2043, %v1995
    %v3532 = vpack.c.b16 %v2044, %v1996
    %v3533 = vpack.c.b16 %v2045, %v1997
    %v3534 = vpack.c.b16 %v2046, %v1998
    %v3535 = vpack.c.b16 %v2047, %v1999
    %v3536 = vpack.c.b16 %v2048, %v2000
    %v3537 = vpack.c.b16 %v2049, %v2001
    %v3538 = vpack.c.b16 %v2050, %v2002
    %v3539 = vpack.c.b16 %v2051, %v2003
    %v3540 = vpack.c.b16 %v2052, %v2004
    %v3541 = vpack.c.b16 %v2053, %v2005
    %v3542 = vpack.c.b16 %v2054, %v2006
    %v3543 = vpack.c.b16 %v2055, %v2007
    %v3544 = vpack.c.b16 %v2056, %v2008
    %v3545 = vpack.c.b16 %v2057, %v2009
    %v3546 = vpack.c.b16 %v2058, %v2010
    %v3547 = vpack.c.b16 %v2059, %v2011
    %v3548 = vpack.c.b16 %v2060, %v2012
    %v3549 = vpack.c.b16 %v2061, %v2013
    %v3550 = vpack.c.b16 %v2062, %v2014
    %v3551 = vpack.c.b16 %v2063, %v2015
    %v3552 = vpack.c.b16 %v2064, %v2016
    %v3553 = vpack.c.b16 %v2113, %v2065
    %v3554 = vpack.c.b16 %v2114, %v2066
    %v3555 = vpack.c.b16 %v2115, %v2067
    %v3556 = vpack.c.b16 %v2116, %v2068
    %v3557 = vpack.c.b16 %v2117, %v2069
    %v3558 = vpack.c.b16 %v2118, %v2070
    %v3559 = vpack.c.b16 %v2119, %v2071
    %v3560 = vpack.c.b16 %v2120, %v2072
    %v3561 = vpack.c.b16 %v2121, %v2073
    %v3562 = vpack.c.b16 %v2122, %v2074
    %v3563 = vpack.c.b16 %v2123, %v2075
    %v3564 = vpack.c.b16 %v2124, %v2076
    %v3565 = vpack.c.b16 %v2125, %v2077
    %v3566 = vpack.c.b16 %v2126, %v2078
    %v3567 = vpack.c.b16 %v2127, %v2079
    %v3568 = vpack.c.b16 %v2128, %v2080
    %v3569 = vpack.c.b16 %v2129, %v2081
    %v3570 = vpack.c.b16 %v2130, %v2082
    %v3571 = vpack.c.b16 %v2131, %v2083
    %v3572 = vpack.c.b16 %v2132, %v2084
    %v3573 = vpack.c.b16 %v2133, %v2085
    %v3574 = vpack.c.b16 %v2134, %v2086
    %v3575 = vpack.c.b16 %v2135, %v2087
    %v3576 = vpack.c.b16 %v2136, %v2088
    %v3577 = vpack.c.b16 %v2137, %v2089
    %v3578 = vpack.c.b16 %v2138, %v2090
    %v3579 = vpack.c.b16 %v2139, %v2091
    %v3580 = vpack.c.b16 %v2140, %v2092
    %v3581 = vpack.c.b16 %v2141, %v2093
    %v3582 = vpack.c.b16 %v2142, %v2094
    %v3583 = vpack.c.b16 %v2143, %v2095
    %v3584 = vpack.c.b16 %v2144, %v2096
    %v3585 = vpack.c.b16 %v2145, %v2097
    %v3586 = vpack.c.b16 %v2146, %v2098
    %v3587 = vpack.c.b16 %v2147, %v2099
    %v3588 = vpack.c.b16 %v2148, %v2100
    %v3589 = vpack.c.b16 %v2149, %v2101
    %v3590 = vpack.c.b16 %v2150, %v2102
    %v3591 = vpack.c.b16 %v2151, %v2103
    %v3592 = vpack.c.b16 %v2152, %v2104
    %v3593 = vpack.c.b16 %v2153, %v2105
    %v3594 = vpack.c.b16 %v2154, %v2106
    %v3595 = vpack.c.b16 %v2155, %v2107
    %v3596 = vpack.c.b16 %v2156, %v2108
    %v3597 = vpack.c.b16 %v2157, %v2109
    %v3598 = vpack.c.b16 %v2158, %v2110
    %v3599 = vpack.c.b16 %v2159, %v2111
    %v3600 = vpack.c.b16 %v2160, %v2112
    %v3601 = vpack.c.b16 %v2209, %v2161
    %v3602 = vpack.c.b16 %v2210, %v2162
    %v3603 = vpack.c.b16 %v2211, %v2163
    %v3604 = vpack.c.b16 %v2212, %v2164
    %v3605 = vpack.c.b16 %v2213, %v2165
    %v3606 = vpack.c.b16 %v2214, %v2166
    %v3607 = vpack.c.b16 %v2215, %v2167
    %v3608 = vpack.c.b16 %v2216, %v2168
    %v3609 = vpack.c.b16 %v2217, %v2169
    %v3610 = vpack.c.b16 %v2218, %v2170
    %v3611 = vpack.c.b16 %v2219, %v2171
    %v3612 = vpack.c.b16 %v2220, %v2172
    %v3613 = vpack.c.b16 %v2221, %v2173
    %v3614 = vpack.c.b16 %v2222, %v2174
    %v3615 = vpack.c.b16 %v2223, %v2175
    %v3616 = vpack.c.b16 %v2224, %v2176
    %v3617 = vpack.c.b16 %v2225, %v2177
    %v3618 = vpack.c.b16 %v2226, %v2178
    %v3619 = vpack.c.b16 %v2227, %v2179
    %v3620 = vpack.c.b16 %v2228, %v2180
    %v3621 = vpack.c.b16 %v2229, %v2181
    %v3622 = vpack.c.b16 %v2230, %v2182
    %v3623 = vpack.c.b16 %v2231, %v2183
    %v3624 = vpack.c.b16 %v2232, %v2184
    %v3625 = vpack.c.b16 %v2233, %v2185
    %v3626 = vpack.c.b16 %v2234, %v2186
    %v3627 = vpack.c.b16 %v2235, %v2187
    %v3628 = vpack.c.b16 %v2236, %v2188
    %v3629 = vpack.c.b16 %v2237, %v2189
    %v3630 = vpack.c.b16 %v2238, %v2190
    %v3631 = vpack.c.b16 %v2239, %v2191
    %v3632 = vpack.c.b16 %v2240, %v2192
    %v3633 = vpack.c.b16 %v2241, %v2193
    %v3634 = vpack.c.b16 %v2242, %v2194
    %v3635 = vpack.c.b16 %v2243, %v2195
    %v3636 = vpack.c.b16 %v2244, %v2196
    %v3637 = vpack.c.b16 %v2245, %v2197
    %v3638 = vpack.c.b16 %v2246, %v2198
    %v3639 = vpack.c.b16 %v2247, %v2199
    %v3640 = vpack.c.b16 %v2248, %v2200
    %v3641 = vpack.c.b16 %v2249, %v2201
    %v3642 = vpack.c.b16 %v2250, %v2202
    %v3643 = vpack.c.b16 %v2251, %v2203
    %v3644 = vpack.c.b16 %v2252, %v2204
    %v3645 = vpack.c.b16 %v2253, %v2205
    %v3646 = vpack.c.b16 %v2254, %v2206
    %v3647 = vpack.c.b16 %v2255, %v2207
    %v3648 = vpack.c.b16 %v2256, %v2208
    %v3649 = vpack.c.b16 %v2305, %v2257
    %v3650 = vpack.c.b16 %v2306, %v2258
    %v3651 = vpack.c.b16 %v2307, %v2259
    %v3652 = vpack.c.b16 %v2308, %v2260
    %v3653 = vpack.c.b16 %v2309, %v2261
    %v3654 = vpack.c.b16 %v2310, %v2262
    %v3655 = vpack.c.b16 %v2311, %v2263
    %v3656 = vpack.c.b16 %v2312, %v2264
    %v3657 = vpack.c.b16 %v2313, %v2265
    %v3658 = vpack.c.b16 %v2314, %v2266
    %v3659 = vpack.c.b16 %v2315, %v2267
    %v3660 = vpack.c.b16 %v2316, %v2268
    %v3661 = vpack.c.b16 %v2317, %v2269
    %v3662 = vpack.c.b16 %v2318, %v2270
    %v3663 = vpack.c.b16 %v2319, %v2271
    %v3664 = vpack.c.b16 %v2320, %v2272
    %v3665 = vpack.c.b16 %v2321, %v2273
    %v3666 = vpack.c.b16 %v2322, %v2274
    %v3667 = vpack.c.b16 %v2323, %v2275
    %v3668 = vpack.c.b16 %v2324, %v2276
    %v3669 = vpack.c.b16 %v2325, %v2277
    %v3670 = vpack.c.b16 %v2326, %v2278
    %v3671 = vpack.c.b16 %v2327, %v2279
    %v3672 = vpack.c.b16 %v2328, %v2280
    %v3673 = vpack.c.b16 %v2329, %v2281
    %v3674 = vpack.c.b16 %v2330, %v2282
    %v3675 = vpack.c.b16 %v2331, %v2283
    %v3676 = vpack.c.b16 %v2332, %v2284
    %v3677 = vpack.c.b16 %v2333, %v2285
    %v3678 = vpack.c.b16 %v2334, %v2286
    %v3679 = vpack.c.b16 %v2335, %v2287
    %v3680 = vpack.c.b16 %v2336, %v2288
    %v3681 = vpack.c.b16 %v2337, %v2289
    %v3682 = vpack.c.b16 %v2338, %v2290
    %v3683 = vpack.c.b16 %v2339, %v2291
    %v3684 = vpack.c.b16 %v2340, %v2292
    %v3685 = vpack.c.b16 %v2341, %v2293
    %v3686 = vpack.c.b16 %v2342, %v2294
    %v3687 = vpack.c.b16 %v2343, %v2295
    %v3688 = vpack.c.b16 %v2344, %v2296
    %v3689 = vpack.c.b16 %v2345, %v2297
    %v3690 = vpack.c.b16 %v2346, %v2298
    %v3691 = vpack.c.b16 %v2347, %v2299
    %v3692 = vpack.c.b16 %v2348, %v2300
    %v3693 = vpack.c.b16 %v2349, %v2301
    %v3694 = vpack.c.b16 %v2350, %v2302
    %v3695 = vpack.c.b16 %v2351, %v2303
    %v3696 = vpack.c.b16 %v2352, %v2304
    %v3697 = vpack.c.b16 %v2401, %v2353
    %v3698 = vpack.c.b16 %v2402, %v2354
    %v3699 = vpack.c.b16 %v2403, %v2355
    %v3700 = vpack.c.b16 %v2404, %v2356
    %v3701 = vpack.c.b16 %v2405, %v2357
    %v3702 = vpack.c.b16 %v2406, %v2358
    %v3703 = vpack.c.b16 %v2407, %v2359
    %v3704 = vpack.c.b16 %v2408, %v2360
    %v3705 = vpack.c.b16 %v2409, %v2361
    %v3706 = vpack.c.b16 %v2410, %v2362
    %v3707 = vpack.c.b16 %v2411, %v2363
    %v3708 = vpack.c.b16 %v2412, %v2364
    %v3709 = vpack.c.b16 %v2413, %v2365
    %v3710 = vpack.c.b16 %v2414, %v2366
    %v3711 = vpack.c.b16 %v2415, %v2367
    %v3712 = vpack.c.b16 %v2416, %v2368
    %v3713 = vpack.c.b16 %v2417, %v2369
    %v3714 = vpack.c.b16 %v2418, %v2370
    %v3715 = vpack.c.b16 %v2419, %v2371
    %v3716 = vpack.c.b16 %v2420, %v2372
    %v3717 = vpack.c.b16 %v2421, %v2373
    %v3718 = vpack.c.b16 %v2422, %v2374
    %v3719 = vpack.c.b16 %v2423, %v2375
    %v3720 = vpack.c.b16 %v2424, %v2376
    %v3721 = vpack.c.b16 %v2425, %v2377
    %v3722 = vpack.c.b16 %v2426, %v2378
    %v3723 = vpack.c.b16 %v2427, %v2379
    %v3724 = vpack.c.b16 %v2428, %v2380
    %v3725 = vpack.c.b16 %v2429, %v2381
    %v3726 = vpack.c.b16 %v2430, %v2382
    %v3727 = vpack.c.b16 %v2431, %v2383
    %v3728 = vpack.c.b16 %v2432, %v2384
    %v3729 = vpack.c.b16 %v2433, %v2385
    %v3730 = vpack.c.b16 %v2434, %v2386
    %v3731 = vpack.c.b16 %v2435, %v2387
    %v3732 = vpack.c.b16 %v2436, %v2388
    %v3733 = vpack.c.b16 %v2437, %v2389
    %v3734 = vpack.c.b16 %v2438, %v2390
    %v3735 = vpack.c.b16 %v2439, %v2391
    %v3736 = vpack.c.b16 %v2440, %v2392
    %v3737 = vpack.c.b16 %v2441, %v2393
    %v3738 = vpack.c.b16 %v2442, %v2394
    %v3739 = vpack.c.b16 %v2443, %v2395
    %v3740 = vpack.c.b16 %v2444, %v2396
    %v3741 = vpack.c.b16 %v2445, %v2397
    %v3742 = vpack.c.b16 %v2446, %v2398
    %v3743 = vpack.c.b16 %v2447, %v2399
    %v3744 = vpack.c.b16 %v2448, %v2400
    %v3745 = vpack.c.b16 %v2497, %v2449
    %v3746 = vpack.c.b16 %v2498, %v2450
    %v3747 = vpack.c.b16 %v2499, %v2451
    %v3748 = vpack.c.b16 %v2500, %v2452
    %v3749 = vpack.c.b16 %v2501, %v2453
    %v3750 = vpack.c.b16 %v2502, %v2454
    %v3751 = vpack.c.b16 %v2503, %v2455
    %v3752 = vpack.c.b16 %v2504, %v2456
    %v3753 = vpack.c.b16 %v2505, %v2457
    %v3754 = vpack.c.b16 %v2506, %v2458
    %v3755 = vpack.c.b16 %v2507, %v2459
    %v3756 = vpack.c.b16 %v2508, %v2460
    %v3757 = vpack.c.b16 %v2509, %v2461
    %v3758 = vpack.c.b16 %v2510, %v2462
    %v3759 = vpack.c.b16 %v2511, %v2463
    %v3760 = vpack.c.b16 %v2512, %v2464
    %v3761 = vpack.c.b16 %v2513, %v2465
    %v3762 = vpack.c.b16 %v2514, %v2466
    %v3763 = vpack.c.b16 %v2515, %v2467
    %v3764 = vpack.c.b16 %v2516, %v2468
    %v3765 = vpack.c.b16 %v2517, %v2469
    %v3766 = vpack.c.b16 %v2518, %v2470
    %v3767 = vpack.c.b16 %v2519, %v2471
    %v3768 = vpack.c.b16 %v2520, %v2472
    %v3769 = vpack.c.b16 %v2521, %v2473
    %v3770 = vpack.c.b16 %v2522, %v2474
    %v3771 = vpack.c.b16 %v2523, %v2475
    %v3772 = vpack.c.b16 %v2524, %v2476
    %v3773 = vpack.c.b16 %v2525, %v2477
    %v3774 = vpack.c.b16 %v2526, %v2478
    %v3775 = vpack.c.b16 %v2527, %v2479
    %v3776 = vpack.c.b16 %v2528, %v2480
    %v3777 = vpack.c.b16 %v2529, %v2481
    %v3778 = vpack.c.b16 %v2530, %v2482
    %v3779 = vpack.c.b16 %v2531, %v2483
    %v3780 = vpack.c.b16 %v2532, %v2484
    %v3781 = vpack.c.b16 %v2533, %v2485
    %v3782 = vpack.c.b16 %v2534, %v2486
    %v3783 = vpack.c.b16 %v2535, %v2487
    %v3784 = vpack.c.b16 %v2536, %v2488
    %v3785 = vpack.c.b16 %v2537, %v2489
    %v3786 = vpack.c.b16 %v2538, %v2490
    %v3787 = vpack.c.b16 %v2539, %v2491
    %v3788 = vpack.c.b16 %v2540, %v2492
    %v3789 = vpack.c.b16 %v2541, %v2493
    %v3790 = vpack.c.b16 %v2542, %v2494
    %v3791 = vpack.c.b16 %v2543, %v2495
    %v3792 = vpack.c.b16 %v2544, %v2496
    %v3793 = vpack.c.b16 %v2593, %v2545
    %v3794 = vpack.c.b16 %v2594, %v2546
    %v3795 = vpack.c.b16 %v2595, %v2547
    %v3796 = vpack.c.b16 %v2596, %v2548
    %v3797 = vpack.c.b16 %v2597, %v2549
    %v3798 = vpack.c.b16 %v2598, %v2550
    %v3799 = vpack.c.b16 %v2599, %v2551
    %v3800 = vpack.c.b16 %v2600, %v2552
    %v3801 = vpack.c.b16 %v2601, %v2553
    %v3802 = vpack.c.b16 %v2602, %v2554
    %v3803 = vpack.c.b16 %v2603, %v2555
    %v3804 = vpack.c.b16 %v2604, %v2556
    %v3805 = vpack.c.b16 %v2605, %v2557
    %v3806 = vpack.c.b16 %v2606, %v2558
    %v3807 = vpack.c.b16 %v2607, %v2559
    %v3808 = vpack.c.b16 %v2608, %v2560
    %v3809 = vpack.c.b16 %v2609, %v2561
    %v3810 = vpack.c.b16 %v2610, %v2562
    %v3811 = vpack.c.b16 %v2611, %v2563
    %v3812 = vpack.c.b16 %v2612, %v2564
    %v3813 = vpack.c.b16 %v2613, %v2565
    %v3814 = vpack.c.b16 %v2614, %v2566
    %v3815 = vpack.c.b16 %v2615, %v2567
    %v3816 = vpack.c.b16 %v2616, %v2568
    %v3817 = vpack.c.b16 %v2617, %v2569
    %v3818 = vpack.c.b16 %v2618, %v2570
    %v3819 = vpack.c.b16 %v2619, %v2571
    %v3820 = vpack.c.b16 %v2620, %v2572
    %v3821 = vpack.c.b16 %v2621, %v2573
    %v3822 = vpack.c.b16 %v2622, %v2574
    %v3823 = vpack.c.b16 %v2623, %v2575
    %v3824 = vpack.c.b16 %v2624, %v2576
    %v3825 = vpack.c.b16 %v2625, %v2577
    %v3826 = vpack.c.b16 %v2626, %v2578
    %v3827 = vpack.c.b16 %v2627, %v2579
    %v3828 = vpack.c.b16 %v2628, %v2580
    %v3829 = vpack.c.b16 %v2629, %v2581
    %v3830 = vpack.c.b16 %v2630, %v2582
    %v3831 = vpack.c.b16 %v2631, %v2583
    %v3832 = vpack.c.b16 %v2632, %v2584
    %v3833 = vpack.c.b16 %v2633, %v2585
    %v3834 = vpack.c.b16 %v2634, %v2586
    %v3835 = vpack.c.b16 %v2635, %v2587
    %v3836 = vpack.c.b16 %v2636, %v2588
    %v3837 = vpack.c.b16 %v2637, %v2589
    %v3838 = vpack.c.b16 %v2638, %v2590
    %v3839 = vpack.c.b16 %v2639, %v2591
    %v3840 = vpack.c.b16 %v2640, %v2592
    %v3841 = vpack.c.b16 %v2689, %v2641
    %v3842 = vpack.c.b16 %v2690, %v2642
    %v3843 = vpack.c.b16 %v2691, %v2643
    %v3844 = vpack.c.b16 %v2692, %v2644
    %v3845 = vpack.c.b16 %v2693, %v2645
    %v3846 = vpack.c.b16 %v2694, %v2646
    %v3847 = vpack.c.b16 %v2695, %v2647
    %v3848 = vpack.c.b16 %v2696, %v2648
    %v3849 = vpack.c.b16 %v2697, %v2649
    %v3850 = vpack.c.b16 %v2698, %v2650
    %v3851 = vpack.c.b16 %v2699, %v2651
    %v3852 = vpack.c.b16 %v2700, %v2652
    %v3853 = vpack.c.b16 %v2701, %v2653
    %v3854 = vpack.c.b16 %v2702, %v2654
    %v3855 = vpack.c.b16 %v2703, %v2655
    %v3856 = vpack.c.b16 %v2704, %v2656
    %v3857 = vpack.c.b16 %v2705, %v2657
    %v3858 = vpack.c.b16 %v2706, %v2658
    %v3859 = vpack.c.b16 %v2707, %v2659
    %v3860 = vpack.c.b16 %v2708, %v2660
    %v3861 = vpack.c.b16 %v2709, %v2661
    %v3862 = vpack.c.b16 %v2710, %v2662
    %v3863 = vpack.c.b16 %v2711, %v2663
    %v3864 = vpack.c.b16 %v2712, %v2664
    %v3865 = vpack.c.b16 %v2713, %v2665
    %v3866 = vpack.c.b16 %v2714, %v2666
    %v3867 = vpack.c.b16 %v2715, %v2667
    %v3868 = vpack.c.b16 %v2716, %v2668
    %v3869 = vpack.c.b16 %v2717, %v2669
    %v3870 = vpack.c.b16 %v2718, %v2670
    %v3871 = vpack.c.b16 %v2719, %v2671
    %v3872 = vpack.c.b16 %v2720, %v2672
    %v3873 = vpack.c.b16 %v2721, %v2673
    %v3874 = vpack.c.b16 %v2722, %v2674
    %v3875 = vpack.c.b16 %v2723, %v2675
    %v3876 = vpack.c.b16 %v2724, %v2676
    %v3877 = vpack.c.b16 %v2725, %v2677
    %v3878 = vpack.c.b16 %v2726, %v2678
    %v3879 = vpack.c.b16 %v2727, %v2679
    %v3880 = vpack.c.b16 %v2728, %v2680
    %v3881 = vpack.c.b16 %v2729, %v2681
    %v3882 = vpack.c.b16 %v2730, %v2682
    %v3883 = vpack.c.b16 %v2731, %v2683
    %v3884 = vpack.c.b16 %v2732, %v2684
    %v3885 = vpack.c.b16 %v2733, %v2685
    %v3886 = vpack.c.b16 %v2734, %v2686
    %v3887 = vpack.c.b16 %v2735, %v2687
    %v3888 = vpack.c.b16 %v2736, %v2688
    %v3889 = vpack.c.b16 %v2785, %v2737
    %v3890 = vpack.c.b16 %v2786, %v2738
    %v3891 = vpack.c.b16 %v2787, %v2739
    %v3892 = vpack.c.b16 %v2788, %v2740
    %v3893 = vpack.c.b16 %v2789, %v2741
    %v3894 = vpack.c.b16 %v2790, %v2742
    %v3895 = vpack.c.b16 %v2791, %v2743
    %v3896 = vpack.c.b16 %v2792, %v2744
    %v3897 = vpack.c.b16 %v2793, %v2745
    %v3898 = vpack.c.b16 %v2794, %v2746
    %v3899 = vpack.c.b16 %v2795, %v2747
    %v3900 = vpack.c.b16 %v2796, %v2748
    %v3901 = vpack.c.b16 %v2797, %v2749
    %v3902 = vpack.c.b16 %v2798, %v2750
    %v3903 = vpack.c.b16 %v2799, %v2751
    %v3904 = vpack.c.b16 %v2800, %v2752
    %v3905 = vpack.c.b16 %v2801, %v2753
    %v3906 = vpack.c.b16 %v2802, %v2754
    %v3907 = vpack.c.b16 %v2803, %v2755
    %v3908 = vpack.c.b16 %v2804, %v2756
    %v3909 = vpack.c.b16 %v2805, %v2757
    %v3910 = vpack.c.b16 %v2806, %v2758
    %v3911 = vpack.c.b16 %v2807, %v2759
    %v3912 = vpack.c.b16 %v2808, %v2760
    %v3913 = vpack.c.b16 %v2809, %v2761
    %v3914 = vpack.c.b16 %v2810, %v2762
    %v3915 = vpack.c.b16 %v2811, %v2763
    %v3916 = vpack.c.b16 %v2812, %v2764
    %v3917 = vpack.c.b16 %v2813, %v2765
    %v3918 = vpack.c.b16 %v2814, %v2766
    %v3919 = vpack.c.b16 %v2815, %v2767
    %v3920 = vpack.c.b16 %v2816, %v2768
    %v3921 = vpack.c.b16 %v2817, %v2769
    %v3922 = vpack.c.b16 %v2818, %v2770
    %v3923 = vpack.c.b16 %v2819, %v2771
    %v3924 = vpack.c.b16 %v2820, %v2772
    %v3925 = vpack.c.b16 %v2821, %v2773
    %v3926 = vpack.c.b16 %v2822, %v2774
    %v3927 = vpack.c.b16 %v2823, %v2775
    %v3928 = vpack.c.b16 %v2824, %v2776
    %v3929 = vpack.c.b16 %v2825, %v2777
    %v3930 = vpack.c.b16 %v2826, %v2778
    %v3931 = vpack.c.b16 %v2827, %v2779
    %v3932 = vpack.c.b16 %v2828, %v2780
    %v3933 = vpack.c.b16 %v2829, %v2781
    %v3934 = vpack.c.b16 %v2830, %v2782
    %v3935 = vpack.c.b16 %v2831, %v2783
    %v3936 = vpack.c.b16 %v2832, %v2784
    %v3937 = vpack.c.b16 %v2881, %v2833
    %v3938 = vpack.c.b16 %v2882, %v2834
    %v3939 = vpack.c.b16 %v2883, %v2835
    %v3940 = vpack.c.b16 %v2884, %v2836
    %v3941 = vpack.c.b16 %v2885, %v2837
    %v3942 = vpack.c.b16 %v2886, %v2838
    %v3943 = vpack.c.b16 %v2887, %v2839
    %v3944 = vpack.c.b16 %v2888, %v2840
    %v3945 = vpack.c.b16 %v2889, %v2841
    %v3946 = vpack.c.b16 %v2890, %v2842
    %v3947 = vpack.c.b16 %v2891, %v2843
    %v3948 = vpack.c.b16 %v2892, %v2844
    %v3949 = vpack.c.b16 %v2893, %v2845
    %v3950 = vpack.c.b16 %v2894, %v2846
    %v3951 = vpack.c.b16 %v2895, %v2847
    %v3952 = vpack.c.b16 %v2896, %v2848
    %v3953 = vpack.c.b16 %v2897, %v2849
    %v3954 = vpack.c.b16 %v2898, %v2850
    %v3955 = vpack.c.b16 %v2899, %v2851
    %v3956 = vpack.c.b16 %v2900, %v2852
    %v3957 = vpack.c.b16 %v2901, %v2853
    %v3958 = vpack.c.b16 %v2902, %v2854
    %v3959 = vpack.c.b16 %v2903, %v2855
    %v3960 = vpack.c.b16 %v2904, %v2856
    %v3961 = vpack.c.b16 %v2905, %v2857
    %v3962 = vpack.c.b16 %v2906, %v2858
    %v3963 = vpack.c.b16 %v2907, %v2859
    %v3964 = vpack.c.b16 %v2908, %v2860
    %v3965 = vpack.c.b16 %v2909, %v2861
    %v3966 = vpack.c.b16 %v2910, %v2862
    %v3967 = vpack.c.b16 %v2911, %v2863
    %v3968 = vpack.c.b16 %v2912, %v2864
    %v3969 = vpack.c.b16 %v2913, %v2865
    %v3970 = vpack.c.b16 %v2914, %v2866
    %v3971 = vpack.c.b16 %v2915, %v2867
    %v3972 = vpack.c.b16 %v2916, %v2868
    %v3973 = vpack.c.b16 %v2917, %v2869
    %v3974 = vpack.c.b16 %v2918, %v2870
    %v3975 = vpack.c.b16 %v2919, %v2871
    %v3976 = vpack.c.b16 %v2920, %v2872
    %v3977 = vpack.c.b16 %v2921, %v2873
    %v3978 = vpack.c.b16 %v2922, %v2874
    %v3979 = vpack.c.b16 %v2923, %v2875
    %v3980 = vpack.c.b16 %v2924, %v2876
    %v3981 = vpack.c.b16 %v2925, %v2877
    %v3982 = vpack.c.b16 %v2926, %v2878
    %v3983 = vpack.c.b16 %v2927, %v2879
    %v3984 = vpack.c.b16 %v2928, %v2880
    %v3985 = vpack.c.b16 %v2977, %v2929
    %v3986 = vpack.c.b16 %v2978, %v2930
    %v3987 = vpack.c.b16 %v2979, %v2931
    %v3988 = vpack.c.b16 %v2980, %v2932
    %v3989 = vpack.c.b16 %v2981, %v2933
    %v3990 = vpack.c.b16 %v2982, %v2934
    %v3991 = vpack.c.b16 %v2983, %v2935
    %v3992 = vpack.c.b16 %v2984, %v2936
    %v3993 = vpack.c.b16 %v2985, %v2937
    %v3994 = vpack.c.b16 %v2986, %v2938
    %v3995 = vpack.c.b16 %v2987, %v2939
    %v3996 = vpack.c.b16 %v2988, %v2940
    %v3997 = vpack.c.b16 %v2989, %v2941
    %v3998 = vpack.c.b16 %v2990, %v2942
    %v3999 = vpack.c.b16 %v2991, %v2943
    %v4000 = vpack.c.b16 %v2992, %v2944
    %v4001 = vpack.c.b16 %v2993, %v2945
    %v4002 = vpack.c.b16 %v2994, %v2946
    %v4003 = vpack.c.b16 %v2995, %v2947
    %v4004 = vpack.c.b16 %v2996, %v2948
    %v4005 = vpack.c.b16 %v2997, %v2949
    %v4006 = vpack.c.b16 %v2998, %v2950
    %v4007 = vpack.c.b16 %v2999, %v2951
    %v4008 = vpack.c.b16 %v3000, %v2952
    %v4009 = vpack.c.b16 %v3001, %v2953
    %v4010 = vpack.c.b16 %v3002, %v2954
    %v4011 = vpack.c.b16 %v3003, %v2955
    %v4012 = vpack.c.b16 %v3004, %v2956
    %v4013 = vpack.c.b16 %v3005, %v2957
    %v4014 = vpack.c.b16 %v3006, %v2958
    %v4015 = vpack.c.b16 %v3007, %v2959
    %v4016 = vpack.c.b16 %v3008, %v2960
    %v4017 = vpack.c.b16 %v3009, %v2961
    %v4018 = vpack.c.b16 %v3010, %v2962
    %v4019 = vpack.c.b16 %v3011, %v2963
    %v4020 = vpack.c.b16 %v3012, %v2964
    %v4021 = vpack.c.b16 %v3013, %v2965
    %v4022 = vpack.c.b16 %v3014, %v2966
    %v4023 = vpack.c.b16 %v3015, %v2967
    %v4024 = vpack.c.b16 %v3016, %v2968
    %v4025 = vpack.c.b16 %v3017, %v2969
    %v4026 = vpack.c.b16 %v3018, %v2970
    %v4027 = vpack.c.b16 %v3019, %v2971
    %v4028 = vpack.c.b16 %v3020, %v2972
    %v4029 = vpack.c.b16 %v3021, %v2973
    %v4030 = vpack.c.b16 %v3022, %v2974
    %v4031 = vpack.c.b16 %v3023, %v2975
    %v4032 = vpack.c.b16 %v3024, %v2976
    %v4033 = vpack.c.b16 %v3073, %v3025
    %v4034 = vpack.c.b16 %v3074, %v3026
    %v4035 = vpack.c.b16 %v3075, %v3027
    %v4036 = vpack.c.b16 %v3076, %v3028
    %v4037 = vpack.c.b16 %v3077, %v3029
    %v4038 = vpack.c.b16 %v3078, %v3030
    %v4039 = vpack.c.b16 %v3079, %v3031
    %v4040 = vpack.c.b16 %v3080, %v3032
    %v4041 = vpack.c.b16 %v3081, %v3033
    %v4042 = vpack.c.b16 %v3082, %v3034
    %v4043 = vpack.c.b16 %v3083, %v3035
    %v4044 = vpack.c.b16 %v3084, %v3036
    %v4045 = vpack.c.b16 %v3085, %v3037
    %v4046 = vpack.c.b16 %v3086, %v3038
    %v4047 = vpack.c.b16 %v3087, %v3039
    %v4048 = vpack.c.b16 %v3088, %v3040
    %v4049 = vpack.c.b16 %v3089, %v3041
    %v4050 = vpack.c.b16 %v3090, %v3042
    %v4051 = vpack.c.b16 %v3091, %v3043
    %v4052 = vpack.c.b16 %v3092, %v3044
    %v4053 = vpack.c.b16 %v3093, %v3045
    %v4054 = vpack.c.b16 %v3094, %v3046
    %v4055 = vpack.c.b16 %v3095, %v3047
    %v4056 = vpack.c.b16 %v3096, %v3048
    %v4057 = vpack.c.b16 %v3097, %v3049
    %v4058 = vpack.c.b16 %v3098, %v3050
    %v4059 = vpack.c.b16 %v3099, %v3051
    %v4060 = vpack.c.b16 %v3100, %v3052
    %v4061 = vpack.c.b16 %v3101, %v3053
    %v4062 = vpack.c.b16 %v3102, %v3054
    %v4063 = vpack.c.b16 %v3103, %v3055
    %v4064 = vpack.c.b16 %v3104, %v3056
    %v4065 = vpack.c.b16 %v3105, %v3057
    %v4066 = vpack.c.b16 %v3106, %v3058
    %v4067 = vpack.c.b16 %v3107, %v3059
    %v4068 = vpack.c.b16 %v3108, %v3060
    %v4069 = vpack.c.b16 %v3109, %v3061
    %v4070 = vpack.c.b16 %v3110, %v3062
    %v4071 = vpack.c.b16 %v3111, %v3063
    %v4072 = vpack.c.b16 %v3112, %v3064
    %v4073 = vpack.c.b16 %v3113, %v3065
    %v4074 = vpack.c.b16 %v3114, %v3066
    %v4075 = vpack.c.b16 %v3115, %v3067
    %v4076 = vpack.c.b16 %v3116, %v3068
    %v4077 = vpack.c.b16 %v3117, %v3069
    %v4078 = vpack.c.b16 %v3118, %v3070
    %v4079 = vpack.c.b16 %v3119, %v3071
    %v4080 = vpack.c.b16 %v3120, %v3072
    %v4081 = vpack.c.b16 %v3169, %v3121
    %v4082 = vpack.c.b16 %v3170, %v3122
    %v4083 = vpack.c.b16 %v3171, %v3123
    %v4084 = vpack.c.b16 %v3172, %v3124
    %v4085 = vpack.c.b16 %v3173, %v3125
    %v4086 = vpack.c.b16 %v3174, %v3126
    %v4087 = vpack.c.b16 %v3175, %v3127
    %v4088 = vpack.c.b16 %v3176, %v3128
    %v4089 = vpack.c.b16 %v3177, %v3129
    %v4090 = vpack.c.b16 %v3178, %v3130
    %v4091 = vpack.c.b16 %v3179, %v3131
    %v4092 = vpack.c.b16 %v3180, %v3132
    %v4093 = vpack.c.b16 %v3181, %v3133
    %v4094 = vpack.c.b16 %v3182, %v3134
    %v4095 = vpack.c.b16 %v3183, %v3135
    %v4096 = vpack.c.b16 %v3184, %v3136
    %v4097 = vpack.c.b16 %v3185, %v3137
    %v4098 = vpack.c.b16 %v3186, %v3138
    %v4099 = vpack.c.b16 %v3187, %v3139
    %v4100 = vpack.c.b16 %v3188, %v3140
    %v4101 = vpack.c.b16 %v3189, %v3141
    %v4102 = vpack.c.b16 %v3190, %v3142
    %v4103 = vpack.c.b16 %v3191, %v3143
    %v4104 = vpack.c.b16 %v3192, %v3144
    %v4105 = vpack.c.b16 %v3193, %v3145
    %v4106 = vpack.c.b16 %v3194, %v3146
    %v4107 = vpack.c.b16 %v3195, %v3147
    %v4108 = vpack.c.b16 %v3196, %v3148
    %v4109 = vpack.c.b16 %v3197, %v3149
    %v4110 = vpack.c.b16 %v3198, %v3150
    %v4111 = vpack.c.b16 %v3199, %v3151
    %v4112 = vpack.c.b16 %v3200, %v3152
    %v4113 = vpack.c.b16 %v3201, %v3153
    %v4114 = vpack.c.b16 %v3202, %v3154
    %v4115 = vpack.c.b16 %v3203, %v3155
    %v4116 = vpack.c.b16 %v3204, %v3156
    %v4117 = vpack.c.b16 %v3205, %v3157
    %v4118 = vpack.c.b16 %v3206, %v3158
    %v4119 = vpack.c.b16 %v3207, %v3159
    %v4120 = vpack.c.b16 %v3208, %v3160
    %v4121 = vpack.c.b16 %v3209, %v3161
    %v4122 = vpack.c.b16 %v3210, %v3162
    %v4123 = vpack.c.b16 %v3211, %v3163
    %v4124 = vpack.c.b16 %v3212, %v3164
    %v4125 = vpack.c.b16 %v3213, %v3165
    %v4126 = vpack.c.b16 %v3214, %v3166
    %v4127 = vpack.c.b16 %v3215, %v3167
    %v4128 = vpack.c.b16 %v3216, %v3168
    %v4129 = vpack.c.b16 %v3265, %v3217
    %v4130 = vpack.c.b16 %v3266, %v3218
    %v4131 = vpack.c.b16 %v3267, %v3219
    %v4132 = vpack.c.b16 %v3268, %v3220
    %v4133 = vpack.c.b16 %v3269, %v3221
    %v4134 = vpack.c.b16 %v3270, %v3222
    %v4135 = vpack.c.b16 %v3271, %v3223
    %v4136 = vpack.c.b16 %v3272, %v3224
    %v4137 = vpack.c.b16 %v3273, %v3225
    %v4138 = vpack.c.b16 %v3274, %v3226
    %v4139 = vpack.c.b16 %v3275, %v3227
    %v4140 = vpack.c.b16 %v3276, %v3228
    %v4141 = vpack.c.b16 %v3277, %v3229
    %v4142 = vpack.c.b16 %v3278, %v3230
    %v4143 = vpack.c.b16 %v3279, %v3231
    %v4144 = vpack.c.b16 %v3280, %v3232
    %v4145 = vpack.c.b16 %v3281, %v3233
    %v4146 = vpack.c.b16 %v3282, %v3234
    %v4147 = vpack.c.b16 %v3283, %v3235
    %v4148 = vpack.c.b16 %v3284, %v3236
    %v4149 = vpack.c.b16 %v3285, %v3237
    %v4150 = vpack.c.b16 %v3286, %v3238
    %v4151 = vpack.c.b16 %v3287, %v3239
    %v4152 = vpack.c.b16 %v3288, %v3240
    %v4153 = vpack.c.b16 %v3289, %v3241
    %v4154 = vpack.c.b16 %v3290, %v3242
    %v4155 = vpack.c.b16 %v3291, %v3243
    %v4156 = vpack.c.b16 %v3292, %v3244
    %v4157 = vpack.c.b16 %v3293, %v3245
    %v4158 = vpack.c.b16 %v3294, %v3246
    %v4159 = vpack.c.b16 %v3295, %v3247
    %v4160 = vpack.c.b16 %v3296, %v3248
    %v4161 = vpack.c.b16 %v3297, %v3249
    %v4162 = vpack.c.b16 %v3298, %v3250
    %v4163 = vpack.c.b16 %v3299, %v3251
    %v4164 = vpack.c.b16 %v3300, %v3252
    %v4165 = vpack.c.b16 %v3301, %v3253
    %v4166 = vpack.c.b16 %v3302, %v3254
    %v4167 = vpack.c.b16 %v3303, %v3255
    %v4168 = vpack.c.b16 %v3304, %v3256
    %v4169 = vpack.c.b16 %v3305, %v3257
    %v4170 = vpack.c.b16 %v3306, %v3258
    %v4171 = vpack.c.b16 %v3307, %v3259
    %v4172 = vpack.c.b16 %v3308, %v3260
    %v4173 = vpack.c.b16 %v3309, %v3261
    %v4174 = vpack.c.b16 %v3310, %v3262
    %v4175 = vpack.c.b16 %v3311, %v3263
    %v4176 = vpack.c.b16 %v3312, %v3264
    %v4177 = vpack.c.b16 %v3361, %v3313
    %v4178 = vpack.c.b16 %v3362, %v3314
    %v4179 = vpack.c.b16 %v3363, %v3315
    %v4180 = vpack.c.b16 %v3364, %v3316
    %v4181 = vpack.c.b16 %v3365, %v3317
    %v4182 = vpack.c.b16 %v3366, %v3318
    %v4183 = vpack.c.b16 %v3367, %v3319
    %v4184 = vpack.c.b16 %v3368, %v3320
    %v4185 = vpack.c.b16 %v3369, %v3321
    %v4186 = vpack.c.b16 %v3370, %v3322
    %v4187 = vpack.c.b16 %v3371, %v3323
    %v4188 = vpack.c.b16 %v3372, %v3324
    %v4189 = vpack.c.b16 %v3373, %v3325
    %v4190 = vpack.c.b16 %v3374, %v3326
    %v4191 = vpack.c.b16 %v3375, %v3327
    %v4192 = vpack.c.b16 %v3376, %v3328
    %v4193 = vpack.c.b16 %v3377, %v3329
    %v4194 = vpack.c.b16 %v3378, %v3330
    %v4195 = vpack.c.b16 %v3379, %v3331
    %v4196 = vpack.c.b16 %v3380, %v3332
    %v4197 = vpack.c.b16 %v3381, %v3333
    %v4198 = vpack.c.b16 %v3382, %v3334
    %v4199 = vpack.c.b16 %v3383, %v3335
    %v4200 = vpack.c.b16 %v3384, %v3336
    %v4201 = vpack.c.b16 %v3385, %v3337
    %v4202 = vpack.c.b16 %v3386, %v3338
    %v4203 = vpack.c.b16 %v3387, %v3339
    %v4204 = vpack.c.b16 %v3388, %v3340
    %v4205 = vpack.c.b16 %v3389, %v3341
    %v4206 = vpack.c.b16 %v3390, %v3342
    %v4207 = vpack.c.b16 %v3391, %v3343
    %v4208 = vpack.c.b16 %v3392, %v3344
    %v4209 = vpack.c.b16 %v3393, %v3345
    %v4210 = vpack.c.b16 %v3394, %v3346
    %v4211 = vpack.c.b16 %v3395, %v3347
    %v4212 = vpack.c.b16 %v3396, %v3348
    %v4213 = vpack.c.b16 %v3397, %v3349
    %v4214 = vpack.c.b16 %v3398, %v3350
    %v4215 = vpack.c.b16 %v3399, %v3351
    %v4216 = vpack.c.b16 %v3400, %v3352
    %v4217 = vpack.c.b16 %v3401, %v3353
    %v4218 = vpack.c.b16 %v3402, %v3354
    %v4219 = vpack.c.b16 %v3403, %v3355
    %v4220 = vpack.c.b16 %v3404, %v3356
    %v4221 = vpack.c.b16 %v3405, %v3357
    %v4222 = vpack.c.b16 %v3406, %v3358
    %v4223 = vpack.c.b16 %v3407, %v3359
    %v4224 = vpack.c.b16 %v3408, %v3360
    %v4225 = vpack.c.b16 %v3457, %v3409
    %v4226 = vpack.c.b16 %v3458, %v3410
    %v4227 = vpack.c.b16 %v3459, %v3411
    %v4228 = vpack.c.b16 %v3460, %v3412
    %v4229 = vpack.c.b16 %v3461, %v3413
    %v4230 = vpack.c.b16 %v3462, %v3414
    %v4231 = vpack.c.b16 %v3463, %v3415
    %v4232 = vpack.c.b16 %v3464, %v3416
    %v4233 = vpack.c.b16 %v3465, %v3417
    %v4234 = vpack.c.b16 %v3466, %v3418
    %v4235 = vpack.c.b16 %v3467, %v3419
    %v4236 = vpack.c.b16 %v3468, %v3420
    %v4237 = vpack.c.b16 %v3469, %v3421
    %v4238 = vpack.c.b16 %v3470, %v3422
    %v4239 = vpack.c.b16 %v3471, %v3423
    %v4240 = vpack.c.b16 %v3472, %v3424
    %v4241 = vpack.c.b16 %v3473, %v3425
    %v4242 = vpack.c.b16 %v3474, %v3426
    %v4243 = vpack.c.b16 %v3475, %v3427
    %v4244 = vpack.c.b16 %v3476, %v3428
    %v4245 = vpack.c.b16 %v3477, %v3429
    %v4246 = vpack.c.b16 %v3478, %v3430
    %v4247 = vpack.c.b16 %v3479, %v3431
    %v4248 = vpack.c.b16 %v3480, %v3432
    %v4249 = vpack.c.b16 %v3481, %v3433
    %v4250 = vpack.c.b16 %v3482, %v3434
    %v4251 = vpack.c.b16 %v3483, %v3435
    %v4252 = vpack.c.b16 %v3484, %v3436
    %v4253 = vpack.c.b16 %v3485, %v3437
    %v4254 = vpack.c.b16 %v3486, %v3438
    %v4255 = vpack.c.b16 %v3487, %v3439
    %v4256 = vpack.c.b16 %v3488, %v3440
    %v4257 = vpack.c.b16 %v3489, %v3441
    %v4258 = vpack.c.b16 %v3490, %v3442
    %v4259 = vpack.c.b16 %v3491, %v3443
    %v4260 = vpack.c.b16 %v3492, %v3444
    %v4261 = vpack.c.b16 %v3493, %v3445
    %v4262 = vpack.c.b16 %v3494, %v3446
    %v4263 = vpack.c.b16 %v3495, %v3447
    %v4264 = vpack.c.b16 %v3496, %v3448
    %v4265 = vpack.c.b16 %v3497, %v3449
    %v4266 = vpack.c.b16 %v3498, %v3450
    %v4267 = vpack.c.b16 %v3499, %v3451
    %v4268 = vpack.c.b16 %v3500, %v3452
    %v4269 = vpack.c.b16 %v3501, %v3453
    %v4270 = vpack.c.b16 %v3502, %v3454
    %v4271 = vpack.c.b16 %v3503, %v3455
    %v4272 = vpack.c.b16 %v3504, %v3456
    %5041 = vmatprep.subr.bf16.mxu0 %v3506
    %5042 = vmatpush1.bf16.msra.mxu0 %v3505
    %5043 = vmatprep.subr.bf16.mxu0 %v3554
    %5044 = vmatpush1.bf16.msra.mxu0 %v3553
    %5045 = vmatprep.subr.bf16.mxu0 %v3602
    %5046 = vmatpush1.bf16.msra.mxu0 %v3601
    %5047 = vmatprep.subr.bf16.mxu0 %v3650
    %5048 = vmatpush1.bf16.msra.mxu0 %v3649
    %5049 = vmatprep.subr.bf16.mxu0 %v3698
    %5050 = vmatpush1.bf16.msra.mxu0 %v3697
    %5051 = vmatprep.subr.bf16.mxu0 %v3746
    %5052 = vmatpush1.bf16.msra.mxu0 %v3745
    %5053 = vmatprep.subr.bf16.mxu0 %v3794
    %5054 = vmatpush1.bf16.msra.mxu0 %v3793
    %5055 = vmatprep.subr.bf16.mxu0 %v3842
    %5056 = vmatpush1.bf16.msra.mxu0 %v3841
    %5057 = vmatprep.subr.bf16.mxu0 %v3890
    %5058 = vmatpush1.bf16.msra.mxu0 %v3889
    %5059 = vmatprep.subr.bf16.mxu0 %v3938
    %5060 = vmatpush1.bf16.msra.mxu0 %v3937
    %5061 = vmatprep.subr.bf16.mxu0 %v3986
    %5062 = vmatpush1.bf16.msra.mxu0 %v3985
    %5063 = vmatprep.subr.bf16.mxu0 %v4034
    %5064 = vmatpush1.bf16.msra.mxu0 %v4033
    %5065 = vmatprep.subr.bf16.mxu0 %v4082
    %5066 = vmatpush1.bf16.msra.mxu0 %v4081
    %5067 = vmatprep.subr.bf16.mxu0 %v4130
    %5068 = vmatpush1.bf16.msra.mxu0 %v4129
    %5069 = vmatprep.subr.bf16.mxu0 %v4178
    %5070 = vmatpush1.bf16.msra.mxu0 %v4177
    %5071 = vmatprep.subr.bf16.mxu0 %v4226
    %5072 = vmatpush1.bf16.msra.mxu0 %v4225
    %5073 = vmatprep.mubr.bf16.mxu0 %v180
    %5074 = vmatmul.mubr.bf16.gmra.mrb[0].mxu0 %v179
    %v5075 = vpop.f32.mrb[0].mxu0
    %v5076 = vadd.f32 %v964, %v5075
    %v5077 = vpop.f32.mrb[0].mxu0
    %v5078 = vadd.f32 %v968, %v5077
    %v5079 = vpop.f32.mrb[0].mxu0
    %v5080 = vpop.f32.mrb[0].mxu0
    %5081 = vdwg.mxu0
    %5082 = vmatprep.subr.bf16.mxu0 %v3508
    %5083 = vmatpush1.bf16.msra.mxu0 %v3507
    %5084 = vmatprep.subr.bf16.mxu0 %v3556
    %5085 = vmatpush1.bf16.msra.mxu0 %v3555
    %5086 = vmatprep.subr.bf16.mxu0 %v3604
    %5087 = vmatpush1.bf16.msra.mxu0 %v3603
    %5088 = vmatprep.subr.bf16.mxu0 %v3652
    %5089 = vmatpush1.bf16.msra.mxu0 %v3651
    %5090 = vmatprep.subr.bf16.mxu0 %v3700
    %5091 = vmatpush1.bf16.msra.mxu0 %v3699
    %5092 = vmatprep.subr.bf16.mxu0 %v3748
    %5093 = vmatpush1.bf16.msra.mxu0 %v3747
    %5094 = vmatprep.subr.bf16.mxu0 %v3796
    %5095 = vmatpush1.bf16.msra.mxu0 %v3795
    %5096 = vmatprep.subr.bf16.mxu0 %v3844
    %5097 = vmatpush1.bf16.msra.mxu0 %v3843
    %5098 = vmatprep.subr.bf16.mxu0 %v3892
    %5099 = vmatpush1.bf16.msra.mxu0 %v3891
    %5100 = vmatprep.subr.bf16.mxu0 %v3940
    %5101 = vmatpush1.bf16.msra.mxu0 %v3939
    %5102 = vmatprep.subr.bf16.mxu0 %v3988
    %5103 = vmatpush1.bf16.msra.mxu0 %v3987
    %5104 = vmatprep.subr.bf16.mxu0 %v4036
    %5105 = vmatpush1.bf16.msra.mxu0 %v4035
    %5106 = vmatprep.subr.bf16.mxu0 %v4084
    %5107 = vmatpush1.bf16.msra.mxu0 %v4083
    %5108 = vmatprep.subr.bf16.mxu0 %v4132
    %5109 = vmatpush1.bf16.msra.mxu0 %v4131
    %5110 = vmatprep.subr.bf16.mxu0 %v4180
    %5111 = vmatpush1.bf16.msra.mxu0 %v4179
    %5112 = vmatprep.subr.bf16.mxu0 %v4228
    %5113 = vmatpush1.bf16.msra.mxu0 %v4227
    %5114 = vmatprep.mubr.bf16.mxu0 %v180
    %5115 = vmatmul.mubr.bf16.gmra.mrb[0].mxu0 %v179
    %v5116 = vpop.f32.mrb[0].mxu0
    %v5117 = vadd.f32 %v972, %v5116
    %v5118 = vpop.f32.mrb[0].mxu0
    %v5119 = vadd.f32 %v976, %v5118
    %v5120 = vpop.f32.mrb[0].mxu0
    %v5121 = vpop.f32.mrb[0].mxu0
    %5122 = vdwg.mxu0
    %5123 = vmatprep.subr.bf16.mxu0 %v3510
    %5124 = vmatpush1.bf16.msra.mxu0 %v3509
    %5125 = vmatprep.subr.bf16.mxu0 %v3558
    %5126 = vmatpush1.bf16.msra.mxu0 %v3557
    %5127 = vmatprep.subr.bf16.mxu0 %v3606
    %5128 = vmatpush1.bf16.msra.mxu0 %v3605
    %5129 = vmatprep.subr.bf16.mxu0 %v3654
    %5130 = vmatpush1.bf16.msra.mxu0 %v3653
    %5131 = vmatprep.subr.bf16.mxu0 %v3702
    %5132 = vmatpush1.bf16.msra.mxu0 %v3701
    %5133 = vmatprep.subr.bf16.mxu0 %v3750
    %5134 = vmatpush1.bf16.msra.mxu0 %v3749
    %5135 = vmatprep.subr.bf16.mxu0 %v3798
    %5136 = vmatpush1.bf16.msra.mxu0 %v3797
    %5137 = vmatprep.subr.bf16.mxu0 %v3846
    %5138 = vmatpush1.bf16.msra.mxu0 %v3845
    %5139 = vmatprep.subr.bf16.mxu0 %v3894
    %5140 = vmatpush1.bf16.msra.mxu0 %v3893
    %5141 = vmatprep.subr.bf16.mxu0 %v3942
    %5142 = vmatpush1.bf16.msra.mxu0 %v3941
    %5143 = vmatprep.subr.bf16.mxu0 %v3990
    %5144 = vmatpush1.bf16.msra.mxu0 %v3989
    %5145 = vmatprep.subr.bf16.mxu0 %v4038
    %5146 = vmatpush1.bf16.msra.mxu0 %v4037
    %5147 = vmatprep.subr.bf16.mxu0 %v4086
    %5148 = vmatpush1.bf16.msra.mxu0 %v4085
    %5149 = vmatprep.subr.bf16.mxu0 %v4134
    %5150 = vmatpush1.bf16.msra.mxu0 %v4133
    %5151 = vmatprep.subr.bf16.mxu0 %v4182
    %5152 = vmatpush1.bf16.msra.mxu0 %v4181
    %5153 = vmatprep.subr.bf16.mxu0 %v4230
    %5154 = vmatpush1.bf16.msra.mxu0 %v4229
    %5155 = vmatprep.mubr.bf16.mxu0 %v180
    %5156 = vmatmul.mubr.bf16.gmra.mrb[0].mxu0 %v179
    %v5157 = vpop.f32.mrb[0].mxu0
    %v5158 = vadd.f32 %v980, %v5157
    %v5159 = vpop.f32.mrb[0].mxu0
    %v5160 = vadd.f32 %v984, %v5159
    %v5161 = vpop.f32.mrb[0].mxu0
    %v5162 = vpop.f32.mrb[0].mxu0
    %5163 = vdwg.mxu0
    %5164 = vmatprep.subr.bf16.mxu0 %v3512
    %5165 = vmatpush1.bf16.msra.mxu0 %v3511
    %5166 = vmatprep.subr.bf16.mxu0 %v3560
    %5167 = vmatpush1.bf16.msra.mxu0 %v3559
    %5168 = vmatprep.subr.bf16.mxu0 %v3608
    %5169 = vmatpush1.bf16.msra.mxu0 %v3607
    %5170 = vmatprep.subr.bf16.mxu0 %v3656
    %5171 = vmatpush1.bf16.msra.mxu0 %v3655
    %5172 = vmatprep.subr.bf16.mxu0 %v3704
    %5173 = vmatpush1.bf16.msra.mxu0 %v3703
    %5174 = vmatprep.subr.bf16.mxu0 %v3752
    %5175 = vmatpush1.bf16.msra.mxu0 %v3751
    %5176 = vmatprep.subr.bf16.mxu0 %v3800
    %5177 = vmatpush1.bf16.msra.mxu0 %v3799
    %5178 = vmatprep.subr.bf16.mxu0 %v3848
    %5179 = vmatpush1.bf16.msra.mxu0 %v3847
    %5180 = vmatprep.subr.bf16.mxu0 %v3896
    %5181 = vmatpush1.bf16.msra.mxu0 %v3895
    %5182 = vmatprep.subr.bf16.mxu0 %v3944
    %5183 = vmatpush1.bf16.msra.mxu0 %v3943
    %5184 = vmatprep.subr.bf16.mxu0 %v3992
    %5185 = vmatpush1.bf16.msra.mxu0 %v3991
    %5186 = vmatprep.subr.bf16.mxu0 %v4040
    %5187 = vmatpush1.bf16.msra.mxu0 %v4039
    %5188 = vmatprep.subr.bf16.mxu0 %v4088
    %5189 = vmatpush1.bf16.msra.mxu0 %v4087
    %5190 = vmatprep.subr.bf16.mxu0 %v4136
    %5191 = vmatpush1.bf16.msra.mxu0 %v4135
    %5192 = vmatprep.subr.bf16.mxu0 %v4184
    %5193 = vmatpush1.bf16.msra.mxu0 %v4183
    %5194 = vmatprep.subr.bf16.mxu0 %v4232
    %5195 = vmatpush1.bf16.msra.mxu0 %v4231
    %5196 = vmatprep.mubr.bf16.mxu0 %v180
    %5197 = vmatmul.mubr.bf16.gmra.mrb[0].mxu0 %v179
    %v5198 = vpop.f32.mrb[0].mxu0
    %v5199 = vadd.f32 %v988, %v5198
    %v5200 = vpop.f32.mrb[0].mxu0
    %v5201 = vadd.f32 %v992, %v5200
    %v5202 = vpop.f32.mrb[0].mxu0
    %v5203 = vpop.f32.mrb[0].mxu0
    %5204 = vdwg.mxu0
    %5205 = vmatprep.subr.bf16.mxu0 %v3514
    %5206 = vmatpush1.bf16.msra.mxu0 %v3513
    %5207 = vmatprep.subr.bf16.mxu0 %v3562
    %5208 = vmatpush1.bf16.msra.mxu0 %v3561
    %5209 = vmatprep.subr.bf16.mxu0 %v3610
    %5210 = vmatpush1.bf16.msra.mxu0 %v3609
    %5211 = vmatprep.subr.bf16.mxu0 %v3658
    %5212 = vmatpush1.bf16.msra.mxu0 %v3657
    %5213 = vmatprep.subr.bf16.mxu0 %v3706
    %5214 = vmatpush1.bf16.msra.mxu0 %v3705
    %5215 = vmatprep.subr.bf16.mxu0 %v3754
    %5216 = vmatpush1.bf16.msra.mxu0 %v3753
    %5217 = vmatprep.subr.bf16.mxu0 %v3802
    %5218 = vmatpush1.bf16.msra.mxu0 %v3801
    %5219 = vmatprep.subr.bf16.mxu0 %v3850
    %5220 = vmatpush1.bf16.msra.mxu0 %v3849
    %5221 = vmatprep.subr.bf16.mxu0 %v3898
    %5222 = vmatpush1.bf16.msra.mxu0 %v3897
    %5223 = vmatprep.subr.bf16.mxu0 %v3946
    %5224 = vmatpush1.bf16.msra.mxu0 %v3945
    %5225 = vmatprep.subr.bf16.mxu0 %v3994
    %5226 = vmatpush1.bf16.msra.mxu0 %v3993
    %5227 = vmatprep.subr.bf16.mxu0 %v4042
    %5228 = vmatpush1.bf16.msra.mxu0 %v4041
    %5229 = vmatprep.subr.bf16.mxu0 %v4090
    %5230 = vmatpush1.bf16.msra.mxu0 %v4089
    %5231 = vmatprep.subr.bf16.mxu0 %v4138
    %5232 = vmatpush1.bf16.msra.mxu0 %v4137
    %5233 = vmatprep.subr.bf16.mxu0 %v4186
    %5234 = vmatpush1.bf16.msra.mxu0 %v4185
    %5235 = vmatprep.subr.bf16.mxu0 %v4234
    %5236 = vmatpush1.bf16.msra.mxu0 %v4233
    %5237 = vmatprep.mubr.bf16.mxu0 %v180
    %5238 = vmatmul.mubr.bf16.gmra.mrb[0].mxu0 %v179
    %v5239 = vpop.f32.mrb[0].mxu0
    %v5240 = vadd.f32 %v996, %v5239
    %v5241 = vpop.f32.mrb[0].mxu0
    %v5242 = vadd.f32 %v1000, %v5241
    %v5243 = vpop.f32.mrb[0].mxu0
    %v5244 = vpop.f32.mrb[0].mxu0
    %5245 = vdwg.mxu0
    %5246 = vmatprep.subr.bf16.mxu0 %v3516
    %5247 = vmatpush1.bf16.msra.mxu0 %v3515
    %5248 = vmatprep.subr.bf16.mxu0 %v3564
    %5249 = vmatpush1.bf16.msra.mxu0 %v3563
    %5250 = vmatprep.subr.bf16.mxu0 %v3612
    %5251 = vmatpush1.bf16.msra.mxu0 %v3611
    %5252 = vmatprep.subr.bf16.mxu0 %v3660
    %5253 = vmatpush1.bf16.msra.mxu0 %v3659
    %5254 = vmatprep.subr.bf16.mxu0 %v3708
    %5255 = vmatpush1.bf16.msra.mxu0 %v3707
    %5256 = vmatprep.subr.bf16.mxu0 %v3756
    %5257 = vmatpush1.bf16.msra.mxu0 %v3755
    %5258 = vmatprep.subr.bf16.mxu0 %v3804
    %5259 = vmatpush1.bf16.msra.mxu0 %v3803
    %5260 = vmatprep.subr.bf16.mxu0 %v3852
    %5261 = vmatpush1.bf16.msra.mxu0 %v3851
    %5262 = vmatprep.subr.bf16.mxu0 %v3900
    %5263 = vmatpush1.bf16.msra.mxu0 %v3899
    %5264 = vmatprep.subr.bf16.mxu0 %v3948
    %5265 = vmatpush1.bf16.msra.mxu0 %v3947
    %5266 = vmatprep.subr.bf16.mxu0 %v3996
    %5267 = vmatpush1.bf16.msra.mxu0 %v3995
    %5268 = vmatprep.subr.bf16.mxu0 %v4044
    %5269 = vmatpush1.bf16.msra.mxu0 %v4043
    %5270 = vmatprep.subr.bf16.mxu0 %v4092
    %5271 = vmatpush1.bf16.msra.mxu0 %v4091
    %5272 = vmatprep.subr.bf16.mxu0 %v4140
    %5273 = vmatpush1.bf16.msra.mxu0 %v4139
    %5274 = vmatprep.subr.bf16.mxu0 %v4188
    %5275 = vmatpush1.bf16.msra.mxu0 %v4187
    %5276 = vmatprep.subr.bf16.mxu0 %v4236
    %5277 = vmatpush1.bf16.msra.mxu0 %v4235
    %5278 = vmatprep.mubr.bf16.mxu0 %v180
    %5279 = vmatmul.mubr.bf16.gmra.mrb[0].mxu0 %v179
    %v5280 = vpop.f32.mrb[0].mxu0
    %v5281 = vadd.f32 %v1004, %v5280
    %v5282 = vpop.f32.mrb[0].mxu0
    %v5283 = vadd.f32 %v1008, %v5282
    %v5284 = vpop.f32.mrb[0].mxu0
    %v5285 = vpop.f32.mrb[0].mxu0
    %5286 = vdwg.mxu0
    %5287 = vmatprep.subr.bf16.mxu0 %v3518
    %5288 = vmatpush1.bf16.msra.mxu0 %v3517
    %5289 = vmatprep.subr.bf16.mxu0 %v3566
    %5290 = vmatpush1.bf16.msra.mxu0 %v3565
    %5291 = vmatprep.subr.bf16.mxu0 %v3614
    %5292 = vmatpush1.bf16.msra.mxu0 %v3613
    %5293 = vmatprep.subr.bf16.mxu0 %v3662
    %5294 = vmatpush1.bf16.msra.mxu0 %v3661
    %5295 = vmatprep.subr.bf16.mxu0 %v3710
    %5296 = vmatpush1.bf16.msra.mxu0 %v3709
    %5297 = vmatprep.subr.bf16.mxu0 %v3758
    %5298 = vmatpush1.bf16.msra.mxu0 %v3757
    %5299 = vmatprep.subr.bf16.mxu0 %v3806
    %5300 = vmatpush1.bf16.msra.mxu0 %v3805
    %5301 = vmatprep.subr.bf16.mxu0 %v3854
    %5302 = vmatpush1.bf16.msra.mxu0 %v3853
    %5303 = vmatprep.subr.bf16.mxu0 %v3902
    %5304 = vmatpush1.bf16.msra.mxu0 %v3901
    %5305 = vmatprep.subr.bf16.mxu0 %v3950
    %5306 = vmatpush1.bf16.msra.mxu0 %v3949
    %5307 = vmatprep.subr.bf16.mxu0 %v3998
    %5308 = vmatpush1.bf16.msra.mxu0 %v3997
    %5309 = vmatprep.subr.bf16.mxu0 %v4046
    %5310 = vmatpush1.bf16.msra.mxu0 %v4045
    %5311 = vmatprep.subr.bf16.mxu0 %v4094
    %5312 = vmatpush1.bf16.msra.mxu0 %v4093
    %5313 = vmatprep.subr.bf16.mxu0 %v4142
    %5314 = vmatpush1.bf16.msra.mxu0 %v4141
    %5315 = vmatprep.subr.bf16.mxu0 %v4190
    %5316 = vmatpush1.bf16.msra.mxu0 %v4189
    %5317 = vmatprep.subr.bf16.mxu0 %v4238
    %5318 = vmatpush1.bf16.msra.mxu0 %v4237
    %5319 = vmatprep.mubr.bf16.mxu0 %v180
    %5320 = vmatmul.mubr.bf16.gmra.mrb[0].mxu0 %v179
    %v5321 = vpop.f32.mrb[0].mxu0
    %v5322 = vadd.f32 %v1012, %v5321
    %v5323 = vpop.f32.mrb[0].mxu0
    %v5324 = vadd.f32 %v1016, %v5323
    %v5325 = vpop.f32.mrb[0].mxu0
    %v5326 = vpop.f32.mrb[0].mxu0
    %5327 = vdwg.mxu0
    %5328 = vmatprep.subr.bf16.mxu0 %v3520
    %5329 = vmatpush1.bf16.msra.mxu0 %v3519
    %5330 = vmatprep.subr.bf16.mxu0 %v3568
    %5331 = vmatpush1.bf16.msra.mxu0 %v3567
    %5332 = vmatprep.subr.bf16.mxu0 %v3616
    %5333 = vmatpush1.bf16.msra.mxu0 %v3615
    %5334 = vmatprep.subr.bf16.mxu0 %v3664
    %5335 = vmatpush1.bf16.msra.mxu0 %v3663
    %5336 = vmatprep.subr.bf16.mxu0 %v3712
    %5337 = vmatpush1.bf16.msra.mxu0 %v3711
    %5338 = vmatprep.subr.bf16.mxu0 %v3760
    %5339 = vmatpush1.bf16.msra.mxu0 %v3759
    %5340 = vmatprep.subr.bf16.mxu0 %v3808
    %5341 = vmatpush1.bf16.msra.mxu0 %v3807
    %5342 = vmatprep.subr.bf16.mxu0 %v3856
    %5343 = vmatpush1.bf16.msra.mxu0 %v3855
    %5344 = vmatprep.subr.bf16.mxu0 %v3904
    %5345 = vmatpush1.bf16.msra.mxu0 %v3903
    %5346 = vmatprep.subr.bf16.mxu0 %v3952
    %5347 = vmatpush1.bf16.msra.mxu0 %v3951
    %5348 = vmatprep.subr.bf16.mxu0 %v4000
    %5349 = vmatpush1.bf16.msra.mxu0 %v3999
    %5350 = vmatprep.subr.bf16.mxu0 %v4048
    %5351 = vmatpush1.bf16.msra.mxu0 %v4047
    %5352 = vmatprep.subr.bf16.mxu0 %v4096
    %5353 = vmatpush1.bf16.msra.mxu0 %v4095
    %5354 = vmatprep.subr.bf16.mxu0 %v4144
    %5355 = vmatpush1.bf16.msra.mxu0 %v4143
    %5356 = vmatprep.subr.bf16.mxu0 %v4192
    %5357 = vmatpush1.bf16.msra.mxu0 %v4191
    %5358 = vmatprep.subr.bf16.mxu0 %v4240
    %5359 = vmatpush1.bf16.msra.mxu0 %v4239
    %5360 = vmatprep.mubr.bf16.mxu0 %v180
    %5361 = vmatmul.mubr.bf16.gmra.mrb[0].mxu0 %v179
    %v5362 = vpop.f32.mrb[0].mxu0
    %v5363 = vadd.f32 %v1020, %v5362
    %v5364 = vpop.f32.mrb[0].mxu0
    %v5365 = vadd.f32 %v1024, %v5364
    %v5366 = vpop.f32.mrb[0].mxu0
    %v5367 = vpop.f32.mrb[0].mxu0
    %5368 = vdwg.mxu0
    %5369 = vmatprep.subr.bf16.mxu0 %v3522
    %5370 = vmatpush1.bf16.msra.mxu0 %v3521
    %5371 = vmatprep.subr.bf16.mxu0 %v3570
    %5372 = vmatpush1.bf16.msra.mxu0 %v3569
    %5373 = vmatprep.subr.bf16.mxu0 %v3618
    %5374 = vmatpush1.bf16.msra.mxu0 %v3617
    %5375 = vmatprep.subr.bf16.mxu0 %v3666
    %5376 = vmatpush1.bf16.msra.mxu0 %v3665
    %5377 = vmatprep.subr.bf16.mxu0 %v3714
    %5378 = vmatpush1.bf16.msra.mxu0 %v3713
    %5379 = vmatprep.subr.bf16.mxu0 %v3762
    %5380 = vmatpush1.bf16.msra.mxu0 %v3761
    %5381 = vmatprep.subr.bf16.mxu0 %v3810
    %5382 = vmatpush1.bf16.msra.mxu0 %v3809
    %5383 = vmatprep.subr.bf16.mxu0 %v3858
    %5384 = vmatpush1.bf16.msra.mxu0 %v3857
    %5385 = vmatprep.subr.bf16.mxu0 %v3906
    %5386 = vmatpush1.bf16.msra.mxu0 %v3905
    %5387 = vmatprep.subr.bf16.mxu0 %v3954
    %5388 = vmatpush1.bf16.msra.mxu0 %v3953
    %5389 = vmatprep.subr.bf16.mxu0 %v4002
    %5390 = vmatpush1.bf16.msra.mxu0 %v4001
    %5391 = vmatprep.subr.bf16.mxu0 %v4050
    %5392 = vmatpush1.bf16.msra.mxu0 %v4049
    %5393 = vmatprep.subr.bf16.mxu0 %v4098
    %5394 = vmatpush1.bf16.msra.mxu0 %v4097
    %5395 = vmatprep.subr.bf16.mxu0 %v4146
    %5396 = vmatpush1.bf16.msra.mxu0 %v4145
    %5397 = vmatprep.subr.bf16.mxu0 %v4194
    %5398 = vmatpush1.bf16.msra.mxu0 %v4193
    %5399 = vmatprep.subr.bf16.mxu0 %v4242
    %5400 = vmatpush1.bf16.msra.mxu0 %v4241
    %5401 = vmatprep.mubr.bf16.mxu0 %v180
    %5402 = vmatmul.mubr.bf16.gmra.mrb[0].mxu0 %v179
    %v5403 = vpop.f32.mrb[0].mxu0
    %v5404 = vadd.f32 %v1028, %v5403
    %v5405 = vpop.f32.mrb[0].mxu0
    %v5406 = vadd.f32 %v1032, %v5405
    %v5407 = vpop.f32.mrb[0].mxu0
    %v5408 = vpop.f32.mrb[0].mxu0
    %5409 = vdwg.mxu0
    %5410 = vmatprep.subr.bf16.mxu0 %v3524
    %5411 = vmatpush1.bf16.msra.mxu0 %v3523
    %5412 = vmatprep.subr.bf16.mxu0 %v3572
    %5413 = vmatpush1.bf16.msra.mxu0 %v3571
    %5414 = vmatprep.subr.bf16.mxu0 %v3620
    %5415 = vmatpush1.bf16.msra.mxu0 %v3619
    %5416 = vmatprep.subr.bf16.mxu0 %v3668
    %5417 = vmatpush1.bf16.msra.mxu0 %v3667
    %5418 = vmatprep.subr.bf16.mxu0 %v3716
    %5419 = vmatpush1.bf16.msra.mxu0 %v3715
    %5420 = vmatprep.subr.bf16.mxu0 %v3764
    %5421 = vmatpush1.bf16.msra.mxu0 %v3763
    %5422 = vmatprep.subr.bf16.mxu0 %v3812
    %5423 = vmatpush1.bf16.msra.mxu0 %v3811
    %5424 = vmatprep.subr.bf16.mxu0 %v3860
    %5425 = vmatpush1.bf16.msra.mxu0 %v3859
    %5426 = vmatprep.subr.bf16.mxu0 %v3908
    %5427 = vmatpush1.bf16.msra.mxu0 %v3907
    %5428 = vmatprep.subr.bf16.mxu0 %v3956
    %5429 = vmatpush1.bf16.msra.mxu0 %v3955
    %5430 = vmatprep.subr.bf16.mxu0 %v4004
    %5431 = vmatpush1.bf16.msra.mxu0 %v4003
    %5432 = vmatprep.subr.bf16.mxu0 %v4052
    %5433 = vmatpush1.bf16.msra.mxu0 %v4051
    %5434 = vmatprep.subr.bf16.mxu0 %v4100
    %5435 = vmatpush1.bf16.msra.mxu0 %v4099
    %5436 = vmatprep.subr.bf16.mxu0 %v4148
    %5437 = vmatpush1.bf16.msra.mxu0 %v4147
    %5438 = vmatprep.subr.bf16.mxu0 %v4196
    %5439 = vmatpush1.bf16.msra.mxu0 %v4195
    %5440 = vmatprep.subr.bf16.mxu0 %v4244
    %5441 = vmatpush1.bf16.msra.mxu0 %v4243
    %5442 = vmatprep.mubr.bf16.mxu0 %v180
    %5443 = vmatmul.mubr.bf16.gmra.mrb[0].mxu0 %v179
    %v5444 = vpop.f32.mrb[0].mxu0
    %v5445 = vadd.f32 %v1036, %v5444
    %v5446 = vpop.f32.mrb[0].mxu0
    %v5447 = vadd.f32 %v1040, %v5446
    %v5448 = vpop.f32.mrb[0].mxu0
    %v5449 = vpop.f32.mrb[0].mxu0
    %5450 = vdwg.mxu0
    %5451 = vmatprep.subr.bf16.mxu0 %v3526
    %5452 = vmatpush1.bf16.msra.mxu0 %v3525
    %5453 = vmatprep.subr.bf16.mxu0 %v3574
    %5454 = vmatpush1.bf16.msra.mxu0 %v3573
    %5455 = vmatprep.subr.bf16.mxu0 %v3622
    %5456 = vmatpush1.bf16.msra.mxu0 %v3621
    %5457 = vmatprep.subr.bf16.mxu0 %v3670
    %5458 = vmatpush1.bf16.msra.mxu0 %v3669
    %5459 = vmatprep.subr.bf16.mxu0 %v3718
    %5460 = vmatpush1.bf16.msra.mxu0 %v3717
    %5461 = vmatprep.subr.bf16.mxu0 %v3766
    %5462 = vmatpush1.bf16.msra.mxu0 %v3765
    %5463 = vmatprep.subr.bf16.mxu0 %v3814
    %5464 = vmatpush1.bf16.msra.mxu0 %v3813
    %5465 = vmatprep.subr.bf16.mxu0 %v3862
    %5466 = vmatpush1.bf16.msra.mxu0 %v3861
    %5467 = vmatprep.subr.bf16.mxu0 %v3910
    %5468 = vmatpush1.bf16.msra.mxu0 %v3909
    %5469 = vmatprep.subr.bf16.mxu0 %v3958
    %5470 = vmatpush1.bf16.msra.mxu0 %v3957
    %5471 = vmatprep.subr.bf16.mxu0 %v4006
    %5472 = vmatpush1.bf16.msra.mxu0 %v4005
    %5473 = vmatprep.subr.bf16.mxu0 %v4054
    %5474 = vmatpush1.bf16.msra.mxu0 %v4053
    %5475 = vmatprep.subr.bf16.mxu0 %v4102
    %5476 = vmatpush1.bf16.msra.mxu0 %v4101
    %5477 = vmatprep.subr.bf16.mxu0 %v4150
    %5478 = vmatpush1.bf16.msra.mxu0 %v4149
    %5479 = vmatprep.subr.bf16.mxu0 %v4198
    %5480 = vmatpush1.bf16.msra.mxu0 %v4197
    %5481 = vmatprep.subr.bf16.mxu0 %v4246
    %5482 = vmatpush1.bf16.msra.mxu0 %v4245
    %5483 = vmatprep.mubr.bf16.mxu0 %v180
    %5484 = vmatmul.mubr.bf16.gmra.mrb[0].mxu0 %v179
    %v5485 = vpop.f32.mrb[0].mxu0
    %v5486 = vadd.f32 %v1044, %v5485
    %v5487 = vpop.f32.mrb[0].mxu0
    %v5488 = vadd.f32 %v1048, %v5487
    %v5489 = vpop.f32.mrb[0].mxu0
    %v5490 = vpop.f32.mrb[0].mxu0
    %5491 = vdwg.mxu0
    %5492 = vmatprep.subr.bf16.mxu0 %v3528
    %5493 = vmatpush1.bf16.msra.mxu0 %v3527
    %5494 = vmatprep.subr.bf16.mxu0 %v3576
    %5495 = vmatpush1.bf16.msra.mxu0 %v3575
    %5496 = vmatprep.subr.bf16.mxu0 %v3624
    %5497 = vmatpush1.bf16.msra.mxu0 %v3623
    %5498 = vmatprep.subr.bf16.mxu0 %v3672
    %5499 = vmatpush1.bf16.msra.mxu0 %v3671
    %5500 = vmatprep.subr.bf16.mxu0 %v3720
    %5501 = vmatpush1.bf16.msra.mxu0 %v3719
    %5502 = vmatprep.subr.bf16.mxu0 %v3768
    %5503 = vmatpush1.bf16.msra.mxu0 %v3767
    %5504 = vmatprep.subr.bf16.mxu0 %v3816
    %5505 = vmatpush1.bf16.msra.mxu0 %v3815
    %5506 = vmatprep.subr.bf16.mxu0 %v3864
    %5507 = vmatpush1.bf16.msra.mxu0 %v3863
    %5508 = vmatprep.subr.bf16.mxu0 %v3912
    %5509 = vmatpush1.bf16.msra.mxu0 %v3911
    %5510 = vmatprep.subr.bf16.mxu0 %v3960
    %5511 = vmatpush1.bf16.msra.mxu0 %v3959
    %5512 = vmatprep.subr.bf16.mxu0 %v4008
    %5513 = vmatpush1.bf16.msra.mxu0 %v4007
    %5514 = vmatprep.subr.bf16.mxu0 %v4056
    %5515 = vmatpush1.bf16.msra.mxu0 %v4055
    %5516 = vmatprep.subr.bf16.mxu0 %v4104
    %5517 = vmatpush1.bf16.msra.mxu0 %v4103
    %5518 = vmatprep.subr.bf16.mxu0 %v4152
    %5519 = vmatpush1.bf16.msra.mxu0 %v4151
    %5520 = vmatprep.subr.bf16.mxu0 %v4200
    %5521 = vmatpush1.bf16.msra.mxu0 %v4199
    %5522 = vmatprep.subr.bf16.mxu0 %v4248
    %5523 = vmatpush1.bf16.msra.mxu0 %v4247
    %5524 = vmatprep.mubr.bf16.mxu0 %v180
    %5525 = vmatmul.mubr.bf16.gmra.mrb[0].mxu0 %v179
    %v5526 = vpop.f32.mrb[0].mxu0
    %v5527 = vadd.f32 %v1052, %v5526
    %v5528 = vpop.f32.mrb[0].mxu0
    %v5529 = vadd.f32 %v1056, %v5528
    %v5530 = vpop.f32.mrb[0].mxu0
    %v5531 = vpop.f32.mrb[0].mxu0
    %5532 = vdwg.mxu0
    %5533 = vmatprep.subr.bf16.mxu0 %v3530
    %5534 = vmatpush1.bf16.msra.mxu0 %v3529
    %5535 = vmatprep.subr.bf16.mxu0 %v3578
    %5536 = vmatpush1.bf16.msra.mxu0 %v3577
    %5537 = vmatprep.subr.bf16.mxu0 %v3626
    %5538 = vmatpush1.bf16.msra.mxu0 %v3625
    %5539 = vmatprep.subr.bf16.mxu0 %v3674
    %5540 = vmatpush1.bf16.msra.mxu0 %v3673
    %5541 = vmatprep.subr.bf16.mxu0 %v3722
    %5542 = vmatpush1.bf16.msra.mxu0 %v3721
    %5543 = vmatprep.subr.bf16.mxu0 %v3770
    %5544 = vmatpush1.bf16.msra.mxu0 %v3769
    %5545 = vmatprep.subr.bf16.mxu0 %v3818
    %5546 = vmatpush1.bf16.msra.mxu0 %v3817
    %5547 = vmatprep.subr.bf16.mxu0 %v3866
    %5548 = vmatpush1.bf16.msra.mxu0 %v3865
    %5549 = vmatprep.subr.bf16.mxu0 %v3914
    %5550 = vmatpush1.bf16.msra.mxu0 %v3913
    %5551 = vmatprep.subr.bf16.mxu0 %v3962
    %5552 = vmatpush1.bf16.msra.mxu0 %v3961
    %5553 = vmatprep.subr.bf16.mxu0 %v4010
    %5554 = vmatpush1.bf16.msra.mxu0 %v4009
    %5555 = vmatprep.subr.bf16.mxu0 %v4058
    %5556 = vmatpush1.bf16.msra.mxu0 %v4057
    %5557 = vmatprep.subr.bf16.mxu0 %v4106
    %5558 = vmatpush1.bf16.msra.mxu0 %v4105
    %5559 = vmatprep.subr.bf16.mxu0 %v4154
    %5560 = vmatpush1.bf16.msra.mxu0 %v4153
    %5561 = vmatprep.subr.bf16.mxu0 %v4202
    %5562 = vmatpush1.bf16.msra.mxu0 %v4201
    %5563 = vmatprep.subr.bf16.mxu0 %v4250
    %5564 = vmatpush1.bf16.msra.mxu0 %v4249
    %5565 = vmatprep.mubr.bf16.mxu0 %v180
    %5566 = vmatmul.mubr.bf16.gmra.mrb[0].mxu0 %v179
    %v5567 = vpop.f32.mrb[0].mxu0
    %v5568 = vadd.f32 %v1060, %v5567
    %v5569 = vpop.f32.mrb[0].mxu0
    %v5570 = vadd.f32 %v1064, %v5569
    %v5571 = vpop.f32.mrb[0].mxu0
    %v5572 = vpop.f32.mrb[0].mxu0
    %5573 = vdwg.mxu0
    %5574 = vmatprep.subr.bf16.mxu0 %v3532
    %5575 = vmatpush1.bf16.msra.mxu0 %v3531
    %5576 = vmatprep.subr.bf16.mxu0 %v3580
    %5577 = vmatpush1.bf16.msra.mxu0 %v3579
    %5578 = vmatprep.subr.bf16.mxu0 %v3628
    %5579 = vmatpush1.bf16.msra.mxu0 %v3627
    %5580 = vmatprep.subr.bf16.mxu0 %v3676
    %5581 = vmatpush1.bf16.msra.mxu0 %v3675
    %5582 = vmatprep.subr.bf16.mxu0 %v3724
    %5583 = vmatpush1.bf16.msra.mxu0 %v3723
    %5584 = vmatprep.subr.bf16.mxu0 %v3772
    %5585 = vmatpush1.bf16.msra.mxu0 %v3771
    %5586 = vmatprep.subr.bf16.mxu0 %v3820
    %5587 = vmatpush1.bf16.msra.mxu0 %v3819
    %5588 = vmatprep.subr.bf16.mxu0 %v3868
    %5589 = vmatpush1.bf16.msra.mxu0 %v3867
    %5590 = vmatprep.subr.bf16.mxu0 %v3916
    %5591 = vmatpush1.bf16.msra.mxu0 %v3915
    %5592 = vmatprep.subr.bf16.mxu0 %v3964
    %5593 = vmatpush1.bf16.msra.mxu0 %v3963
    %5594 = vmatprep.subr.bf16.mxu0 %v4012
    %5595 = vmatpush1.bf16.msra.mxu0 %v4011
    %5596 = vmatprep.subr.bf16.mxu0 %v4060
    %5597 = vmatpush1.bf16.msra.mxu0 %v4059
    %5598 = vmatprep.subr.bf16.mxu0 %v4108
    %5599 = vmatpush1.bf16.msra.mxu0 %v4107
    %5600 = vmatprep.subr.bf16.mxu0 %v4156
    %5601 = vmatpush1.bf16.msra.mxu0 %v4155
    %5602 = vmatprep.subr.bf16.mxu0 %v4204
    %5603 = vmatpush1.bf16.msra.mxu0 %v4203
    %5604 = vmatprep.subr.bf16.mxu0 %v4252
    %5605 = vmatpush1.bf16.msra.mxu0 %v4251
    %5606 = vmatprep.mubr.bf16.mxu0 %v180
    %5607 = vmatmul.mubr.bf16.gmra.mrb[0].mxu0 %v179
    %v5608 = vpop.f32.mrb[0].mxu0
    %v5609 = vadd.f32 %v1068, %v5608
    %v5610 = vpop.f32.mrb[0].mxu0
    %v5611 = vadd.f32 %v1072, %v5610
    %v5612 = vpop.f32.mrb[0].mxu0
    %v5613 = vpop.f32.mrb[0].mxu0
    %5614 = vdwg.mxu0
    %5615 = vmatprep.subr.bf16.mxu0 %v3534
    %5616 = vmatpush1.bf16.msra.mxu0 %v3533
    %5617 = vmatprep.subr.bf16.mxu0 %v3582
    %5618 = vmatpush1.bf16.msra.mxu0 %v3581
    %5619 = vmatprep.subr.bf16.mxu0 %v3630
    %5620 = vmatpush1.bf16.msra.mxu0 %v3629
    %5621 = vmatprep.subr.bf16.mxu0 %v3678
    %5622 = vmatpush1.bf16.msra.mxu0 %v3677
    %5623 = vmatprep.subr.bf16.mxu0 %v3726
    %5624 = vmatpush1.bf16.msra.mxu0 %v3725
    %5625 = vmatprep.subr.bf16.mxu0 %v3774
    %5626 = vmatpush1.bf16.msra.mxu0 %v3773
    %5627 = vmatprep.subr.bf16.mxu0 %v3822
    %5628 = vmatpush1.bf16.msra.mxu0 %v3821
    %5629 = vmatprep.subr.bf16.mxu0 %v3870
    %5630 = vmatpush1.bf16.msra.mxu0 %v3869
    %5631 = vmatprep.subr.bf16.mxu0 %v3918
    %5632 = vmatpush1.bf16.msra.mxu0 %v3917
    %5633 = vmatprep.subr.bf16.mxu0 %v3966
    %5634 = vmatpush1.bf16.msra.mxu0 %v3965
    %5635 = vmatprep.subr.bf16.mxu0 %v4014
    %5636 = vmatpush1.bf16.msra.mxu0 %v4013
    %5637 = vmatprep.subr.bf16.mxu0 %v4062
    %5638 = vmatpush1.bf16.msra.mxu0 %v4061
    %5639 = vmatprep.subr.bf16.mxu0 %v4110
    %5640 = vmatpush1.bf16.msra.mxu0 %v4109
    %5641 = vmatprep.subr.bf16.mxu0 %v4158
    %5642 = vmatpush1.bf16.msra.mxu0 %v4157
    %5643 = vmatprep.subr.bf16.mxu0 %v4206
    %5644 = vmatpush1.bf16.msra.mxu0 %v4205
    %5645 = vmatprep.subr.bf16.mxu0 %v4254
    %5646 = vmatpush1.bf16.msra.mxu0 %v4253
    %5647 = vmatprep.mubr.bf16.mxu0 %v180
    %5648 = vmatmul.mubr.bf16.gmra.mrb[0].mxu0 %v179
    %v5649 = vpop.f32.mrb[0].mxu0
    %v5650 = vadd.f32 %v1076, %v5649
    %v5651 = vpop.f32.mrb[0].mxu0
    %v5652 = vadd.f32 %v1080, %v5651
    %v5653 = vpop.f32.mrb[0].mxu0
    %v5654 = vpop.f32.mrb[0].mxu0
    %5655 = vdwg.mxu0
    %5656 = vmatprep.subr.bf16.mxu0 %v3536
    %5657 = vmatpush1.bf16.msra.mxu0 %v3535
    %5658 = vmatprep.subr.bf16.mxu0 %v3584
    %5659 = vmatpush1.bf16.msra.mxu0 %v3583
    %5660 = vmatprep.subr.bf16.mxu0 %v3632
    %5661 = vmatpush1.bf16.msra.mxu0 %v3631
    %5662 = vmatprep.subr.bf16.mxu0 %v3680
    %5663 = vmatpush1.bf16.msra.mxu0 %v3679
    %5664 = vmatprep.subr.bf16.mxu0 %v3728
    %5665 = vmatpush1.bf16.msra.mxu0 %v3727
    %5666 = vmatprep.subr.bf16.mxu0 %v3776
    %5667 = vmatpush1.bf16.msra.mxu0 %v3775
    %5668 = vmatprep.subr.bf16.mxu0 %v3824
    %5669 = vmatpush1.bf16.msra.mxu0 %v3823
    %5670 = vmatprep.subr.bf16.mxu0 %v3872
    %5671 = vmatpush1.bf16.msra.mxu0 %v3871
    %5672 = vmatprep.subr.bf16.mxu0 %v3920
    %5673 = vmatpush1.bf16.msra.mxu0 %v3919
    %5674 = vmatprep.subr.bf16.mxu0 %v3968
    %5675 = vmatpush1.bf16.msra.mxu0 %v3967
    %5676 = vmatprep.subr.bf16.mxu0 %v4016
    %5677 = vmatpush1.bf16.msra.mxu0 %v4015
    %5678 = vmatprep.subr.bf16.mxu0 %v4064
    %5679 = vmatpush1.bf16.msra.mxu0 %v4063
    %5680 = vmatprep.subr.bf16.mxu0 %v4112
    %5681 = vmatpush1.bf16.msra.mxu0 %v4111
    %5682 = vmatprep.subr.bf16.mxu0 %v4160
    %5683 = vmatpush1.bf16.msra.mxu0 %v4159
    %5684 = vmatprep.subr.bf16.mxu0 %v4208
    %5685 = vmatpush1.bf16.msra.mxu0 %v4207
    %5686 = vmatprep.subr.bf16.mxu0 %v4256
    %5687 = vmatpush1.bf16.msra.mxu0 %v4255
    %5688 = vmatprep.mubr.bf16.mxu0 %v180
    %5689 = vmatmul.mubr.bf16.gmra.mrb[0].mxu0 %v179
    %v5690 = vpop.f32.mrb[0].mxu0
    %v5691 = vadd.f32 %v1084, %v5690
    %v5692 = vpop.f32.mrb[0].mxu0
    %v5693 = vadd.f32 %v1088, %v5692
    %v5694 = vpop.f32.mrb[0].mxu0
    %v5695 = vpop.f32.mrb[0].mxu0
    %5696 = vdwg.mxu0
    %5697 = vmatprep.subr.bf16.mxu0 %v3538
    %5698 = vmatpush1.bf16.msra.mxu0 %v3537
    %5699 = vmatprep.subr.bf16.mxu0 %v3586
    %5700 = vmatpush1.bf16.msra.mxu0 %v3585
    %5701 = vmatprep.subr.bf16.mxu0 %v3634
    %5702 = vmatpush1.bf16.msra.mxu0 %v3633
    %5703 = vmatprep.subr.bf16.mxu0 %v3682
    %5704 = vmatpush1.bf16.msra.mxu0 %v3681
    %5705 = vmatprep.subr.bf16.mxu0 %v3730
    %5706 = vmatpush1.bf16.msra.mxu0 %v3729
    %5707 = vmatprep.subr.bf16.mxu0 %v3778
    %5708 = vmatpush1.bf16.msra.mxu0 %v3777
    %5709 = vmatprep.subr.bf16.mxu0 %v3826
    %5710 = vmatpush1.bf16.msra.mxu0 %v3825
    %5711 = vmatprep.subr.bf16.mxu0 %v3874
    %5712 = vmatpush1.bf16.msra.mxu0 %v3873
    %5713 = vmatprep.subr.bf16.mxu0 %v3922
    %5714 = vmatpush1.bf16.msra.mxu0 %v3921
    %5715 = vmatprep.subr.bf16.mxu0 %v3970
    %5716 = vmatpush1.bf16.msra.mxu0 %v3969
    %5717 = vmatprep.subr.bf16.mxu0 %v4018
    %5718 = vmatpush1.bf16.msra.mxu0 %v4017
    %5719 = vmatprep.subr.bf16.mxu0 %v4066
    %5720 = vmatpush1.bf16.msra.mxu0 %v4065
    %5721 = vmatprep.subr.bf16.mxu0 %v4114
    %5722 = vmatpush1.bf16.msra.mxu0 %v4113
    %5723 = vmatprep.subr.bf16.mxu0 %v4162
    %5724 = vmatpush1.bf16.msra.mxu0 %v4161
    %5725 = vmatprep.subr.bf16.mxu0 %v4210
    %5726 = vmatpush1.bf16.msra.mxu0 %v4209
    %5727 = vmatprep.subr.bf16.mxu0 %v4258
    %5728 = vmatpush1.bf16.msra.mxu0 %v4257
    %5729 = vmatprep.mubr.bf16.mxu0 %v180
    %5730 = vmatmul.mubr.bf16.gmra.mrb[0].mxu0 %v179
    %v5731 = vpop.f32.mrb[0].mxu0
    %v5732 = vadd.f32 %v1092, %v5731
    %v5733 = vpop.f32.mrb[0].mxu0
    %v5734 = vadd.f32 %v1096, %v5733
    %v5735 = vpop.f32.mrb[0].mxu0
    %v5736 = vpop.f32.mrb[0].mxu0
    %5737 = vdwg.mxu0
    %5738 = vmatprep.subr.bf16.mxu0 %v3540
    %5739 = vmatpush1.bf16.msra.mxu0 %v3539
    %5740 = vmatprep.subr.bf16.mxu0 %v3588
    %5741 = vmatpush1.bf16.msra.mxu0 %v3587
    %5742 = vmatprep.subr.bf16.mxu0 %v3636
    %5743 = vmatpush1.bf16.msra.mxu0 %v3635
    %5744 = vmatprep.subr.bf16.mxu0 %v3684
    %5745 = vmatpush1.bf16.msra.mxu0 %v3683
    %5746 = vmatprep.subr.bf16.mxu0 %v3732
    %5747 = vmatpush1.bf16.msra.mxu0 %v3731
    %5748 = vmatprep.subr.bf16.mxu0 %v3780
    %5749 = vmatpush1.bf16.msra.mxu0 %v3779
    %5750 = vmatprep.subr.bf16.mxu0 %v3828
    %5751 = vmatpush1.bf16.msra.mxu0 %v3827
    %5752 = vmatprep.subr.bf16.mxu0 %v3876
    %5753 = vmatpush1.bf16.msra.mxu0 %v3875
    %5754 = vmatprep.subr.bf16.mxu0 %v3924
    %5755 = vmatpush1.bf16.msra.mxu0 %v3923
    %5756 = vmatprep.subr.bf16.mxu0 %v3972
    %5757 = vmatpush1.bf16.msra.mxu0 %v3971
    %5758 = vmatprep.subr.bf16.mxu0 %v4020
    %5759 = vmatpush1.bf16.msra.mxu0 %v4019
    %5760 = vmatprep.subr.bf16.mxu0 %v4068
    %5761 = vmatpush1.bf16.msra.mxu0 %v4067
    %5762 = vmatprep.subr.bf16.mxu0 %v4116
    %5763 = vmatpush1.bf16.msra.mxu0 %v4115
    %5764 = vmatprep.subr.bf16.mxu0 %v4164
    %5765 = vmatpush1.bf16.msra.mxu0 %v4163
    %5766 = vmatprep.subr.bf16.mxu0 %v4212
    %5767 = vmatpush1.bf16.msra.mxu0 %v4211
    %5768 = vmatprep.subr.bf16.mxu0 %v4260
    %5769 = vmatpush1.bf16.msra.mxu0 %v4259
    %5770 = vmatprep.mubr.bf16.mxu0 %v180
    %5771 = vmatmul.mubr.bf16.gmra.mrb[0].mxu0 %v179
    %v5772 = vpop.f32.mrb[0].mxu0
    %v5773 = vadd.f32 %v1100, %v5772
    %v5774 = vpop.f32.mrb[0].mxu0
    %v5775 = vadd.f32 %v1104, %v5774
    %v5776 = vpop.f32.mrb[0].mxu0
    %v5777 = vpop.f32.mrb[0].mxu0
    %5778 = vdwg.mxu0
    %5779 = vmatprep.subr.bf16.mxu0 %v3542
    %5780 = vmatpush1.bf16.msra.mxu0 %v3541
    %5781 = vmatprep.subr.bf16.mxu0 %v3590
    %5782 = vmatpush1.bf16.msra.mxu0 %v3589
    %5783 = vmatprep.subr.bf16.mxu0 %v3638
    %5784 = vmatpush1.bf16.msra.mxu0 %v3637
    %5785 = vmatprep.subr.bf16.mxu0 %v3686
    %5786 = vmatpush1.bf16.msra.mxu0 %v3685
    %5787 = vmatprep.subr.bf16.mxu0 %v3734
    %5788 = vmatpush1.bf16.msra.mxu0 %v3733
    %5789 = vmatprep.subr.bf16.mxu0 %v3782
    %5790 = vmatpush1.bf16.msra.mxu0 %v3781
    %5791 = vmatprep.subr.bf16.mxu0 %v3830
    %5792 = vmatpush1.bf16.msra.mxu0 %v3829
    %5793 = vmatprep.subr.bf16.mxu0 %v3878
    %5794 = vmatpush1.bf16.msra.mxu0 %v3877
    %5795 = vmatprep.subr.bf16.mxu0 %v3926
    %5796 = vmatpush1.bf16.msra.mxu0 %v3925
    %5797 = vmatprep.subr.bf16.mxu0 %v3974
    %5798 = vmatpush1.bf16.msra.mxu0 %v3973
    %5799 = vmatprep.subr.bf16.mxu0 %v4022
    %5800 = vmatpush1.bf16.msra.mxu0 %v4021
    %5801 = vmatprep.subr.bf16.mxu0 %v4070
    %5802 = vmatpush1.bf16.msra.mxu0 %v4069
    %5803 = vmatprep.subr.bf16.mxu0 %v4118
    %5804 = vmatpush1.bf16.msra.mxu0 %v4117
    %5805 = vmatprep.subr.bf16.mxu0 %v4166
    %5806 = vmatpush1.bf16.msra.mxu0 %v4165
    %5807 = vmatprep.subr.bf16.mxu0 %v4214
    %5808 = vmatpush1.bf16.msra.mxu0 %v4213
    %5809 = vmatprep.subr.bf16.mxu0 %v4262
    %5810 = vmatpush1.bf16.msra.mxu0 %v4261
    %5811 = vmatprep.mubr.bf16.mxu0 %v180
    %5812 = vmatmul.mubr.bf16.gmra.mrb[0].mxu0 %v179
    %v5813 = vpop.f32.mrb[0].mxu0
    %v5814 = vadd.f32 %v1108, %v5813
    %v5815 = vpop.f32.mrb[0].mxu0
    %v5816 = vadd.f32 %v1112, %v5815
    %v5817 = vpop.f32.mrb[0].mxu0
    %v5818 = vpop.f32.mrb[0].mxu0
    %5819 = vdwg.mxu0
    %5820 = vmatprep.subr.bf16.mxu0 %v3544
    %5821 = vmatpush1.bf16.msra.mxu0 %v3543
    %5822 = vmatprep.subr.bf16.mxu0 %v3592
    %5823 = vmatpush1.bf16.msra.mxu0 %v3591
    %5824 = vmatprep.subr.bf16.mxu0 %v3640
    %5825 = vmatpush1.bf16.msra.mxu0 %v3639
    %5826 = vmatprep.subr.bf16.mxu0 %v3688
    %5827 = vmatpush1.bf16.msra.mxu0 %v3687
    %5828 = vmatprep.subr.bf16.mxu0 %v3736
    %5829 = vmatpush1.bf16.msra.mxu0 %v3735
    %5830 = vmatprep.subr.bf16.mxu0 %v3784
    %5831 = vmatpush1.bf16.msra.mxu0 %v3783
    %5832 = vmatprep.subr.bf16.mxu0 %v3832
    %5833 = vmatpush1.bf16.msra.mxu0 %v3831
    %5834 = vmatprep.subr.bf16.mxu0 %v3880
    %5835 = vmatpush1.bf16.msra.mxu0 %v3879
    %5836 = vmatprep.subr.bf16.mxu0 %v3928
    %5837 = vmatpush1.bf16.msra.mxu0 %v3927
    %5838 = vmatprep.subr.bf16.mxu0 %v3976
    %5839 = vmatpush1.bf16.msra.mxu0 %v3975
    %5840 = vmatprep.subr.bf16.mxu0 %v4024
    %5841 = vmatpush1.bf16.msra.mxu0 %v4023
    %5842 = vmatprep.subr.bf16.mxu0 %v4072
    %5843 = vmatpush1.bf16.msra.mxu0 %v4071
    %5844 = vmatprep.subr.bf16.mxu0 %v4120
    %5845 = vmatpush1.bf16.msra.mxu0 %v4119
    %5846 = vmatprep.subr.bf16.mxu0 %v4168
    %5847 = vmatpush1.bf16.msra.mxu0 %v4167
    %5848 = vmatprep.subr.bf16.mxu0 %v4216
    %5849 = vmatpush1.bf16.msra.mxu0 %v4215
    %5850 = vmatprep.subr.bf16.mxu0 %v4264
    %5851 = vmatpush1.bf16.msra.mxu0 %v4263
    %5852 = vmatprep.mubr.bf16.mxu0 %v180
    %5853 = vmatmul.mubr.bf16.gmra.mrb[0].mxu0 %v179
    %v5854 = vpop.f32.mrb[0].mxu0
    %v5855 = vadd.f32 %v1116, %v5854
    %v5856 = vpop.f32.mrb[0].mxu0
    %v5857 = vadd.f32 %v1120, %v5856
    %v5858 = vpop.f32.mrb[0].mxu0
    %v5859 = vpop.f32.mrb[0].mxu0
    %5860 = vdwg.mxu0
    %5861 = vmatprep.subr.bf16.mxu0 %v3546
    %5862 = vmatpush1.bf16.msra.mxu0 %v3545
    %5863 = vmatprep.subr.bf16.mxu0 %v3594
    %5864 = vmatpush1.bf16.msra.mxu0 %v3593
    %5865 = vmatprep.subr.bf16.mxu0 %v3642
    %5866 = vmatpush1.bf16.msra.mxu0 %v3641
    %5867 = vmatprep.subr.bf16.mxu0 %v3690
    %5868 = vmatpush1.bf16.msra.mxu0 %v3689
    %5869 = vmatprep.subr.bf16.mxu0 %v3738
    %5870 = vmatpush1.bf16.msra.mxu0 %v3737
    %5871 = vmatprep.subr.bf16.mxu0 %v3786
    %5872 = vmatpush1.bf16.msra.mxu0 %v3785
    %5873 = vmatprep.subr.bf16.mxu0 %v3834
    %5874 = vmatpush1.bf16.msra.mxu0 %v3833
    %5875 = vmatprep.subr.bf16.mxu0 %v3882
    %5876 = vmatpush1.bf16.msra.mxu0 %v3881
    %5877 = vmatprep.subr.bf16.mxu0 %v3930
    %5878 = vmatpush1.bf16.msra.mxu0 %v3929
    %5879 = vmatprep.subr.bf16.mxu0 %v3978
    %5880 = vmatpush1.bf16.msra.mxu0 %v3977
    %5881 = vmatprep.subr.bf16.mxu0 %v4026
    %5882 = vmatpush1.bf16.msra.mxu0 %v4025
    %5883 = vmatprep.subr.bf16.mxu0 %v4074
    %5884 = vmatpush1.bf16.msra.mxu0 %v4073
    %5885 = vmatprep.subr.bf16.mxu0 %v4122
    %5886 = vmatpush1.bf16.msra.mxu0 %v4121
    %5887 = vmatprep.subr.bf16.mxu0 %v4170
    %5888 = vmatpush1.bf16.msra.mxu0 %v4169
    %5889 = vmatprep.subr.bf16.mxu0 %v4218
    %5890 = vmatpush1.bf16.msra.mxu0 %v4217
    %5891 = vmatprep.subr.bf16.mxu0 %v4266
    %5892 = vmatpush1.bf16.msra.mxu0 %v4265
    %5893 = vmatprep.mubr.bf16.mxu0 %v180
    %5894 = vmatmul.mubr.bf16.gmra.mrb[0].mxu0 %v179
    %v5895 = vpop.f32.mrb[0].mxu0
    %v5896 = vadd.f32 %v1124, %v5895
    %v5897 = vpop.f32.mrb[0].mxu0
    %v5898 = vadd.f32 %v1128, %v5897
    %v5899 = vpop.f32.mrb[0].mxu0
    %v5900 = vpop.f32.mrb[0].mxu0
    %5901 = vdwg.mxu0
    %5902 = vmatprep.subr.bf16.mxu0 %v3548
    %5903 = vmatpush1.bf16.msra.mxu0 %v3547
    %5904 = vmatprep.subr.bf16.mxu0 %v3596
    %5905 = vmatpush1.bf16.msra.mxu0 %v3595
    %5906 = vmatprep.subr.bf16.mxu0 %v3644
    %5907 = vmatpush1.bf16.msra.mxu0 %v3643
    %5908 = vmatprep.subr.bf16.mxu0 %v3692
    %5909 = vmatpush1.bf16.msra.mxu0 %v3691
    %5910 = vmatprep.subr.bf16.mxu0 %v3740
    %5911 = vmatpush1.bf16.msra.mxu0 %v3739
    %5912 = vmatprep.subr.bf16.mxu0 %v3788
    %5913 = vmatpush1.bf16.msra.mxu0 %v3787
    %5914 = vmatprep.subr.bf16.mxu0 %v3836
    %5915 = vmatpush1.bf16.msra.mxu0 %v3835
    %5916 = vmatprep.subr.bf16.mxu0 %v3884
    %5917 = vmatpush1.bf16.msra.mxu0 %v3883
    %5918 = vmatprep.subr.bf16.mxu0 %v3932
    %5919 = vmatpush1.bf16.msra.mxu0 %v3931
    %5920 = vmatprep.subr.bf16.mxu0 %v3980
    %5921 = vmatpush1.bf16.msra.mxu0 %v3979
    %5922 = vmatprep.subr.bf16.mxu0 %v4028
    %5923 = vmatpush1.bf16.msra.mxu0 %v4027
    %5924 = vmatprep.subr.bf16.mxu0 %v4076
    %5925 = vmatpush1.bf16.msra.mxu0 %v4075
    %5926 = vmatprep.subr.bf16.mxu0 %v4124
    %5927 = vmatpush1.bf16.msra.mxu0 %v4123
    %5928 = vmatprep.subr.bf16.mxu0 %v4172
    %5929 = vmatpush1.bf16.msra.mxu0 %v4171
    %5930 = vmatprep.subr.bf16.mxu0 %v4220
    %5931 = vmatpush1.bf16.msra.mxu0 %v4219
    %5932 = vmatprep.subr.bf16.mxu0 %v4268
    %5933 = vmatpush1.bf16.msra.mxu0 %v4267
    %5934 = vmatprep.mubr.bf16.mxu0 %v180
    %5935 = vmatmul.mubr.bf16.gmra.mrb[0].mxu0 %v179
    %v5936 = vpop.f32.mrb[0].mxu0
    %v5937 = vadd.f32 %v1132, %v5936
    %v5938 = vpop.f32.mrb[0].mxu0
    %v5939 = vadd.f32 %v1136, %v5938
    %v5940 = vpop.f32.mrb[0].mxu0
    %v5941 = vpop.f32.mrb[0].mxu0
    %5942 = vdwg.mxu0
    %5943 = vmatprep.subr.bf16.mxu0 %v3550
    %5944 = vmatpush1.bf16.msra.mxu0 %v3549
    %5945 = vmatprep.subr.bf16.mxu0 %v3598
    %5946 = vmatpush1.bf16.msra.mxu0 %v3597
    %5947 = vmatprep.subr.bf16.mxu0 %v3646
    %5948 = vmatpush1.bf16.msra.mxu0 %v3645
    %5949 = vmatprep.subr.bf16.mxu0 %v3694
    %5950 = vmatpush1.bf16.msra.mxu0 %v3693
    %5951 = vmatprep.subr.bf16.mxu0 %v3742
    %5952 = vmatpush1.bf16.msra.mxu0 %v3741
    %5953 = vmatprep.subr.bf16.mxu0 %v3790
    %5954 = vmatpush1.bf16.msra.mxu0 %v3789
    %5955 = vmatprep.subr.bf16.mxu0 %v3838
    %5956 = vmatpush1.bf16.msra.mxu0 %v3837
    %5957 = vmatprep.subr.bf16.mxu0 %v3886
    %5958 = vmatpush1.bf16.msra.mxu0 %v3885
    %5959 = vmatprep.subr.bf16.mxu0 %v3934
    %5960 = vmatpush1.bf16.msra.mxu0 %v3933
    %5961 = vmatprep.subr.bf16.mxu0 %v3982
    %5962 = vmatpush1.bf16.msra.mxu0 %v3981
    %5963 = vmatprep.subr.bf16.mxu0 %v4030
    %5964 = vmatpush1.bf16.msra.mxu0 %v4029
    %5965 = vmatprep.subr.bf16.mxu0 %v4078
    %5966 = vmatpush1.bf16.msra.mxu0 %v4077
    %5967 = vmatprep.subr.bf16.mxu0 %v4126
    %5968 = vmatpush1.bf16.msra.mxu0 %v4125
    %5969 = vmatprep.subr.bf16.mxu0 %v4174
    %5970 = vmatpush1.bf16.msra.mxu0 %v4173
    %5971 = vmatprep.subr.bf16.mxu0 %v4222
    %5972 = vmatpush1.bf16.msra.mxu0 %v4221
    %5973 = vmatprep.subr.bf16.mxu0 %v4270
    %5974 = vmatpush1.bf16.msra.mxu0 %v4269
    %5975 = vmatprep.mubr.bf16.mxu0 %v180
    %5976 = vmatmul.mubr.bf16.gmra.mrb[0].mxu0 %v179
    %v5977 = vpop.f32.mrb[0].mxu0
    %v5978 = vadd.f32 %v1140, %v5977
    %v5979 = vpop.f32.mrb[0].mxu0
    %v5980 = vadd.f32 %v1144, %v5979
    %v5981 = vpop.f32.mrb[0].mxu0
    %v5982 = vpop.f32.mrb[0].mxu0
    %5983 = vdwg.mxu0
    %5984 = vmatprep.subr.bf16.mxu0 %v3552
    %5985 = vmatpush1.bf16.msra.mxu0 %v3551
    %5986 = vmatprep.subr.bf16.mxu0 %v3600
    %5987 = vmatpush1.bf16.msra.mxu0 %v3599
    %5988 = vmatprep.subr.bf16.mxu0 %v3648
    %5989 = vmatpush1.bf16.msra.mxu0 %v3647
    %5990 = vmatprep.subr.bf16.mxu0 %v3696
    %5991 = vmatpush1.bf16.msra.mxu0 %v3695
    %5992 = vmatprep.subr.bf16.mxu0 %v3744
    %5993 = vmatpush1.bf16.msra.mxu0 %v3743
    %5994 = vmatprep.subr.bf16.mxu0 %v3792
    %5995 = vmatpush1.bf16.msra.mxu0 %v3791
    %5996 = vmatprep.subr.bf16.mxu0 %v3840
    %5997 = vmatpush1.bf16.msra.mxu0 %v3839
    %5998 = vmatprep.subr.bf16.mxu0 %v3888
    %5999 = vmatpush1.bf16.msra.mxu0 %v3887
    %6000 = vmatprep.subr.bf16.mxu0 %v3936
    %6001 = vmatpush1.bf16.msra.mxu0 %v3935
    %6002 = vmatprep.subr.bf16.mxu0 %v3984
    %6003 = vmatpush1.bf16.msra.mxu0 %v3983
    %6004 = vmatprep.subr.bf16.mxu0 %v4032
    %6005 = vmatpush1.bf16.msra.mxu0 %v4031
    %6006 = vmatprep.subr.bf16.mxu0 %v4080
    %6007 = vmatpush1.bf16.msra.mxu0 %v4079
    %6008 = vmatprep.subr.bf16.mxu0 %v4128
    %6009 = vmatpush1.bf16.msra.mxu0 %v4127
    %6010 = vmatprep.subr.bf16.mxu0 %v4176
    %6011 = vmatpush1.bf16.msra.mxu0 %v4175
    %6012 = vmatprep.subr.bf16.mxu0 %v4224
    %6013 = vmatpush1.bf16.msra.mxu0 %v4223
    %6014 = vmatprep.subr.bf16.mxu0 %v4272
    %6015 = vmatpush1.bf16.msra.mxu0 %v4271
    %6016 = vmatprep.mubr.bf16.mxu0 %v180
    %6017 = vmatmul.mubr.bf16.gmra.mrb[0].mxu0 %v179
    %v6018 = vpop.f32.mrb[0].mxu0
    %v6019 = vadd.f32 %v1148, %v6018
    %v6020 = vpop.f32.mrb[0].mxu0
    %v6021 = vadd.f32 %v1152, %v6020
    %v6022 = vpop.f32.mrb[0].mxu0
    %v6023 = vpop.f32.mrb[0].mxu0
    %6024 = vdwg.mxu0
    %v6025 = vmax.f32 %v5076, 0.0
    %v6026 = vmax.f32 %v5078, 0.0
    %v6027 = vmax.f32 %v5117, 0.0
    %v6028 = vmax.f32 %v5119, 0.0
    %v6029 = vmax.f32 %v5158, 0.0
    %v6030 = vmax.f32 %v5160, 0.0
    %v6031 = vmax.f32 %v5199, 0.0
    %v6032 = vmax.f32 %v5201, 0.0
    %v6033 = vmax.f32 %v5240, 0.0
    %v6034 = vmax.f32 %v5242, 0.0
    %v6035 = vmax.f32 %v5281, 0.0
    %v6036 = vmax.f32 %v5283, 0.0
    %v6037 = vmax.f32 %v5322, 0.0
    %v6038 = vmax.f32 %v5324, 0.0
    %v6039 = vmax.f32 %v5363, 0.0
    %v6040 = vmax.f32 %v5365, 0.0
    %v6041 = vmax.f32 %v5404, 0.0
    %v6042 = vmax.f32 %v5406, 0.0
    %v6043 = vmax.f32 %v5445, 0.0
    %v6044 = vmax.f32 %v5447, 0.0
    %v6045 = vmax.f32 %v5486, 0.0
    %v6046 = vmax.f32 %v5488, 0.0
    %v6047 = vmax.f32 %v5527, 0.0
    %v6048 = vmax.f32 %v5529, 0.0
    %v6049 = vmax.f32 %v5568, 0.0
    %v6050 = vmax.f32 %v5570, 0.0
    %v6051 = vmax.f32 %v5609, 0.0
    %v6052 = vmax.f32 %v5611, 0.0
    %v6053 = vmax.f32 %v5650, 0.0
    %v6054 = vmax.f32 %v5652, 0.0
    %v6055 = vmax.f32 %v5691, 0.0
    %v6056 = vmax.f32 %v5693, 0.0
    %v6057 = vmax.f32 %v5732, 0.0
    %v6058 = vmax.f32 %v5734, 0.0
    %v6059 = vmax.f32 %v5773, 0.0
    %v6060 = vmax.f32 %v5775, 0.0
    %v6061 = vmax.f32 %v5814, 0.0
    %v6062 = vmax.f32 %v5816, 0.0
    %v6063 = vmax.f32 %v5855, 0.0
    %v6064 = vmax.f32 %v5857, 0.0
    %v6065 = vmax.f32 %v5896, 0.0
    %v6066 = vmax.f32 %v5898, 0.0
    %v6067 = vmax.f32 %v5937, 0.0
    %v6068 = vmax.f32 %v5939, 0.0
    %v6069 = vmax.f32 %v5978, 0.0
    %v6070 = vmax.f32 %v5980, 0.0
    %v6071 = vmax.f32 %v6019, 0.0
    %v6072 = vmax.f32 %v6021, 0.0
    %6073 = vst [vmem:[#allocation2] sm:$0x3] %v6025
    %6074 = vst [vmem:[#allocation2 + $0x8] sm:$0x3] %v6026
    %6075 = vst [vmem:[#allocation2 + $0x10] sm:$0x3] %v6027
    %6076 = vst [vmem:[#allocation2 + $0x18] sm:$0x3] %v6028
    %v6081 = vrot.slane %v6029, 6
    %v6082 = vrot.slane %v6030, 6
    %v6083 = vrot.slane %v6031, 6
    %v6084 = vrot.slane %v6032, 6
    %6089 = vst [vmem:[#allocation2] sm:$0xc] %v6081
    %6090 = vst [vmem:[#allocation2 + $0x8] sm:$0xc] %v6082
    %6091 = vst [vmem:[#allocation2 + $0x10] sm:$0xc] %v6083
    %6092 = vst [vmem:[#allocation2 + $0x18] sm:$0xc] %v6084
    %v6097 = vrot.slane %v6033, 4
    %v6098 = vrot.slane %v6034, 4
    %v6099 = vrot.slane %v6035, 4
    %v6100 = vrot.slane %v6036, 4
    %6105 = vst [vmem:[#allocation2] sm:$0x30] %v6097
    %6106 = vst [vmem:[#allocation2 + $0x8] sm:$0x30] %v6098
    %6107 = vst [vmem:[#allocation2 + $0x10] sm:$0x30] %v6099
    %6108 = vst [vmem:[#allocation2 + $0x18] sm:$0x30] %v6100
    %v6113 = vrot.slane %v6037, 2
    %v6114 = vrot.slane %v6038, 2
    %v6115 = vrot.slane %v6039, 2
    %v6116 = vrot.slane %v6040, 2
    %6121 = vst [vmem:[#allocation2] sm:$0xc0] %v6113
    %6122 = vst [vmem:[#allocation2 + $0x8] sm:$0xc0] %v6114
    %6123 = vst [vmem:[#allocation2 + $0x10] sm:$0xc0] %v6115
    %6124 = vst [vmem:[#allocation2 + $0x18] sm:$0xc0] %v6116
    %6125 = vst [vmem:[#allocation2 + $0x20] sm:$0x3] %v6041
    %6126 = vst [vmem:[#allocation2 + $0x28] sm:$0x3] %v6042
    %6127 = vst [vmem:[#allocation2 + $0x30] sm:$0x3] %v6043
    %6128 = vst [vmem:[#allocation2 + $0x38] sm:$0x3] %v6044
    %v6133 = vrot.slane %v6045, 6
    %v6134 = vrot.slane %v6046, 6
    %v6135 = vrot.slane %v6047, 6
    %v6136 = vrot.slane %v6048, 6
    %6141 = vst [vmem:[#allocation2 + $0x20] sm:$0xc] %v6133
    %6142 = vst [vmem:[#allocation2 + $0x28] sm:$0xc] %v6134
    %6143 = vst [vmem:[#allocation2 + $0x30] sm:$0xc] %v6135
    %6144 = vst [vmem:[#allocation2 + $0x38] sm:$0xc] %v6136
    %v6149 = vrot.slane %v6049, 4
    %v6150 = vrot.slane %v6050, 4
    %v6151 = vrot.slane %v6051, 4
    %v6152 = vrot.slane %v6052, 4
    %6157 = vst [vmem:[#allocation2 + $0x20] sm:$0x30] %v6149
    %6158 = vst [vmem:[#allocation2 + $0x28] sm:$0x30] %v6150
    %6159 = vst [vmem:[#allocation2 + $0x30] sm:$0x30] %v6151
    %6160 = vst [vmem:[#allocation2 + $0x38] sm:$0x30] %v6152
    %v6165 = vrot.slane %v6053, 2
    %v6166 = vrot.slane %v6054, 2
    %v6167 = vrot.slane %v6055, 2
    %v6168 = vrot.slane %v6056, 2
    %6173 = vst [vmem:[#allocation2 + $0x20] sm:$0xc0] %v6165
    %6174 = vst [vmem:[#allocation2 + $0x28] sm:$0xc0] %v6166
    %6175 = vst [vmem:[#allocation2 + $0x30] sm:$0xc0] %v6167
    %6176 = vst [vmem:[#allocation2 + $0x38] sm:$0xc0] %v6168
    %6177 = vst [vmem:[#allocation2 + $0x40] sm:$0x3] %v6057
    %6178 = vst [vmem:[#allocation2 + $0x48] sm:$0x3] %v6058
    %6179 = vst [vmem:[#allocation2 + $0x50] sm:$0x3] %v6059
    %6180 = vst [vmem:[#allocation2 + $0x58] sm:$0x3] %v6060
    %v6185 = vrot.slane %v6061, 6
    %v6186 = vrot.slane %v6062, 6
    %v6187 = vrot.slane %v6063, 6
    %v6188 = vrot.slane %v6064, 6
    %6193 = vst [vmem:[#allocation2 + $0x40] sm:$0xc] %v6185
    %6194 = vst [vmem:[#allocation2 + $0x48] sm:$0xc] %v6186
    %6195 = vst [vmem:[#allocation2 + $0x50] sm:$0xc] %v6187
    %6196 = vst [vmem:[#allocation2 + $0x58] sm:$0xc] %v6188
    %v6201 = vrot.slane %v6065, 4
    %v6202 = vrot.slane %v6066, 4
    %v6203 = vrot.slane %v6067, 4
    %v6204 = vrot.slane %v6068, 4
    %6209 = vst [vmem:[#allocation2 + $0x40] sm:$0x30] %v6201
    %6210 = vst [vmem:[#allocation2 + $0x48] sm:$0x30] %v6202
    %6211 = vst [vmem:[#allocation2 + $0x50] sm:$0x30] %v6203
    %6212 = vst [vmem:[#allocation2 + $0x58] sm:$0x30] %v6204
    %v6217 = vrot.slane %v6069, 2
    %v6218 = vrot.slane %v6070, 2
    %v6219 = vrot.slane %v6071, 2
    %v6220 = vrot.slane %v6072, 2
    %6225 = vst [vmem:[#allocation2 + $0x40] sm:$0xc0] %v6217
    %6226 = vst [vmem:[#allocation2 + $0x48] sm:$0xc0] %v6218
    %6227 = vst [vmem:[#allocation2 + $0x50] sm:$0xc0] %v6219
    %6228 = vst [vmem:[#allocation2 + $0x58] sm:$0xc0] %v6220
    %v6229 = vld [vmem:[#allocation2] sm:$0xff]
    %v6230 = vld [vmem:[#allocation2 + $0x8] sm:$0xff]
    %v6231 = vld [vmem:[#allocation2 + $0x10] sm:$0xff]
    %v6232 = vld [vmem:[#allocation2 + $0x18] sm:$0xff]
    %v6233 = vld [vmem:[#allocation2 + $0x20] sm:$0xff]
    %v6234 = vld [vmem:[#allocation2 + $0x28] sm:$0xff]
    %v6235 = vld [vmem:[#allocation2 + $0x30] sm:$0xff]
    %v6236 = vld [vmem:[#allocation2 + $0x38] sm:$0xff]
    %v6237 = vld [vmem:[#allocation2 + $0x40] sm:$0xff]
    %v6238 = vld [vmem:[#allocation2 + $0x48] sm:$0xff]
    %v6239 = vld [vmem:[#allocation2 + $0x50] sm:$0xff]
    %v6240 = vld [vmem:[#allocation2 + $0x58] sm:$0xff]
    %v6241 = vpack.c.bf16 %v6233, %v6229
    %v6242 = vpack.c.bf16 %v6234, %v6230
    %v6243 = vpack.c.bf16 %v6235, %v6231
    %v6244 = vpack.c.bf16 %v6236, %v6232
    %v6245 = vpack.c.bf16 %v6237, %v6237
    %v6246 = vpack.c.bf16 %v6238, %v6238
    %v6247 = vpack.c.bf16 %v6239, %v6239
    %v6248 = vpack.c.bf16 %v6240, %v6240
    %v6249 = vld [vmem:[#allocation12] sm:$0xff]
    %v6250 = vld [vmem:[#allocation12 + $0x8] sm:$0xff]
    %v6251 = vld [vmem:[#allocation12 + $0x10] sm:$0xff]
    %v6252 = vld [vmem:[#allocation12 + $0x18] sm:$0xff]
    %v6253 = vld [vmem:[#allocation12 + $0x20] sm:$0xff]
    %v6254 = vld [vmem:[#allocation12 + $0x28] sm:$0xff]
    %v6255 = vld [vmem:[#allocation12 + $0x30] sm:$0xff]
    %v6256 = vld [vmem:[#allocation12 + $0x38] sm:$0xff]
    %v6257 = vld [vmem:[#allocation12 + $0x40] sm:$0xff]
    %v6258 = vld [vmem:[#allocation12 + $0x48] sm:$0xff]
    %v6259 = vld [vmem:[#allocation12 + $0x50] sm:$0xff]
    %v6260 = vld [vmem:[#allocation12 + $0x58] sm:$0xff]
    %v6261 = vld [vmem:[#allocation12 + $0x60] sm:$0xff]
    %v6262 = vld [vmem:[#allocation12 + $0x68] sm:$0xff]
    %v6263 = vld [vmem:[#allocation12 + $0x70] sm:$0xff]
    %v6264 = vld [vmem:[#allocation12 + $0x78] sm:$0xff]
    %v6265 = vld [vmem:[#allocation12 + $0x80] sm:$0xff]
    %v6266 = vld [vmem:[#allocation12 + $0x88] sm:$0xff]
    %v6267 = vld [vmem:[#allocation12 + $0x90] sm:$0xff]
    %v6268 = vld [vmem:[#allocation12 + $0x98] sm:$0xff]
    %v6269 = vld [vmem:[#allocation12 + $0xa0] sm:$0xff]
    %v6270 = vld [vmem:[#allocation12 + $0xa8] sm:$0xff]
    %v6271 = vld [vmem:[#allocation12 + $0xb0] sm:$0xff]
    %v6272 = vld [vmem:[#allocation12 + $0xb8] sm:$0xff]
    %v6273 = vld [vmem:[#allocation12 + $0xc0] sm:$0xff]
    %v6274 = vld [vmem:[#allocation12 + $0xc8] sm:$0xff]
    %v6275 = vld [vmem:[#allocation12 + $0xd0] sm:$0xff]
    %v6276 = vld [vmem:[#allocation12 + $0xd8] sm:$0xff]
    %v6277 = vld [vmem:[#allocation12 + $0xe0] sm:$0xff]
    %v6278 = vld [vmem:[#allocation12 + $0xe8] sm:$0xff]
    %v6279 = vld [vmem:[#allocation12 + $0xf0] sm:$0xff]
    %v6280 = vld [vmem:[#allocation12 + $0xf8] sm:$0xff]
    %v6281 = vld [vmem:[#allocation12 + $0x100] sm:$0xff]
    %v6282 = vld [vmem:[#allocation12 + $0x108] sm:$0xff]
    %v6283 = vld [vmem:[#allocation12 + $0x110] sm:$0xff]
    %v6284 = vld [vmem:[#allocation12 + $0x118] sm:$0xff]
    %v6285 = vld [vmem:[#allocation12 + $0x120] sm:$0xff]
    %v6286 = vld [vmem:[#allocation12 + $0x128] sm:$0xff]
    %v6287 = vld [vmem:[#allocation12 + $0x130] sm:$0xff]
    %v6288 = vld [vmem:[#allocation12 + $0x138] sm:$0xff]
    %v6289 = vld [vmem:[#allocation12 + $0x140] sm:$0xff]
    %v6290 = vld [vmem:[#allocation12 + $0x148] sm:$0xff]
    %v6291 = vld [vmem:[#allocation12 + $0x150] sm:$0xff]
    %v6292 = vld [vmem:[#allocation12 + $0x158] sm:$0xff]
    %v6293 = vld [vmem:[#allocation12 + $0x160] sm:$0xff]
    %v6294 = vld [vmem:[#allocation12 + $0x168] sm:$0xff]
    %v6295 = vld [vmem:[#allocation12 + $0x170] sm:$0xff]
    %v6296 = vld [vmem:[#allocation12 + $0x178] sm:$0xff]
    %v6297 = vld [vmem:[#allocation12 + $0x180] sm:$0xff]
    %v6298 = vld [vmem:[#allocation12 + $0x188] sm:$0xff]
    %v6299 = vld [vmem:[#allocation12 + $0x190] sm:$0xff]
    %v6300 = vld [vmem:[#allocation12 + $0x198] sm:$0xff]
    %v6301 = vld [vmem:[#allocation12 + $0x1a0] sm:$0xff]
    %v6302 = vld [vmem:[#allocation12 + $0x1a8] sm:$0xff]
    %v6303 = vld [vmem:[#allocation12 + $0x1b0] sm:$0xff]
    %v6304 = vld [vmem:[#allocation12 + $0x1b8] sm:$0xff]
    %v6305 = vld [vmem:[#allocation12 + $0x1c0] sm:$0xff]
    %v6306 = vld [vmem:[#allocation12 + $0x1c8] sm:$0xff]
    %v6307 = vld [vmem:[#allocation12 + $0x1d0] sm:$0xff]
    %v6308 = vld [vmem:[#allocation12 + $0x1d8] sm:$0xff]
    %v6309 = vld [vmem:[#allocation12 + $0x1e0] sm:$0xff]
    %v6310 = vld [vmem:[#allocation12 + $0x1e8] sm:$0xff]
    %v6311 = vld [vmem:[#allocation12 + $0x1f0] sm:$0xff]
    %v6312 = vld [vmem:[#allocation12 + $0x1f8] sm:$0xff]
    %v6313 = vld [vmem:[#allocation12 + $0x200] sm:$0xff]
    %v6314 = vld [vmem:[#allocation12 + $0x208] sm:$0xff]
    %v6315 = vld [vmem:[#allocation12 + $0x210] sm:$0xff]
    %v6316 = vld [vmem:[#allocation12 + $0x218] sm:$0xff]
    %v6317 = vld [vmem:[#allocation12 + $0x220] sm:$0xff]
    %v6318 = vld [vmem:[#allocation12 + $0x228] sm:$0xff]
    %v6319 = vld [vmem:[#allocation12 + $0x230] sm:$0xff]
    %v6320 = vld [vmem:[#allocation12 + $0x238] sm:$0xff]
    %v6321 = vld [vmem:[#allocation12 + $0x240] sm:$0xff]
    %v6322 = vld [vmem:[#allocation12 + $0x248] sm:$0xff]
    %v6323 = vld [vmem:[#allocation12 + $0x250] sm:$0xff]
    %v6324 = vld [vmem:[#allocation12 + $0x258] sm:$0xff]
    %v6325 = vld [vmem:[#allocation12 + $0x260] sm:$0xff]
    %v6326 = vld [vmem:[#allocation12 + $0x268] sm:$0xff]
    %v6327 = vld [vmem:[#allocation12 + $0x270] sm:$0xff]
    %v6328 = vld [vmem:[#allocation12 + $0x278] sm:$0xff]
    %v6329 = vld [vmem:[#allocation12 + $0x280] sm:$0xff]
    %v6330 = vld [vmem:[#allocation12 + $0x288] sm:$0xff]
    %v6331 = vld [vmem:[#allocation12 + $0x290] sm:$0xff]
    %v6332 = vld [vmem:[#allocation12 + $0x298] sm:$0xff]
    %v6333 = vld [vmem:[#allocation12 + $0x2a0] sm:$0xff]
    %v6334 = vld [vmem:[#allocation12 + $0x2a8] sm:$0xff]
    %v6335 = vld [vmem:[#allocation12 + $0x2b0] sm:$0xff]
    %v6336 = vld [vmem:[#allocation12 + $0x2b8] sm:$0xff]
    %v6337 = vld [vmem:[#allocation12 + $0x2c0] sm:$0xff]
    %v6338 = vld [vmem:[#allocation12 + $0x2c8] sm:$0xff]
    %v6339 = vld [vmem:[#allocation12 + $0x2d0] sm:$0xff]
    %v6340 = vld [vmem:[#allocation12 + $0x2d8] sm:$0xff]
    %v6341 = vld [vmem:[#allocation12 + $0x2e0] sm:$0xff]
    %v6342 = vld [vmem:[#allocation12 + $0x2e8] sm:$0xff]
    %v6343 = vld [vmem:[#allocation12 + $0x2f0] sm:$0xff]
    %v6344 = vld [vmem:[#allocation12 + $0x2f8] sm:$0xff]
    %v6345 = vld [vmem:[#allocation12 + $0x300] sm:$0xff]
    %v6346 = vld [vmem:[#allocation12 + $0x308] sm:$0xff]
    %v6347 = vld [vmem:[#allocation12 + $0x310] sm:$0xff]
    %v6348 = vld [vmem:[#allocation12 + $0x318] sm:$0xff]
    %v6349 = vld [vmem:[#allocation12 + $0x320] sm:$0xff]
    %v6350 = vld [vmem:[#allocation12 + $0x328] sm:$0xff]
    %v6351 = vld [vmem:[#allocation12 + $0x330] sm:$0xff]
    %v6352 = vld [vmem:[#allocation12 + $0x338] sm:$0xff]
    %v6353 = vld [vmem:[#allocation12 + $0x340] sm:$0xff]
    %v6354 = vld [vmem:[#allocation12 + $0x348] sm:$0xff]
    %v6355 = vld [vmem:[#allocation12 + $0x350] sm:$0xff]
    %v6356 = vld [vmem:[#allocation12 + $0x358] sm:$0xff]
    %v6357 = vld [vmem:[#allocation12 + $0x360] sm:$0xff]
    %v6358 = vld [vmem:[#allocation12 + $0x368] sm:$0xff]
    %v6359 = vld [vmem:[#allocation12 + $0x370] sm:$0xff]
    %v6360 = vld [vmem:[#allocation12 + $0x378] sm:$0xff]
    %v6361 = vld [vmem:[#allocation12 + $0x380] sm:$0xff]
    %v6362 = vld [vmem:[#allocation12 + $0x388] sm:$0xff]
    %v6363 = vld [vmem:[#allocation12 + $0x390] sm:$0xff]
    %v6364 = vld [vmem:[#allocation12 + $0x398] sm:$0xff]
    %v6365 = vld [vmem:[#allocation12 + $0x3a0] sm:$0xff]
    %v6366 = vld [vmem:[#allocation12 + $0x3a8] sm:$0xff]
    %v6367 = vld [vmem:[#allocation12 + $0x3b0] sm:$0xff]
    %v6368 = vld [vmem:[#allocation12 + $0x3b8] sm:$0xff]
    %v6369 = vld [vmem:[#allocation12 + $0x3c0] sm:$0xff]
    %v6370 = vld [vmem:[#allocation12 + $0x3c8] sm:$0xff]
    %v6371 = vld [vmem:[#allocation12 + $0x3d0] sm:$0xff]
    %v6372 = vld [vmem:[#allocation12 + $0x3d8] sm:$0xff]
    %v6373 = vld [vmem:[#allocation12 + $0x3e0] sm:$0xff]
    %v6374 = vld [vmem:[#allocation12 + $0x3e8] sm:$0xff]
    %v6375 = vld [vmem:[#allocation12 + $0x3f0] sm:$0xff]
    %v6376 = vld [vmem:[#allocation12 + $0x3f8] sm:$0xff]
    %v6377 = vld [vmem:[#allocation12 + $0x400] sm:$0xff]
    %v6378 = vld [vmem:[#allocation12 + $0x408] sm:$0xff]
    %v6379 = vld [vmem:[#allocation12 + $0x410] sm:$0xff]
    %v6380 = vld [vmem:[#allocation12 + $0x418] sm:$0xff]
    %v6381 = vld [vmem:[#allocation12 + $0x420] sm:$0xff]
    %v6382 = vld [vmem:[#allocation12 + $0x428] sm:$0xff]
    %v6383 = vld [vmem:[#allocation12 + $0x430] sm:$0xff]
    %v6384 = vld [vmem:[#allocation12 + $0x438] sm:$0xff]
    %v6385 = vld [vmem:[#allocation12 + $0x440] sm:$0xff]
    %v6386 = vld [vmem:[#allocation12 + $0x448] sm:$0xff]
    %v6387 = vld [vmem:[#allocation12 + $0x450] sm:$0xff]
    %v6388 = vld [vmem:[#allocation12 + $0x458] sm:$0xff]
    %v6389 = vld [vmem:[#allocation12 + $0x460] sm:$0xff]
    %v6390 = vld [vmem:[#allocation12 + $0x468] sm:$0xff]
    %v6391 = vld [vmem:[#allocation12 + $0x470] sm:$0xff]
    %v6392 = vld [vmem:[#allocation12 + $0x478] sm:$0xff]
    %v6393 = vld [vmem:[#allocation12 + $0x480] sm:$0xff]
    %v6394 = vld [vmem:[#allocation12 + $0x488] sm:$0xff]
    %v6395 = vld [vmem:[#allocation12 + $0x490] sm:$0xff]
    %v6396 = vld [vmem:[#allocation12 + $0x498] sm:$0xff]
    %v6397 = vld [vmem:[#allocation12 + $0x4a0] sm:$0xff]
    %v6398 = vld [vmem:[#allocation12 + $0x4a8] sm:$0xff]
    %v6399 = vld [vmem:[#allocation12 + $0x4b0] sm:$0xff]
    %v6400 = vld [vmem:[#allocation12 + $0x4b8] sm:$0xff]
    %v6401 = vld [vmem:[#allocation12 + $0x4c0] sm:$0xff]
    %v6402 = vld [vmem:[#allocation12 + $0x4c8] sm:$0xff]
    %v6403 = vld [vmem:[#allocation12 + $0x4d0] sm:$0xff]
    %v6404 = vld [vmem:[#allocation12 + $0x4d8] sm:$0xff]
    %v6405 = vld [vmem:[#allocation12 + $0x4e0] sm:$0xff]
    %v6406 = vld [vmem:[#allocation12 + $0x4e8] sm:$0xff]
    %v6407 = vld [vmem:[#allocation12 + $0x4f0] sm:$0xff]
    %v6408 = vld [vmem:[#allocation12 + $0x4f8] sm:$0xff]
    %v6409 = vld [vmem:[#allocation12 + $0x500] sm:$0xff]
    %v6410 = vld [vmem:[#allocation12 + $0x508] sm:$0xff]
    %v6411 = vld [vmem:[#allocation12 + $0x510] sm:$0xff]
    %v6412 = vld [vmem:[#allocation12 + $0x518] sm:$0xff]
    %v6413 = vld [vmem:[#allocation12 + $0x520] sm:$0xff]
    %v6414 = vld [vmem:[#allocation12 + $0x528] sm:$0xff]
    %v6415 = vld [vmem:[#allocation12 + $0x530] sm:$0xff]
    %v6416 = vld [vmem:[#allocation12 + $0x538] sm:$0xff]
    %v6417 = vld [vmem:[#allocation12 + $0x540] sm:$0xff]
    %v6418 = vld [vmem:[#allocation12 + $0x548] sm:$0xff]
    %v6419 = vld [vmem:[#allocation12 + $0x550] sm:$0xff]
    %v6420 = vld [vmem:[#allocation12 + $0x558] sm:$0xff]
    %v6421 = vld [vmem:[#allocation12 + $0x560] sm:$0xff]
    %v6422 = vld [vmem:[#allocation12 + $0x568] sm:$0xff]
    %v6423 = vld [vmem:[#allocation12 + $0x570] sm:$0xff]
    %v6424 = vld [vmem:[#allocation12 + $0x578] sm:$0xff]
    %v6425 = vld [vmem:[#allocation12 + $0x580] sm:$0xff]
    %v6426 = vld [vmem:[#allocation12 + $0x588] sm:$0xff]
    %v6427 = vld [vmem:[#allocation12 + $0x590] sm:$0xff]
    %v6428 = vld [vmem:[#allocation12 + $0x598] sm:$0xff]
    %v6429 = vld [vmem:[#allocation12 + $0x5a0] sm:$0xff]
    %v6430 = vld [vmem:[#allocation12 + $0x5a8] sm:$0xff]
    %v6431 = vld [vmem:[#allocation12 + $0x5b0] sm:$0xff]
    %v6432 = vld [vmem:[#allocation12 + $0x5b8] sm:$0xff]
    %v6433 = vld [vmem:[#allocation12 + $0x5c0] sm:$0xff]
    %v6434 = vld [vmem:[#allocation12 + $0x5c8] sm:$0xff]
    %v6435 = vld [vmem:[#allocation12 + $0x5d0] sm:$0xff]
    %v6436 = vld [vmem:[#allocation12 + $0x5d8] sm:$0xff]
    %v6437 = vld [vmem:[#allocation12 + $0x5e0] sm:$0xff]
    %v6438 = vld [vmem:[#allocation12 + $0x5e8] sm:$0xff]
    %v6439 = vld [vmem:[#allocation12 + $0x5f0] sm:$0xff]
    %v6440 = vld [vmem:[#allocation12 + $0x5f8] sm:$0xff]
    %v6441 = vld [vmem:[#allocation12 + $0x600] sm:$0xff]
    %v6442 = vld [vmem:[#allocation12 + $0x608] sm:$0xff]
    %v6443 = vld [vmem:[#allocation12 + $0x610] sm:$0xff]
    %v6444 = vld [vmem:[#allocation12 + $0x618] sm:$0xff]
    %v6445 = vld [vmem:[#allocation12 + $0x620] sm:$0xff]
    %v6446 = vld [vmem:[#allocation12 + $0x628] sm:$0xff]
    %v6447 = vld [vmem:[#allocation12 + $0x630] sm:$0xff]
    %v6448 = vld [vmem:[#allocation12 + $0x638] sm:$0xff]
    %v6449 = vld [vmem:[#allocation12 + $0x640] sm:$0xff]
    %v6450 = vld [vmem:[#allocation12 + $0x648] sm:$0xff]
    %v6451 = vld [vmem:[#allocation12 + $0x650] sm:$0xff]
    %v6452 = vld [vmem:[#allocation12 + $0x658] sm:$0xff]
    %v6453 = vld [vmem:[#allocation12 + $0x660] sm:$0xff]
    %v6454 = vld [vmem:[#allocation12 + $0x668] sm:$0xff]
    %v6455 = vld [vmem:[#allocation12 + $0x670] sm:$0xff]
    %v6456 = vld [vmem:[#allocation12 + $0x678] sm:$0xff]
    %v6457 = vld [vmem:[#allocation12 + $0x680] sm:$0xff]
    %v6458 = vld [vmem:[#allocation12 + $0x688] sm:$0xff]
    %v6459 = vld [vmem:[#allocation12 + $0x690] sm:$0xff]
    %v6460 = vld [vmem:[#allocation12 + $0x698] sm:$0xff]
    %v6461 = vld [vmem:[#allocation12 + $0x6a0] sm:$0xff]
    %v6462 = vld [vmem:[#allocation12 + $0x6a8] sm:$0xff]
    %v6463 = vld [vmem:[#allocation12 + $0x6b0] sm:$0xff]
    %v6464 = vld [vmem:[#allocation12 + $0x6b8] sm:$0xff]
    %v6465 = vld [vmem:[#allocation12 + $0x6c0] sm:$0xff]
    %v6466 = vld [vmem:[#allocation12 + $0x6c8] sm:$0xff]
    %v6467 = vld [vmem:[#allocation12 + $0x6d0] sm:$0xff]
    %v6468 = vld [vmem:[#allocation12 + $0x6d8] sm:$0xff]
    %v6469 = vld [vmem:[#allocation12 + $0x6e0] sm:$0xff]
    %v6470 = vld [vmem:[#allocation12 + $0x6e8] sm:$0xff]
    %v6471 = vld [vmem:[#allocation12 + $0x6f0] sm:$0xff]
    %v6472 = vld [vmem:[#allocation12 + $0x6f8] sm:$0xff]
    %v6473 = vld [vmem:[#allocation12 + $0x700] sm:$0xff]
    %v6474 = vld [vmem:[#allocation12 + $0x708] sm:$0xff]
    %v6475 = vld [vmem:[#allocation12 + $0x710] sm:$0xff]
    %v6476 = vld [vmem:[#allocation12 + $0x718] sm:$0xff]
    %v6477 = vld [vmem:[#allocation12 + $0x720] sm:$0xff]
    %v6478 = vld [vmem:[#allocation12 + $0x728] sm:$0xff]
    %v6479 = vld [vmem:[#allocation12 + $0x730] sm:$0xff]
    %v6480 = vld [vmem:[#allocation12 + $0x738] sm:$0xff]
    %v6481 = vld [vmem:[#allocation12 + $0x740] sm:$0xff]
    %v6482 = vld [vmem:[#allocation12 + $0x748] sm:$0xff]
    %v6483 = vld [vmem:[#allocation12 + $0x750] sm:$0xff]
    %v6484 = vld [vmem:[#allocation12 + $0x758] sm:$0xff]
    %v6485 = vld [vmem:[#allocation12 + $0x760] sm:$0xff]
    %v6486 = vld [vmem:[#allocation12 + $0x768] sm:$0xff]
    %v6487 = vld [vmem:[#allocation12 + $0x770] sm:$0xff]
    %v6488 = vld [vmem:[#allocation12 + $0x778] sm:$0xff]
    %v6489 = vld [vmem:[#allocation12 + $0x780] sm:$0xff]
    %v6490 = vld [vmem:[#allocation12 + $0x788] sm:$0xff]
    %v6491 = vld [vmem:[#allocation12 + $0x790] sm:$0xff]
    %v6492 = vld [vmem:[#allocation12 + $0x798] sm:$0xff]
    %v6493 = vld [vmem:[#allocation12 + $0x7a0] sm:$0xff]
    %v6494 = vld [vmem:[#allocation12 + $0x7a8] sm:$0xff]
    %v6495 = vld [vmem:[#allocation12 + $0x7b0] sm:$0xff]
    %v6496 = vld [vmem:[#allocation12 + $0x7b8] sm:$0xff]
    %v6497 = vld [vmem:[#allocation12 + $0x7c0] sm:$0xff]
    %v6498 = vld [vmem:[#allocation12 + $0x7c8] sm:$0xff]
    %v6499 = vld [vmem:[#allocation12 + $0x7d0] sm:$0xff]
    %v6500 = vld [vmem:[#allocation12 + $0x7d8] sm:$0xff]
    %v6501 = vld [vmem:[#allocation12 + $0x7e0] sm:$0xff]
    %v6502 = vld [vmem:[#allocation12 + $0x7e8] sm:$0xff]
    %v6503 = vld [vmem:[#allocation12 + $0x7f0] sm:$0xff]
    %v6504 = vld [vmem:[#allocation12 + $0x7f8] sm:$0xff]
    %v6505 = vld [vmem:[#allocation14] sm:$0xff]
    %v6507 = vlaneseq
    %v6508 = vshrl.u32 %v6507, 7
    %v6509 = vsub.s32 0, %v6508
    %v6510 = vrot.slane %v6505, %v6509
    %v6511 = vlaneseq
    %v6512 = vshrl.u32 %v6511, 7
    %v6513 = vsub.s32 1, %v6512
    %v6514 = vrot.slane %v6505, %v6513
    %v6515 = vlaneseq
    %v6516 = vshrl.u32 %v6515, 7
    %v6517 = vsub.s32 2, %v6516
    %v6518 = vrot.slane %v6505, %v6517
    %v6519 = vlaneseq
    %v6520 = vshrl.u32 %v6519, 7
    %v6521 = vsub.s32 3, %v6520
    %v6522 = vrot.slane %v6505, %v6521
    %v6523 = vlaneseq
    %v6524 = vshrl.u32 %v6523, 7
    %v6525 = vsub.s32 4, %v6524
    %v6526 = vrot.slane %v6505, %v6525
    %v6527 = vlaneseq
    %v6528 = vshrl.u32 %v6527, 7
    %v6529 = vsub.s32 5, %v6528
    %v6530 = vrot.slane %v6505, %v6529
    %v6531 = vlaneseq
    %v6532 = vshrl.u32 %v6531, 7
    %v6533 = vsub.s32 6, %v6532
    %v6534 = vrot.slane %v6505, %v6533
    %v6535 = vlaneseq
    %v6536 = vshrl.u32 %v6535, 7
    %v6537 = vsub.s32 7, %v6536
    %v6538 = vrot.slane %v6505, %v6537
    %v6803 = vunpack.c.l.b16 %v6249
    %v6804 = vunpack.c.h.b16 %v6249
    %v6805 = vunpack.c.l.b16 %v6250
    %v6806 = vunpack.c.h.b16 %v6250
    %v6807 = vunpack.c.l.b16 %v6251
    %v6808 = vunpack.c.h.b16 %v6251
    %v6809 = vunpack.c.l.b16 %v6252
    %v6810 = vunpack.c.h.b16 %v6252
    %v6811 = vunpack.c.l.b16 %v6253
    %v6812 = vunpack.c.h.b16 %v6253
    %v6813 = vunpack.c.l.b16 %v6254
    %v6814 = vunpack.c.h.b16 %v6254
    %v6815 = vunpack.c.l.b16 %v6255
    %v6816 = vunpack.c.h.b16 %v6255
    %v6817 = vunpack.c.l.b16 %v6256
    %v6818 = vunpack.c.h.b16 %v6256
    %v6819 = vunpack.c.l.b16 %v6257
    %v6820 = vunpack.c.h.b16 %v6257
    %v6821 = vunpack.c.l.b16 %v6258
    %v6822 = vunpack.c.h.b16 %v6258
    %v6823 = vunpack.c.l.b16 %v6259
    %v6824 = vunpack.c.h.b16 %v6259
    %v6825 = vunpack.c.l.b16 %v6260
    %v6826 = vunpack.c.h.b16 %v6260
    %v6827 = vunpack.c.l.b16 %v6261
    %v6828 = vunpack.c.h.b16 %v6261
    %v6829 = vunpack.c.l.b16 %v6262
    %v6830 = vunpack.c.h.b16 %v6262
    %v6831 = vunpack.c.l.b16 %v6263
    %v6832 = vunpack.c.h.b16 %v6263
    %v6833 = vunpack.c.l.b16 %v6264
    %v6834 = vunpack.c.h.b16 %v6264
    %v6835 = vunpack.c.l.b16 %v6265
    %v6836 = vunpack.c.h.b16 %v6265
    %v6837 = vunpack.c.l.b16 %v6266
    %v6838 = vunpack.c.h.b16 %v6266
    %v6839 = vunpack.c.l.b16 %v6267
    %v6840 = vunpack.c.h.b16 %v6267
    %v6841 = vunpack.c.l.b16 %v6268
    %v6842 = vunpack.c.h.b16 %v6268
    %v6843 = vunpack.c.l.b16 %v6269
    %v6844 = vunpack.c.h.b16 %v6269
    %v6845 = vunpack.c.l.b16 %v6270
    %v6846 = vunpack.c.h.b16 %v6270
    %v6847 = vunpack.c.l.b16 %v6271
    %v6848 = vunpack.c.h.b16 %v6271
    %v6849 = vunpack.c.l.b16 %v6272
    %v6850 = vunpack.c.h.b16 %v6272
    %v6851 = vunpack.c.l.b16 %v6273
    %v6852 = vunpack.c.h.b16 %v6273
    %v6853 = vunpack.c.l.b16 %v6274
    %v6854 = vunpack.c.h.b16 %v6274
    %v6855 = vunpack.c.l.b16 %v6275
    %v6856 = vunpack.c.h.b16 %v6275
    %v6857 = vunpack.c.l.b16 %v6276
    %v6858 = vunpack.c.h.b16 %v6276
    %v6859 = vunpack.c.l.b16 %v6277
    %v6860 = vunpack.c.h.b16 %v6277
    %v6861 = vunpack.c.l.b16 %v6278
    %v6862 = vunpack.c.h.b16 %v6278
    %v6863 = vunpack.c.l.b16 %v6279
    %v6864 = vunpack.c.h.b16 %v6279
    %v6865 = vunpack.c.l.b16 %v6280
    %v6866 = vunpack.c.h.b16 %v6280
    %v6867 = vunpack.c.l.b16 %v6281
    %v6868 = vunpack.c.h.b16 %v6281
    %v6869 = vunpack.c.l.b16 %v6282
    %v6870 = vunpack.c.h.b16 %v6282
    %v6871 = vunpack.c.l.b16 %v6283
    %v6872 = vunpack.c.h.b16 %v6283
    %v6873 = vunpack.c.l.b16 %v6284
    %v6874 = vunpack.c.h.b16 %v6284
    %v6875 = vunpack.c.l.b16 %v6285
    %v6876 = vunpack.c.h.b16 %v6285
    %v6877 = vunpack.c.l.b16 %v6286
    %v6878 = vunpack.c.h.b16 %v6286
    %v6879 = vunpack.c.l.b16 %v6287
    %v6880 = vunpack.c.h.b16 %v6287
    %v6881 = vunpack.c.l.b16 %v6288
    %v6882 = vunpack.c.h.b16 %v6288
    %v6883 = vunpack.c.l.b16 %v6289
    %v6884 = vunpack.c.h.b16 %v6289
    %v6885 = vunpack.c.l.b16 %v6290
    %v6886 = vunpack.c.h.b16 %v6290
    %v6887 = vunpack.c.l.b16 %v6291
    %v6888 = vunpack.c.h.b16 %v6291
    %v6889 = vunpack.c.l.b16 %v6292
    %v6890 = vunpack.c.h.b16 %v6292
    %v6891 = vunpack.c.l.b16 %v6293
    %v6892 = vunpack.c.h.b16 %v6293
    %v6893 = vunpack.c.l.b16 %v6294
    %v6894 = vunpack.c.h.b16 %v6294
    %v6895 = vunpack.c.l.b16 %v6295
    %v6896 = vunpack.c.h.b16 %v6295
    %v6897 = vunpack.c.l.b16 %v6296
    %v6898 = vunpack.c.h.b16 %v6296
    %v6899 = vunpack.c.l.b16 %v6297
    %v6900 = vunpack.c.h.b16 %v6297
    %v6901 = vunpack.c.l.b16 %v6298
    %v6902 = vunpack.c.h.b16 %v6298
    %v6903 = vunpack.c.l.b16 %v6299
    %v6904 = vunpack.c.h.b16 %v6299
    %v6905 = vunpack.c.l.b16 %v6300
    %v6906 = vunpack.c.h.b16 %v6300
    %v6907 = vunpack.c.l.b16 %v6301
    %v6908 = vunpack.c.h.b16 %v6301
    %v6909 = vunpack.c.l.b16 %v6302
    %v6910 = vunpack.c.h.b16 %v6302
    %v6911 = vunpack.c.l.b16 %v6303
    %v6912 = vunpack.c.h.b16 %v6303
    %v6913 = vunpack.c.l.b16 %v6304
    %v6914 = vunpack.c.h.b16 %v6304
    %v6915 = vunpack.c.l.b16 %v6305
    %v6916 = vunpack.c.h.b16 %v6305
    %v6917 = vunpack.c.l.b16 %v6306
    %v6918 = vunpack.c.h.b16 %v6306
    %v6919 = vunpack.c.l.b16 %v6307
    %v6920 = vunpack.c.h.b16 %v6307
    %v6921 = vunpack.c.l.b16 %v6308
    %v6922 = vunpack.c.h.b16 %v6308
    %v6923 = vunpack.c.l.b16 %v6309
    %v6924 = vunpack.c.h.b16 %v6309
    %v6925 = vunpack.c.l.b16 %v6310
    %v6926 = vunpack.c.h.b16 %v6310
    %v6927 = vunpack.c.l.b16 %v6311
    %v6928 = vunpack.c.h.b16 %v6311
    %v6929 = vunpack.c.l.b16 %v6312
    %v6930 = vunpack.c.h.b16 %v6312
    %v6931 = vunpack.c.l.b16 %v6313
    %v6932 = vunpack.c.h.b16 %v6313
    %v6933 = vunpack.c.l.b16 %v6314
    %v6934 = vunpack.c.h.b16 %v6314
    %v6935 = vunpack.c.l.b16 %v6315
    %v6936 = vunpack.c.h.b16 %v6315
    %v6937 = vunpack.c.l.b16 %v6316
    %v6938 = vunpack.c.h.b16 %v6316
    %v6939 = vunpack.c.l.b16 %v6317
    %v6940 = vunpack.c.h.b16 %v6317
    %v6941 = vunpack.c.l.b16 %v6318
    %v6942 = vunpack.c.h.b16 %v6318
    %v6943 = vunpack.c.l.b16 %v6319
    %v6944 = vunpack.c.h.b16 %v6319
    %v6945 = vunpack.c.l.b16 %v6320
    %v6946 = vunpack.c.h.b16 %v6320
    %v6947 = vunpack.c.l.b16 %v6321
    %v6948 = vunpack.c.h.b16 %v6321
    %v6949 = vunpack.c.l.b16 %v6322
    %v6950 = vunpack.c.h.b16 %v6322
    %v6951 = vunpack.c.l.b16 %v6323
    %v6952 = vunpack.c.h.b16 %v6323
    %v6953 = vunpack.c.l.b16 %v6324
    %v6954 = vunpack.c.h.b16 %v6324
    %v6955 = vunpack.c.l.b16 %v6325
    %v6956 = vunpack.c.h.b16 %v6325
    %v6957 = vunpack.c.l.b16 %v6326
    %v6958 = vunpack.c.h.b16 %v6326
    %v6959 = vunpack.c.l.b16 %v6327
    %v6960 = vunpack.c.h.b16 %v6327
    %v6961 = vunpack.c.l.b16 %v6328
    %v6962 = vunpack.c.h.b16 %v6328
    %v6963 = vunpack.c.l.b16 %v6329
    %v6964 = vunpack.c.h.b16 %v6329
    %v6965 = vunpack.c.l.b16 %v6330
    %v6966 = vunpack.c.h.b16 %v6330
    %v6967 = vunpack.c.l.b16 %v6331
    %v6968 = vunpack.c.h.b16 %v6331
    %v6969 = vunpack.c.l.b16 %v6332
    %v6970 = vunpack.c.h.b16 %v6332
    %v6971 = vunpack.c.l.b16 %v6333
    %v6972 = vunpack.c.h.b16 %v6333
    %v6973 = vunpack.c.l.b16 %v6334
    %v6974 = vunpack.c.h.b16 %v6334
    %v6975 = vunpack.c.l.b16 %v6335
    %v6976 = vunpack.c.h.b16 %v6335
    %v6977 = vunpack.c.l.b16 %v6336
    %v6978 = vunpack.c.h.b16 %v6336
    %v6979 = vunpack.c.l.b16 %v6337
    %v6980 = vunpack.c.h.b16 %v6337
    %v6981 = vunpack.c.l.b16 %v6338
    %v6982 = vunpack.c.h.b16 %v6338
    %v6983 = vunpack.c.l.b16 %v6339
    %v6984 = vunpack.c.h.b16 %v6339
    %v6985 = vunpack.c.l.b16 %v6340
    %v6986 = vunpack.c.h.b16 %v6340
    %v6987 = vunpack.c.l.b16 %v6341
    %v6988 = vunpack.c.h.b16 %v6341
    %v6989 = vunpack.c.l.b16 %v6342
    %v6990 = vunpack.c.h.b16 %v6342
    %v6991 = vunpack.c.l.b16 %v6343
    %v6992 = vunpack.c.h.b16 %v6343
    %v6993 = vunpack.c.l.b16 %v6344
    %v6994 = vunpack.c.h.b16 %v6344
    %v6995 = vunpack.c.l.b16 %v6345
    %v6996 = vunpack.c.h.b16 %v6345
    %v6997 = vunpack.c.l.b16 %v6346
    %v6998 = vunpack.c.h.b16 %v6346
    %v6999 = vunpack.c.l.b16 %v6347
    %v7000 = vunpack.c.h.b16 %v6347
    %v7001 = vunpack.c.l.b16 %v6348
    %v7002 = vunpack.c.h.b16 %v6348
    %v7003 = vunpack.c.l.b16 %v6349
    %v7004 = vunpack.c.h.b16 %v6349
    %v7005 = vunpack.c.l.b16 %v6350
    %v7006 = vunpack.c.h.b16 %v6350
    %v7007 = vunpack.c.l.b16 %v6351
    %v7008 = vunpack.c.h.b16 %v6351
    %v7009 = vunpack.c.l.b16 %v6352
    %v7010 = vunpack.c.h.b16 %v6352
    %v7011 = vunpack.c.l.b16 %v6353
    %v7012 = vunpack.c.h.b16 %v6353
    %v7013 = vunpack.c.l.b16 %v6354
    %v7014 = vunpack.c.h.b16 %v6354
    %v7015 = vunpack.c.l.b16 %v6355
    %v7016 = vunpack.c.h.b16 %v6355
    %v7017 = vunpack.c.l.b16 %v6356
    %v7018 = vunpack.c.h.b16 %v6356
    %v7019 = vunpack.c.l.b16 %v6357
    %v7020 = vunpack.c.h.b16 %v6357
    %v7021 = vunpack.c.l.b16 %v6358
    %v7022 = vunpack.c.h.b16 %v6358
    %v7023 = vunpack.c.l.b16 %v6359
    %v7024 = vunpack.c.h.b16 %v6359
    %v7025 = vunpack.c.l.b16 %v6360
    %v7026 = vunpack.c.h.b16 %v6360
    %v7027 = vunpack.c.l.b16 %v6361
    %v7028 = vunpack.c.h.b16 %v6361
    %v7029 = vunpack.c.l.b16 %v6362
    %v7030 = vunpack.c.h.b16 %v6362
    %v7031 = vunpack.c.l.b16 %v6363
    %v7032 = vunpack.c.h.b16 %v6363
    %v7033 = vunpack.c.l.b16 %v6364
    %v7034 = vunpack.c.h.b16 %v6364
    %v7035 = vunpack.c.l.b16 %v6365
    %v7036 = vunpack.c.h.b16 %v6365
    %v7037 = vunpack.c.l.b16 %v6366
    %v7038 = vunpack.c.h.b16 %v6366
    %v7039 = vunpack.c.l.b16 %v6367
    %v7040 = vunpack.c.h.b16 %v6367
    %v7041 = vunpack.c.l.b16 %v6368
    %v7042 = vunpack.c.h.b16 %v6368
    %v7043 = vunpack.c.l.b16 %v6369
    %v7044 = vunpack.c.h.b16 %v6369
    %v7045 = vunpack.c.l.b16 %v6370
    %v7046 = vunpack.c.h.b16 %v6370
    %v7047 = vunpack.c.l.b16 %v6371
    %v7048 = vunpack.c.h.b16 %v6371
    %v7049 = vunpack.c.l.b16 %v6372
    %v7050 = vunpack.c.h.b16 %v6372
    %v7051 = vunpack.c.l.b16 %v6373
    %v7052 = vunpack.c.h.b16 %v6373
    %v7053 = vunpack.c.l.b16 %v6374
    %v7054 = vunpack.c.h.b16 %v6374
    %v7055 = vunpack.c.l.b16 %v6375
    %v7056 = vunpack.c.h.b16 %v6375
    %v7057 = vunpack.c.l.b16 %v6376
    %v7058 = vunpack.c.h.b16 %v6376
    %v7059 = vunpack.c.l.b16 %v6377
    %v7060 = vunpack.c.h.b16 %v6377
    %v7061 = vunpack.c.l.b16 %v6378
    %v7062 = vunpack.c.h.b16 %v6378
    %v7063 = vunpack.c.l.b16 %v6379
    %v7064 = vunpack.c.h.b16 %v6379
    %v7065 = vunpack.c.l.b16 %v6380
    %v7066 = vunpack.c.h.b16 %v6380
    %v7067 = vunpack.c.l.b16 %v6381
    %v7068 = vunpack.c.h.b16 %v6381
    %v7069 = vunpack.c.l.b16 %v6382
    %v7070 = vunpack.c.h.b16 %v6382
    %v7071 = vunpack.c.l.b16 %v6383
    %v7072 = vunpack.c.h.b16 %v6383
    %v7073 = vunpack.c.l.b16 %v6384
    %v7074 = vunpack.c.h.b16 %v6384
    %v7075 = vunpack.c.l.b16 %v6385
    %v7076 = vunpack.c.h.b16 %v6385
    %v7077 = vunpack.c.l.b16 %v6386
    %v7078 = vunpack.c.h.b16 %v6386
    %v7079 = vunpack.c.l.b16 %v6387
    %v7080 = vunpack.c.h.b16 %v6387
    %v7081 = vunpack.c.l.b16 %v6388
    %v7082 = vunpack.c.h.b16 %v6388
    %v7083 = vunpack.c.l.b16 %v6389
    %v7084 = vunpack.c.h.b16 %v6389
    %v7085 = vunpack.c.l.b16 %v6390
    %v7086 = vunpack.c.h.b16 %v6390
    %v7087 = vunpack.c.l.b16 %v6391
    %v7088 = vunpack.c.h.b16 %v6391
    %v7089 = vunpack.c.l.b16 %v6392
    %v7090 = vunpack.c.h.b16 %v6392
    %v7091 = vunpack.c.l.b16 %v6393
    %v7092 = vunpack.c.h.b16 %v6393
    %v7093 = vunpack.c.l.b16 %v6394
    %v7094 = vunpack.c.h.b16 %v6394
    %v7095 = vunpack.c.l.b16 %v6395
    %v7096 = vunpack.c.h.b16 %v6395
    %v7097 = vunpack.c.l.b16 %v6396
    %v7098 = vunpack.c.h.b16 %v6396
    %v7099 = vunpack.c.l.b16 %v6397
    %v7100 = vunpack.c.h.b16 %v6397
    %v7101 = vunpack.c.l.b16 %v6398
    %v7102 = vunpack.c.h.b16 %v6398
    %v7103 = vunpack.c.l.b16 %v6399
    %v7104 = vunpack.c.h.b16 %v6399
    %v7105 = vunpack.c.l.b16 %v6400
    %v7106 = vunpack.c.h.b16 %v6400
    %v7107 = vunpack.c.l.b16 %v6401
    %v7108 = vunpack.c.h.b16 %v6401
    %v7109 = vunpack.c.l.b16 %v6402
    %v7110 = vunpack.c.h.b16 %v6402
    %v7111 = vunpack.c.l.b16 %v6403
    %v7112 = vunpack.c.h.b16 %v6403
    %v7113 = vunpack.c.l.b16 %v6404
    %v7114 = vunpack.c.h.b16 %v6404
    %v7115 = vunpack.c.l.b16 %v6405
    %v7116 = vunpack.c.h.b16 %v6405
    %v7117 = vunpack.c.l.b16 %v6406
    %v7118 = vunpack.c.h.b16 %v6406
    %v7119 = vunpack.c.l.b16 %v6407
    %v7120 = vunpack.c.h.b16 %v6407
    %v7121 = vunpack.c.l.b16 %v6408
    %v7122 = vunpack.c.h.b16 %v6408
    %v7123 = vunpack.c.l.b16 %v6409
    %v7124 = vunpack.c.h.b16 %v6409
    %v7125 = vunpack.c.l.b16 %v6410
    %v7126 = vunpack.c.h.b16 %v6410
    %v7127 = vunpack.c.l.b16 %v6411
    %v7128 = vunpack.c.h.b16 %v6411
    %v7129 = vunpack.c.l.b16 %v6412
    %v7130 = vunpack.c.h.b16 %v6412
    %v7131 = vunpack.c.l.b16 %v6413
    %v7132 = vunpack.c.h.b16 %v6413
    %v7133 = vunpack.c.l.b16 %v6414
    %v7134 = vunpack.c.h.b16 %v6414
    %v7135 = vunpack.c.l.b16 %v6415
    %v7136 = vunpack.c.h.b16 %v6415
    %v7137 = vunpack.c.l.b16 %v6416
    %v7138 = vunpack.c.h.b16 %v6416
    %v7139 = vunpack.c.l.b16 %v6417
    %v7140 = vunpack.c.h.b16 %v6417
    %v7141 = vunpack.c.l.b16 %v6418
    %v7142 = vunpack.c.h.b16 %v6418
    %v7143 = vunpack.c.l.b16 %v6419
    %v7144 = vunpack.c.h.b16 %v6419
    %v7145 = vunpack.c.l.b16 %v6420
    %v7146 = vunpack.c.h.b16 %v6420
    %v7147 = vunpack.c.l.b16 %v6421
    %v7148 = vunpack.c.h.b16 %v6421
    %v7149 = vunpack.c.l.b16 %v6422
    %v7150 = vunpack.c.h.b16 %v6422
    %v7151 = vunpack.c.l.b16 %v6423
    %v7152 = vunpack.c.h.b16 %v6423
    %v7153 = vunpack.c.l.b16 %v6424
    %v7154 = vunpack.c.h.b16 %v6424
    %v7155 = vunpack.c.l.b16 %v6425
    %v7156 = vunpack.c.h.b16 %v6425
    %v7157 = vunpack.c.l.b16 %v6426
    %v7158 = vunpack.c.h.b16 %v6426
    %v7159 = vunpack.c.l.b16 %v6427
    %v7160 = vunpack.c.h.b16 %v6427
    %v7161 = vunpack.c.l.b16 %v6428
    %v7162 = vunpack.c.h.b16 %v6428
    %v7163 = vunpack.c.l.b16 %v6429
    %v7164 = vunpack.c.h.b16 %v6429
    %v7165 = vunpack.c.l.b16 %v6430
    %v7166 = vunpack.c.h.b16 %v6430
    %v7167 = vunpack.c.l.b16 %v6431
    %v7168 = vunpack.c.h.b16 %v6431
    %v7169 = vunpack.c.l.b16 %v6432
    %v7170 = vunpack.c.h.b16 %v6432
    %v7171 = vunpack.c.l.b16 %v6433
    %v7172 = vunpack.c.h.b16 %v6433
    %v7173 = vunpack.c.l.b16 %v6434
    %v7174 = vunpack.c.h.b16 %v6434
    %v7175 = vunpack.c.l.b16 %v6435
    %v7176 = vunpack.c.h.b16 %v6435
    %v7177 = vunpack.c.l.b16 %v6436
    %v7178 = vunpack.c.h.b16 %v6436
    %v7179 = vunpack.c.l.b16 %v6437
    %v7180 = vunpack.c.h.b16 %v6437
    %v7181 = vunpack.c.l.b16 %v6438
    %v7182 = vunpack.c.h.b16 %v6438
    %v7183 = vunpack.c.l.b16 %v6439
    %v7184 = vunpack.c.h.b16 %v6439
    %v7185 = vunpack.c.l.b16 %v6440
    %v7186 = vunpack.c.h.b16 %v6440
    %v7187 = vunpack.c.l.b16 %v6441
    %v7188 = vunpack.c.h.b16 %v6441
    %v7189 = vunpack.c.l.b16 %v6442
    %v7190 = vunpack.c.h.b16 %v6442
    %v7191 = vunpack.c.l.b16 %v6443
    %v7192 = vunpack.c.h.b16 %v6443
    %v7193 = vunpack.c.l.b16 %v6444
    %v7194 = vunpack.c.h.b16 %v6444
    %v7195 = vunpack.c.l.b16 %v6445
    %v7196 = vunpack.c.h.b16 %v6445
    %v7197 = vunpack.c.l.b16 %v6446
    %v7198 = vunpack.c.h.b16 %v6446
    %v7199 = vunpack.c.l.b16 %v6447
    %v7200 = vunpack.c.h.b16 %v6447
    %v7201 = vunpack.c.l.b16 %v6448
    %v7202 = vunpack.c.h.b16 %v6448
    %v7203 = vunpack.c.l.b16 %v6449
    %v7204 = vunpack.c.h.b16 %v6449
    %v7205 = vunpack.c.l.b16 %v6450
    %v7206 = vunpack.c.h.b16 %v6450
    %v7207 = vunpack.c.l.b16 %v6451
    %v7208 = vunpack.c.h.b16 %v6451
    %v7209 = vunpack.c.l.b16 %v6452
    %v7210 = vunpack.c.h.b16 %v6452
    %v7211 = vunpack.c.l.b16 %v6453
    %v7212 = vunpack.c.h.b16 %v6453
    %v7213 = vunpack.c.l.b16 %v6454
    %v7214 = vunpack.c.h.b16 %v6454
    %v7215 = vunpack.c.l.b16 %v6455
    %v7216 = vunpack.c.h.b16 %v6455
    %v7217 = vunpack.c.l.b16 %v6456
    %v7218 = vunpack.c.h.b16 %v6456
    %v7219 = vunpack.c.l.b16 %v6457
    %v7220 = vunpack.c.h.b16 %v6457
    %v7221 = vunpack.c.l.b16 %v6458
    %v7222 = vunpack.c.h.b16 %v6458
    %v7223 = vunpack.c.l.b16 %v6459
    %v7224 = vunpack.c.h.b16 %v6459
    %v7225 = vunpack.c.l.b16 %v6460
    %v7226 = vunpack.c.h.b16 %v6460
    %v7227 = vunpack.c.l.b16 %v6461
    %v7228 = vunpack.c.h.b16 %v6461
    %v7229 = vunpack.c.l.b16 %v6462
    %v7230 = vunpack.c.h.b16 %v6462
    %v7231 = vunpack.c.l.b16 %v6463
    %v7232 = vunpack.c.h.b16 %v6463
    %v7233 = vunpack.c.l.b16 %v6464
    %v7234 = vunpack.c.h.b16 %v6464
    %v7235 = vunpack.c.l.b16 %v6465
    %v7236 = vunpack.c.h.b16 %v6465
    %v7237 = vunpack.c.l.b16 %v6466
    %v7238 = vunpack.c.h.b16 %v6466
    %v7239 = vunpack.c.l.b16 %v6467
    %v7240 = vunpack.c.h.b16 %v6467
    %v7241 = vunpack.c.l.b16 %v6468
    %v7242 = vunpack.c.h.b16 %v6468
    %v7243 = vunpack.c.l.b16 %v6469
    %v7244 = vunpack.c.h.b16 %v6469
    %v7245 = vunpack.c.l.b16 %v6470
    %v7246 = vunpack.c.h.b16 %v6470
    %v7247 = vunpack.c.l.b16 %v6471
    %v7248 = vunpack.c.h.b16 %v6471
    %v7249 = vunpack.c.l.b16 %v6472
    %v7250 = vunpack.c.h.b16 %v6472
    %v7251 = vunpack.c.l.b16 %v6473
    %v7252 = vunpack.c.h.b16 %v6473
    %v7253 = vunpack.c.l.b16 %v6474
    %v7254 = vunpack.c.h.b16 %v6474
    %v7255 = vunpack.c.l.b16 %v6475
    %v7256 = vunpack.c.h.b16 %v6475
    %v7257 = vunpack.c.l.b16 %v6476
    %v7258 = vunpack.c.h.b16 %v6476
    %v7259 = vunpack.c.l.b16 %v6477
    %v7260 = vunpack.c.h.b16 %v6477
    %v7261 = vunpack.c.l.b16 %v6478
    %v7262 = vunpack.c.h.b16 %v6478
    %v7263 = vunpack.c.l.b16 %v6479
    %v7264 = vunpack.c.h.b16 %v6479
    %v7265 = vunpack.c.l.b16 %v6480
    %v7266 = vunpack.c.h.b16 %v6480
    %v7267 = vunpack.c.l.b16 %v6481
    %v7268 = vunpack.c.h.b16 %v6481
    %v7269 = vunpack.c.l.b16 %v6482
    %v7270 = vunpack.c.h.b16 %v6482
    %v7271 = vunpack.c.l.b16 %v6483
    %v7272 = vunpack.c.h.b16 %v6483
    %v7273 = vunpack.c.l.b16 %v6484
    %v7274 = vunpack.c.h.b16 %v6484
    %v7275 = vunpack.c.l.b16 %v6485
    %v7276 = vunpack.c.h.b16 %v6485
    %v7277 = vunpack.c.l.b16 %v6486
    %v7278 = vunpack.c.h.b16 %v6486
    %v7279 = vunpack.c.l.b16 %v6487
    %v7280 = vunpack.c.h.b16 %v6487
    %v7281 = vunpack.c.l.b16 %v6488
    %v7282 = vunpack.c.h.b16 %v6488
    %v7283 = vunpack.c.l.b16 %v6489
    %v7284 = vunpack.c.h.b16 %v6489
    %v7285 = vunpack.c.l.b16 %v6490
    %v7286 = vunpack.c.h.b16 %v6490
    %v7287 = vunpack.c.l.b16 %v6491
    %v7288 = vunpack.c.h.b16 %v6491
    %v7289 = vunpack.c.l.b16 %v6492
    %v7290 = vunpack.c.h.b16 %v6492
    %v7291 = vunpack.c.l.b16 %v6493
    %v7292 = vunpack.c.h.b16 %v6493
    %v7293 = vunpack.c.l.b16 %v6494
    %v7294 = vunpack.c.h.b16 %v6494
    %v7295 = vunpack.c.l.b16 %v6495
    %v7296 = vunpack.c.h.b16 %v6495
    %v7297 = vunpack.c.l.b16 %v6496
    %v7298 = vunpack.c.h.b16 %v6496
    %v7299 = vunpack.c.l.b16 %v6497
    %v7300 = vunpack.c.h.b16 %v6497
    %v7301 = vunpack.c.l.b16 %v6498
    %v7302 = vunpack.c.h.b16 %v6498
    %v7303 = vunpack.c.l.b16 %v6499
    %v7304 = vunpack.c.h.b16 %v6499
    %v7305 = vunpack.c.l.b16 %v6500
    %v7306 = vunpack.c.h.b16 %v6500
    %v7307 = vunpack.c.l.b16 %v6501
    %v7308 = vunpack.c.h.b16 %v6501
    %v7309 = vunpack.c.l.b16 %v6502
    %v7310 = vunpack.c.h.b16 %v6502
    %v7311 = vunpack.c.l.b16 %v6503
    %v7312 = vunpack.c.h.b16 %v6503
    %v7313 = vunpack.c.l.b16 %v6504
    %v7314 = vunpack.c.h.b16 %v6504
    %v7315 = vpack.c.b16 %v6811, %v6803
    %v7316 = vpack.c.b16 %v6812, %v6804
    %v7317 = vpack.c.b16 %v6813, %v6805
    %v7318 = vpack.c.b16 %v6814, %v6806
    %v7319 = vpack.c.b16 %v6815, %v6807
    %v7320 = vpack.c.b16 %v6816, %v6808
    %v7321 = vpack.c.b16 %v6817, %v6809
    %v7322 = vpack.c.b16 %v6818, %v6810
    %v7323 = vpack.c.b16 %v6827, %v6819
    %v7324 = vpack.c.b16 %v6828, %v6820
    %v7325 = vpack.c.b16 %v6829, %v6821
    %v7326 = vpack.c.b16 %v6830, %v6822
    %v7327 = vpack.c.b16 %v6831, %v6823
    %v7328 = vpack.c.b16 %v6832, %v6824
    %v7329 = vpack.c.b16 %v6833, %v6825
    %v7330 = vpack.c.b16 %v6834, %v6826
    %v7331 = vpack.c.b16 %v6843, %v6835
    %v7332 = vpack.c.b16 %v6844, %v6836
    %v7333 = vpack.c.b16 %v6845, %v6837
    %v7334 = vpack.c.b16 %v6846, %v6838
    %v7335 = vpack.c.b16 %v6847, %v6839
    %v7336 = vpack.c.b16 %v6848, %v6840
    %v7337 = vpack.c.b16 %v6849, %v6841
    %v7338 = vpack.c.b16 %v6850, %v6842
    %v7339 = vpack.c.b16 %v6859, %v6851
    %v7340 = vpack.c.b16 %v6860, %v6852
    %v7341 = vpack.c.b16 %v6861, %v6853
    %v7342 = vpack.c.b16 %v6862, %v6854
    %v7343 = vpack.c.b16 %v6863, %v6855
    %v7344 = vpack.c.b16 %v6864, %v6856
    %v7345 = vpack.c.b16 %v6865, %v6857
    %v7346 = vpack.c.b16 %v6866, %v6858
    %v7347 = vpack.c.b16 %v6875, %v6867
    %v7348 = vpack.c.b16 %v6876, %v6868
    %v7349 = vpack.c.b16 %v6877, %v6869
    %v7350 = vpack.c.b16 %v6878, %v6870
    %v7351 = vpack.c.b16 %v6879, %v6871
    %v7352 = vpack.c.b16 %v6880, %v6872
    %v7353 = vpack.c.b16 %v6881, %v6873
    %v7354 = vpack.c.b16 %v6882, %v6874
    %v7355 = vpack.c.b16 %v6891, %v6883
    %v7356 = vpack.c.b16 %v6892, %v6884
    %v7357 = vpack.c.b16 %v6893, %v6885
    %v7358 = vpack.c.b16 %v6894, %v6886
    %v7359 = vpack.c.b16 %v6895, %v6887
    %v7360 = vpack.c.b16 %v6896, %v6888
    %v7361 = vpack.c.b16 %v6897, %v6889
    %v7362 = vpack.c.b16 %v6898, %v6890
    %v7363 = vpack.c.b16 %v6907, %v6899
    %v7364 = vpack.c.b16 %v6908, %v6900
    %v7365 = vpack.c.b16 %v6909, %v6901
    %v7366 = vpack.c.b16 %v6910, %v6902
    %v7367 = vpack.c.b16 %v6911, %v6903
    %v7368 = vpack.c.b16 %v6912, %v6904
    %v7369 = vpack.c.b16 %v6913, %v6905
    %v7370 = vpack.c.b16 %v6914, %v6906
    %v7371 = vpack.c.b16 %v6923, %v6915
    %v7372 = vpack.c.b16 %v6924, %v6916
    %v7373 = vpack.c.b16 %v6925, %v6917
    %v7374 = vpack.c.b16 %v6926, %v6918
    %v7375 = vpack.c.b16 %v6927, %v6919
    %v7376 = vpack.c.b16 %v6928, %v6920
    %v7377 = vpack.c.b16 %v6929, %v6921
    %v7378 = vpack.c.b16 %v6930, %v6922
    %v7379 = vpack.c.b16 %v6939, %v6931
    %v7380 = vpack.c.b16 %v6940, %v6932
    %v7381 = vpack.c.b16 %v6941, %v6933
    %v7382 = vpack.c.b16 %v6942, %v6934
    %v7383 = vpack.c.b16 %v6943, %v6935
    %v7384 = vpack.c.b16 %v6944, %v6936
    %v7385 = vpack.c.b16 %v6945, %v6937
    %v7386 = vpack.c.b16 %v6946, %v6938
    %v7387 = vpack.c.b16 %v6955, %v6947
    %v7388 = vpack.c.b16 %v6956, %v6948
    %v7389 = vpack.c.b16 %v6957, %v6949
    %v7390 = vpack.c.b16 %v6958, %v6950
    %v7391 = vpack.c.b16 %v6959, %v6951
    %v7392 = vpack.c.b16 %v6960, %v6952
    %v7393 = vpack.c.b16 %v6961, %v6953
    %v7394 = vpack.c.b16 %v6962, %v6954
    %v7395 = vpack.c.b16 %v6971, %v6963
    %v7396 = vpack.c.b16 %v6972, %v6964
    %v7397 = vpack.c.b16 %v6973, %v6965
    %v7398 = vpack.c.b16 %v6974, %v6966
    %v7399 = vpack.c.b16 %v6975, %v6967
    %v7400 = vpack.c.b16 %v6976, %v6968
    %v7401 = vpack.c.b16 %v6977, %v6969
    %v7402 = vpack.c.b16 %v6978, %v6970
    %v7403 = vpack.c.b16 %v6987, %v6979
    %v7404 = vpack.c.b16 %v6988, %v6980
    %v7405 = vpack.c.b16 %v6989, %v6981
    %v7406 = vpack.c.b16 %v6990, %v6982
    %v7407 = vpack.c.b16 %v6991, %v6983
    %v7408 = vpack.c.b16 %v6992, %v6984
    %v7409 = vpack.c.b16 %v6993, %v6985
    %v7410 = vpack.c.b16 %v6994, %v6986
    %v7411 = vpack.c.b16 %v7003, %v6995
    %v7412 = vpack.c.b16 %v7004, %v6996
    %v7413 = vpack.c.b16 %v7005, %v6997
    %v7414 = vpack.c.b16 %v7006, %v6998
    %v7415 = vpack.c.b16 %v7007, %v6999
    %v7416 = vpack.c.b16 %v7008, %v7000
    %v7417 = vpack.c.b16 %v7009, %v7001
    %v7418 = vpack.c.b16 %v7010, %v7002
    %v7419 = vpack.c.b16 %v7019, %v7011
    %v7420 = vpack.c.b16 %v7020, %v7012
    %v7421 = vpack.c.b16 %v7021, %v7013
    %v7422 = vpack.c.b16 %v7022, %v7014
    %v7423 = vpack.c.b16 %v7023, %v7015
    %v7424 = vpack.c.b16 %v7024, %v7016
    %v7425 = vpack.c.b16 %v7025, %v7017
    %v7426 = vpack.c.b16 %v7026, %v7018
    %v7427 = vpack.c.b16 %v7035, %v7027
    %v7428 = vpack.c.b16 %v7036, %v7028
    %v7429 = vpack.c.b16 %v7037, %v7029
    %v7430 = vpack.c.b16 %v7038, %v7030
    %v7431 = vpack.c.b16 %v7039, %v7031
    %v7432 = vpack.c.b16 %v7040, %v7032
    %v7433 = vpack.c.b16 %v7041, %v7033
    %v7434 = vpack.c.b16 %v7042, %v7034
    %v7435 = vpack.c.b16 %v7051, %v7043
    %v7436 = vpack.c.b16 %v7052, %v7044
    %v7437 = vpack.c.b16 %v7053, %v7045
    %v7438 = vpack.c.b16 %v7054, %v7046
    %v7439 = vpack.c.b16 %v7055, %v7047
    %v7440 = vpack.c.b16 %v7056, %v7048
    %v7441 = vpack.c.b16 %v7057, %v7049
    %v7442 = vpack.c.b16 %v7058, %v7050
    %v7443 = vpack.c.b16 %v7067, %v7059
    %v7444 = vpack.c.b16 %v7068, %v7060
    %v7445 = vpack.c.b16 %v7069, %v7061
    %v7446 = vpack.c.b16 %v7070, %v7062
    %v7447 = vpack.c.b16 %v7071, %v7063
    %v7448 = vpack.c.b16 %v7072, %v7064
    %v7449 = vpack.c.b16 %v7073, %v7065
    %v7450 = vpack.c.b16 %v7074, %v7066
    %v7451 = vpack.c.b16 %v7083, %v7075
    %v7452 = vpack.c.b16 %v7084, %v7076
    %v7453 = vpack.c.b16 %v7085, %v7077
    %v7454 = vpack.c.b16 %v7086, %v7078
    %v7455 = vpack.c.b16 %v7087, %v7079
    %v7456 = vpack.c.b16 %v7088, %v7080
    %v7457 = vpack.c.b16 %v7089, %v7081
    %v7458 = vpack.c.b16 %v7090, %v7082
    %v7459 = vpack.c.b16 %v7099, %v7091
    %v7460 = vpack.c.b16 %v7100, %v7092
    %v7461 = vpack.c.b16 %v7101, %v7093
    %v7462 = vpack.c.b16 %v7102, %v7094
    %v7463 = vpack.c.b16 %v7103, %v7095
    %v7464 = vpack.c.b16 %v7104, %v7096
    %v7465 = vpack.c.b16 %v7105, %v7097
    %v7466 = vpack.c.b16 %v7106, %v7098
    %v7467 = vpack.c.b16 %v7115, %v7107
    %v7468 = vpack.c.b16 %v7116, %v7108
    %v7469 = vpack.c.b16 %v7117, %v7109
    %v7470 = vpack.c.b16 %v7118, %v7110
    %v7471 = vpack.c.b16 %v7119, %v7111
    %v7472 = vpack.c.b16 %v7120, %v7112
    %v7473 = vpack.c.b16 %v7121, %v7113
    %v7474 = vpack.c.b16 %v7122, %v7114
    %v7475 = vpack.c.b16 %v7131, %v7123
    %v7476 = vpack.c.b16 %v7132, %v7124
    %v7477 = vpack.c.b16 %v7133, %v7125
    %v7478 = vpack.c.b16 %v7134, %v7126
    %v7479 = vpack.c.b16 %v7135, %v7127
    %v7480 = vpack.c.b16 %v7136, %v7128
    %v7481 = vpack.c.b16 %v7137, %v7129
    %v7482 = vpack.c.b16 %v7138, %v7130
    %v7483 = vpack.c.b16 %v7147, %v7139
    %v7484 = vpack.c.b16 %v7148, %v7140
    %v7485 = vpack.c.b16 %v7149, %v7141
    %v7486 = vpack.c.b16 %v7150, %v7142
    %v7487 = vpack.c.b16 %v7151, %v7143
    %v7488 = vpack.c.b16 %v7152, %v7144
    %v7489 = vpack.c.b16 %v7153, %v7145
    %v7490 = vpack.c.b16 %v7154, %v7146
    %v7491 = vpack.c.b16 %v7163, %v7155
    %v7492 = vpack.c.b16 %v7164, %v7156
    %v7493 = vpack.c.b16 %v7165, %v7157
    %v7494 = vpack.c.b16 %v7166, %v7158
    %v7495 = vpack.c.b16 %v7167, %v7159
    %v7496 = vpack.c.b16 %v7168, %v7160
    %v7497 = vpack.c.b16 %v7169, %v7161
    %v7498 = vpack.c.b16 %v7170, %v7162
    %v7499 = vpack.c.b16 %v7179, %v7171
    %v7500 = vpack.c.b16 %v7180, %v7172
    %v7501 = vpack.c.b16 %v7181, %v7173
    %v7502 = vpack.c.b16 %v7182, %v7174
    %v7503 = vpack.c.b16 %v7183, %v7175
    %v7504 = vpack.c.b16 %v7184, %v7176
    %v7505 = vpack.c.b16 %v7185, %v7177
    %v7506 = vpack.c.b16 %v7186, %v7178
    %v7507 = vpack.c.b16 %v7195, %v7187
    %v7508 = vpack.c.b16 %v7196, %v7188
    %v7509 = vpack.c.b16 %v7197, %v7189
    %v7510 = vpack.c.b16 %v7198, %v7190
    %v7511 = vpack.c.b16 %v7199, %v7191
    %v7512 = vpack.c.b16 %v7200, %v7192
    %v7513 = vpack.c.b16 %v7201, %v7193
    %v7514 = vpack.c.b16 %v7202, %v7194
    %v7515 = vpack.c.b16 %v7211, %v7203
    %v7516 = vpack.c.b16 %v7212, %v7204
    %v7517 = vpack.c.b16 %v7213, %v7205
    %v7518 = vpack.c.b16 %v7214, %v7206
    %v7519 = vpack.c.b16 %v7215, %v7207
    %v7520 = vpack.c.b16 %v7216, %v7208
    %v7521 = vpack.c.b16 %v7217, %v7209
    %v7522 = vpack.c.b16 %v7218, %v7210
    %v7523 = vpack.c.b16 %v7227, %v7219
    %v7524 = vpack.c.b16 %v7228, %v7220
    %v7525 = vpack.c.b16 %v7229, %v7221
    %v7526 = vpack.c.b16 %v7230, %v7222
    %v7527 = vpack.c.b16 %v7231, %v7223
    %v7528 = vpack.c.b16 %v7232, %v7224
    %v7529 = vpack.c.b16 %v7233, %v7225
    %v7530 = vpack.c.b16 %v7234, %v7226
    %v7531 = vpack.c.b16 %v7243, %v7235
    %v7532 = vpack.c.b16 %v7244, %v7236
    %v7533 = vpack.c.b16 %v7245, %v7237
    %v7534 = vpack.c.b16 %v7246, %v7238
    %v7535 = vpack.c.b16 %v7247, %v7239
    %v7536 = vpack.c.b16 %v7248, %v7240
    %v7537 = vpack.c.b16 %v7249, %v7241
    %v7538 = vpack.c.b16 %v7250, %v7242
    %v7539 = vpack.c.b16 %v7259, %v7251
    %v7540 = vpack.c.b16 %v7260, %v7252
    %v7541 = vpack.c.b16 %v7261, %v7253
    %v7542 = vpack.c.b16 %v7262, %v7254
    %v7543 = vpack.c.b16 %v7263, %v7255
    %v7544 = vpack.c.b16 %v7264, %v7256
    %v7545 = vpack.c.b16 %v7265, %v7257
    %v7546 = vpack.c.b16 %v7266, %v7258
    %v7547 = vpack.c.b16 %v7275, %v7267
    %v7548 = vpack.c.b16 %v7276, %v7268
    %v7549 = vpack.c.b16 %v7277, %v7269
    %v7550 = vpack.c.b16 %v7278, %v7270
    %v7551 = vpack.c.b16 %v7279, %v7271
    %v7552 = vpack.c.b16 %v7280, %v7272
    %v7553 = vpack.c.b16 %v7281, %v7273
    %v7554 = vpack.c.b16 %v7282, %v7274
    %v7555 = vpack.c.b16 %v7291, %v7283
    %v7556 = vpack.c.b16 %v7292, %v7284
    %v7557 = vpack.c.b16 %v7293, %v7285
    %v7558 = vpack.c.b16 %v7294, %v7286
    %v7559 = vpack.c.b16 %v7295, %v7287
    %v7560 = vpack.c.b16 %v7296, %v7288
    %v7561 = vpack.c.b16 %v7297, %v7289
    %v7562 = vpack.c.b16 %v7298, %v7290
    %v7563 = vpack.c.b16 %v7307, %v7299
    %v7564 = vpack.c.b16 %v7308, %v7300
    %v7565 = vpack.c.b16 %v7309, %v7301
    %v7566 = vpack.c.b16 %v7310, %v7302
    %v7567 = vpack.c.b16 %v7311, %v7303
    %v7568 = vpack.c.b16 %v7312, %v7304
    %v7569 = vpack.c.b16 %v7313, %v7305
    %v7570 = vpack.c.b16 %v7314, %v7306
    %7827 = vmatprep.subr.bf16.mxu0 %v7316
    %7828 = vmatpush1.bf16.msra.mxu0 %v7315
    %7829 = vmatprep.subr.bf16.mxu0 %v7324
    %7830 = vmatpush1.bf16.msra.mxu0 %v7323
    %7831 = vmatprep.subr.bf16.mxu0 %v7332
    %7832 = vmatpush1.bf16.msra.mxu0 %v7331
    %7833 = vmatprep.subr.bf16.mxu0 %v7340
    %7834 = vmatpush1.bf16.msra.mxu0 %v7339
    %7835 = vmatprep.subr.bf16.mxu0 %v7348
    %7836 = vmatpush1.bf16.msra.mxu0 %v7347
    %7837 = vmatprep.subr.bf16.mxu0 %v7356
    %7838 = vmatpush1.bf16.msra.mxu0 %v7355
    %7839 = vmatprep.subr.bf16.mxu0 %v7364
    %7840 = vmatpush1.bf16.msra.mxu0 %v7363
    %7841 = vmatprep.subr.bf16.mxu0 %v7372
    %7842 = vmatpush1.bf16.msra.mxu0 %v7371
    %7843 = vmatprep.subr.bf16.mxu0 %v7380
    %7844 = vmatpush1.bf16.msra.mxu0 %v7379
    %7845 = vmatprep.subr.bf16.mxu0 %v7388
    %7846 = vmatpush1.bf16.msra.mxu0 %v7387
    %7847 = vmatprep.subr.bf16.mxu0 %v7396
    %7848 = vmatpush1.bf16.msra.mxu0 %v7395
    %7849 = vmatprep.subr.bf16.mxu0 %v7404
    %7850 = vmatpush1.bf16.msra.mxu0 %v7403
    %7851 = vmatprep.subr.bf16.mxu0 %v7412
    %7852 = vmatpush1.bf16.msra.mxu0 %v7411
    %7853 = vmatprep.subr.bf16.mxu0 %v7420
    %7854 = vmatpush1.bf16.msra.mxu0 %v7419
    %7855 = vmatprep.subr.bf16.mxu0 %v7428
    %7856 = vmatpush1.bf16.msra.mxu0 %v7427
    %7857 = vmatprep.subr.bf16.mxu0 %v7436
    %7858 = vmatpush1.bf16.msra.mxu0 %v7435
    %7859 = vmatprep.mubr.bf16.mxu0 %v6242
    %7860 = vmatmul.mubr.bf16.gmra.mrb[0].mxu0 %v6241
    %v7861 = vpop.f32.mrb[0].mxu0
    %v7862 = vadd.f32 %v6510, %v7861
    %v7863 = vpop.f32.mrb[0].mxu0
    %v7864 = vadd.f32 %v6514, %v7863
    %v7865 = vpop.f32.mrb[0].mxu0
    %v7866 = vadd.f32 %v6510, %v7865
    %v7867 = vpop.f32.mrb[0].mxu0
    %v7868 = vadd.f32 %v6514, %v7867
    %7869 = vmatprep.mubr.bf16.mxu0 %v6246
    %7870 = vmatmul.mubr.bf16.gmra.mrb[0].mxu0 %v6245
    %v7871 = vpop.f32.mrb[0].mxu0
    %v7872 = vadd.f32 %v6510, %v7871
    %v7873 = vpop.f32.mrb[0].mxu0
    %v7874 = vadd.f32 %v6514, %v7873
    %v7875 = vpop.f32.mrb[0].mxu0
    %v7876 = vpop.f32.mrb[0].mxu0
    %7877 = vdwg.mxu0
    %7878 = vmatprep.subr.bf16.mxu0 %v7444
    %7879 = vmatpush1.bf16.msra.mxu0 %v7443
    %7880 = vmatprep.subr.bf16.mxu0 %v7452
    %7881 = vmatpush1.bf16.msra.mxu0 %v7451
    %7882 = vmatprep.subr.bf16.mxu0 %v7460
    %7883 = vmatpush1.bf16.msra.mxu0 %v7459
    %7884 = vmatprep.subr.bf16.mxu0 %v7468
    %7885 = vmatpush1.bf16.msra.mxu0 %v7467
    %7886 = vmatprep.subr.bf16.mxu0 %v7476
    %7887 = vmatpush1.bf16.msra.mxu0 %v7475
    %7888 = vmatprep.subr.bf16.mxu0 %v7484
    %7889 = vmatpush1.bf16.msra.mxu0 %v7483
    %7890 = vmatprep.subr.bf16.mxu0 %v7492
    %7891 = vmatpush1.bf16.msra.mxu0 %v7491
    %7892 = vmatprep.subr.bf16.mxu0 %v7500
    %7893 = vmatpush1.bf16.msra.mxu0 %v7499
    %7894 = vmatprep.subr.bf16.mxu0 %v7508
    %7895 = vmatpush1.bf16.msra.mxu0 %v7507
    %7896 = vmatprep.subr.bf16.mxu0 %v7516
    %7897 = vmatpush1.bf16.msra.mxu0 %v7515
    %7898 = vmatprep.subr.bf16.mxu0 %v7524
    %7899 = vmatpush1.bf16.msra.mxu0 %v7523
    %7900 = vmatprep.subr.bf16.mxu0 %v7532
    %7901 = vmatpush1.bf16.msra.mxu0 %v7531
    %7902 = vmatprep.subr.bf16.mxu0 %v7540
    %7903 = vmatpush1.bf16.msra.mxu0 %v7539
    %7904 = vmatprep.subr.bf16.mxu0 %v7548
    %7905 = vmatpush1.bf16.msra.mxu0 %v7547
    %7906 = vmatprep.subr.bf16.mxu0 %v7556
    %7907 = vmatpush1.bf16.msra.mxu0 %v7555
    %7908 = vmatprep.subr.bf16.mxu0 %v7564
    %7909 = vmatpush1.bf16.msra.mxu0 %v7563
    %7910 = vmatprep.mubr.bf16.mxu0 %v6244
    %7911 = vmatmul.mubr.bf16.gmra.mrb[0].mxu0 %v6243
    %v7912 = vpop.f32.mrb[0].mxu0
    %v7913 = vadd.f32 %v7862, %v7912
    %v7914 = vpop.f32.mrb[0].mxu0
    %v7915 = vadd.f32 %v7864, %v7914
    %v7916 = vpop.f32.mrb[0].mxu0
    %v7917 = vadd.f32 %v7866, %v7916
    %v7918 = vpop.f32.mrb[0].mxu0
    %v7919 = vadd.f32 %v7868, %v7918
    %7920 = vmatprep.mubr.bf16.mxu0 %v6248
    %7921 = vmatmul.mubr.bf16.gmra.mrb[0].mxu0 %v6247
    %v7922 = vpop.f32.mrb[0].mxu0
    %v7923 = vadd.f32 %v7872, %v7922
    %v7924 = vpop.f32.mrb[0].mxu0
    %v7925 = vadd.f32 %v7874, %v7924
    %v7926 = vpop.f32.mrb[0].mxu0
    %v7927 = vpop.f32.mrb[0].mxu0
    %7928 = vdwg.mxu0
    %7929 = vmatprep.subr.bf16.mxu0 %v7318
    %7930 = vmatpush1.bf16.msra.mxu0 %v7317
    %7931 = vmatprep.subr.bf16.mxu0 %v7326
    %7932 = vmatpush1.bf16.msra.mxu0 %v7325
    %7933 = vmatprep.subr.bf16.mxu0 %v7334
    %7934 = vmatpush1.bf16.msra.mxu0 %v7333
    %7935 = vmatprep.subr.bf16.mxu0 %v7342
    %7936 = vmatpush1.bf16.msra.mxu0 %v7341
    %7937 = vmatprep.subr.bf16.mxu0 %v7350
    %7938 = vmatpush1.bf16.msra.mxu0 %v7349
    %7939 = vmatprep.subr.bf16.mxu0 %v7358
    %7940 = vmatpush1.bf16.msra.mxu0 %v7357
    %7941 = vmatprep.subr.bf16.mxu0 %v7366
    %7942 = vmatpush1.bf16.msra.mxu0 %v7365
    %7943 = vmatprep.subr.bf16.mxu0 %v7374
    %7944 = vmatpush1.bf16.msra.mxu0 %v7373
    %7945 = vmatprep.subr.bf16.mxu0 %v7382
    %7946 = vmatpush1.bf16.msra.mxu0 %v7381
    %7947 = vmatprep.subr.bf16.mxu0 %v7390
    %7948 = vmatpush1.bf16.msra.mxu0 %v7389
    %7949 = vmatprep.subr.bf16.mxu0 %v7398
    %7950 = vmatpush1.bf16.msra.mxu0 %v7397
    %7951 = vmatprep.subr.bf16.mxu0 %v7406
    %7952 = vmatpush1.bf16.msra.mxu0 %v7405
    %7953 = vmatprep.subr.bf16.mxu0 %v7414
    %7954 = vmatpush1.bf16.msra.mxu0 %v7413
    %7955 = vmatprep.subr.bf16.mxu0 %v7422
    %7956 = vmatpush1.bf16.msra.mxu0 %v7421
    %7957 = vmatprep.subr.bf16.mxu0 %v7430
    %7958 = vmatpush1.bf16.msra.mxu0 %v7429
    %7959 = vmatprep.subr.bf16.mxu0 %v7438
    %7960 = vmatpush1.bf16.msra.mxu0 %v7437
    %7961 = vmatprep.mubr.bf16.mxu0 %v6242
    %7962 = vmatmul.mubr.bf16.gmra.mrb[0].mxu0 %v6241
    %v7963 = vpop.f32.mrb[0].mxu0
    %v7964 = vadd.f32 %v6518, %v7963
    %v7965 = vpop.f32.mrb[0].mxu0
    %v7966 = vadd.f32 %v6522, %v7965
    %v7967 = vpop.f32.mrb[0].mxu0
    %v7968 = vadd.f32 %v6518, %v7967
    %v7969 = vpop.f32.mrb[0].mxu0
    %v7970 = vadd.f32 %v6522, %v7969
    %7971 = vmatprep.mubr.bf16.mxu0 %v6246
    %7972 = vmatmul.mubr.bf16.gmra.mrb[0].mxu0 %v6245
    %v7973 = vpop.f32.mrb[0].mxu0
    %v7974 = vadd.f32 %v6518, %v7973
    %v7975 = vpop.f32.mrb[0].mxu0
    %v7976 = vadd.f32 %v6522, %v7975
    %v7977 = vpop.f32.mrb[0].mxu0
    %v7978 = vpop.f32.mrb[0].mxu0
    %7979 = vdwg.mxu0
    %7980 = vmatprep.subr.bf16.mxu0 %v7446
    %7981 = vmatpush1.bf16.msra.mxu0 %v7445
    %7982 = vmatprep.subr.bf16.mxu0 %v7454
    %7983 = vmatpush1.bf16.msra.mxu0 %v7453
    %7984 = vmatprep.subr.bf16.mxu0 %v7462
    %7985 = vmatpush1.bf16.msra.mxu0 %v7461
    %7986 = vmatprep.subr.bf16.mxu0 %v7470
    %7987 = vmatpush1.bf16.msra.mxu0 %v7469
    %7988 = vmatprep.subr.bf16.mxu0 %v7478
    %7989 = vmatpush1.bf16.msra.mxu0 %v7477
    %7990 = vmatprep.subr.bf16.mxu0 %v7486
    %7991 = vmatpush1.bf16.msra.mxu0 %v7485
    %7992 = vmatprep.subr.bf16.mxu0 %v7494
    %7993 = vmatpush1.bf16.msra.mxu0 %v7493
    %7994 = vmatprep.subr.bf16.mxu0 %v7502
    %7995 = vmatpush1.bf16.msra.mxu0 %v7501
    %7996 = vmatprep.subr.bf16.mxu0 %v7510
    %7997 = vmatpush1.bf16.msra.mxu0 %v7509
    %7998 = vmatprep.subr.bf16.mxu0 %v7518
    %7999 = vmatpush1.bf16.msra.mxu0 %v7517
    %8000 = vmatprep.subr.bf16.mxu0 %v7526
    %8001 = vmatpush1.bf16.msra.mxu0 %v7525
    %8002 = vmatprep.subr.bf16.mxu0 %v7534
    %8003 = vmatpush1.bf16.msra.mxu0 %v7533
    %8004 = vmatprep.subr.bf16.mxu0 %v7542
    %8005 = vmatpush1.bf16.msra.mxu0 %v7541
    %8006 = vmatprep.subr.bf16.mxu0 %v7550
    %8007 = vmatpush1.bf16.msra.mxu0 %v7549
    %8008 = vmatprep.subr.bf16.mxu0 %v7558
    %8009 = vmatpush1.bf16.msra.mxu0 %v7557
    %8010 = vmatprep.subr.bf16.mxu0 %v7566
    %8011 = vmatpush1.bf16.msra.mxu0 %v7565
    %8012 = vmatprep.mubr.bf16.mxu0 %v6244
    %8013 = vmatmul.mubr.bf16.gmra.mrb[0].mxu0 %v6243
    %v8014 = vpop.f32.mrb[0].mxu0
    %v8015 = vadd.f32 %v7964, %v8014
    %v8016 = vpop.f32.mrb[0].mxu0
    %v8017 = vadd.f32 %v7966, %v8016
    %v8018 = vpop.f32.mrb[0].mxu0
    %v8019 = vadd.f32 %v7968, %v8018
    %v8020 = vpop.f32.mrb[0].mxu0
    %v8021 = vadd.f32 %v7970, %v8020
    %8022 = vmatprep.mubr.bf16.mxu0 %v6248
    %8023 = vmatmul.mubr.bf16.gmra.mrb[0].mxu0 %v6247
    %v8024 = vpop.f32.mrb[0].mxu0
    %v8025 = vadd.f32 %v7974, %v8024
    %v8026 = vpop.f32.mrb[0].mxu0
    %v8027 = vadd.f32 %v7976, %v8026
    %v8028 = vpop.f32.mrb[0].mxu0
    %v8029 = vpop.f32.mrb[0].mxu0
    %8030 = vdwg.mxu0
    %8031 = vmatprep.subr.bf16.mxu0 %v7320
    %8032 = vmatpush1.bf16.msra.mxu0 %v7319
    %8033 = vmatprep.subr.bf16.mxu0 %v7328
    %8034 = vmatpush1.bf16.msra.mxu0 %v7327
    %8035 = vmatprep.subr.bf16.mxu0 %v7336
    %8036 = vmatpush1.bf16.msra.mxu0 %v7335
    %8037 = vmatprep.subr.bf16.mxu0 %v7344
    %8038 = vmatpush1.bf16.msra.mxu0 %v7343
    %8039 = vmatprep.subr.bf16.mxu0 %v7352
    %8040 = vmatpush1.bf16.msra.mxu0 %v7351
    %8041 = vmatprep.subr.bf16.mxu0 %v7360
    %8042 = vmatpush1.bf16.msra.mxu0 %v7359
    %8043 = vmatprep.subr.bf16.mxu0 %v7368
    %8044 = vmatpush1.bf16.msra.mxu0 %v7367
    %8045 = vmatprep.subr.bf16.mxu0 %v7376
    %8046 = vmatpush1.bf16.msra.mxu0 %v7375
    %8047 = vmatprep.subr.bf16.mxu0 %v7384
    %8048 = vmatpush1.bf16.msra.mxu0 %v7383
    %8049 = vmatprep.subr.bf16.mxu0 %v7392
    %8050 = vmatpush1.bf16.msra.mxu0 %v7391
    %8051 = vmatprep.subr.bf16.mxu0 %v7400
    %8052 = vmatpush1.bf16.msra.mxu0 %v7399
    %8053 = vmatprep.subr.bf16.mxu0 %v7408
    %8054 = vmatpush1.bf16.msra.mxu0 %v7407
    %8055 = vmatprep.subr.bf16.mxu0 %v7416
    %8056 = vmatpush1.bf16.msra.mxu0 %v7415
    %8057 = vmatprep.subr.bf16.mxu0 %v7424
    %8058 = vmatpush1.bf16.msra.mxu0 %v7423
    %8059 = vmatprep.subr.bf16.mxu0 %v7432
    %8060 = vmatpush1.bf16.msra.mxu0 %v7431
    %8061 = vmatprep.subr.bf16.mxu0 %v7440
    %8062 = vmatpush1.bf16.msra.mxu0 %v7439
    %8063 = vmatprep.mubr.bf16.mxu0 %v6242
    %8064 = vmatmul.mubr.bf16.gmra.mrb[0].mxu0 %v6241
    %v8065 = vpop.f32.mrb[0].mxu0
    %v8066 = vadd.f32 %v6526, %v8065
    %v8067 = vpop.f32.mrb[0].mxu0
    %v8068 = vadd.f32 %v6530, %v8067
    %v8069 = vpop.f32.mrb[0].mxu0
    %v8070 = vadd.f32 %v6526, %v8069
    %v8071 = vpop.f32.mrb[0].mxu0
    %v8072 = vadd.f32 %v6530, %v8071
    %8073 = vmatprep.mubr.bf16.mxu0 %v6246
    %8074 = vmatmul.mubr.bf16.gmra.mrb[0].mxu0 %v6245
    %v8075 = vpop.f32.mrb[0].mxu0
    %v8076 = vadd.f32 %v6526, %v8075
    %v8077 = vpop.f32.mrb[0].mxu0
    %v8078 = vadd.f32 %v6530, %v8077
    %v8079 = vpop.f32.mrb[0].mxu0
    %v8080 = vpop.f32.mrb[0].mxu0
    %8081 = vdwg.mxu0
    %8082 = vmatprep.subr.bf16.mxu0 %v7448
    %8083 = vmatpush1.bf16.msra.mxu0 %v7447
    %8084 = vmatprep.subr.bf16.mxu0 %v7456
    %8085 = vmatpush1.bf16.msra.mxu0 %v7455
    %8086 = vmatprep.subr.bf16.mxu0 %v7464
    %8087 = vmatpush1.bf16.msra.mxu0 %v7463
    %8088 = vmatprep.subr.bf16.mxu0 %v7472
    %8089 = vmatpush1.bf16.msra.mxu0 %v7471
    %8090 = vmatprep.subr.bf16.mxu0 %v7480
    %8091 = vmatpush1.bf16.msra.mxu0 %v7479
    %8092 = vmatprep.subr.bf16.mxu0 %v7488
    %8093 = vmatpush1.bf16.msra.mxu0 %v7487
    %8094 = vmatprep.subr.bf16.mxu0 %v7496
    %8095 = vmatpush1.bf16.msra.mxu0 %v7495
    %8096 = vmatprep.subr.bf16.mxu0 %v7504
    %8097 = vmatpush1.bf16.msra.mxu0 %v7503
    %8098 = vmatprep.subr.bf16.mxu0 %v7512
    %8099 = vmatpush1.bf16.msra.mxu0 %v7511
    %8100 = vmatprep.subr.bf16.mxu0 %v7520
    %8101 = vmatpush1.bf16.msra.mxu0 %v7519
    %8102 = vmatprep.subr.bf16.mxu0 %v7528
    %8103 = vmatpush1.bf16.msra.mxu0 %v7527
    %8104 = vmatprep.subr.bf16.mxu0 %v7536
    %8105 = vmatpush1.bf16.msra.mxu0 %v7535
    %8106 = vmatprep.subr.bf16.mxu0 %v7544
    %8107 = vmatpush1.bf16.msra.mxu0 %v7543
    %8108 = vmatprep.subr.bf16.mxu0 %v7552
    %8109 = vmatpush1.bf16.msra.mxu0 %v7551
    %8110 = vmatprep.subr.bf16.mxu0 %v7560
    %8111 = vmatpush1.bf16.msra.mxu0 %v7559
    %8112 = vmatprep.subr.bf16.mxu0 %v7568
    %8113 = vmatpush1.bf16.msra.mxu0 %v7567
    %8114 = vmatprep.mubr.bf16.mxu0 %v6244
    %8115 = vmatmul.mubr.bf16.gmra.mrb[0].mxu0 %v6243
    %v8116 = vpop.f32.mrb[0].mxu0
    %v8117 = vadd.f32 %v8066, %v8116
    %v8118 = vpop.f32.mrb[0].mxu0
    %v8119 = vadd.f32 %v8068, %v8118
    %v8120 = vpop.f32.mrb[0].mxu0
    %v8121 = vadd.f32 %v8070, %v8120
    %v8122 = vpop.f32.mrb[0].mxu0
    %v8123 = vadd.f32 %v8072, %v8122
    %8124 = vmatprep.mubr.bf16.mxu0 %v6248
    %8125 = vmatmul.mubr.bf16.gmra.mrb[0].mxu0 %v6247
    %v8126 = vpop.f32.mrb[0].mxu0
    %v8127 = vadd.f32 %v8076, %v8126
    %v8128 = vpop.f32.mrb[0].mxu0
    %v8129 = vadd.f32 %v8078, %v8128
    %v8130 = vpop.f32.mrb[0].mxu0
    %v8131 = vpop.f32.mrb[0].mxu0
    %8132 = vdwg.mxu0
    %8133 = vmatprep.subr.bf16.mxu0 %v7322
    %8134 = vmatpush1.bf16.msra.mxu0 %v7321
    %8135 = vmatprep.subr.bf16.mxu0 %v7330
    %8136 = vmatpush1.bf16.msra.mxu0 %v7329
    %8137 = vmatprep.subr.bf16.mxu0 %v7338
    %8138 = vmatpush1.bf16.msra.mxu0 %v7337
    %8139 = vmatprep.subr.bf16.mxu0 %v7346
    %8140 = vmatpush1.bf16.msra.mxu0 %v7345
    %8141 = vmatprep.subr.bf16.mxu0 %v7354
    %8142 = vmatpush1.bf16.msra.mxu0 %v7353
    %8143 = vmatprep.subr.bf16.mxu0 %v7362
    %8144 = vmatpush1.bf16.msra.mxu0 %v7361
    %8145 = vmatprep.subr.bf16.mxu0 %v7370
    %8146 = vmatpush1.bf16.msra.mxu0 %v7369
    %8147 = vmatprep.subr.bf16.mxu0 %v7378
    %8148 = vmatpush1.bf16.msra.mxu0 %v7377
    %8149 = vmatprep.subr.bf16.mxu0 %v7386
    %8150 = vmatpush1.bf16.msra.mxu0 %v7385
    %8151 = vmatprep.subr.bf16.mxu0 %v7394
    %8152 = vmatpush1.bf16.msra.mxu0 %v7393
    %8153 = vmatprep.subr.bf16.mxu0 %v7402
    %8154 = vmatpush1.bf16.msra.mxu0 %v7401
    %8155 = vmatprep.subr.bf16.mxu0 %v7410
    %8156 = vmatpush1.bf16.msra.mxu0 %v7409
    %8157 = vmatprep.subr.bf16.mxu0 %v7418
    %8158 = vmatpush1.bf16.msra.mxu0 %v7417
    %8159 = vmatprep.subr.bf16.mxu0 %v7426
    %8160 = vmatpush1.bf16.msra.mxu0 %v7425
    %8161 = vmatprep.subr.bf16.mxu0 %v7434
    %8162 = vmatpush1.bf16.msra.mxu0 %v7433
    %8163 = vmatprep.subr.bf16.mxu0 %v7442
    %8164 = vmatpush1.bf16.msra.mxu0 %v7441
    %8165 = vmatprep.mubr.bf16.mxu0 %v6242
    %8166 = vmatmul.mubr.bf16.gmra.mrb[0].mxu0 %v6241
    %v8167 = vpop.f32.mrb[0].mxu0
    %v8168 = vadd.f32 %v6534, %v8167
    %v8169 = vpop.f32.mrb[0].mxu0
    %v8170 = vadd.f32 %v6538, %v8169
    %v8171 = vpop.f32.mrb[0].mxu0
    %v8172 = vadd.f32 %v6534, %v8171
    %v8173 = vpop.f32.mrb[0].mxu0
    %v8174 = vadd.f32 %v6538, %v8173
    %8175 = vmatprep.mubr.bf16.mxu0 %v6246
    %8176 = vmatmul.mubr.bf16.gmra.mrb[0].mxu0 %v6245
    %v8177 = vpop.f32.mrb[0].mxu0
    %v8178 = vadd.f32 %v6534, %v8177
    %v8179 = vpop.f32.mrb[0].mxu0
    %v8180 = vadd.f32 %v6538, %v8179
    %v8181 = vpop.f32.mrb[0].mxu0
    %v8182 = vpop.f32.mrb[0].mxu0
    %8183 = vdwg.mxu0
    %8184 = vmatprep.subr.bf16.mxu0 %v7450
    %8185 = vmatpush1.bf16.msra.mxu0 %v7449
    %8186 = vmatprep.subr.bf16.mxu0 %v7458
    %8187 = vmatpush1.bf16.msra.mxu0 %v7457
    %8188 = vmatprep.subr.bf16.mxu0 %v7466
    %8189 = vmatpush1.bf16.msra.mxu0 %v7465
    %8190 = vmatprep.subr.bf16.mxu0 %v7474
    %8191 = vmatpush1.bf16.msra.mxu0 %v7473
    %8192 = vmatprep.subr.bf16.mxu0 %v7482
    %8193 = vmatpush1.bf16.msra.mxu0 %v7481
    %8194 = vmatprep.subr.bf16.mxu0 %v7490
    %8195 = vmatpush1.bf16.msra.mxu0 %v7489
    %8196 = vmatprep.subr.bf16.mxu0 %v7498
    %8197 = vmatpush1.bf16.msra.mxu0 %v7497
    %8198 = vmatprep.subr.bf16.mxu0 %v7506
    %8199 = vmatpush1.bf16.msra.mxu0 %v7505
    %8200 = vmatprep.subr.bf16.mxu0 %v7514
    %8201 = vmatpush1.bf16.msra.mxu0 %v7513
    %8202 = vmatprep.subr.bf16.mxu0 %v7522
    %8203 = vmatpush1.bf16.msra.mxu0 %v7521
    %8204 = vmatprep.subr.bf16.mxu0 %v7530
    %8205 = vmatpush1.bf16.msra.mxu0 %v7529
    %8206 = vmatprep.subr.bf16.mxu0 %v7538
    %8207 = vmatpush1.bf16.msra.mxu0 %v7537
    %8208 = vmatprep.subr.bf16.mxu0 %v7546
    %8209 = vmatpush1.bf16.msra.mxu0 %v7545
    %8210 = vmatprep.subr.bf16.mxu0 %v7554
    %8211 = vmatpush1.bf16.msra.mxu0 %v7553
    %8212 = vmatprep.subr.bf16.mxu0 %v7562
    %8213 = vmatpush1.bf16.msra.mxu0 %v7561
    %8214 = vmatprep.subr.bf16.mxu0 %v7570
    %8215 = vmatpush1.bf16.msra.mxu0 %v7569
    %8216 = vmatprep.mubr.bf16.mxu0 %v6244
    %8217 = vmatmul.mubr.bf16.gmra.mrb[0].mxu0 %v6243
    %v8218 = vpop.f32.mrb[0].mxu0
    %v8219 = vadd.f32 %v8168, %v8218
    %v8220 = vpop.f32.mrb[0].mxu0
    %v8221 = vadd.f32 %v8170, %v8220
    %v8222 = vpop.f32.mrb[0].mxu0
    %v8223 = vadd.f32 %v8172, %v8222
    %v8224 = vpop.f32.mrb[0].mxu0
    %v8225 = vadd.f32 %v8174, %v8224
    %8226 = vmatprep.mubr.bf16.mxu0 %v6248
    %8227 = vmatmul.mubr.bf16.gmra.mrb[0].mxu0 %v6247
    %v8228 = vpop.f32.mrb[0].mxu0
    %v8229 = vadd.f32 %v8178, %v8228
    %v8230 = vpop.f32.mrb[0].mxu0
    %v8231 = vadd.f32 %v8180, %v8230
    %v8232 = vpop.f32.mrb[0].mxu0
    %v8233 = vpop.f32.mrb[0].mxu0
    %8234 = vdwg.mxu0
    %v8235 = vmax.f32 %v7913, 0.0
    %v8236 = vmax.f32 %v7915, 0.0
    %v8237 = vmax.f32 %v8015, 0.0
    %v8238 = vmax.f32 %v8017, 0.0
    %v8239 = vmax.f32 %v8117, 0.0
    %v8240 = vmax.f32 %v8119, 0.0
    %v8241 = vmax.f32 %v8219, 0.0
    %v8242 = vmax.f32 %v8221, 0.0
    %v8243 = vmax.f32 %v7917, 0.0
    %v8244 = vmax.f32 %v7919, 0.0
    %v8245 = vmax.f32 %v8019, 0.0
    %v8246 = vmax.f32 %v8021, 0.0
    %v8247 = vmax.f32 %v8121, 0.0
    %v8248 = vmax.f32 %v8123, 0.0
    %v8249 = vmax.f32 %v8223, 0.0
    %v8250 = vmax.f32 %v8225, 0.0
    %v8251 = vmax.f32 %v7923, 0.0
    %v8252 = vmax.f32 %v7925, 0.0
    %v8253 = vmax.f32 %v8025, 0.0
    %v8254 = vmax.f32 %v8027, 0.0
    %v8255 = vmax.f32 %v8127, 0.0
    %v8256 = vmax.f32 %v8129, 0.0
    %v8257 = vmax.f32 %v8229, 0.0
    %v8258 = vmax.f32 %v8231, 0.0
    %8259 = vst [vmem:[#allocation3] sm:$0xff] %v8235
    %8260 = vst [vmem:[#allocation3 + $0x8] sm:$0xff] %v8236
    %8261 = vst [vmem:[#allocation3 + $0x10] sm:$0xff] %v8243
    %8262 = vst [vmem:[#allocation3 + $0x18] sm:$0xff] %v8244
    %8263 = vst [vmem:[#allocation3 + $0x20] sm:$0xff] %v8251
    %8264 = vst [vmem:[#allocation3 + $0x28] sm:$0xff] %v8252
    %8265 = vst [vmem:[#allocation3 + $0x30] sm:$0xff] %v8237
    %8266 = vst [vmem:[#allocation3 + $0x38] sm:$0xff] %v8238
    %8267 = vst [vmem:[#allocation3 + $0x40] sm:$0xff] %v8245
    %8268 = vst [vmem:[#allocation3 + $0x48] sm:$0xff] %v8246
    %8269 = vst [vmem:[#allocation3 + $0x50] sm:$0xff] %v8253
    %8270 = vst [vmem:[#allocation3 + $0x58] sm:$0xff] %v8254
    %8271 = vst [vmem:[#allocation3 + $0x60] sm:$0xff] %v8239
    %8272 = vst [vmem:[#allocation3 + $0x68] sm:$0xff] %v8240
    %8273 = vst [vmem:[#allocation3 + $0x70] sm:$0xff] %v8247
    %8274 = vst [vmem:[#allocation3 + $0x78] sm:$0xff] %v8248
    %8275 = vst [vmem:[#allocation3 + $0x80] sm:$0xff] %v8255
    %8276 = vst [vmem:[#allocation3 + $0x88] sm:$0xff] %v8256
    %8277 = vst [vmem:[#allocation3 + $0x90] sm:$0xff] %v8241
    %8278 = vst [vmem:[#allocation3 + $0x98] sm:$0xff] %v8242
    %8279 = vst [vmem:[#allocation3 + $0xa0] sm:$0xff] %v8249
    %8280 = vst [vmem:[#allocation3 + $0xa8] sm:$0xff] %v8250
    %8281 = vst [vmem:[#allocation3 + $0xb0] sm:$0xff] %v8257
    %8282 = vst [vmem:[#allocation3 + $0xb8] sm:$0xff] %v8258
    %v8283 = vld [vmem:[#allocation3] sm:$0xff]
    %v8284 = vld [vmem:[#allocation3 + $0x8] sm:$0xff]
    %v8285 = vld [vmem:[#allocation3 + $0x10] sm:$0xff]
    %v8286 = vld [vmem:[#allocation3 + $0x18] sm:$0xff]
    %v8287 = vld [vmem:[#allocation3 + $0x20] sm:$0xff]
    %v8288 = vld [vmem:[#allocation3 + $0x28] sm:$0xff]
    %v8289 = vld [vmem:[#allocation3 + $0x30] sm:$0xff]
    %v8290 = vld [vmem:[#allocation3 + $0x38] sm:$0xff]
    %v8291 = vld [vmem:[#allocation3 + $0x40] sm:$0xff]
    %v8292 = vld [vmem:[#allocation3 + $0x48] sm:$0xff]
    %v8293 = vld [vmem:[#allocation3 + $0x50] sm:$0xff]
    %v8294 = vld [vmem:[#allocation3 + $0x58] sm:$0xff]
    %v8295 = vld [vmem:[#allocation3 + $0x60] sm:$0xff]
    %v8296 = vld [vmem:[#allocation3 + $0x68] sm:$0xff]
    %v8297 = vld [vmem:[#allocation3 + $0x70] sm:$0xff]
    %v8298 = vld [vmem:[#allocation3 + $0x78] sm:$0xff]
    %v8299 = vld [vmem:[#allocation3 + $0x80] sm:$0xff]
    %v8300 = vld [vmem:[#allocation3 + $0x88] sm:$0xff]
    %v8301 = vld [vmem:[#allocation3 + $0x90] sm:$0xff]
    %v8302 = vld [vmem:[#allocation3 + $0x98] sm:$0xff]
    %v8303 = vld [vmem:[#allocation3 + $0xa0] sm:$0xff]
    %v8304 = vld [vmem:[#allocation3 + $0xa8] sm:$0xff]
    %v8305 = vld [vmem:[#allocation3 + $0xb0] sm:$0xff]
    %v8306 = vld [vmem:[#allocation3 + $0xb8] sm:$0xff]
    %v8307 = vpack.c.bf16 %v8285, %v8283
    %v8308 = vpack.c.bf16 %v8286, %v8284
    %v8309 = vpack.c.bf16 %v8289, %v8287
    %v8310 = vpack.c.bf16 %v8290, %v8288
    %v8311 = vpack.c.bf16 %v8293, %v8291
    %v8312 = vpack.c.bf16 %v8294, %v8292
    %v8313 = vpack.c.bf16 %v8297, %v8295
    %v8314 = vpack.c.bf16 %v8298, %v8296
    %v8315 = vpack.c.bf16 %v8301, %v8299
    %v8316 = vpack.c.bf16 %v8302, %v8300
    %v8317 = vpack.c.bf16 %v8305, %v8303
    %v8318 = vpack.c.bf16 %v8306, %v8304
    %v8319 = vld [vmem:[#allocation15] sm:$0xff]
    %v8320 = vld [vmem:[#allocation15 + $0x8] sm:$0xff]
    %v8321 = vld [vmem:[#allocation15 + $0x10] sm:$0xff]
    %v8322 = vld [vmem:[#allocation15 + $0x18] sm:$0xff]
    %v8323 = vld [vmem:[#allocation15 + $0x20] sm:$0xff]
    %v8324 = vld [vmem:[#allocation15 + $0x28] sm:$0xff]
    %v8325 = vld [vmem:[#allocation15 + $0x30] sm:$0xff]
    %v8326 = vld [vmem:[#allocation15 + $0x38] sm:$0xff]
    %v8327 = vld [vmem:[#allocation15 + $0x40] sm:$0xff]
    %v8328 = vld [vmem:[#allocation15 + $0x48] sm:$0xff]
    %v8329 = vld [vmem:[#allocation15 + $0x50] sm:$0xff]
    %v8330 = vld [vmem:[#allocation15 + $0x58] sm:$0xff]
    %v8331 = vld [vmem:[#allocation15 + $0x60] sm:$0xff]
    %v8332 = vld [vmem:[#allocation15 + $0x68] sm:$0xff]
    %v8333 = vld [vmem:[#allocation15 + $0x70] sm:$0xff]
    %v8334 = vld [vmem:[#allocation15 + $0x78] sm:$0xff]
    %v8335 = vld [vmem:[#allocation15 + $0x80] sm:$0xff]
    %v8336 = vld [vmem:[#allocation15 + $0x88] sm:$0xff]
    %v8337 = vld [vmem:[#allocation15 + $0x90] sm:$0xff]
    %v8338 = vld [vmem:[#allocation15 + $0x98] sm:$0xff]
    %v8339 = vld [vmem:[#allocation15 + $0xa0] sm:$0xff]
    %v8340 = vld [vmem:[#allocation15 + $0xa8] sm:$0xff]
    %v8341 = vld [vmem:[#allocation15 + $0xb0] sm:$0xff]
    %v8342 = vld [vmem:[#allocation15 + $0xb8] sm:$0xff]
    %v8343 = vld [vmem:[#allocation15 + $0xc0] sm:$0xff]
    %v8344 = vld [vmem:[#allocation15 + $0xc8] sm:$0xff]
    %v8345 = vld [vmem:[#allocation15 + $0xd0] sm:$0xff]
    %v8346 = vld [vmem:[#allocation15 + $0xd8] sm:$0xff]
    %v8347 = vld [vmem:[#allocation15 + $0xe0] sm:$0xff]
    %v8348 = vld [vmem:[#allocation15 + $0xe8] sm:$0xff]
    %v8349 = vld [vmem:[#allocation15 + $0xf0] sm:$0xff]
    %v8350 = vld [vmem:[#allocation15 + $0xf8] sm:$0xff]
    %v8351 = vld [vmem:[#allocation15 + $0x100] sm:$0xff]
    %v8352 = vld [vmem:[#allocation15 + $0x108] sm:$0xff]
    %v8353 = vld [vmem:[#allocation15 + $0x110] sm:$0xff]
    %v8354 = vld [vmem:[#allocation15 + $0x118] sm:$0xff]
    %v8355 = vld [vmem:[#allocation15 + $0x120] sm:$0xff]
    %v8356 = vld [vmem:[#allocation15 + $0x128] sm:$0xff]
    %v8357 = vld [vmem:[#allocation15 + $0x130] sm:$0xff]
    %v8358 = vld [vmem:[#allocation15 + $0x138] sm:$0xff]
    %v8359 = vld [vmem:[#allocation15 + $0x140] sm:$0xff]
    %v8360 = vld [vmem:[#allocation15 + $0x148] sm:$0xff]
    %v8361 = vld [vmem:[#allocation15 + $0x150] sm:$0xff]
    %v8362 = vld [vmem:[#allocation15 + $0x158] sm:$0xff]
    %v8363 = vld [vmem:[#allocation15 + $0x160] sm:$0xff]
    %v8364 = vld [vmem:[#allocation15 + $0x168] sm:$0xff]
    %v8365 = vld [vmem:[#allocation15 + $0x170] sm:$0xff]
    %v8366 = vld [vmem:[#allocation15 + $0x178] sm:$0xff]
    %v8367 = vld [vmem:[#allocation15 + $0x180] sm:$0xff]
    %v8368 = vld [vmem:[#allocation15 + $0x188] sm:$0xff]
    %v8369 = vld [vmem:[#allocation15 + $0x190] sm:$0xff]
    %v8370 = vld [vmem:[#allocation15 + $0x198] sm:$0xff]
    %v8371 = vld [vmem:[#allocation15 + $0x1a0] sm:$0xff]
    %v8372 = vld [vmem:[#allocation15 + $0x1a8] sm:$0xff]
    %v8373 = vld [vmem:[#allocation15 + $0x1b0] sm:$0xff]
    %v8374 = vld [vmem:[#allocation15 + $0x1b8] sm:$0xff]
    %v8375 = vld [vmem:[#allocation15 + $0x1c0] sm:$0xff]
    %v8376 = vld [vmem:[#allocation15 + $0x1c8] sm:$0xff]
    %v8377 = vld [vmem:[#allocation15 + $0x1d0] sm:$0xff]
    %v8378 = vld [vmem:[#allocation15 + $0x1d8] sm:$0xff]
    %v8379 = vld [vmem:[#allocation15 + $0x1e0] sm:$0xff]
    %v8380 = vld [vmem:[#allocation15 + $0x1e8] sm:$0xff]
    %v8381 = vld [vmem:[#allocation15 + $0x1f0] sm:$0xff]
    %v8382 = vld [vmem:[#allocation15 + $0x1f8] sm:$0xff]
    %v8383 = vld [vmem:[#allocation17] sm:$0xf]
    %v8385 = vlaneseq
    %v8386 = vshrl.u32 %v8385, 7
    %v8387 = vsub.s32 0, %v8386
    %v8388 = vrot.slane %v8383, %v8387
    %v8389 = vlaneseq
    %v8390 = vshrl.u32 %v8389, 7
    %v8391 = vsub.s32 1, %v8390
    %v8392 = vrot.slane %v8383, %v8391
    %v8393 = vlaneseq
    %v8394 = vshrl.u32 %v8393, 7
    %v8395 = vsub.s32 2, %v8394
    %v8396 = vrot.slane %v8383, %v8395
    %v8397 = vlaneseq
    %v8398 = vshrl.u32 %v8397, 7
    %v8399 = vsub.s32 3, %v8398
    %v8400 = vrot.slane %v8383, %v8399
    %v8469 = vunpack.c.l.b16 %v8319
    %v8470 = vunpack.c.h.b16 %v8319
    %v8471 = vunpack.c.l.b16 %v8320
    %v8472 = vunpack.c.h.b16 %v8320
    %v8473 = vunpack.c.l.b16 %v8321
    %v8474 = vunpack.c.h.b16 %v8321
    %v8475 = vunpack.c.l.b16 %v8322
    %v8476 = vunpack.c.h.b16 %v8322
    %v8477 = vunpack.c.l.b16 %v8323
    %v8478 = vunpack.c.h.b16 %v8323
    %v8479 = vunpack.c.l.b16 %v8324
    %v8480 = vunpack.c.h.b16 %v8324
    %v8481 = vunpack.c.l.b16 %v8325
    %v8482 = vunpack.c.h.b16 %v8325
    %v8483 = vunpack.c.l.b16 %v8326
    %v8484 = vunpack.c.h.b16 %v8326
    %v8485 = vunpack.c.l.b16 %v8327
    %v8486 = vunpack.c.h.b16 %v8327
    %v8487 = vunpack.c.l.b16 %v8328
    %v8488 = vunpack.c.h.b16 %v8328
    %v8489 = vunpack.c.l.b16 %v8329
    %v8490 = vunpack.c.h.b16 %v8329
    %v8491 = vunpack.c.l.b16 %v8330
    %v8492 = vunpack.c.h.b16 %v8330
    %v8493 = vunpack.c.l.b16 %v8331
    %v8494 = vunpack.c.h.b16 %v8331
    %v8495 = vunpack.c.l.b16 %v8332
    %v8496 = vunpack.c.h.b16 %v8332
    %v8497 = vunpack.c.l.b16 %v8333
    %v8498 = vunpack.c.h.b16 %v8333
    %v8499 = vunpack.c.l.b16 %v8334
    %v8500 = vunpack.c.h.b16 %v8334
    %v8501 = vunpack.c.l.b16 %v8335
    %v8502 = vunpack.c.h.b16 %v8335
    %v8503 = vunpack.c.l.b16 %v8336
    %v8504 = vunpack.c.h.b16 %v8336
    %v8505 = vunpack.c.l.b16 %v8337
    %v8506 = vunpack.c.h.b16 %v8337
    %v8507 = vunpack.c.l.b16 %v8338
    %v8508 = vunpack.c.h.b16 %v8338
    %v8509 = vunpack.c.l.b16 %v8339
    %v8510 = vunpack.c.h.b16 %v8339
    %v8511 = vunpack.c.l.b16 %v8340
    %v8512 = vunpack.c.h.b16 %v8340
    %v8513 = vunpack.c.l.b16 %v8341
    %v8514 = vunpack.c.h.b16 %v8341
    %v8515 = vunpack.c.l.b16 %v8342
    %v8516 = vunpack.c.h.b16 %v8342
    %v8517 = vunpack.c.l.b16 %v8343
    %v8518 = vunpack.c.h.b16 %v8343
    %v8519 = vunpack.c.l.b16 %v8344
    %v8520 = vunpack.c.h.b16 %v8344
    %v8521 = vunpack.c.l.b16 %v8345
    %v8522 = vunpack.c.h.b16 %v8345
    %v8523 = vunpack.c.l.b16 %v8346
    %v8524 = vunpack.c.h.b16 %v8346
    %v8525 = vunpack.c.l.b16 %v8347
    %v8526 = vunpack.c.h.b16 %v8347
    %v8527 = vunpack.c.l.b16 %v8348
    %v8528 = vunpack.c.h.b16 %v8348
    %v8529 = vunpack.c.l.b16 %v8349
    %v8530 = vunpack.c.h.b16 %v8349
    %v8531 = vunpack.c.l.b16 %v8350
    %v8532 = vunpack.c.h.b16 %v8350
    %v8533 = vunpack.c.l.b16 %v8351
    %v8534 = vunpack.c.h.b16 %v8351
    %v8535 = vunpack.c.l.b16 %v8352
    %v8536 = vunpack.c.h.b16 %v8352
    %v8537 = vunpack.c.l.b16 %v8353
    %v8538 = vunpack.c.h.b16 %v8353
    %v8539 = vunpack.c.l.b16 %v8354
    %v8540 = vunpack.c.h.b16 %v8354
    %v8541 = vunpack.c.l.b16 %v8355
    %v8542 = vunpack.c.h.b16 %v8355
    %v8543 = vunpack.c.l.b16 %v8356
    %v8544 = vunpack.c.h.b16 %v8356
    %v8545 = vunpack.c.l.b16 %v8357
    %v8546 = vunpack.c.h.b16 %v8357
    %v8547 = vunpack.c.l.b16 %v8358
    %v8548 = vunpack.c.h.b16 %v8358
    %v8549 = vunpack.c.l.b16 %v8359
    %v8550 = vunpack.c.h.b16 %v8359
    %v8551 = vunpack.c.l.b16 %v8360
    %v8552 = vunpack.c.h.b16 %v8360
    %v8553 = vunpack.c.l.b16 %v8361
    %v8554 = vunpack.c.h.b16 %v8361
    %v8555 = vunpack.c.l.b16 %v8362
    %v8556 = vunpack.c.h.b16 %v8362
    %v8557 = vunpack.c.l.b16 %v8363
    %v8558 = vunpack.c.h.b16 %v8363
    %v8559 = vunpack.c.l.b16 %v8364
    %v8560 = vunpack.c.h.b16 %v8364
    %v8561 = vunpack.c.l.b16 %v8365
    %v8562 = vunpack.c.h.b16 %v8365
    %v8563 = vunpack.c.l.b16 %v8366
    %v8564 = vunpack.c.h.b16 %v8366
    %v8565 = vunpack.c.l.b16 %v8367
    %v8566 = vunpack.c.h.b16 %v8367
    %v8567 = vunpack.c.l.b16 %v8368
    %v8568 = vunpack.c.h.b16 %v8368
    %v8569 = vunpack.c.l.b16 %v8369
    %v8570 = vunpack.c.h.b16 %v8369
    %v8571 = vunpack.c.l.b16 %v8370
    %v8572 = vunpack.c.h.b16 %v8370
    %v8573 = vunpack.c.l.b16 %v8371
    %v8574 = vunpack.c.h.b16 %v8371
    %v8575 = vunpack.c.l.b16 %v8372
    %v8576 = vunpack.c.h.b16 %v8372
    %v8577 = vunpack.c.l.b16 %v8373
    %v8578 = vunpack.c.h.b16 %v8373
    %v8579 = vunpack.c.l.b16 %v8374
    %v8580 = vunpack.c.h.b16 %v8374
    %v8581 = vunpack.c.l.b16 %v8375
    %v8582 = vunpack.c.h.b16 %v8375
    %v8583 = vunpack.c.l.b16 %v8376
    %v8584 = vunpack.c.h.b16 %v8376
    %v8585 = vunpack.c.l.b16 %v8377
    %v8586 = vunpack.c.h.b16 %v8377
    %v8587 = vunpack.c.l.b16 %v8378
    %v8588 = vunpack.c.h.b16 %v8378
    %v8589 = vunpack.c.l.b16 %v8379
    %v8590 = vunpack.c.h.b16 %v8379
    %v8591 = vunpack.c.l.b16 %v8380
    %v8592 = vunpack.c.h.b16 %v8380
    %v8593 = vunpack.c.l.b16 %v8381
    %v8594 = vunpack.c.h.b16 %v8381
    %v8595 = vunpack.c.l.b16 %v8382
    %v8596 = vunpack.c.h.b16 %v8382
    %v8597 = vpack.c.b16 %v8473, %v8469
    %v8598 = vpack.c.b16 %v8474, %v8470
    %v8599 = vpack.c.b16 %v8475, %v8471
    %v8600 = vpack.c.b16 %v8476, %v8472
    %v8601 = vpack.c.b16 %v8481, %v8477
    %v8602 = vpack.c.b16 %v8482, %v8478
    %v8603 = vpack.c.b16 %v8483, %v8479
    %v8604 = vpack.c.b16 %v8484, %v8480
    %v8605 = vpack.c.b16 %v8489, %v8485
    %v8606 = vpack.c.b16 %v8490, %v8486
    %v8607 = vpack.c.b16 %v8491, %v8487
    %v8608 = vpack.c.b16 %v8492, %v8488
    %v8609 = vpack.c.b16 %v8497, %v8493
    %v8610 = vpack.c.b16 %v8498, %v8494
    %v8611 = vpack.c.b16 %v8499, %v8495
    %v8612 = vpack.c.b16 %v8500, %v8496
    %v8613 = vpack.c.b16 %v8505, %v8501
    %v8614 = vpack.c.b16 %v8506, %v8502
    %v8615 = vpack.c.b16 %v8507, %v8503
    %v8616 = vpack.c.b16 %v8508, %v8504
    %v8617 = vpack.c.b16 %v8513, %v8509
    %v8618 = vpack.c.b16 %v8514, %v8510
    %v8619 = vpack.c.b16 %v8515, %v8511
    %v8620 = vpack.c.b16 %v8516, %v8512
    %v8621 = vpack.c.b16 %v8521, %v8517
    %v8622 = vpack.c.b16 %v8522, %v8518
    %v8623 = vpack.c.b16 %v8523, %v8519
    %v8624 = vpack.c.b16 %v8524, %v8520
    %v8625 = vpack.c.b16 %v8529, %v8525
    %v8626 = vpack.c.b16 %v8530, %v8526
    %v8627 = vpack.c.b16 %v8531, %v8527
    %v8628 = vpack.c.b16 %v8532, %v8528
    %v8629 = vpack.c.b16 %v8537, %v8533
    %v8630 = vpack.c.b16 %v8538, %v8534
    %v8631 = vpack.c.b16 %v8539, %v8535
    %v8632 = vpack.c.b16 %v8540, %v8536
    %v8633 = vpack.c.b16 %v8545, %v8541
    %v8634 = vpack.c.b16 %v8546, %v8542
    %v8635 = vpack.c.b16 %v8547, %v8543
    %v8636 = vpack.c.b16 %v8548, %v8544
    %v8637 = vpack.c.b16 %v8553, %v8549
    %v8638 = vpack.c.b16 %v8554, %v8550
    %v8639 = vpack.c.b16 %v8555, %v8551
    %v8640 = vpack.c.b16 %v8556, %v8552
    %v8641 = vpack.c.b16 %v8561, %v8557
    %v8642 = vpack.c.b16 %v8562, %v8558
    %v8643 = vpack.c.b16 %v8563, %v8559
    %v8644 = vpack.c.b16 %v8564, %v8560
    %v8645 = vpack.c.b16 %v8569, %v8565
    %v8646 = vpack.c.b16 %v8570, %v8566
    %v8647 = vpack.c.b16 %v8571, %v8567
    %v8648 = vpack.c.b16 %v8572, %v8568
    %v8649 = vpack.c.b16 %v8577, %v8573
    %v8650 = vpack.c.b16 %v8578, %v8574
    %v8651 = vpack.c.b16 %v8579, %v8575
    %v8652 = vpack.c.b16 %v8580, %v8576
    %v8653 = vpack.c.b16 %v8585, %v8581
    %v8654 = vpack.c.b16 %v8586, %v8582
    %v8655 = vpack.c.b16 %v8587, %v8583
    %v8656 = vpack.c.b16 %v8588, %v8584
    %v8657 = vpack.c.b16 %v8593, %v8589
    %v8658 = vpack.c.b16 %v8594, %v8590
    %v8659 = vpack.c.b16 %v8595, %v8591
    %v8660 = vpack.c.b16 %v8596, %v8592
    %8725 = vmatprep.subr.bf16.mxu0 %v8598
    %8726 = vmatpush1.bf16.msra.mxu0 %v8597
    %8727 = vmatprep.subr.bf16.mxu0 %v8602
    %8728 = vmatpush1.bf16.msra.mxu0 %v8601
    %8729 = vmatprep.subr.bf16.mxu0 %v8606
    %8730 = vmatpush1.bf16.msra.mxu0 %v8605
    %8731 = vmatprep.subr.bf16.mxu0 %v8610
    %8732 = vmatpush1.bf16.msra.mxu0 %v8609
    %8733 = vmatprep.subr.bf16.mxu0 %v8614
    %8734 = vmatpush1.bf16.msra.mxu0 %v8613
    %8735 = vmatprep.subr.bf16.mxu0 %v8618
    %8736 = vmatpush1.bf16.msra.mxu0 %v8617
    %8737 = vmatprep.subr.bf16.mxu0 %v8622
    %8738 = vmatpush1.bf16.msra.mxu0 %v8621
    %8739 = vmatprep.subr.bf16.mxu0 %v8626
    %8740 = vmatpush1.bf16.msra.mxu0 %v8625
    %8741 = vmatprep.subr.bf16.mxu0 %v8630
    %8742 = vmatpush1.bf16.msra.mxu0 %v8629
    %8743 = vmatprep.subr.bf16.mxu0 %v8634
    %8744 = vmatpush1.bf16.msra.mxu0 %v8633
    %8745 = vmatprep.subr.bf16.mxu0 %v8638
    %8746 = vmatpush1.bf16.msra.mxu0 %v8637
    %8747 = vmatprep.subr.bf16.mxu0 %v8642
    %8748 = vmatpush1.bf16.msra.mxu0 %v8641
    %8749 = vmatprep.subr.bf16.mxu0 %v8646
    %8750 = vmatpush1.bf16.msra.mxu0 %v8645
    %8751 = vmatprep.subr.bf16.mxu0 %v8650
    %8752 = vmatpush1.bf16.msra.mxu0 %v8649
    %8753 = vmatprep.subr.bf16.mxu0 %v8654
    %8754 = vmatpush1.bf16.msra.mxu0 %v8653
    %8755 = vmatprep.subr.bf16.mxu0 %v8658
    %8756 = vmatpush1.bf16.msra.mxu0 %v8657
    %8757 = vmatprep.mubr.bf16.mxu0 %v8308
    %8758 = vmatmul.mubr.bf16.gmra.mrb[0].mxu0 %v8307
    %v8759 = vpop.f32.mrb[0].mxu0
    %v8760 = vadd.f32 %v8388, %v8759
    %v8761 = vpop.f32.mrb[0].mxu0
    %v8762 = vadd.f32 %v8392, %v8761
    %v8763 = vpop.f32.mrb[0].mxu0
    %v8764 = vadd.f32 %v8388, %v8763
    %v8765 = vpop.f32.mrb[0].mxu0
    %v8766 = vadd.f32 %v8392, %v8765
    %8767 = vmatprep.mubr.bf16.mxu0 %v8310
    %8768 = vmatmul.mubr.bf16.gmra.mrb[0].mxu0 %v8309
    %v8769 = vpop.f32.mrb[0].mxu0
    %v8770 = vadd.f32 %v8388, %v8769
    %v8771 = vpop.f32.mrb[0].mxu0
    %v8772 = vadd.f32 %v8392, %v8771
    %v8773 = vpop.f32.mrb[0].mxu0
    %v8774 = vadd.f32 %v8388, %v8773
    %v8775 = vpop.f32.mrb[0].mxu0
    %v8776 = vadd.f32 %v8392, %v8775
    %8777 = vmatprep.mubr.bf16.mxu0 %v8312
    %8778 = vmatmul.mubr.bf16.gmra.mrb[0].mxu0 %v8311
    %v8779 = vpop.f32.mrb[0].mxu0
    %v8780 = vadd.f32 %v8388, %v8779
    %v8781 = vpop.f32.mrb[0].mxu0
    %v8782 = vadd.f32 %v8392, %v8781
    %v8783 = vpop.f32.mrb[0].mxu0
    %v8784 = vadd.f32 %v8388, %v8783
    %v8785 = vpop.f32.mrb[0].mxu0
    %v8786 = vadd.f32 %v8392, %v8785
    %8787 = vmatprep.mubr.bf16.mxu0 %v8314
    %8788 = vmatmul.mubr.bf16.gmra.mrb[0].mxu0 %v8313
    %v8789 = vpop.f32.mrb[0].mxu0
    %v8790 = vadd.f32 %v8388, %v8789
    %v8791 = vpop.f32.mrb[0].mxu0
    %v8792 = vadd.f32 %v8392, %v8791
    %v8793 = vpop.f32.mrb[0].mxu0
    %v8794 = vadd.f32 %v8388, %v8793
    %v8795 = vpop.f32.mrb[0].mxu0
    %v8796 = vadd.f32 %v8392, %v8795
    %8797 = vmatprep.mubr.bf16.mxu0 %v8316
    %8798 = vmatmul.mubr.bf16.gmra.mrb[0].mxu0 %v8315
    %v8799 = vpop.f32.mrb[0].mxu0
    %v8800 = vadd.f32 %v8388, %v8799
    %v8801 = vpop.f32.mrb[0].mxu0
    %v8802 = vadd.f32 %v8392, %v8801
    %v8803 = vpop.f32.mrb[0].mxu0
    %v8804 = vadd.f32 %v8388, %v8803
    %v8805 = vpop.f32.mrb[0].mxu0
    %v8806 = vadd.f32 %v8392, %v8805
    %8807 = vmatprep.mubr.bf16.mxu0 %v8318
    %8808 = vmatmul.mubr.bf16.gmra.mrb[0].mxu0 %v8317
    %v8809 = vpop.f32.mrb[0].mxu0
    %v8810 = vadd.f32 %v8388, %v8809
    %v8811 = vpop.f32.mrb[0].mxu0
    %v8812 = vadd.f32 %v8392, %v8811
    %v8813 = vpop.f32.mrb[0].mxu0
    %v8814 = vadd.f32 %v8388, %v8813
    %v8815 = vpop.f32.mrb[0].mxu0
    %v8816 = vadd.f32 %v8392, %v8815
    %8817 = vdwg.mxu0
    %8818 = vmatprep.subr.bf16.mxu0 %v8600
    %8819 = vmatpush1.bf16.msra.mxu0 %v8599
    %8820 = vmatprep.subr.bf16.mxu0 %v8604
    %8821 = vmatpush1.bf16.msra.mxu0 %v8603
    %8822 = vmatprep.subr.bf16.mxu0 %v8608
    %8823 = vmatpush1.bf16.msra.mxu0 %v8607
    %8824 = vmatprep.subr.bf16.mxu0 %v8612
    %8825 = vmatpush1.bf16.msra.mxu0 %v8611
    %8826 = vmatprep.subr.bf16.mxu0 %v8616
    %8827 = vmatpush1.bf16.msra.mxu0 %v8615
    %8828 = vmatprep.subr.bf16.mxu0 %v8620
    %8829 = vmatpush1.bf16.msra.mxu0 %v8619
    %8830 = vmatprep.subr.bf16.mxu0 %v8624
    %8831 = vmatpush1.bf16.msra.mxu0 %v8623
    %8832 = vmatprep.subr.bf16.mxu0 %v8628
    %8833 = vmatpush1.bf16.msra.mxu0 %v8627
    %8834 = vmatprep.subr.bf16.mxu0 %v8632
    %8835 = vmatpush1.bf16.msra.mxu0 %v8631
    %8836 = vmatprep.subr.bf16.mxu0 %v8636
    %8837 = vmatpush1.bf16.msra.mxu0 %v8635
    %8838 = vmatprep.subr.bf16.mxu0 %v8640
    %8839 = vmatpush1.bf16.msra.mxu0 %v8639
    %8840 = vmatprep.subr.bf16.mxu0 %v8644
    %8841 = vmatpush1.bf16.msra.mxu0 %v8643
    %8842 = vmatprep.subr.bf16.mxu0 %v8648
    %8843 = vmatpush1.bf16.msra.mxu0 %v8647
    %8844 = vmatprep.subr.bf16.mxu0 %v8652
    %8845 = vmatpush1.bf16.msra.mxu0 %v8651
    %8846 = vmatprep.subr.bf16.mxu0 %v8656
    %8847 = vmatpush1.bf16.msra.mxu0 %v8655
    %8848 = vmatprep.subr.bf16.mxu0 %v8660
    %8849 = vmatpush1.bf16.msra.mxu0 %v8659
    %8850 = vmatprep.mubr.bf16.mxu0 %v8308
    %8851 = vmatmul.mubr.bf16.gmra.mrb[0].mxu0 %v8307
    %v8852 = vpop.f32.mrb[0].mxu0
    %v8853 = vadd.f32 %v8396, %v8852
    %v8854 = vpop.f32.mrb[0].mxu0
    %v8855 = vadd.f32 %v8400, %v8854
    %v8856 = vpop.f32.mrb[0].mxu0
    %v8857 = vadd.f32 %v8396, %v8856
    %v8858 = vpop.f32.mrb[0].mxu0
    %v8859 = vadd.f32 %v8400, %v8858
    %8860 = vmatprep.mubr.bf16.mxu0 %v8310
    %8861 = vmatmul.mubr.bf16.gmra.mrb[0].mxu0 %v8309
    %v8862 = vpop.f32.mrb[0].mxu0
    %v8863 = vadd.f32 %v8396, %v8862
    %v8864 = vpop.f32.mrb[0].mxu0
    %v8865 = vadd.f32 %v8400, %v8864
    %v8866 = vpop.f32.mrb[0].mxu0
    %v8867 = vadd.f32 %v8396, %v8866
    %v8868 = vpop.f32.mrb[0].mxu0
    %v8869 = vadd.f32 %v8400, %v8868
    %8870 = vmatprep.mubr.bf16.mxu0 %v8312
    %8871 = vmatmul.mubr.bf16.gmra.mrb[0].mxu0 %v8311
    %v8872 = vpop.f32.mrb[0].mxu0
    %v8873 = vadd.f32 %v8396, %v8872
    %v8874 = vpop.f32.mrb[0].mxu0
    %v8875 = vadd.f32 %v8400, %v8874
    %v8876 = vpop.f32.mrb[0].mxu0
    %v8877 = vadd.f32 %v8396, %v8876
    %v8878 = vpop.f32.mrb[0].mxu0
    %v8879 = vadd.f32 %v8400, %v8878
    %8880 = vmatprep.mubr.bf16.mxu0 %v8314
    %8881 = vmatmul.mubr.bf16.gmra.mrb[0].mxu0 %v8313
    %v8882 = vpop.f32.mrb[0].mxu0
    %v8883 = vadd.f32 %v8396, %v8882
    %v8884 = vpop.f32.mrb[0].mxu0
    %v8885 = vadd.f32 %v8400, %v8884
    %v8886 = vpop.f32.mrb[0].mxu0
    %v8887 = vadd.f32 %v8396, %v8886
    %v8888 = vpop.f32.mrb[0].mxu0
    %v8889 = vadd.f32 %v8400, %v8888
    %8890 = vmatprep.mubr.bf16.mxu0 %v8316
    %8891 = vmatmul.mubr.bf16.gmra.mrb[0].mxu0 %v8315
    %v8892 = vpop.f32.mrb[0].mxu0
    %v8893 = vadd.f32 %v8396, %v8892
    %v8894 = vpop.f32.mrb[0].mxu0
    %v8895 = vadd.f32 %v8400, %v8894
    %v8896 = vpop.f32.mrb[0].mxu0
    %v8897 = vadd.f32 %v8396, %v8896
    %v8898 = vpop.f32.mrb[0].mxu0
    %v8899 = vadd.f32 %v8400, %v8898
    %8900 = vmatprep.mubr.bf16.mxu0 %v8318
    %8901 = vmatmul.mubr.bf16.gmra.mrb[0].mxu0 %v8317
    %v8902 = vpop.f32.mrb[0].mxu0
    %v8903 = vadd.f32 %v8396, %v8902
    %v8904 = vpop.f32.mrb[0].mxu0
    %v8905 = vadd.f32 %v8400, %v8904
    %v8906 = vpop.f32.mrb[0].mxu0
    %v8907 = vadd.f32 %v8396, %v8906
    %v8908 = vpop.f32.mrb[0].mxu0
    %v8909 = vadd.f32 %v8400, %v8908
    %8910 = vdwg.mxu0
    %v8911 = vmax.f32 %v8760, 0.0
    %v8912 = vmax.f32 %v8762, 0.0
    %v8913 = vmax.f32 %v8853, 0.0
    %v8914 = vmax.f32 %v8855, 0.0
    %v8915 = vmax.f32 %v8764, 0.0
    %v8916 = vmax.f32 %v8766, 0.0
    %v8917 = vmax.f32 %v8857, 0.0
    %v8918 = vmax.f32 %v8859, 0.0
    %v8919 = vmax.f32 %v8770, 0.0
    %v8920 = vmax.f32 %v8772, 0.0
    %v8921 = vmax.f32 %v8863, 0.0
    %v8922 = vmax.f32 %v8865, 0.0
    %v8923 = vmax.f32 %v8774, 0.0
    %v8924 = vmax.f32 %v8776, 0.0
    %v8925 = vmax.f32 %v8867, 0.0
    %v8926 = vmax.f32 %v8869, 0.0
    %v8927 = vmax.f32 %v8780, 0.0
    %v8928 = vmax.f32 %v8782, 0.0
    %v8929 = vmax.f32 %v8873, 0.0
    %v8930 = vmax.f32 %v8875, 0.0
    %v8931 = vmax.f32 %v8784, 0.0
    %v8932 = vmax.f32 %v8786, 0.0
    %v8933 = vmax.f32 %v8877, 0.0
    %v8934 = vmax.f32 %v8879, 0.0
    %v8935 = vmax.f32 %v8790, 0.0
    %v8936 = vmax.f32 %v8792, 0.0
    %v8937 = vmax.f32 %v8883, 0.0
    %v8938 = vmax.f32 %v8885, 0.0
    %v8939 = vmax.f32 %v8794, 0.0
    %v8940 = vmax.f32 %v8796, 0.0
    %v8941 = vmax.f32 %v8887, 0.0
    %v8942 = vmax.f32 %v8889, 0.0
    %v8943 = vmax.f32 %v8800, 0.0
    %v8944 = vmax.f32 %v8802, 0.0
    %v8945 = vmax.f32 %v8893, 0.0
    %v8946 = vmax.f32 %v8895, 0.0
    %v8947 = vmax.f32 %v8804, 0.0
    %v8948 = vmax.f32 %v8806, 0.0
    %v8949 = vmax.f32 %v8897, 0.0
    %v8950 = vmax.f32 %v8899, 0.0
    %v8951 = vmax.f32 %v8810, 0.0
    %v8952 = vmax.f32 %v8812, 0.0
    %v8953 = vmax.f32 %v8903, 0.0
    %v8954 = vmax.f32 %v8905, 0.0
    %v8955 = vmax.f32 %v8814, 0.0
    %v8956 = vmax.f32 %v8816, 0.0
    %v8957 = vmax.f32 %v8907, 0.0
    %v8958 = vmax.f32 %v8909, 0.0
    %8959 = vst [vmem:[#allocation4] sm:$0xff] %v8911
    %8960 = vst [vmem:[#allocation4 + $0x8] sm:$0xff] %v8915
    %8961 = vst [vmem:[#allocation4 + $0x10] sm:$0xff] %v8919
    %8962 = vst [vmem:[#allocation4 + $0x18] sm:$0xff] %v8923
    %8963 = vst [vmem:[#allocation4 + $0x20] sm:$0xff] %v8927
    %8964 = vst [vmem:[#allocation4 + $0x28] sm:$0xff] %v8931
    %8965 = vst [vmem:[#allocation4 + $0x30] sm:$0xff] %v8935
    %8966 = vst [vmem:[#allocation4 + $0x38] sm:$0xff] %v8939
    %8967 = vst [vmem:[#allocation4 + $0x40] sm:$0xff] %v8943
    %8968 = vst [vmem:[#allocation4 + $0x48] sm:$0xff] %v8947
    %8969 = vst [vmem:[#allocation4 + $0x50] sm:$0xff] %v8951
    %8970 = vst [vmem:[#allocation4 + $0x58] sm:$0xff] %v8955
    %8971 = vst [vmem:[#allocation4 + $0x60] sm:$0xff] %v8912
    %8972 = vst [vmem:[#allocation4 + $0x68] sm:$0xff] %v8916
    %8973 = vst [vmem:[#allocation4 + $0x70] sm:$0xff] %v8920
    %8974 = vst [vmem:[#allocation4 + $0x78] sm:$0xff] %v8924
    %8975 = vst [vmem:[#allocation4 + $0x80] sm:$0xff] %v8928
    %8976 = vst [vmem:[#allocation4 + $0x88] sm:$0xff] %v8932
    %8977 = vst [vmem:[#allocation4 + $0x90] sm:$0xff] %v8936
    %8978 = vst [vmem:[#allocation4 + $0x98] sm:$0xff] %v8940
    %8979 = vst [vmem:[#allocation4 + $0xa0] sm:$0xff] %v8944
    %8980 = vst [vmem:[#allocation4 + $0xa8] sm:$0xff] %v8948
    %8981 = vst [vmem:[#allocation4 + $0xb0] sm:$0xff] %v8952
    %8982 = vst [vmem:[#allocation4 + $0xb8] sm:$0xff] %v8956
    %8983 = vst [vmem:[#allocation4 + $0xc0] sm:$0xff] %v8913
    %8984 = vst [vmem:[#allocation4 + $0xc8] sm:$0xff] %v8917
    %8985 = vst [vmem:[#allocation4 + $0xd0] sm:$0xff] %v8921
    %8986 = vst [vmem:[#allocation4 + $0xd8] sm:$0xff] %v8925
    %8987 = vst [vmem:[#allocation4 + $0xe0] sm:$0xff] %v8929
    %8988 = vst [vmem:[#allocation4 + $0xe8] sm:$0xff] %v8933
    %8989 = vst [vmem:[#allocation4 + $0xf0] sm:$0xff] %v8937
    %8990 = vst [vmem:[#allocation4 + $0xf8] sm:$0xff] %v8941
    %8991 = vst [vmem:[#allocation4 + $0x100] sm:$0xff] %v8945
    %8992 = vst [vmem:[#allocation4 + $0x108] sm:$0xff] %v8949
    %8993 = vst [vmem:[#allocation4 + $0x110] sm:$0xff] %v8953
    %8994 = vst [vmem:[#allocation4 + $0x118] sm:$0xff] %v8957
    %8995 = vst [vmem:[#allocation4 + $0x120] sm:$0xff] %v8914
    %8996 = vst [vmem:[#allocation4 + $0x128] sm:$0xff] %v8918
    %8997 = vst [vmem:[#allocation4 + $0x130] sm:$0xff] %v8922
    %8998 = vst [vmem:[#allocation4 + $0x138] sm:$0xff] %v8926
    %8999 = vst [vmem:[#allocation4 + $0x140] sm:$0xff] %v8930
    %9000 = vst [vmem:[#allocation4 + $0x148] sm:$0xff] %v8934
    %9001 = vst [vmem:[#allocation4 + $0x150] sm:$0xff] %v8938
    %9002 = vst [vmem:[#allocation4 + $0x158] sm:$0xff] %v8942
    %9003 = vst [vmem:[#allocation4 + $0x160] sm:$0xff] %v8946
    %9004 = vst [vmem:[#allocation4 + $0x168] sm:$0xff] %v8950
    %9005 = vst [vmem:[#allocation4 + $0x170] sm:$0xff] %v8954
    %9006 = vst [vmem:[#allocation4 + $0x178] sm:$0xff] %v8958
    %v9007 = vld [vmem:[#allocation4] sm:$0xff]
    %v9008 = vld [vmem:[#allocation4 + $0x8] sm:$0xff]
    %v9009 = vld [vmem:[#allocation4 + $0x10] sm:$0xff]
    %v9010 = vld [vmem:[#allocation4 + $0x18] sm:$0xff]
    %v9011 = vld [vmem:[#allocation4 + $0x20] sm:$0xff]
    %v9012 = vld [vmem:[#allocation4 + $0x28] sm:$0xff]
    %v9013 = vld [vmem:[#allocation4 + $0x30] sm:$0xff]
    %v9014 = vld [vmem:[#allocation4 + $0x38] sm:$0xff]
    %v9015 = vld [vmem:[#allocation4 + $0x40] sm:$0xff]
    %v9016 = vld [vmem:[#allocation4 + $0x48] sm:$0xff]
    %v9017 = vld [vmem:[#allocation4 + $0x50] sm:$0xff]
    %v9018 = vld [vmem:[#allocation4 + $0x58] sm:$0xff]
    %v9019 = vld [vmem:[#allocation4 + $0x60] sm:$0xff]
    %v9020 = vld [vmem:[#allocation4 + $0x68] sm:$0xff]
    %v9021 = vld [vmem:[#allocation4 + $0x70] sm:$0xff]
    %v9022 = vld [vmem:[#allocation4 + $0x78] sm:$0xff]
    %v9023 = vld [vmem:[#allocation4 + $0x80] sm:$0xff]
    %v9024 = vld [vmem:[#allocation4 + $0x88] sm:$0xff]
    %v9025 = vld [vmem:[#allocation4 + $0x90] sm:$0xff]
    %v9026 = vld [vmem:[#allocation4 + $0x98] sm:$0xff]
    %v9027 = vld [vmem:[#allocation4 + $0xa0] sm:$0xff]
    %v9028 = vld [vmem:[#allocation4 + $0xa8] sm:$0xff]
    %v9029 = vld [vmem:[#allocation4 + $0xb0] sm:$0xff]
    %v9030 = vld [vmem:[#allocation4 + $0xb8] sm:$0xff]
    %v9031 = vld [vmem:[#allocation4 + $0xc0] sm:$0xff]
    %v9032 = vld [vmem:[#allocation4 + $0xc8] sm:$0xff]
    %v9033 = vld [vmem:[#allocation4 + $0xd0] sm:$0xff]
    %v9034 = vld [vmem:[#allocation4 + $0xd8] sm:$0xff]
    %v9035 = vld [vmem:[#allocation4 + $0xe0] sm:$0xff]
    %v9036 = vld [vmem:[#allocation4 + $0xe8] sm:$0xff]
    %v9037 = vld [vmem:[#allocation4 + $0xf0] sm:$0xff]
    %v9038 = vld [vmem:[#allocation4 + $0xf8] sm:$0xff]
    %v9039 = vld [vmem:[#allocation4 + $0x100] sm:$0xff]
    %v9040 = vld [vmem:[#allocation4 + $0x108] sm:$0xff]
    %v9041 = vld [vmem:[#allocation4 + $0x110] sm:$0xff]
    %v9042 = vld [vmem:[#allocation4 + $0x118] sm:$0xff]
    %v9043 = vld [vmem:[#allocation4 + $0x120] sm:$0xff]
    %v9044 = vld [vmem:[#allocation4 + $0x128] sm:$0xff]
    %v9045 = vld [vmem:[#allocation4 + $0x130] sm:$0xff]
    %v9046 = vld [vmem:[#allocation4 + $0x138] sm:$0xff]
    %v9047 = vld [vmem:[#allocation4 + $0x140] sm:$0xff]
    %v9048 = vld [vmem:[#allocation4 + $0x148] sm:$0xff]
    %v9049 = vld [vmem:[#allocation4 + $0x150] sm:$0xff]
    %v9050 = vld [vmem:[#allocation4 + $0x158] sm:$0xff]
    %v9051 = vld [vmem:[#allocation4 + $0x160] sm:$0xff]
    %v9052 = vld [vmem:[#allocation4 + $0x168] sm:$0xff]
    %v9053 = vld [vmem:[#allocation4 + $0x170] sm:$0xff]
    %v9054 = vld [vmem:[#allocation4 + $0x178] sm:$0xff]
    %v9055 = vpack.c.bf16 %v9008, %v9007
    %v9056 = vpack.c.bf16 %v9010, %v9009
    %v9057 = vpack.c.bf16 %v9012, %v9011
    %v9058 = vpack.c.bf16 %v9014, %v9013
    %v9059 = vpack.c.bf16 %v9016, %v9015
    %v9060 = vpack.c.bf16 %v9018, %v9017
    %v9061 = vpack.c.bf16 %v9020, %v9019
    %v9062 = vpack.c.bf16 %v9022, %v9021
    %v9063 = vpack.c.bf16 %v9024, %v9023
    %v9064 = vpack.c.bf16 %v9026, %v9025
    %v9065 = vpack.c.bf16 %v9028, %v9027
    %v9066 = vpack.c.bf16 %v9030, %v9029
    %v9067 = vpack.c.bf16 %v9032, %v9031
    %v9068 = vpack.c.bf16 %v9034, %v9033
    %v9069 = vpack.c.bf16 %v9036, %v9035
    %v9070 = vpack.c.bf16 %v9038, %v9037
    %v9071 = vpack.c.bf16 %v9040, %v9039
    %v9072 = vpack.c.bf16 %v9042, %v9041
    %v9073 = vpack.c.bf16 %v9044, %v9043
    %v9074 = vpack.c.bf16 %v9046, %v9045
    %v9075 = vpack.c.bf16 %v9048, %v9047
    %v9076 = vpack.c.bf16 %v9050, %v9049
    %v9077 = vpack.c.bf16 %v9052, %v9051
    %v9078 = vpack.c.bf16 %v9054, %v9053
    %v9079 = vld [vmem:[#allocation18] sm:$0xff]
    %v9080 = vld [vmem:[#allocation18 + $0x8] sm:$0xff]
    %v9081 = vld [vmem:[#allocation18 + $0x10] sm:$0xff]
    %v9082 = vld [vmem:[#allocation18 + $0x18] sm:$0xff]
    %v9083 = vld [vmem:[#allocation18 + $0x20] sm:$0xff]
    %v9084 = vld [vmem:[#allocation18 + $0x28] sm:$0xff]
    %v9085 = vld [vmem:[#allocation18 + $0x30] sm:$0xff]
    %v9086 = vld [vmem:[#allocation18 + $0x38] sm:$0xff]
    %v9087 = vld [vmem:[#allocation18 + $0x40] sm:$0xff]
    %v9088 = vld [vmem:[#allocation18 + $0x48] sm:$0xff]
    %v9089 = vld [vmem:[#allocation18 + $0x50] sm:$0xff]
    %v9090 = vld [vmem:[#allocation18 + $0x58] sm:$0xff]
    %v9091 = vld [vmem:[#allocation18 + $0x60] sm:$0xff]
    %v9092 = vld [vmem:[#allocation18 + $0x68] sm:$0xff]
    %v9093 = vld [vmem:[#allocation18 + $0x70] sm:$0xff]
    %v9094 = vld [vmem:[#allocation18 + $0x78] sm:$0xff]
    %v9095 = vld [vmem:[#allocation20] sm:$0x3]
    %v9097 = vlaneseq
    %v9098 = vshrl.u32 %v9097, 7
    %v9099 = vsub.s32 0, %v9098
    %v9100 = vrot.slane %v9095, %v9099
    %v9101 = vlaneseq
    %v9102 = vshrl.u32 %v9101, 7
    %v9103 = vsub.s32 1, %v9102
    %v9104 = vrot.slane %v9095, %v9103
    %v9123 = vunpack.c.l.b16 %v9079
    %v9124 = vunpack.c.h.b16 %v9079
    %v9125 = vunpack.c.l.b16 %v9080
    %v9126 = vunpack.c.h.b16 %v9080
    %v9127 = vunpack.c.l.b16 %v9081
    %v9128 = vunpack.c.h.b16 %v9081
    %v9129 = vunpack.c.l.b16 %v9082
    %v9130 = vunpack.c.h.b16 %v9082
    %v9131 = vunpack.c.l.b16 %v9083
    %v9132 = vunpack.c.h.b16 %v9083
    %v9133 = vunpack.c.l.b16 %v9084
    %v9134 = vunpack.c.h.b16 %v9084
    %v9135 = vunpack.c.l.b16 %v9085
    %v9136 = vunpack.c.h.b16 %v9085
    %v9137 = vunpack.c.l.b16 %v9086
    %v9138 = vunpack.c.h.b16 %v9086
    %v9139 = vunpack.c.l.b16 %v9087
    %v9140 = vunpack.c.h.b16 %v9087
    %v9141 = vunpack.c.l.b16 %v9088
    %v9142 = vunpack.c.h.b16 %v9088
    %v9143 = vunpack.c.l.b16 %v9089
    %v9144 = vunpack.c.h.b16 %v9089
    %v9145 = vunpack.c.l.b16 %v9090
    %v9146 = vunpack.c.h.b16 %v9090
    %v9147 = vunpack.c.l.b16 %v9091
    %v9148 = vunpack.c.h.b16 %v9091
    %v9149 = vunpack.c.l.b16 %v9092
    %v9150 = vunpack.c.h.b16 %v9092
    %v9151 = vunpack.c.l.b16 %v9093
    %v9152 = vunpack.c.h.b16 %v9093
    %v9153 = vunpack.c.l.b16 %v9094
    %v9154 = vunpack.c.h.b16 %v9094
    %v9155 = vpack.c.b16 %v9125, %v9123
    %v9156 = vpack.c.b16 %v9126, %v9124
    %v9157 = vpack.c.b16 %v9129, %v9127
    %v9158 = vpack.c.b16 %v9130, %v9128
    %v9159 = vpack.c.b16 %v9133, %v9131
    %v9160 = vpack.c.b16 %v9134, %v9132
    %v9161 = vpack.c.b16 %v9137, %v9135
    %v9162 = vpack.c.b16 %v9138, %v9136
    %v9163 = vpack.c.b16 %v9141, %v9139
    %v9164 = vpack.c.b16 %v9142, %v9140
    %v9165 = vpack.c.b16 %v9145, %v9143
    %v9166 = vpack.c.b16 %v9146, %v9144
    %v9167 = vpack.c.b16 %v9149, %v9147
    %v9168 = vpack.c.b16 %v9150, %v9148
    %v9169 = vpack.c.b16 %v9153, %v9151
    %v9170 = vpack.c.b16 %v9154, %v9152
    %9187 = vmatprep.subr.bf16.mxu0 %v9156
    %9188 = vmatpush1.bf16.msra.mxu0 %v9155
    %9189 = vmatprep.subr.bf16.mxu0 %v9158
    %9190 = vmatpush1.bf16.msra.mxu0 %v9157
    %9191 = vmatprep.subr.bf16.mxu0 %v9160
    %9192 = vmatpush1.bf16.msra.mxu0 %v9159
    %9193 = vmatprep.subr.bf16.mxu0 %v9162
    %9194 = vmatpush1.bf16.msra.mxu0 %v9161
    %9195 = vmatprep.subr.bf16.mxu0 %v9164
    %9196 = vmatpush1.bf16.msra.mxu0 %v9163
    %9197 = vmatprep.subr.bf16.mxu0 %v9166
    %9198 = vmatpush1.bf16.msra.mxu0 %v9165
    %9199 = vmatprep.subr.bf16.mxu0 %v9168
    %9200 = vmatpush1.bf16.msra.mxu0 %v9167
    %9201 = vmatprep.subr.bf16.mxu0 %v9170
    %9202 = vmatpush1.bf16.msra.mxu0 %v9169
    %9203 = vmatprep.subr.bf16.mxu0 0
    %9204 = vmatpush1.bf16.msra.mxu0 0
    %9205 = vmatprep.subr.bf16.mxu0 0
    %9206 = vmatpush1.bf16.msra.mxu0 0
    %9207 = vmatprep.subr.bf16.mxu0 0
    %9208 = vmatpush1.bf16.msra.mxu0 0
    %9209 = vmatprep.subr.bf16.mxu0 0
    %9210 = vmatpush1.bf16.msra.mxu0 0
    %9211 = vmatprep.subr.bf16.mxu0 0
    %9212 = vmatpush1.bf16.msra.mxu0 0
    %9213 = vmatprep.subr.bf16.mxu0 0
    %9214 = vmatpush1.bf16.msra.mxu0 0
    %9215 = vmatprep.subr.bf16.mxu0 0
    %9216 = vmatpush1.bf16.msra.mxu0 0
    %9217 = vmatprep.subr.bf16.mxu0 0
    %9218 = vmatpush1.bf16.msra.mxu0 0
    %9219 = vmatprep.mubr.bf16.mxu0 0
    %9220 = vmatmul.mubr.bf16.gmra.mrb[0].mxu0 %v9055
    %v9221 = vpop.f32.mrb[0].mxu0
    %v9222 = vadd.f32 %v9100, %v9221
    %v9223 = vpop.f32.mrb[0].mxu0
    %v9224 = vadd.f32 %v9104, %v9223
    %v9225 = vpop.f32.mrb[0].mxu0
    %v9226 = vadd.f32 %v9100, %v9225
    %v9227 = vpop.f32.mrb[0].mxu0
    %v9228 = vadd.f32 %v9104, %v9227
    %9229 = vmatprep.mubr.bf16.mxu0 0
    %9230 = vmatmul.mubr.bf16.gmra.mrb[0].mxu0 %v9056
    %v9231 = vpop.f32.mrb[0].mxu0
    %v9232 = vadd.f32 %v9100, %v9231
    %v9233 = vpop.f32.mrb[0].mxu0
    %v9234 = vadd.f32 %v9104, %v9233
    %v9235 = vpop.f32.mrb[0].mxu0
    %v9236 = vadd.f32 %v9100, %v9235
    %v9237 = vpop.f32.mrb[0].mxu0
    %v9238 = vadd.f32 %v9104, %v9237
    %9239 = vmatprep.mubr.bf16.mxu0 0
    %9240 = vmatmul.mubr.bf16.gmra.mrb[0].mxu0 %v9057
    %v9241 = vpop.f32.mrb[0].mxu0
    %v9242 = vadd.f32 %v9100, %v9241
    %v9243 = vpop.f32.mrb[0].mxu0
    %v9244 = vadd.f32 %v9104, %v9243
    %v9245 = vpop.f32.mrb[0].mxu0
    %v9246 = vadd.f32 %v9100, %v9245
    %v9247 = vpop.f32.mrb[0].mxu0
    %v9248 = vadd.f32 %v9104, %v9247
    %9249 = vmatprep.mubr.bf16.mxu0 0
    %9250 = vmatmul.mubr.bf16.gmra.mrb[0].mxu0 %v9058
    %v9251 = vpop.f32.mrb[0].mxu0
    %v9252 = vadd.f32 %v9100, %v9251
    %v9253 = vpop.f32.mrb[0].mxu0
    %v9254 = vadd.f32 %v9104, %v9253
    %v9255 = vpop.f32.mrb[0].mxu0
    %v9256 = vadd.f32 %v9100, %v9255
    %v9257 = vpop.f32.mrb[0].mxu0
    %v9258 = vadd.f32 %v9104, %v9257
    %9259 = vmatprep.mubr.bf16.mxu0 0
    %9260 = vmatmul.mubr.bf16.gmra.mrb[0].mxu0 %v9059
    %v9261 = vpop.f32.mrb[0].mxu0
    %v9262 = vadd.f32 %v9100, %v9261
    %v9263 = vpop.f32.mrb[0].mxu0
    %v9264 = vadd.f32 %v9104, %v9263
    %v9265 = vpop.f32.mrb[0].mxu0
    %v9266 = vadd.f32 %v9100, %v9265
    %v9267 = vpop.f32.mrb[0].mxu0
    %v9268 = vadd.f32 %v9104, %v9267
    %9269 = vmatprep.mubr.bf16.mxu0 0
    %9270 = vmatmul.mubr.bf16.gmra.mrb[0].mxu0 %v9060
    %v9271 = vpop.f32.mrb[0].mxu0
    %v9272 = vadd.f32 %v9100, %v9271
    %v9273 = vpop.f32.mrb[0].mxu0
    %v9274 = vadd.f32 %v9104, %v9273
    %v9275 = vpop.f32.mrb[0].mxu0
    %v9276 = vadd.f32 %v9100, %v9275
    %v9277 = vpop.f32.mrb[0].mxu0
    %v9278 = vadd.f32 %v9104, %v9277
    %9279 = vmatprep.mubr.bf16.mxu0 0
    %9280 = vmatmul.mubr.bf16.gmra.mrb[0].mxu0 %v9061
    %v9281 = vpop.f32.mrb[0].mxu0
    %v9282 = vadd.f32 %v9100, %v9281
    %v9283 = vpop.f32.mrb[0].mxu0
    %v9284 = vadd.f32 %v9104, %v9283
    %v9285 = vpop.f32.mrb[0].mxu0
    %v9286 = vadd.f32 %v9100, %v9285
    %v9287 = vpop.f32.mrb[0].mxu0
    %v9288 = vadd.f32 %v9104, %v9287
    %9289 = vmatprep.mubr.bf16.mxu0 0
    %9290 = vmatmul.mubr.bf16.gmra.mrb[0].mxu0 %v9062
    %v9291 = vpop.f32.mrb[0].mxu0
    %v9292 = vadd.f32 %v9100, %v9291
    %v9293 = vpop.f32.mrb[0].mxu0
    %v9294 = vadd.f32 %v9104, %v9293
    %v9295 = vpop.f32.mrb[0].mxu0
    %v9296 = vadd.f32 %v9100, %v9295
    %v9297 = vpop.f32.mrb[0].mxu0
    %v9298 = vadd.f32 %v9104, %v9297
    %9299 = vmatprep.mubr.bf16.mxu0 0
    %9300 = vmatmul.mubr.bf16.gmra.mrb[0].mxu0 %v9063
    %v9301 = vpop.f32.mrb[0].mxu0
    %v9302 = vadd.f32 %v9100, %v9301
    %v9303 = vpop.f32.mrb[0].mxu0
    %v9304 = vadd.f32 %v9104, %v9303
    %v9305 = vpop.f32.mrb[0].mxu0
    %v9306 = vadd.f32 %v9100, %v9305
    %v9307 = vpop.f32.mrb[0].mxu0
    %v9308 = vadd.f32 %v9104, %v9307
    %9309 = vmatprep.mubr.bf16.mxu0 0
    %9310 = vmatmul.mubr.bf16.gmra.mrb[0].mxu0 %v9064
    %v9311 = vpop.f32.mrb[0].mxu0
    %v9312 = vadd.f32 %v9100, %v9311
    %v9313 = vpop.f32.mrb[0].mxu0
    %v9314 = vadd.f32 %v9104, %v9313
    %v9315 = vpop.f32.mrb[0].mxu0
    %v9316 = vadd.f32 %v9100, %v9315
    %v9317 = vpop.f32.mrb[0].mxu0
    %v9318 = vadd.f32 %v9104, %v9317
    %9319 = vmatprep.mubr.bf16.mxu0 0
    %9320 = vmatmul.mubr.bf16.gmra.mrb[0].mxu0 %v9065
    %v9321 = vpop.f32.mrb[0].mxu0
    %v9322 = vadd.f32 %v9100, %v9321
    %v9323 = vpop.f32.mrb[0].mxu0
    %v9324 = vadd.f32 %v9104, %v9323
    %v9325 = vpop.f32.mrb[0].mxu0
    %v9326 = vadd.f32 %v9100, %v9325
    %v9327 = vpop.f32.mrb[0].mxu0
    %v9328 = vadd.f32 %v9104, %v9327
    %9329 = vmatprep.mubr.bf16.mxu0 0
    %9330 = vmatmul.mubr.bf16.gmra.mrb[0].mxu0 %v9066
    %v9331 = vpop.f32.mrb[0].mxu0
    %v9332 = vadd.f32 %v9100, %v9331
    %v9333 = vpop.f32.mrb[0].mxu0
    %v9334 = vadd.f32 %v9104, %v9333
    %v9335 = vpop.f32.mrb[0].mxu0
    %v9336 = vadd.f32 %v9100, %v9335
    %v9337 = vpop.f32.mrb[0].mxu0
    %v9338 = vadd.f32 %v9104, %v9337
    %9339 = vmatprep.mubr.bf16.mxu0 0
    %9340 = vmatmul.mubr.bf16.gmra.mrb[0].mxu0 %v9067
    %v9341 = vpop.f32.mrb[0].mxu0
    %v9342 = vadd.f32 %v9100, %v9341
    %v9343 = vpop.f32.mrb[0].mxu0
    %v9344 = vadd.f32 %v9104, %v9343
    %v9345 = vpop.f32.mrb[0].mxu0
    %v9346 = vadd.f32 %v9100, %v9345
    %v9347 = vpop.f32.mrb[0].mxu0
    %v9348 = vadd.f32 %v9104, %v9347
    %9349 = vmatprep.mubr.bf16.mxu0 0
    %9350 = vmatmul.mubr.bf16.gmra.mrb[0].mxu0 %v9068
    %v9351 = vpop.f32.mrb[0].mxu0
    %v9352 = vadd.f32 %v9100, %v9351
    %v9353 = vpop.f32.mrb[0].mxu0
    %v9354 = vadd.f32 %v9104, %v9353
    %v9355 = vpop.f32.mrb[0].mxu0
    %v9356 = vadd.f32 %v9100, %v9355
    %v9357 = vpop.f32.mrb[0].mxu0
    %v9358 = vadd.f32 %v9104, %v9357
    %9359 = vmatprep.mubr.bf16.mxu0 0
    %9360 = vmatmul.mubr.bf16.gmra.mrb[0].mxu0 %v9069
    %v9361 = vpop.f32.mrb[0].mxu0
    %v9362 = vadd.f32 %v9100, %v9361
    %v9363 = vpop.f32.mrb[0].mxu0
    %v9364 = vadd.f32 %v9104, %v9363
    %v9365 = vpop.f32.mrb[0].mxu0
    %v9366 = vadd.f32 %v9100, %v9365
    %v9367 = vpop.f32.mrb[0].mxu0
    %v9368 = vadd.f32 %v9104, %v9367
    %9369 = vmatprep.mubr.bf16.mxu0 0
    %9370 = vmatmul.mubr.bf16.gmra.mrb[0].mxu0 %v9070
    %v9371 = vpop.f32.mrb[0].mxu0
    %v9372 = vadd.f32 %v9100, %v9371
    %v9373 = vpop.f32.mrb[0].mxu0
    %v9374 = vadd.f32 %v9104, %v9373
    %v9375 = vpop.f32.mrb[0].mxu0
    %v9376 = vadd.f32 %v9100, %v9375
    %v9377 = vpop.f32.mrb[0].mxu0
    %v9378 = vadd.f32 %v9104, %v9377
    %9379 = vmatprep.mubr.bf16.mxu0 0
    %9380 = vmatmul.mubr.bf16.gmra.mrb[0].mxu0 %v9071
    %v9381 = vpop.f32.mrb[0].mxu0
    %v9382 = vadd.f32 %v9100, %v9381
    %v9383 = vpop.f32.mrb[0].mxu0
    %v9384 = vadd.f32 %v9104, %v9383
    %v9385 = vpop.f32.mrb[0].mxu0
    %v9386 = vadd.f32 %v9100, %v9385
    %v9387 = vpop.f32.mrb[0].mxu0
    %v9388 = vadd.f32 %v9104, %v9387
    %9389 = vmatprep.mubr.bf16.mxu0 0
    %9390 = vmatmul.mubr.bf16.gmra.mrb[0].mxu0 %v9072
    %v9391 = vpop.f32.mrb[0].mxu0
    %v9392 = vadd.f32 %v9100, %v9391
    %v9393 = vpop.f32.mrb[0].mxu0
    %v9394 = vadd.f32 %v9104, %v9393
    %v9395 = vpop.f32.mrb[0].mxu0
    %v9396 = vadd.f32 %v9100, %v9395
    %v9397 = vpop.f32.mrb[0].mxu0
    %v9398 = vadd.f32 %v9104, %v9397
    %9399 = vmatprep.mubr.bf16.mxu0 0
    %9400 = vmatmul.mubr.bf16.gmra.mrb[0].mxu0 %v9073
    %v9401 = vpop.f32.mrb[0].mxu0
    %v9402 = vadd.f32 %v9100, %v9401
    %v9403 = vpop.f32.mrb[0].mxu0
    %v9404 = vadd.f32 %v9104, %v9403
    %v9405 = vpop.f32.mrb[0].mxu0
    %v9406 = vadd.f32 %v9100, %v9405
    %v9407 = vpop.f32.mrb[0].mxu0
    %v9408 = vadd.f32 %v9104, %v9407
    %9409 = vmatprep.mubr.bf16.mxu0 0
    %9410 = vmatmul.mubr.bf16.gmra.mrb[0].mxu0 %v9074
    %v9411 = vpop.f32.mrb[0].mxu0
    %v9412 = vadd.f32 %v9100, %v9411
    %v9413 = vpop.f32.mrb[0].mxu0
    %v9414 = vadd.f32 %v9104, %v9413
    %v9415 = vpop.f32.mrb[0].mxu0
    %v9416 = vadd.f32 %v9100, %v9415
    %v9417 = vpop.f32.mrb[0].mxu0
    %v9418 = vadd.f32 %v9104, %v9417
    %9419 = vmatprep.mubr.bf16.mxu0 0
    %9420 = vmatmul.mubr.bf16.gmra.mrb[0].mxu0 %v9075
    %v9421 = vpop.f32.mrb[0].mxu0
    %v9422 = vadd.f32 %v9100, %v9421
    %v9423 = vpop.f32.mrb[0].mxu0
    %v9424 = vadd.f32 %v9104, %v9423
    %v9425 = vpop.f32.mrb[0].mxu0
    %v9426 = vadd.f32 %v9100, %v9425
    %v9427 = vpop.f32.mrb[0].mxu0
    %v9428 = vadd.f32 %v9104, %v9427
    %9429 = vmatprep.mubr.bf16.mxu0 0
    %9430 = vmatmul.mubr.bf16.gmra.mrb[0].mxu0 %v9076
    %v9431 = vpop.f32.mrb[0].mxu0
    %v9432 = vadd.f32 %v9100, %v9431
    %v9433 = vpop.f32.mrb[0].mxu0
    %v9434 = vadd.f32 %v9104, %v9433
    %v9435 = vpop.f32.mrb[0].mxu0
    %v9436 = vadd.f32 %v9100, %v9435
    %v9437 = vpop.f32.mrb[0].mxu0
    %v9438 = vadd.f32 %v9104, %v9437
    %9439 = vmatprep.mubr.bf16.mxu0 0
    %9440 = vmatmul.mubr.bf16.gmra.mrb[0].mxu0 %v9077
    %v9441 = vpop.f32.mrb[0].mxu0
    %v9442 = vadd.f32 %v9100, %v9441
    %v9443 = vpop.f32.mrb[0].mxu0
    %v9444 = vadd.f32 %v9104, %v9443
    %v9445 = vpop.f32.mrb[0].mxu0
    %v9446 = vadd.f32 %v9100, %v9445
    %v9447 = vpop.f32.mrb[0].mxu0
    %v9448 = vadd.f32 %v9104, %v9447
    %9449 = vmatprep.mubr.bf16.mxu0 0
    %9450 = vmatmul.mubr.bf16.gmra.mrb[0].mxu0 %v9078
    %v9451 = vpop.f32.mrb[0].mxu0
    %v9452 = vadd.f32 %v9100, %v9451
    %v9453 = vpop.f32.mrb[0].mxu0
    %v9454 = vadd.f32 %v9104, %v9453
    %v9455 = vpop.f32.mrb[0].mxu0
    %v9456 = vadd.f32 %v9100, %v9455
    %v9457 = vpop.f32.mrb[0].mxu0
    %v9458 = vadd.f32 %v9104, %v9457
    %9459 = vdwg.mxu0
    %v9460 = vmax.f32 %v9222, 0.0
    %v9461 = vmax.f32 %v9224, 0.0
    %v9462 = vmax.f32 %v9226, 0.0
    %v9463 = vmax.f32 %v9228, 0.0
    %v9464 = vmax.f32 %v9232, 0.0
    %v9465 = vmax.f32 %v9234, 0.0
    %v9466 = vmax.f32 %v9236, 0.0
    %v9467 = vmax.f32 %v9238, 0.0
    %v9468 = vmax.f32 %v9242, 0.0
    %v9469 = vmax.f32 %v9244, 0.0
    %v9470 = vmax.f32 %v9246, 0.0
    %v9471 = vmax.f32 %v9248, 0.0
    %v9472 = vmax.f32 %v9252, 0.0
    %v9473 = vmax.f32 %v9254, 0.0
    %v9474 = vmax.f32 %v9256, 0.0
    %v9475 = vmax.f32 %v9258, 0.0
    %v9476 = vmax.f32 %v9262, 0.0
    %v9477 = vmax.f32 %v9264, 0.0
    %v9478 = vmax.f32 %v9266, 0.0
    %v9479 = vmax.f32 %v9268, 0.0
    %v9480 = vmax.f32 %v9272, 0.0
    %v9481 = vmax.f32 %v9274, 0.0
    %v9482 = vmax.f32 %v9276, 0.0
    %v9483 = vmax.f32 %v9278, 0.0
    %v9484 = vmax.f32 %v9282, 0.0
    %v9485 = vmax.f32 %v9284, 0.0
    %v9486 = vmax.f32 %v9286, 0.0
    %v9487 = vmax.f32 %v9288, 0.0
    %v9488 = vmax.f32 %v9292, 0.0
    %v9489 = vmax.f32 %v9294, 0.0
    %v9490 = vmax.f32 %v9296, 0.0
    %v9491 = vmax.f32 %v9298, 0.0
    %v9492 = vmax.f32 %v9302, 0.0
    %v9493 = vmax.f32 %v9304, 0.0
    %v9494 = vmax.f32 %v9306, 0.0
    %v9495 = vmax.f32 %v9308, 0.0
    %v9496 = vmax.f32 %v9312, 0.0
    %v9497 = vmax.f32 %v9314, 0.0
    %v9498 = vmax.f32 %v9316, 0.0
    %v9499 = vmax.f32 %v9318, 0.0
    %v9500 = vmax.f32 %v9322, 0.0
    %v9501 = vmax.f32 %v9324, 0.0
    %v9502 = vmax.f32 %v9326, 0.0
    %v9503 = vmax.f32 %v9328, 0.0
    %v9504 = vmax.f32 %v9332, 0.0
    %v9505 = vmax.f32 %v9334, 0.0
    %v9506 = vmax.f32 %v9336, 0.0
    %v9507 = vmax.f32 %v9338, 0.0
    %v9508 = vmax.f32 %v9342, 0.0
    %v9509 = vmax.f32 %v9344, 0.0
    %v9510 = vmax.f32 %v9346, 0.0
    %v9511 = vmax.f32 %v9348, 0.0
    %v9512 = vmax.f32 %v9352, 0.0
    %v9513 = vmax.f32 %v9354, 0.0
    %v9514 = vmax.f32 %v9356, 0.0
    %v9515 = vmax.f32 %v9358, 0.0
    %v9516 = vmax.f32 %v9362, 0.0
    %v9517 = vmax.f32 %v9364, 0.0
    %v9518 = vmax.f32 %v9366, 0.0
    %v9519 = vmax.f32 %v9368, 0.0
    %v9520 = vmax.f32 %v9372, 0.0
    %v9521 = vmax.f32 %v9374, 0.0
    %v9522 = vmax.f32 %v9376, 0.0
    %v9523 = vmax.f32 %v9378, 0.0
    %v9524 = vmax.f32 %v9382, 0.0
    %v9525 = vmax.f32 %v9384, 0.0
    %v9526 = vmax.f32 %v9386, 0.0
    %v9527 = vmax.f32 %v9388, 0.0
    %v9528 = vmax.f32 %v9392, 0.0
    %v9529 = vmax.f32 %v9394, 0.0
    %v9530 = vmax.f32 %v9396, 0.0
    %v9531 = vmax.f32 %v9398, 0.0
    %v9532 = vmax.f32 %v9402, 0.0
    %v9533 = vmax.f32 %v9404, 0.0
    %v9534 = vmax.f32 %v9406, 0.0
    %v9535 = vmax.f32 %v9408, 0.0
    %v9536 = vmax.f32 %v9412, 0.0
    %v9537 = vmax.f32 %v9414, 0.0
    %v9538 = vmax.f32 %v9416, 0.0
    %v9539 = vmax.f32 %v9418, 0.0
    %v9540 = vmax.f32 %v9422, 0.0
    %v9541 = vmax.f32 %v9424, 0.0
    %v9542 = vmax.f32 %v9426, 0.0
    %v9543 = vmax.f32 %v9428, 0.0
    %v9544 = vmax.f32 %v9432, 0.0
    %v9545 = vmax.f32 %v9434, 0.0
    %v9546 = vmax.f32 %v9436, 0.0
    %v9547 = vmax.f32 %v9438, 0.0
    %v9548 = vmax.f32 %v9442, 0.0
    %v9549 = vmax.f32 %v9444, 0.0
    %v9550 = vmax.f32 %v9446, 0.0
    %v9551 = vmax.f32 %v9448, 0.0
    %v9552 = vmax.f32 %v9452, 0.0
    %v9553 = vmax.f32 %v9454, 0.0
    %v9554 = vmax.f32 %v9456, 0.0
    %v9555 = vmax.f32 %v9458, 0.0
    %9556 = vst [vmem:[#allocation5] sm:$0xff] %v9460
    %9557 = vst [vmem:[#allocation5 + $0x8] sm:$0xff] %v9461
    %9558 = vst [vmem:[#allocation5 + $0x10] sm:$0xff] %v9462
    %9559 = vst [vmem:[#allocation5 + $0x18] sm:$0xff] %v9463
    %9560 = vst [vmem:[#allocation5 + $0x20] sm:$0xff] %v9464
    %9561 = vst [vmem:[#allocation5 + $0x28] sm:$0xff] %v9465
    %9562 = vst [vmem:[#allocation5 + $0x30] sm:$0xff] %v9466
    %9563 = vst [vmem:[#allocation5 + $0x38] sm:$0xff] %v9467
    %9564 = vst [vmem:[#allocation5 + $0x40] sm:$0xff] %v9468
    %9565 = vst [vmem:[#allocation5 + $0x48] sm:$0xff] %v9469
    %9566 = vst [vmem:[#allocation5 + $0x50] sm:$0xff] %v9470
    %9567 = vst [vmem:[#allocation5 + $0x58] sm:$0xff] %v9471
    %9568 = vst [vmem:[#allocation5 + $0x60] sm:$0xff] %v9472
    %9569 = vst [vmem:[#allocation5 + $0x68] sm:$0xff] %v9473
    %9570 = vst [vmem:[#allocation5 + $0x70] sm:$0xff] %v9474
    %9571 = vst [vmem:[#allocation5 + $0x78] sm:$0xff] %v9475
    %9572 = vst [vmem:[#allocation5 + $0x80] sm:$0xff] %v9476
    %9573 = vst [vmem:[#allocation5 + $0x88] sm:$0xff] %v9477
    %9574 = vst [vmem:[#allocation5 + $0x90] sm:$0xff] %v9478
    %9575 = vst [vmem:[#allocation5 + $0x98] sm:$0xff] %v9479
    %9576 = vst [vmem:[#allocation5 + $0xa0] sm:$0xff] %v9480
    %9577 = vst [vmem:[#allocation5 + $0xa8] sm:$0xff] %v9481
    %9578 = vst [vmem:[#allocation5 + $0xb0] sm:$0xff] %v9482
    %9579 = vst [vmem:[#allocation5 + $0xb8] sm:$0xff] %v9483
    %9580 = vst [vmem:[#allocation5 + $0xc0] sm:$0xff] %v9484
    %9581 = vst [vmem:[#allocation5 + $0xc8] sm:$0xff] %v9485
    %9582 = vst [vmem:[#allocation5 + $0xd0] sm:$0xff] %v9486
    %9583 = vst [vmem:[#allocation5 + $0xd8] sm:$0xff] %v9487
    %9584 = vst [vmem:[#allocation5 + $0xe0] sm:$0xff] %v9488
    %9585 = vst [vmem:[#allocation5 + $0xe8] sm:$0xff] %v9489
    %9586 = vst [vmem:[#allocation5 + $0xf0] sm:$0xff] %v9490
    %9587 = vst [vmem:[#allocation5 + $0xf8] sm:$0xff] %v9491
    %9588 = vst [vmem:[#allocation5 + $0x100] sm:$0xff] %v9492
    %9589 = vst [vmem:[#allocation5 + $0x108] sm:$0xff] %v9493
    %9590 = vst [vmem:[#allocation5 + $0x110] sm:$0xff] %v9494
    %9591 = vst [vmem:[#allocation5 + $0x118] sm:$0xff] %v9495
    %9592 = vst [vmem:[#allocation5 + $0x120] sm:$0xff] %v9496
    %9593 = vst [vmem:[#allocation5 + $0x128] sm:$0xff] %v9497
    %9594 = vst [vmem:[#allocation5 + $0x130] sm:$0xff] %v9498
    %9595 = vst [vmem:[#allocation5 + $0x138] sm:$0xff] %v9499
    %9596 = vst [vmem:[#allocation5 + $0x140] sm:$0xff] %v9500
    %9597 = vst [vmem:[#allocation5 + $0x148] sm:$0xff] %v9501
    %9598 = vst [vmem:[#allocation5 + $0x150] sm:$0xff] %v9502
    %9599 = vst [vmem:[#allocation5 + $0x158] sm:$0xff] %v9503
    %9600 = vst [vmem:[#allocation5 + $0x160] sm:$0xff] %v9504
    %9601 = vst [vmem:[#allocation5 + $0x168] sm:$0xff] %v9505
    %9602 = vst [vmem:[#allocation5 + $0x170] sm:$0xff] %v9506
    %9603 = vst [vmem:[#allocation5 + $0x178] sm:$0xff] %v9507
    %9604 = vst [vmem:[#allocation5 + $0x180] sm:$0xff] %v9508
    %9605 = vst [vmem:[#allocation5 + $0x188] sm:$0xff] %v9509
    %9606 = vst [vmem:[#allocation5 + $0x190] sm:$0xff] %v9510
    %9607 = vst [vmem:[#allocation5 + $0x198] sm:$0xff] %v9511
    %9608 = vst [vmem:[#allocation5 + $0x1a0] sm:$0xff] %v9512
    %9609 = vst [vmem:[#allocation5 + $0x1a8] sm:$0xff] %v9513
    %9610 = vst [vmem:[#allocation5 + $0x1b0] sm:$0xff] %v9514
    %9611 = vst [vmem:[#allocation5 + $0x1b8] sm:$0xff] %v9515
    %9612 = vst [vmem:[#allocation5 + $0x1c0] sm:$0xff] %v9516
    %9613 = vst [vmem:[#allocation5 + $0x1c8] sm:$0xff] %v9517
    %9614 = vst [vmem:[#allocation5 + $0x1d0] sm:$0xff] %v9518
    %9615 = vst [vmem:[#allocation5 + $0x1d8] sm:$0xff] %v9519
    %9616 = vst [vmem:[#allocation5 + $0x1e0] sm:$0xff] %v9520
    %9617 = vst [vmem:[#allocation5 + $0x1e8] sm:$0xff] %v9521
    %9618 = vst [vmem:[#allocation5 + $0x1f0] sm:$0xff] %v9522
    %9619 = vst [vmem:[#allocation5 + $0x1f8] sm:$0xff] %v9523
    %9620 = vst [vmem:[#allocation5 + $0x200] sm:$0xff] %v9524
    %9621 = vst [vmem:[#allocation5 + $0x208] sm:$0xff] %v9525
    %9622 = vst [vmem:[#allocation5 + $0x210] sm:$0xff] %v9526
    %9623 = vst [vmem:[#allocation5 + $0x218] sm:$0xff] %v9527
    %9624 = vst [vmem:[#allocation5 + $0x220] sm:$0xff] %v9528
    %9625 = vst [vmem:[#allocation5 + $0x228] sm:$0xff] %v9529
    %9626 = vst [vmem:[#allocation5 + $0x230] sm:$0xff] %v9530
    %9627 = vst [vmem:[#allocation5 + $0x238] sm:$0xff] %v9531
    %9628 = vst [vmem:[#allocation5 + $0x240] sm:$0xff] %v9532
    %9629 = vst [vmem:[#allocation5 + $0x248] sm:$0xff] %v9533
    %9630 = vst [vmem:[#allocation5 + $0x250] sm:$0xff] %v9534
    %9631 = vst [vmem:[#allocation5 + $0x258] sm:$0xff] %v9535
    %9632 = vst [vmem:[#allocation5 + $0x260] sm:$0xff] %v9536
    %9633 = vst [vmem:[#allocation5 + $0x268] sm:$0xff] %v9537
    %9634 = vst [vmem:[#allocation5 + $0x270] sm:$0xff] %v9538
    %9635 = vst [vmem:[#allocation5 + $0x278] sm:$0xff] %v9539
    %9636 = vst [vmem:[#allocation5 + $0x280] sm:$0xff] %v9540
    %9637 = vst [vmem:[#allocation5 + $0x288] sm:$0xff] %v9541
    %9638 = vst [vmem:[#allocation5 + $0x290] sm:$0xff] %v9542
    %9639 = vst [vmem:[#allocation5 + $0x298] sm:$0xff] %v9543
    %9640 = vst [vmem:[#allocation5 + $0x2a0] sm:$0xff] %v9544
    %9641 = vst [vmem:[#allocation5 + $0x2a8] sm:$0xff] %v9545
    %9642 = vst [vmem:[#allocation5 + $0x2b0] sm:$0xff] %v9546
    %9643 = vst [vmem:[#allocation5 + $0x2b8] sm:$0xff] %v9547
    %9644 = vst [vmem:[#allocation5 + $0x2c0] sm:$0xff] %v9548
    %9645 = vst [vmem:[#allocation5 + $0x2c8] sm:$0xff] %v9549
    %9646 = vst [vmem:[#allocation5 + $0x2d0] sm:$0xff] %v9550
    %9647 = vst [vmem:[#allocation5 + $0x2d8] sm:$0xff] %v9551
    %9648 = vst [vmem:[#allocation5 + $0x2e0] sm:$0xff] %v9552
    %9649 = vst [vmem:[#allocation5 + $0x2e8] sm:$0xff] %v9553
    %9650 = vst [vmem:[#allocation5 + $0x2f0] sm:$0xff] %v9554
    %9651 = vst [vmem:[#allocation5 + $0x2f8] sm:$0xff] %v9555
    %v9652 = vld [vmem:[#allocation21] sm:$0xff]
    %v9653 = vld [vmem:[#allocation21 + $0x8] sm:$0xff]
    %v9654 = vld [vmem:[#allocation21 + $0x10] sm:$0xff]
    %v9655 = vld [vmem:[#allocation21 + $0x18] sm:$0xff]
    %v9656 = vld [vmem:[#allocation5] sm:$0xff]
    %v9657 = vld [vmem:[#allocation5 + $0x8] sm:$0xff]
    %v9658 = vld [vmem:[#allocation5 + $0x10] sm:$0xff]
    %v9659 = vld [vmem:[#allocation5 + $0x18] sm:$0xff]
    %v9660 = vld [vmem:[#allocation5 + $0x20] sm:$0xff]
    %v9661 = vld [vmem:[#allocation5 + $0x28] sm:$0xff]
    %v9662 = vld [vmem:[#allocation5 + $0x30] sm:$0xff]
    %v9663 = vld [vmem:[#allocation5 + $0x38] sm:$0xff]
    %v9664 = vld [vmem:[#allocation5 + $0x40] sm:$0xff]
    %v9665 = vld [vmem:[#allocation5 + $0x48] sm:$0xff]
    %v9666 = vld [vmem:[#allocation5 + $0x50] sm:$0xff]
    %v9667 = vld [vmem:[#allocation5 + $0x58] sm:$0xff]
    %v9668 = vld [vmem:[#allocation5 + $0x60] sm:$0xff]
    %v9669 = vld [vmem:[#allocation5 + $0x68] sm:$0xff]
    %v9670 = vld [vmem:[#allocation5 + $0x70] sm:$0xff]
    %v9671 = vld [vmem:[#allocation5 + $0x78] sm:$0xff]
    %v9672 = vld [vmem:[#allocation5 + $0x80] sm:$0xff]
    %v9673 = vld [vmem:[#allocation5 + $0x88] sm:$0xff]
    %v9674 = vld [vmem:[#allocation5 + $0x90] sm:$0xff]
    %v9675 = vld [vmem:[#allocation5 + $0x98] sm:$0xff]
    %v9676 = vld [vmem:[#allocation5 + $0xa0] sm:$0xff]
    %v9677 = vld [vmem:[#allocation5 + $0xa8] sm:$0xff]
    %v9678 = vld [vmem:[#allocation5 + $0xb0] sm:$0xff]
    %v9679 = vld [vmem:[#allocation5 + $0xb8] sm:$0xff]
    %v9680 = vld [vmem:[#allocation5 + $0xc0] sm:$0xff]
    %v9681 = vld [vmem:[#allocation5 + $0xc8] sm:$0xff]
    %v9682 = vld [vmem:[#allocation5 + $0xd0] sm:$0xff]
    %v9683 = vld [vmem:[#allocation5 + $0xd8] sm:$0xff]
    %v9684 = vld [vmem:[#allocation5 + $0xe0] sm:$0xff]
    %v9685 = vld [vmem:[#allocation5 + $0xe8] sm:$0xff]
    %v9686 = vld [vmem:[#allocation5 + $0xf0] sm:$0xff]
    %v9687 = vld [vmem:[#allocation5 + $0xf8] sm:$0xff]
    %v9688 = vld [vmem:[#allocation5 + $0x100] sm:$0xff]
    %v9689 = vld [vmem:[#allocation5 + $0x108] sm:$0xff]
    %v9690 = vld [vmem:[#allocation5 + $0x110] sm:$0xff]
    %v9691 = vld [vmem:[#allocation5 + $0x118] sm:$0xff]
    %v9692 = vld [vmem:[#allocation5 + $0x120] sm:$0xff]
    %v9693 = vld [vmem:[#allocation5 + $0x128] sm:$0xff]
    %v9694 = vld [vmem:[#allocation5 + $0x130] sm:$0xff]
    %v9695 = vld [vmem:[#allocation5 + $0x138] sm:$0xff]
    %v9696 = vld [vmem:[#allocation5 + $0x140] sm:$0xff]
    %v9697 = vld [vmem:[#allocation5 + $0x148] sm:$0xff]
    %v9698 = vld [vmem:[#allocation5 + $0x150] sm:$0xff]
    %v9699 = vld [vmem:[#allocation5 + $0x158] sm:$0xff]
    %v9700 = vld [vmem:[#allocation5 + $0x160] sm:$0xff]
    %v9701 = vld [vmem:[#allocation5 + $0x168] sm:$0xff]
    %v9702 = vld [vmem:[#allocation5 + $0x170] sm:$0xff]
    %v9703 = vld [vmem:[#allocation5 + $0x178] sm:$0xff]
    %v9704 = vld [vmem:[#allocation5 + $0x180] sm:$0xff]
    %v9705 = vld [vmem:[#allocation5 + $0x188] sm:$0xff]
    %v9706 = vld [vmem:[#allocation5 + $0x190] sm:$0xff]
    %v9707 = vld [vmem:[#allocation5 + $0x198] sm:$0xff]
    %v9708 = vld [vmem:[#allocation5 + $0x1a0] sm:$0xff]
    %v9709 = vld [vmem:[#allocation5 + $0x1a8] sm:$0xff]
    %v9710 = vld [vmem:[#allocation5 + $0x1b0] sm:$0xff]
    %v9711 = vld [vmem:[#allocation5 + $0x1b8] sm:$0xff]
    %v9712 = vld [vmem:[#allocation5 + $0x1c0] sm:$0xff]
    %v9713 = vld [vmem:[#allocation5 + $0x1c8] sm:$0xff]
    %v9714 = vld [vmem:[#allocation5 + $0x1d0] sm:$0xff]
    %v9715 = vld [vmem:[#allocation5 + $0x1d8] sm:$0xff]
    %v9716 = vld [vmem:[#allocation5 + $0x1e0] sm:$0xff]
    %v9717 = vld [vmem:[#allocation5 + $0x1e8] sm:$0xff]
    %v9718 = vld [vmem:[#allocation5 + $0x1f0] sm:$0xff]
    %v9719 = vld [vmem:[#allocation5 + $0x1f8] sm:$0xff]
    %v9720 = vld [vmem:[#allocation5 + $0x200] sm:$0xff]
    %v9721 = vld [vmem:[#allocation5 + $0x208] sm:$0xff]
    %v9722 = vld [vmem:[#allocation5 + $0x210] sm:$0xff]
    %v9723 = vld [vmem:[#allocation5 + $0x218] sm:$0xff]
    %v9724 = vld [vmem:[#allocation5 + $0x220] sm:$0xff]
    %v9725 = vld [vmem:[#allocation5 + $0x228] sm:$0xff]
    %v9726 = vld [vmem:[#allocation5 + $0x230] sm:$0xff]
    %v9727 = vld [vmem:[#allocation5 + $0x238] sm:$0xff]
    %v9728 = vld [vmem:[#allocation5 + $0x240] sm:$0xff]
    %v9729 = vld [vmem:[#allocation5 + $0x248] sm:$0xff]
    %v9730 = vld [vmem:[#allocation5 + $0x250] sm:$0xff]
    %v9731 = vld [vmem:[#allocation5 + $0x258] sm:$0xff]
    %v9732 = vld [vmem:[#allocation5 + $0x260] sm:$0xff]
    %v9733 = vld [vmem:[#allocation5 + $0x268] sm:$0xff]
    %v9734 = vld [vmem:[#allocation5 + $0x270] sm:$0xff]
    %v9735 = vld [vmem:[#allocation5 + $0x278] sm:$0xff]
    %v9736 = vld [vmem:[#allocation5 + $0x280] sm:$0xff]
    %v9737 = vld [vmem:[#allocation5 + $0x288] sm:$0xff]
    %v9738 = vld [vmem:[#allocation5 + $0x290] sm:$0xff]
    %v9739 = vld [vmem:[#allocation5 + $0x298] sm:$0xff]
    %v9740 = vld [vmem:[#allocation5 + $0x2a0] sm:$0xff]
    %v9741 = vld [vmem:[#allocation5 + $0x2a8] sm:$0xff]
    %v9742 = vld [vmem:[#allocation5 + $0x2b0] sm:$0xff]
    %v9743 = vld [vmem:[#allocation5 + $0x2b8] sm:$0xff]
    %v9744 = vld [vmem:[#allocation5 + $0x2c0] sm:$0xff]
    %v9745 = vld [vmem:[#allocation5 + $0x2c8] sm:$0xff]
    %v9746 = vld [vmem:[#allocation5 + $0x2d0] sm:$0xff]
    %v9747 = vld [vmem:[#allocation5 + $0x2d8] sm:$0xff]
    %v9748 = vld [vmem:[#allocation5 + $0x2e0] sm:$0xff]
    %v9749 = vld [vmem:[#allocation5 + $0x2e8] sm:$0xff]
    %v9750 = vld [vmem:[#allocation5 + $0x2f0] sm:$0xff]
    %v9751 = vld [vmem:[#allocation5 + $0x2f8] sm:$0xff]
    %v9752 = vld [vmem:[#allocation6] sm:$0x1]
    %v9754 = vlaneseq
    %v9755 = vshrl.u32 %v9754, 7
    %v9756 = vsub.s32 0, %v9755
    %v9757 = vrot.slane %v9752, %v9756
    %9758 = vset.pattern.permute.xlu0 0
    %9759 = vperm.xlu0 %9758, %v9757
    %v9760 = vpop.permute.xlu0 %9759
    %9762 = vmatprep.subr.mxu0 %v9657
    %9763 = vmatpush1.xpose.msra.mxu0 %v9656
    %9764 = vmatprep.subr.mxu0 %v9659
    %9765 = vmatpush1.xpose.msra.mxu0 %v9658
    %9766 = vmatprep.subr.mxu0 %v9661
    %9767 = vmatpush1.xpose.msra.mxu0 %v9660
    %9768 = vmatprep.subr.mxu0 %v9663
    %9769 = vmatpush1.xpose.msra.mxu0 %v9662
    %9770 = vmatprep.subr.mxu0 %v9665
    %9771 = vmatpush1.xpose.msra.mxu0 %v9664
    %9772 = vmatprep.subr.mxu0 %v9667
    %9773 = vmatpush1.xpose.msra.mxu0 %v9666
    %9774 = vmatprep.subr.mxu0 %v9669
    %9775 = vmatpush1.xpose.msra.mxu0 %v9668
    %9776 = vmatprep.subr.mxu0 %v9671
    %9777 = vmatpush1.xpose.msra.mxu0 %v9670
    %9778 = vmatprep.subr.mxu0 %v9673
    %9779 = vmatpush1.xpose.msra.mxu0 %v9672
    %9780 = vmatprep.subr.mxu0 %v9675
    %9781 = vmatpush1.xpose.msra.mxu0 %v9674
    %9782 = vmatprep.subr.mxu0 %v9677
    %9783 = vmatpush1.xpose.msra.mxu0 %v9676
    %9784 = vmatprep.subr.mxu0 %v9679
    %9785 = vmatpush1.xpose.msra.mxu0 %v9678
    %9786 = vmatprep.subr.mxu0 %v9681
    %9787 = vmatpush1.xpose.msra.mxu0 %v9680
    %9788 = vmatprep.subr.mxu0 %v9683
    %9789 = vmatpush1.xpose.msra.mxu0 %v9682
    %9790 = vmatprep.subr.mxu0 %v9685
    %9791 = vmatpush1.xpose.msra.mxu0 %v9684
    %9792 = vmatprep.subr.mxu0 %v9687
    %9793 = vmatpush1.xpose.msra.mxu0 %v9686
    %9794 = vmatprep.subr.mxu0 %v9689
    %9795 = vmatpush1.xpose.msra.mxu0 %v9688
    %9796 = vmatprep.subr.mxu0 %v9691
    %9797 = vmatpush1.xpose.msra.mxu0 %v9690
    %9798 = vmatprep.subr.mxu0 %v9693
    %9799 = vmatpush1.xpose.msra.mxu0 %v9692
    %9800 = vmatprep.subr.mxu0 %v9695
    %9801 = vmatpush1.xpose.msra.mxu0 %v9694
    %9802 = vmatprep.subr.mxu0 %v9697
    %9803 = vmatpush1.xpose.msra.mxu0 %v9696
    %9804 = vmatprep.subr.mxu0 %v9699
    %9805 = vmatpush1.xpose.msra.mxu0 %v9698
    %9806 = vmatprep.subr.mxu0 %v9701
    %9807 = vmatpush1.xpose.msra.mxu0 %v9700
    %9808 = vmatprep.subr.mxu0 %v9703
    %9809 = vmatpush1.xpose.msra.mxu0 %v9702
    %9810 = vmatprep.subr.mxu0 %v9705
    %9811 = vmatpush1.xpose.msra.mxu0 %v9704
    %9812 = vmatprep.subr.mxu0 %v9707
    %9813 = vmatpush1.xpose.msra.mxu0 %v9706
    %9814 = vmatprep.subr.mxu0 %v9709
    %9815 = vmatpush1.xpose.msra.mxu0 %v9708
    %9816 = vmatprep.subr.mxu0 %v9711
    %9817 = vmatpush1.xpose.msra.mxu0 %v9710
    %9818 = vmatprep.subr.mxu0 %v9713
    %9819 = vmatpush1.xpose.msra.mxu0 %v9712
    %9820 = vmatprep.subr.mxu0 %v9715
    %9821 = vmatpush1.xpose.msra.mxu0 %v9714
    %9822 = vmatprep.subr.mxu0 %v9717
    %9823 = vmatpush1.xpose.msra.mxu0 %v9716
    %9824 = vmatprep.subr.mxu0 %v9719
    %9825 = vmatpush1.xpose.msra.mxu0 %v9718
    %9826 = vmatprep.mubr.f32.mxu0 %v9653
    %9827 = vmatmul.mubr.f32.gmra.mrb[0].mxu0 %v9652
    %v9828 = vpop.f32.mrb[0].mxu0
    %v9829 = vadd.f32 %v9760, %v9828
    %v9830 = vpop.f32.mrb[0].mxu0
    %v9831 = vadd.f32 %v9760, %v9830
    %9832 = vmatprep.mubr.f32.mxu0 %v9655
    %9833 = vmatmul.mubr.f32.gmra.mrb[0].mxu0 %v9654
    %v9834 = vpop.f32.mrb[0].mxu0
    %v9835 = vadd.f32 %v9760, %v9834
    %v9836 = vpop.f32.mrb[0].mxu0
    %v9837 = vadd.f32 %v9760, %v9836
    %9838 = vdwg.mxu0
    %9839 = vmatprep.subr.mxu0 %v9721
    %9840 = vmatpush1.xpose.msra.mxu0 %v9720
    %9841 = vmatprep.subr.mxu0 %v9723
    %9842 = vmatpush1.xpose.msra.mxu0 %v9722
    %9843 = vmatprep.subr.mxu0 %v9725
    %9844 = vmatpush1.xpose.msra.mxu0 %v9724
    %9845 = vmatprep.subr.mxu0 %v9727
    %9846 = vmatpush1.xpose.msra.mxu0 %v9726
    %9847 = vmatprep.subr.mxu0 %v9729
    %9848 = vmatpush1.xpose.msra.mxu0 %v9728
    %9849 = vmatprep.subr.mxu0 %v9731
    %9850 = vmatpush1.xpose.msra.mxu0 %v9730
    %9851 = vmatprep.subr.mxu0 %v9733
    %9852 = vmatpush1.xpose.msra.mxu0 %v9732
    %9853 = vmatprep.subr.mxu0 %v9735
    %9854 = vmatpush1.xpose.msra.mxu0 %v9734
    %9855 = vmatprep.subr.mxu0 %v9737
    %9856 = vmatpush1.xpose.msra.mxu0 %v9736
    %9857 = vmatprep.subr.mxu0 %v9739
    %9858 = vmatpush1.xpose.msra.mxu0 %v9738
    %9859 = vmatprep.subr.mxu0 %v9741
    %9860 = vmatpush1.xpose.msra.mxu0 %v9740
    %9861 = vmatprep.subr.mxu0 %v9743
    %9862 = vmatpush1.xpose.msra.mxu0 %v9742
    %9863 = vmatprep.subr.mxu0 %v9745
    %9864 = vmatpush1.xpose.msra.mxu0 %v9744
    %9865 = vmatprep.subr.mxu0 %v9747
    %9866 = vmatpush1.xpose.msra.mxu0 %v9746
    %9867 = vmatprep.subr.mxu0 %v9749
    %9868 = vmatpush1.xpose.msra.mxu0 %v9748
    %9869 = vmatprep.subr.mxu0 %v9751
    %9870 = vmatpush1.xpose.msra.mxu0 %v9750
    %9871 = vmatprep.subr.mxu0 0.0
    %9872 = vmatpush1.xpose.msra.mxu0 0.0
    %9873 = vmatprep.subr.mxu0 0.0
    %9874 = vmatpush1.xpose.msra.mxu0 0.0
    %9875 = vmatprep.subr.mxu0 0.0
    %9876 = vmatpush1.xpose.msra.mxu0 0.0
    %9877 = vmatprep.subr.mxu0 0.0
    %9878 = vmatpush1.xpose.msra.mxu0 0.0
    %9879 = vmatprep.subr.mxu0 0.0
    %9880 = vmatpush1.xpose.msra.mxu0 0.0
    %9881 = vmatprep.subr.mxu0 0.0
    %9882 = vmatpush1.xpose.msra.mxu0 0.0
    %9883 = vmatprep.subr.mxu0 0.0
    %9884 = vmatpush1.xpose.msra.mxu0 0.0
    %9885 = vmatprep.subr.mxu0 0.0
    %9886 = vmatpush1.xpose.msra.mxu0 0.0
    %9887 = vmatprep.subr.mxu0 0.0
    %9888 = vmatpush1.xpose.msra.mxu0 0.0
    %9889 = vmatprep.subr.mxu0 0.0
    %9890 = vmatpush1.xpose.msra.mxu0 0.0
    %9891 = vmatprep.subr.mxu0 0.0
    %9892 = vmatpush1.xpose.msra.mxu0 0.0
    %9893 = vmatprep.subr.mxu0 0.0
    %9894 = vmatpush1.xpose.msra.mxu0 0.0
    %9895 = vmatprep.subr.mxu0 0.0
    %9896 = vmatpush1.xpose.msra.mxu0 0.0
    %9897 = vmatprep.subr.mxu0 0.0
    %9898 = vmatpush1.xpose.msra.mxu0 0.0
    %9899 = vmatprep.subr.mxu0 0.0
    %9900 = vmatpush1.xpose.msra.mxu0 0.0
    %9901 = vmatprep.subr.mxu0 0.0
    %9902 = vmatpush1.xpose.msra.mxu0 0.0
    %9903 = vmatprep.mubr.f32.mxu0 %v9653
    %9904 = vmatmul.mubr.f32.gmra.mrb[0].mxu0 %v9652
    %v9905 = vpop.f32.mrb[0].mxu0
    %v9906 = vadd.f32 %v9760, %v9905
    %v9907 = vpop.f32.mrb[0].mxu0
    %9908 = vmatprep.mubr.f32.mxu0 %v9655
    %9909 = vmatmul.mubr.f32.gmra.mrb[0].mxu0 %v9654
    %v9910 = vpop.f32.mrb[0].mxu0
    %v9911 = vadd.f32 %v9760, %v9910
    %v9912 = vpop.f32.mrb[0].mxu0
    %9913 = vdwg.mxu0
    %v9914 = vtanh.pop %v9829
    %v9915 = vtanh.pop %v9831
    %v9916 = vtanh.pop %v9906
    %v9917 = vtanh.pop %v9835
    %v9918 = vtanh.pop %v9837
    %v9919 = vtanh.pop %v9911
    %9920 = vst [vmem:[%s11] sm:$0xff] %v9914
    %9921 = vst [vmem:[%s11 + $0x8] sm:$0xff] %v9915
    %9922 = vst [vmem:[%s11 + $0x10] sm:$0xff] %v9916
    %9923 = vst [vmem:[%s11 + $0x18] sm:$0xff] %v9917
    %9924 = vst [vmem:[%s11 + $0x20] sm:$0xff] %v9918
    %9925 = vst [vmem:[%s11 + $0x28] sm:$0xff] %v9919
    // Predicated region
    $region86: #{generator_forward.1} parent=1 // pred_check
      _
    $region87: #{generator_forward.1} parent=1 // pred_check_branch
      %9927 = sbr.rel (0) target = $region89
    $region88: #{generator_forward.1} parent=1 // pred_region
      _
    $region89: #{generator_forward.1} parent=1 // pred_fallthru
      _
    // Predicated region
    $region90: #{generator_forward.1} parent=1 // pred_check
      _
    $region91: #{generator_forward.1} parent=1 // pred_check_branch
      %9929 = sbr.rel (0) target = $region93
    $region92: #{generator_forward.1} parent=1 // pred_region
      _
    $region93: #{generator_forward.1} parent=1 // pred_fallthru
      _
    %9930 = vsyncpa [#allocation8], 1
    %9931 = vsyncpa [#allocation10], 1
    %9932 = vsyncpa [#allocation13], 1
    %9933 = vsyncpa [#allocation16], 1
    %9934 = vsyncpa [#allocation19], 1
    %9935 = vsyncpa [#allocation22], 1

</llo_original>
